<compile_context>
chip_gen: v7x
topology: tpu7x:2x2x1
jax: 0.10.0
libtpu: 0.0.40
codegen_flags: <defaults>
</compile_context>

<pallas_src>
import numpy as np
import jax
import jax.numpy as jnp
from jax.experimental import pallas as pl
from jax.experimental.pallas import tpu as pltpu

CIN = 4                       # inplanes
COUT = 8                      # outplanes
H = W = 16                    # input spatial size
HO, WO = H // 2, W // 2       # output spatial size after AvgPool2d(2,2)
GROUP = 8                     # images packed along the lane axis (GROUP*W = 128 lanes)
GW = GROUP * W                # 128
MAX_GROUPS_PER_STEP = 4       # up to 32 images per grid step


# ---------------------------------------------------------------------------
# Kernel: each grid step = up to MAX_GROUPS_PER_STEP lane-groups of 8 images.
# ---------------------------------------------------------------------------
def basic_block_kernel(x_ref, w1_ref, b1_ref, w2_ref, ws_ref,
                       prow_ref, pcol_ref, bias_ref, out_ref):
  f32 = jnp.float32
  gps = x_ref.shape[0]                  # groups per step (static at trace time)
  half_rows = (COUT // 2) * HO          # 32

  # Per-image (16-lane group) column-edge masks, hoisted out of all loops.
  lane = jax.lax.broadcasted_iota(jnp.int32, (H, GW), 1)
  first_col = (lane % W) == 0
  last_col = (lane % W) == (W - 1)

  def make_taps(s):
    """All nine 3x3 taps of a reflection-padded channel slab s: (H, GROUP*W)."""
    # Row (sublane) shifts; reflection maps row -1 -> 1 and row H -> H-2.
    r_up = jnp.concatenate([s[1:2, :], s[:H - 1, :]], axis=0)       # src row y-1
    r_dn = jnp.concatenate([s[1:, :], s[H - 2:H - 1, :]], axis=0)   # src row y+1
    taps = []
    for r in (r_up, s, r_dn):                                       # dy = 0, 1, 2
      left = jnp.concatenate([r[:, GW - 1:], r[:, :GW - 1]], axis=1)   # src col x-1 (wraps)
      right = jnp.concatenate([r[:, 1:], r[:, :1]], axis=1)            # src col x+1 (wraps)
      taps.append(jnp.where(first_col, right, left))   # dx = 0 (reflect col -1 -> 1)
      taps.append(r)                                   # dx = 1
      taps.append(jnp.where(last_col, left, right))    # dx = 2 (reflect col W -> W-2)
    return taps

  def group_body(g):
    # ---- conv branch, layer 1: ReLU -> reflection pad -> conv3x3 (CIN -> CIN)
    acc1 = [None] * CIN
    for ci in range(CIN):
      t9 = make_taps(jnp.maximum(x_ref[g, ci], 0.0))
      for co in range(CIN):
        base = (co * CIN + ci) * 9
        for t in range(9):
          term = t9[t] * w1_ref[base + t:base + t + 1, :]
          acc1[co] = term if acc1[co] is None else acc1[co] + term
    h1 = [jnp.maximum(acc1[co] + b1_ref[co:co + 1, :], 0.0) for co in range(CIN)]

    # ---- shortcut 1x1 conv on raw x, folded in ahead of the shared avg pool
    # (conv1x1 and AvgPool2d commute, biases are added after pooling).
    acc2 = [None] * COUT
    for ci in range(CIN):
      xs = x_ref[g, ci]
      for co in range(COUT):
        term = xs * ws_ref[co * CIN + ci:co * CIN + ci + 1, :]
        acc2[co] = term if acc2[co] is None else acc2[co] + term

    # ---- conv branch, layer 2: ReLU -> reflection pad -> conv3x3 (CIN -> COUT)
    for ci in range(CIN):
      t9 = make_taps(h1[ci])
      for co in range(COUT):
        base = (co * CIN + ci) * 9
        for t in range(9):
          acc2[co] = acc2[co] + t9[t] * w2_ref[base + t:base + t + 1, :]

    # ---- AvgPool2d(2,2) of (conv2 + shortcut): two batched MXU matmuls ------
    stacked = jnp.concatenate(acc2, axis=0)                             # (COUT*H, GW) = (128,128)
    rp = jnp.dot(prow_ref[...], stacked, preferred_element_type=f32)    # (COUT*HO, GW) = (64,128)
    res = jnp.dot(rp, pcol_ref[...], preferred_element_type=f32)        # (64, GROUP*WO) = (64,64)
    res = res + bias_ref[...]                                           # (b2 + bs) per channel

    # Lane-dense (32, 128) slab: channels 0-3 in lanes 0-63, 4-7 in 64-127.
    out_ref[g] = jnp.concatenate([res[:half_rows, :], res[half_rows:, :]], axis=1)

  if gps == 1:
    group_body(0)
  else:
    @pl.loop(0, gps)
    def _(g):
      group_body(g)


# ---------------------------------------------------------------------------
# Constant operand builders (wrapper side).
# ---------------------------------------------------------------------------
def _lane_rep(v):
  """Flatten and replicate a weight/bias vector across 128 lanes."""
  v = jnp.asarray(v, jnp.float32).reshape(-1)
  return jnp.broadcast_to(v[:, None], (v.shape[0], 128))


def _pool_matrices():
  # Row pool: block-diagonal (COUT*HO, COUT*H), one 0.5-pair block per channel.
  pr = np.zeros((COUT * HO, COUT * H), np.float32)
  for c in range(COUT):
    for i in range(HO):
      pr[c * HO + i, c * H + 2 * i] = 0.5
      pr[c * HO + i, c * H + 2 * i + 1] = 0.5
  # Column pool: block-diagonal (GROUP*W, GROUP*WO), one 0.5-pair block per image.
  pc = np.zeros((GROUP * W, GROUP * WO), np.float32)
  for b in range(GROUP):
    for j in range(WO):
      pc[b * W + 2 * j, b * WO + j] = 0.5
      pc[b * W + 2 * j + 1, b * WO + j] = 0.5
  return jnp.asarray(pr), jnp.asarray(pc)


# ---------------------------------------------------------------------------
# Wrapper: repack to lane-dense layout, call the kernel, unpack.
# ---------------------------------------------------------------------------
def basic_block_forward(x, params):
  B = x.shape[0]
  n_groups = -(-B // GROUP)
  gps = max(1, min(MAX_GROUPS_PER_STEP, n_groups // 2)) if n_groups > 1 else 1
  n_steps = -(-n_groups // gps)
  n_groups_p = n_steps * gps
  Bp = n_groups_p * GROUP
  if Bp != B:
    x = jnp.pad(x, ((0, Bp - B), (0, 0), (0, 0), (0, 0)))

  # (Bp, C, H, W) -> (groups, C, H, GROUP*W): 8 images side-by-side along lanes.
  xk = (x.astype(jnp.float32)
          .reshape(n_groups_p, GROUP, CIN, H, W)
          .transpose(0, 2, 3, 1, 4)
          .reshape(n_groups_p, CIN, H, GW))

  w1t = _lane_rep(params["w1"].reshape(-1))      # (CIN*CIN*9, 128)
  b1t = _lane_rep(params["b1"])                  # (CIN, 128)
  w2t = _lane_rep(params["w2"].reshape(-1))      # (COUT*CIN*9, 128)
  wst = _lane_rep(params["ws"].reshape(-1))      # (COUT*CIN, 128)
  prow, pcol = _pool_matrices()                  # (64,128), (128,64)
  bias = jnp.broadcast_to(
      jnp.repeat((params["b2"] + params["bs"]).astype(jnp.float32), HO)[:, None],
      (COUT * HO, GROUP * WO))                   # (64, 64)

  def const_spec(shape):
    return pl.BlockSpec(shape, lambda i, _s=len(shape): (0,) * _s)

  out = pl.pallas_call(
      basic_block_kernel,
      out_shape=jax.ShapeDtypeStruct(
          (n_groups_p, (COUT // 2) * HO, 2 * GROUP * WO), jnp.float32),
      grid=(n_steps,),
      in_specs=[
          pl.BlockSpec((gps, CIN, H, GW), lambda i: (i, 0, 0, 0)),   # packed images
          const_spec((CIN * CIN * 9, 128)),                          # w1 (resident)
          const_spec((CIN, 128)),                                    # b1
          const_spec((COUT * CIN * 9, 128)),                         # w2
          const_spec((COUT * CIN, 128)),                             # shortcut w
          const_spec((COUT * HO, COUT * H)),                         # row-pool matrix
          const_spec((GROUP * W, GROUP * WO)),                       # col-pool matrix
          const_spec((COUT * HO, GROUP * WO)),                       # combined bias
      ],
      out_specs=pl.BlockSpec((gps, (COUT // 2) * HO, 2 * GROUP * WO),
                             lambda i: (i, 0, 0)),
      compiler_params=pltpu.CompilerParams(dimension_semantics=("parallel",)),
  )(xk, w1t, b1t, w2t, wst, prow, pcol, bias)

  # (groups, 32, 128) -> (Bp, COUT, HO, WO)
  o = (out.reshape(n_groups_p, COUT // 2, HO, 2, GROUP, WO)
          .transpose(0, 4, 3, 1, 2, 5)
          .reshape(Bp, COUT, HO, WO))
  return o[:B]


# ---------------------------------------------------------------------------
# Deterministic parameters (PyTorch-style uniform init, OIHW layout).
# ---------------------------------------------------------------------------
def make_params(key):
  def conv_param(k, cout, cin, ksz):
    kw, kb = jax.random.split(k)
    bound = 1.0 / np.sqrt(cin * ksz * ksz)
    w = jax.random.uniform(kw, (cout, cin, ksz, ksz), jnp.float32, -bound, bound)
    b = jax.random.uniform(kb, (cout,), jnp.float32, -bound, bound)
    return w, b

  k1, k2, k3 = jax.random.split(key, 3)
  w1, b1 = conv_param(k1, CIN, CIN, 3)      # conv3x3(in, in)
  w2, b2 = conv_param(k2, COUT, CIN, 3)     # conv3x3(in, out)  (convMeanpool)
  ws, bs = conv_param(k3, COUT, CIN, 1)     # conv1x1(in, out)  (shortcut)
  return dict(w1=w1, b1=b1, w2=w2, b2=b2, ws=ws, bs=bs)


# ---------------------------------------------------------------------------
# Pure-JAX reference mirroring the PyTorch forward (for validation).
# ---------------------------------------------------------------------------
def reference_forward(x, params):
  dn = ("NCHW", "OIHW", "NCHW")

  def refl_pad(t):
    return jnp.pad(t, ((0, 0), (0, 0), (1, 1), (1, 1)), mode="reflect")

  def conv(t, w, b):
    y = jax.lax.conv_general_dilated(t, w, (1, 1), "VALID", dimension_numbers=dn)
    return y + b[None, :, None, None]

  def avgpool2(t):
    return jax.lax.reduce_window(t, 0.0, jax.lax.add,
                                 (1, 1, 2, 2), (1, 1, 2, 2), "VALID") * 0.25

  h = jnp.maximum(x, 0.0)
  h = conv(refl_pad(h), params["w1"], params["b1"])
  h = jnp.maximum(h, 0.0)
  h = conv(refl_pad(h), params["w2"], params["b2"])
  h = avgpool2(h)
  s = conv(avgpool2(x), params["ws"], params["bs"])
  return h + s


if __name__ == "__main__":
  key = jax.random.PRNGKey(0)
  kparam, kx = jax.random.split(key)
  params = make_params(kparam)
  fwd = jax.jit(basic_block_forward)

  # Primary small check (B=2): single lane-group, single grid step.
  x = jax.random.normal(kx, (2, CIN, H, W), jnp.float32)
  out = jax.block_until_ready(fwd(x, params))
  np.testing.assert_allclose(np.asarray(out), np.asarray(reference_forward(x, params)),
                             rtol=1e-4, atol=1e-4)

  # Larger batch exercises batch padding, the in-kernel group loop and grid > 1.
  x2 = jax.random.normal(jax.random.PRNGKey(1), (40, CIN, H, W), jnp.float32)
  out2 = jax.block_until_ready(fwd(x2, params))
  np.testing.assert_allclose(np.asarray(out2), np.asarray(reference_forward(x2, params)),
                             rtol=1e-4, atol=1e-4)

  print("KERNEL_OK")
</pallas_src>

<mosaic_0001>
module attributes {stable_mosaic.version = 11 : i64} {
  func.func @basic_block_kernel(%arg0: i32, %arg1: memref<1x4x16x128xf32, #tpu.memory_space<vmem>>, %arg2: memref<144x128xf32, #tpu.memory_space<vmem>>, %arg3: memref<4x128xf32, #tpu.memory_space<vmem>>, %arg4: memref<288x128xf32, #tpu.memory_space<vmem>>, %arg5: memref<32x128xf32, #tpu.memory_space<vmem>>, %arg6: memref<64x128xf32, #tpu.memory_space<vmem>>, %arg7: memref<128x64xf32, #tpu.memory_space<vmem>>, %arg8: memref<64x64xf32, #tpu.memory_space<vmem>>, %arg9: memref<1x32x128xf32, #tpu.memory_space<vmem>>) attributes {dimension_semantics = [#tpu.dimension_semantics<parallel>], iteration_bounds = array<i64: 1>, scalar_prefetch = 0 : i64, scratch_operands = 0 : i64, tpu.core_type = #tpu.core_type<tc>, window_params = [{transform_indices = @transform_0, window_bounds = array<i64: 1, 4, 16, 128>}, {pipeline_mode = #tpu.pipeline_mode<synchronous>, transform_indices = @transform_1, window_bounds = array<i64: 144, 128>}, {pipeline_mode = #tpu.pipeline_mode<synchronous>, transform_indices = @transform_2, window_bounds = array<i64: 4, 128>}, {pipeline_mode = #tpu.pipeline_mode<synchronous>, transform_indices = @transform_3, window_bounds = array<i64: 288, 128>}, {pipeline_mode = #tpu.pipeline_mode<synchronous>, transform_indices = @transform_4, window_bounds = array<i64: 32, 128>}, {pipeline_mode = #tpu.pipeline_mode<synchronous>, transform_indices = @transform_5, window_bounds = array<i64: 64, 128>}, {pipeline_mode = #tpu.pipeline_mode<synchronous>, transform_indices = @transform_6, window_bounds = array<i64: 128, 64>}, {pipeline_mode = #tpu.pipeline_mode<synchronous>, transform_indices = @transform_7, window_bounds = array<i64: 64, 64>}, {transform_indices = @transform_8, window_bounds = array<i64: 1, 32, 128>}]} {
    %0 = tpu.iota {dimensions = array<i32: 1>} : vector<16x128xi32>
    %c16_i32 = arith.constant 16 : i32
    %c0_i32 = arith.constant 0 : i32
    %1 = arith.cmpi eq, %c16_i32, %c0_i32 : i32
    %c1_i32 = arith.constant 1 : i32
    %2 = arith.select %1, %c1_i32, %c16_i32 : i32
    %3 = vector.broadcast %2 : i32 to vector<16x128xi32>
    %4 = arith.remsi %0, %3 : vector<16x128xi32>
    %c0_i32_0 = arith.constant 0 : i32
    %5 = vector.broadcast %c0_i32_0 : i32 to vector<16x128xi32>
    %6 = arith.cmpi ne, %4, %5 : vector<16x128xi32>
    %c0_i32_1 = arith.constant 0 : i32
    %7 = vector.broadcast %c0_i32_1 : i32 to vector<16x128xi32>
    %8 = arith.cmpi slt, %4, %7 : vector<16x128xi32>
    %c0_i32_2 = arith.constant 0 : i32
    %9 = arith.cmpi slt, %2, %c0_i32_2 : i32
    %10 = vector.broadcast %9 : i1 to vector<16x128xi1>
    %11 = vector.broadcast %10 : vector<16x128xi1> to vector<16x128xi1>
    %12 = arith.xori %8, %11 : vector<16x128xi1>
    %13 = arith.andi %12, %6 : vector<16x128xi1>
    %14 = vector.broadcast %2 : i32 to vector<16x128xi32>
    %15 = arith.addi %4, %14 : vector<16x128xi32>
    %16 = arith.select %13, %15, %4 : vector<16x128xi1>, vector<16x128xi32>
    %c0_i32_3 = arith.constant 0 : i32
    %17 = vector.broadcast %c0_i32_3 : i32 to vector<16x128xi32>
    %18 = arith.cmpi eq, %16, %17 : vector<16x128xi32>
    %c16_i32_4 = arith.constant 16 : i32
    %c0_i32_5 = arith.constant 0 : i32
    %19 = arith.cmpi eq, %c16_i32_4, %c0_i32_5 : i32
    %c1_i32_6 = arith.constant 1 : i32
    %20 = arith.select %19, %c1_i32_6, %c16_i32_4 : i32
    %21 = vector.broadcast %20 : i32 to vector<16x128xi32>
    %22 = arith.remsi %0, %21 : vector<16x128xi32>
    %c0_i32_7 = arith.constant 0 : i32
    %23 = vector.broadcast %c0_i32_7 : i32 to vector<16x128xi32>
    %24 = arith.cmpi ne, %22, %23 : vector<16x128xi32>
    %c0_i32_8 = arith.constant 0 : i32
    %25 = vector.broadcast %c0_i32_8 : i32 to vector<16x128xi32>
    %26 = arith.cmpi slt, %22, %25 : vector<16x128xi32>
    %c0_i32_9 = arith.constant 0 : i32
    %27 = arith.cmpi slt, %20, %c0_i32_9 : i32
    %28 = vector.broadcast %27 : i1 to vector<16x128xi1>
    %29 = vector.broadcast %28 : vector<16x128xi1> to vector<16x128xi1>
    %30 = arith.xori %26, %29 : vector<16x128xi1>
    %31 = arith.andi %30, %24 : vector<16x128xi1>
    %32 = vector.broadcast %20 : i32 to vector<16x128xi32>
    %33 = arith.addi %22, %32 : vector<16x128xi32>
    %34 = arith.select %31, %33, %22 : vector<16x128xi1>, vector<16x128xi32>
    %c15_i32 = arith.constant 15 : i32
    %35 = vector.broadcast %c15_i32 : i32 to vector<16x128xi32>
    %36 = arith.cmpi eq, %34, %35 : vector<16x128xi32>
    %c0 = arith.constant 0 : index
    %c0_10 = arith.constant 0 : index
    %c0_11 = arith.constant 0 : index
    %c0_12 = arith.constant 0 : index
    %37 = vector.load %arg1[%c0, %c0_10, %c0_11, %c0_12] : memref<1x4x16x128xf32, #tpu.memory_space<vmem>>, vector<1x1x16x128xf32>
    %38 = vector.shape_cast %37 : vector<1x1x16x128xf32> to vector<16x128xf32>
    %cst = arith.constant 0.000000e+00 : f32
    %39 = vector.broadcast %cst : f32 to vector<16x128xf32>
    %40 = arith.maximumf %38, %39 : vector<16x128xf32>
    %41 = vector.extract_strided_slice %40 {offsets = [1, 0], sizes = [1, 128], strides = [1, 1]} : vector<16x128xf32> to vector<1x128xf32>
    %42 = vector.extract_strided_slice %40 {offsets = [0, 0], sizes = [15, 128], strides = [1, 1]} : vector<16x128xf32> to vector<15x128xf32>
    %43 = tpu.concatenate %41, %42 in 0 : vector<1x128xf32>, vector<15x128xf32> -> vector<16x128xf32>
    %44 = vector.extract_strided_slice %40 {offsets = [1, 0], sizes = [15, 128], strides = [1, 1]} : vector<16x128xf32> to vector<15x128xf32>
    %45 = vector.extract_strided_slice %40 {offsets = [14, 0], sizes = [1, 128], strides = [1, 1]} : vector<16x128xf32> to vector<1x128xf32>
    %46 = tpu.concatenate %44, %45 in 0 : vector<15x128xf32>, vector<1x128xf32> -> vector<16x128xf32>
    %47 = vector.extract_strided_slice %43 {offsets = [0, 127], sizes = [16, 1], strides = [1, 1]} : vector<16x128xf32> to vector<16x1xf32>
    %48 = vector.extract_strided_slice %43 {offsets = [0, 0], sizes = [16, 127], strides = [1, 1]} : vector<16x128xf32> to vector<16x127xf32>
    %49 = tpu.concatenate %47, %48 in 1 : vector<16x1xf32>, vector<16x127xf32> -> vector<16x128xf32>
    %50 = vector.extract_strided_slice %43 {offsets = [0, 1], sizes = [16, 127], strides = [1, 1]} : vector<16x128xf32> to vector<16x127xf32>
    %51 = vector.extract_strided_slice %43 {offsets = [0, 0], sizes = [16, 1], strides = [1, 1]} : vector<16x128xf32> to vector<16x1xf32>
    %52 = tpu.concatenate %50, %51 in 1 : vector<16x127xf32>, vector<16x1xf32> -> vector<16x128xf32>
    %53 = arith.select %18, %52, %49 : vector<16x128xi1>, vector<16x128xf32>
    %54 = arith.select %36, %49, %52 : vector<16x128xi1>, vector<16x128xf32>
    %55 = vector.extract_strided_slice %40 {offsets = [0, 127], sizes = [16, 1], strides = [1, 1]} : vector<16x128xf32> to vector<16x1xf32>
    %56 = vector.extract_strided_slice %40 {offsets = [0, 0], sizes = [16, 127], strides = [1, 1]} : vector<16x128xf32> to vector<16x127xf32>
    %57 = tpu.concatenate %55, %56 in 1 : vector<16x1xf32>, vector<16x127xf32> -> vector<16x128xf32>
    %58 = vector.extract_strided_slice %40 {offsets = [0, 1], sizes = [16, 127], strides = [1, 1]} : vector<16x128xf32> to vector<16x127xf32>
    %59 = vector.extract_strided_slice %40 {offsets = [0, 0], sizes = [16, 1], strides = [1, 1]} : vector<16x128xf32> to vector<16x1xf32>
    %60 = tpu.concatenate %58, %59 in 1 : vector<16x127xf32>, vector<16x1xf32> -> vector<16x128xf32>
    %61 = arith.select %18, %60, %57 : vector<16x128xi1>, vector<16x128xf32>
    %62 = arith.select %36, %57, %60 : vector<16x128xi1>, vector<16x128xf32>
    %63 = vector.extract_strided_slice %46 {offsets = [0, 127], sizes = [16, 1], strides = [1, 1]} : vector<16x128xf32> to vector<16x1xf32>
    %64 = vector.extract_strided_slice %46 {offsets = [0, 0], sizes = [16, 127], strides = [1, 1]} : vector<16x128xf32> to vector<16x127xf32>
    %65 = tpu.concatenate %63, %64 in 1 : vector<16x1xf32>, vector<16x127xf32> -> vector<16x128xf32>
    %66 = vector.extract_strided_slice %46 {offsets = [0, 1], sizes = [16, 127], strides = [1, 1]} : vector<16x128xf32> to vector<16x127xf32>
    %67 = vector.extract_strided_slice %46 {offsets = [0, 0], sizes = [16, 1], strides = [1, 1]} : vector<16x128xf32> to vector<16x1xf32>
    %68 = tpu.concatenate %66, %67 in 1 : vector<16x127xf32>, vector<16x1xf32> -> vector<16x128xf32>
    %69 = arith.select %18, %68, %65 : vector<16x128xi1>, vector<16x128xf32>
    %70 = arith.select %36, %65, %68 : vector<16x128xi1>, vector<16x128xf32>
    %c0_13 = arith.constant 0 : index
    %c0_14 = arith.constant 0 : index
    %71 = vector.load %arg2[%c0_13, %c0_14] : memref<144x128xf32, #tpu.memory_space<vmem>>, vector<1x128xf32>
    %72 = vector.broadcast %71 : vector<1x128xf32> to vector<16x128xf32>
    %73 = arith.mulf %53, %72 : vector<16x128xf32>
    %c1 = arith.constant 1 : index
    %c0_15 = arith.constant 0 : index
    %74 = vector.load %arg2[%c1, %c0_15] : memref<144x128xf32, #tpu.memory_space<vmem>>, vector<1x128xf32>
    %75 = vector.broadcast %74 : vector<1x128xf32> to vector<16x128xf32>
    %76 = arith.mulf %43, %75 : vector<16x128xf32>
    %77 = arith.addf %73, %76 : vector<16x128xf32>
    %c2 = arith.constant 2 : index
    %c0_16 = arith.constant 0 : index
    %78 = vector.load %arg2[%c2, %c0_16] : memref<144x128xf32, #tpu.memory_space<vmem>>, vector<1x128xf32>
    %79 = vector.broadcast %78 : vector<1x128xf32> to vector<16x128xf32>
    %80 = arith.mulf %54, %79 : vector<16x128xf32>
    %81 = arith.addf %77, %80 : vector<16x128xf32>
    %c3 = arith.constant 3 : index
    %c0_17 = arith.constant 0 : index
    %82 = vector.load %arg2[%c3, %c0_17] : memref<144x128xf32, #tpu.memory_space<vmem>>, vector<1x128xf32>
    %83 = vector.broadcast %82 : vector<1x128xf32> to vector<16x128xf32>
    %84 = arith.mulf %61, %83 : vector<16x128xf32>
    %85 = arith.addf %81, %84 : vector<16x128xf32>
    %c4 = arith.constant 4 : index
    %c0_18 = arith.constant 0 : index
    %86 = vector.load %arg2[%c4, %c0_18] : memref<144x128xf32, #tpu.memory_space<vmem>>, vector<1x128xf32>
    %87 = vector.broadcast %86 : vector<1x128xf32> to vector<16x128xf32>
    %88 = arith.mulf %40, %87 : vector<16x128xf32>
    %89 = arith.addf %85, %88 : vector<16x128xf32>
    %c5 = arith.constant 5 : index
    %c0_19 = arith.constant 0 : index
    %90 = vector.load %arg2[%c5, %c0_19] : memref<144x128xf32, #tpu.memory_space<vmem>>, vector<1x128xf32>
    %91 = vector.broadcast %90 : vector<1x128xf32> to vector<16x128xf32>
    %92 = arith.mulf %62, %91 : vector<16x128xf32>
    %93 = arith.addf %89, %92 : vector<16x128xf32>
    %c6 = arith.constant 6 : index
    %c0_20 = arith.constant 0 : index
    %94 = vector.load %arg2[%c6, %c0_20] : memref<144x128xf32, #tpu.memory_space<vmem>>, vector<1x128xf32>
    %95 = vector.broadcast %94 : vector<1x128xf32> to vector<16x128xf32>
    %96 = arith.mulf %69, %95 : vector<16x128xf32>
    %97 = arith.addf %93, %96 : vector<16x128xf32>
    %c7 = arith.constant 7 : index
    %c0_21 = arith.constant 0 : index
    %98 = vector.load %arg2[%c7, %c0_21] : memref<144x128xf32, #tpu.memory_space<vmem>>, vector<1x128xf32>
    %99 = vector.broadcast %98 : vector<1x128xf32> to vector<16x128xf32>
    %100 = arith.mulf %46, %99 : vector<16x128xf32>
    %101 = arith.addf %97, %100 : vector<16x128xf32>
    %c8 = arith.constant 8 : index
    %c0_22 = arith.constant 0 : index
    %102 = vector.load %arg2[%c8, %c0_22] : memref<144x128xf32, #tpu.memory_space<vmem>>, vector<1x128xf32>
    %103 = vector.broadcast %102 : vector<1x128xf32> to vector<16x128xf32>
    %104 = arith.mulf %70, %103 : vector<16x128xf32>
    %105 = arith.addf %101, %104 : vector<16x128xf32>
    %c36 = arith.constant 36 : index
    %c0_23 = arith.constant 0 : index
    %106 = vector.load %arg2[%c36, %c0_23] : memref<144x128xf32, #tpu.memory_space<vmem>>, vector<1x128xf32>
    %107 = vector.broadcast %106 : vector<1x128xf32> to vector<16x128xf32>
    %108 = arith.mulf %53, %107 : vector<16x128xf32>
    %c37 = arith.constant 37 : index
    %c0_24 = arith.constant 0 : index
    %109 = vector.load %arg2[%c37, %c0_24] : memref<144x128xf32, #tpu.memory_space<vmem>>, vector<1x128xf32>
    %110 = vector.broadcast %109 : vector<1x128xf32> to vector<16x128xf32>
    %111 = arith.mulf %43, %110 : vector<16x128xf32>
    %112 = arith.addf %108, %111 : vector<16x128xf32>
    %c38 = arith.constant 38 : index
    %c0_25 = arith.constant 0 : index
    %113 = vector.load %arg2[%c38, %c0_25] : memref<144x128xf32, #tpu.memory_space<vmem>>, vector<1x128xf32>
    %114 = vector.broadcast %113 : vector<1x128xf32> to vector<16x128xf32>
    %115 = arith.mulf %54, %114 : vector<16x128xf32>
    %116 = arith.addf %112, %115 : vector<16x128xf32>
    %c39 = arith.constant 39 : index
    %c0_26 = arith.constant 0 : index
    %117 = vector.load %arg2[%c39, %c0_26] : memref<144x128xf32, #tpu.memory_space<vmem>>, vector<1x128xf32>
    %118 = vector.broadcast %117 : vector<1x128xf32> to vector<16x128xf32>
    %119 = arith.mulf %61, %118 : vector<16x128xf32>
    %120 = arith.addf %116, %119 : vector<16x128xf32>
    %c40 = arith.constant 40 : index
    %c0_27 = arith.constant 0 : index
    %121 = vector.load %arg2[%c40, %c0_27] : memref<144x128xf32, #tpu.memory_space<vmem>>, vector<1x128xf32>
    %122 = vector.broadcast %121 : vector<1x128xf32> to vector<16x128xf32>
    %123 = arith.mulf %40, %122 : vector<16x128xf32>
    %124 = arith.addf %120, %123 : vector<16x128xf32>
    %c41 = arith.constant 41 : index
    %c0_28 = arith.constant 0 : index
    %125 = vector.load %arg2[%c41, %c0_28] : memref<144x128xf32, #tpu.memory_space<vmem>>, vector<1x128xf32>
    %126 = vector.broadcast %125 : vector<1x128xf32> to vector<16x128xf32>
    %127 = arith.mulf %62, %126 : vector<16x128xf32>
    %128 = arith.addf %124, %127 : vector<16x128xf32>
    %c42 = arith.constant 42 : index
    %c0_29 = arith.constant 0 : index
    %129 = vector.load %arg2[%c42, %c0_29] : memref<144x128xf32, #tpu.memory_space<vmem>>, vector<1x128xf32>
    %130 = vector.broadcast %129 : vector<1x128xf32> to vector<16x128xf32>
    %131 = arith.mulf %69, %130 : vector<16x128xf32>
    %132 = arith.addf %128, %131 : vector<16x128xf32>
    %c43 = arith.constant 43 : index
    %c0_30 = arith.constant 0 : index
    %133 = vector.load %arg2[%c43, %c0_30] : memref<144x128xf32, #tpu.memory_space<vmem>>, vector<1x128xf32>
    %134 = vector.broadcast %133 : vector<1x128xf32> to vector<16x128xf32>
    %135 = arith.mulf %46, %134 : vector<16x128xf32>
    %136 = arith.addf %132, %135 : vector<16x128xf32>
    %c44 = arith.constant 44 : index
    %c0_31 = arith.constant 0 : index
    %137 = vector.load %arg2[%c44, %c0_31] : memref<144x128xf32, #tpu.memory_space<vmem>>, vector<1x128xf32>
    %138 = vector.broadcast %137 : vector<1x128xf32> to vector<16x128xf32>
    %139 = arith.mulf %70, %138 : vector<16x128xf32>
    %140 = arith.addf %136, %139 : vector<16x128xf32>
    %c72 = arith.constant 72 : index
    %c0_32 = arith.constant 0 : index
    %141 = vector.load %arg2[%c72, %c0_32] : memref<144x128xf32, #tpu.memory_space<vmem>>, vector<1x128xf32>
    %142 = vector.broadcast %141 : vector<1x128xf32> to vector<16x128xf32>
    %143 = arith.mulf %53, %142 : vector<16x128xf32>
    %c73 = arith.constant 73 : index
    %c0_33 = arith.constant 0 : index
    %144 = vector.load %arg2[%c73, %c0_33] : memref<144x128xf32, #tpu.memory_space<vmem>>, vector<1x128xf32>
    %145 = vector.broadcast %144 : vector<1x128xf32> to vector<16x128xf32>
    %146 = arith.mulf %43, %145 : vector<16x128xf32>
    %147 = arith.addf %143, %146 : vector<16x128xf32>
    %c74 = arith.constant 74 : index
    %c0_34 = arith.constant 0 : index
    %148 = vector.load %arg2[%c74, %c0_34] : memref<144x128xf32, #tpu.memory_space<vmem>>, vector<1x128xf32>
    %149 = vector.broadcast %148 : vector<1x128xf32> to vector<16x128xf32>
    %150 = arith.mulf %54, %149 : vector<16x128xf32>
    %151 = arith.addf %147, %150 : vector<16x128xf32>
    %c75 = arith.constant 75 : index
    %c0_35 = arith.constant 0 : index
    %152 = vector.load %arg2[%c75, %c0_35] : memref<144x128xf32, #tpu.memory_space<vmem>>, vector<1x128xf32>
    %153 = vector.broadcast %152 : vector<1x128xf32> to vector<16x128xf32>
    %154 = arith.mulf %61, %153 : vector<16x128xf32>
    %155 = arith.addf %151, %154 : vector<16x128xf32>
    %c76 = arith.constant 76 : index
    %c0_36 = arith.constant 0 : index
    %156 = vector.load %arg2[%c76, %c0_36] : memref<144x128xf32, #tpu.memory_space<vmem>>, vector<1x128xf32>
    %157 = vector.broadcast %156 : vector<1x128xf32> to vector<16x128xf32>
    %158 = arith.mulf %40, %157 : vector<16x128xf32>
    %159 = arith.addf %155, %158 : vector<16x128xf32>
    %c77 = arith.constant 77 : index
    %c0_37 = arith.constant 0 : index
    %160 = vector.load %arg2[%c77, %c0_37] : memref<144x128xf32, #tpu.memory_space<vmem>>, vector<1x128xf32>
    %161 = vector.broadcast %160 : vector<1x128xf32> to vector<16x128xf32>
    %162 = arith.mulf %62, %161 : vector<16x128xf32>
    %163 = arith.addf %159, %162 : vector<16x128xf32>
    %c78 = arith.constant 78 : index
    %c0_38 = arith.constant 0 : index
    %164 = vector.load %arg2[%c78, %c0_38] : memref<144x128xf32, #tpu.memory_space<vmem>>, vector<1x128xf32>
    %165 = vector.broadcast %164 : vector<1x128xf32> to vector<16x128xf32>
    %166 = arith.mulf %69, %165 : vector<16x128xf32>
    %167 = arith.addf %163, %166 : vector<16x128xf32>
    %c79 = arith.constant 79 : index
    %c0_39 = arith.constant 0 : index
    %168 = vector.load %arg2[%c79, %c0_39] : memref<144x128xf32, #tpu.memory_space<vmem>>, vector<1x128xf32>
    %169 = vector.broadcast %168 : vector<1x128xf32> to vector<16x128xf32>
    %170 = arith.mulf %46, %169 : vector<16x128xf32>
    %171 = arith.addf %167, %170 : vector<16x128xf32>
    %c80 = arith.constant 80 : index
    %c0_40 = arith.constant 0 : index
    %172 = vector.load %arg2[%c80, %c0_40] : memref<144x128xf32, #tpu.memory_space<vmem>>, vector<1x128xf32>
    %173 = vector.broadcast %172 : vector<1x128xf32> to vector<16x128xf32>
    %174 = arith.mulf %70, %173 : vector<16x128xf32>
    %175 = arith.addf %171, %174 : vector<16x128xf32>
    %c108 = arith.constant 108 : index
    %c0_41 = arith.constant 0 : index
    %176 = vector.load %arg2[%c108, %c0_41] : memref<144x128xf32, #tpu.memory_space<vmem>>, vector<1x128xf32>
    %177 = vector.broadcast %176 : vector<1x128xf32> to vector<16x128xf32>
    %178 = arith.mulf %53, %177 : vector<16x128xf32>
    %c109 = arith.constant 109 : index
    %c0_42 = arith.constant 0 : index
    %179 = vector.load %arg2[%c109, %c0_42] : memref<144x128xf32, #tpu.memory_space<vmem>>, vector<1x128xf32>
    %180 = vector.broadcast %179 : vector<1x128xf32> to vector<16x128xf32>
    %181 = arith.mulf %43, %180 : vector<16x128xf32>
    %182 = arith.addf %178, %181 : vector<16x128xf32>
    %c110 = arith.constant 110 : index
    %c0_43 = arith.constant 0 : index
    %183 = vector.load %arg2[%c110, %c0_43] : memref<144x128xf32, #tpu.memory_space<vmem>>, vector<1x128xf32>
    %184 = vector.broadcast %183 : vector<1x128xf32> to vector<16x128xf32>
    %185 = arith.mulf %54, %184 : vector<16x128xf32>
    %186 = arith.addf %182, %185 : vector<16x128xf32>
    %c111 = arith.constant 111 : index
    %c0_44 = arith.constant 0 : index
    %187 = vector.load %arg2[%c111, %c0_44] : memref<144x128xf32, #tpu.memory_space<vmem>>, vector<1x128xf32>
    %188 = vector.broadcast %187 : vector<1x128xf32> to vector<16x128xf32>
    %189 = arith.mulf %61, %188 : vector<16x128xf32>
    %190 = arith.addf %186, %189 : vector<16x128xf32>
    %c112 = arith.constant 112 : index
    %c0_45 = arith.constant 0 : index
    %191 = vector.load %arg2[%c112, %c0_45] : memref<144x128xf32, #tpu.memory_space<vmem>>, vector<1x128xf32>
    %192 = vector.broadcast %191 : vector<1x128xf32> to vector<16x128xf32>
    %193 = arith.mulf %40, %192 : vector<16x128xf32>
    %194 = arith.addf %190, %193 : vector<16x128xf32>
    %c113 = arith.constant 113 : index
    %c0_46 = arith.constant 0 : index
    %195 = vector.load %arg2[%c113, %c0_46] : memref<144x128xf32, #tpu.memory_space<vmem>>, vector<1x128xf32>
    %196 = vector.broadcast %195 : vector<1x128xf32> to vector<16x128xf32>
    %197 = arith.mulf %62, %196 : vector<16x128xf32>
    %198 = arith.addf %194, %197 : vector<16x128xf32>
    %c114 = arith.constant 114 : index
    %c0_47 = arith.constant 0 : index
    %199 = vector.load %arg2[%c114, %c0_47] : memref<144x128xf32, #tpu.memory_space<vmem>>, vector<1x128xf32>
    %200 = vector.broadcast %199 : vector<1x128xf32> to vector<16x128xf32>
    %201 = arith.mulf %69, %200 : vector<16x128xf32>
    %202 = arith.addf %198, %201 : vector<16x128xf32>
    %c115 = arith.constant 115 : index
    %c0_48 = arith.constant 0 : index
    %203 = vector.load %arg2[%c115, %c0_48] : memref<144x128xf32, #tpu.memory_space<vmem>>, vector<1x128xf32>
    %204 = vector.broadcast %203 : vector<1x128xf32> to vector<16x128xf32>
    %205 = arith.mulf %46, %204 : vector<16x128xf32>
    %206 = arith.addf %202, %205 : vector<16x128xf32>
    %c116 = arith.constant 116 : index
    %c0_49 = arith.constant 0 : index
    %207 = vector.load %arg2[%c116, %c0_49] : memref<144x128xf32, #tpu.memory_space<vmem>>, vector<1x128xf32>
    %208 = vector.broadcast %207 : vector<1x128xf32> to vector<16x128xf32>
    %209 = arith.mulf %70, %208 : vector<16x128xf32>
    %210 = arith.addf %206, %209 : vector<16x128xf32>
    %c0_50 = arith.constant 0 : index
    %c1_51 = arith.constant 1 : index
    %c0_52 = arith.constant 0 : index
    %c0_53 = arith.constant 0 : index
    %211 = vector.load %arg1[%c0_50, %c1_51, %c0_52, %c0_53] : memref<1x4x16x128xf32, #tpu.memory_space<vmem>>, vector<1x1x16x128xf32>
    %212 = vector.shape_cast %211 : vector<1x1x16x128xf32> to vector<16x128xf32>
    %cst_54 = arith.constant 0.000000e+00 : f32
    %213 = vector.broadcast %cst_54 : f32 to vector<16x128xf32>
    %214 = arith.maximumf %212, %213 : vector<16x128xf32>
    %215 = vector.extract_strided_slice %214 {offsets = [1, 0], sizes = [1, 128], strides = [1, 1]} : vector<16x128xf32> to vector<1x128xf32>
    %216 = vector.extract_strided_slice %214 {offsets = [0, 0], sizes = [15, 128], strides = [1, 1]} : vector<16x128xf32> to vector<15x128xf32>
    %217 = tpu.concatenate %215, %216 in 0 : vector<1x128xf32>, vector<15x128xf32> -> vector<16x128xf32>
    %218 = vector.extract_strided_slice %214 {offsets = [1, 0], sizes = [15, 128], strides = [1, 1]} : vector<16x128xf32> to vector<15x128xf32>
    %219 = vector.extract_strided_slice %214 {offsets = [14, 0], sizes = [1, 128], strides = [1, 1]} : vector<16x128xf32> to vector<1x128xf32>
    %220 = tpu.concatenate %218, %219 in 0 : vector<15x128xf32>, vector<1x128xf32> -> vector<16x128xf32>
    %221 = vector.extract_strided_slice %217 {offsets = [0, 127], sizes = [16, 1], strides = [1, 1]} : vector<16x128xf32> to vector<16x1xf32>
    %222 = vector.extract_strided_slice %217 {offsets = [0, 0], sizes = [16, 127], strides = [1, 1]} : vector<16x128xf32> to vector<16x127xf32>
    %223 = tpu.concatenate %221, %222 in 1 : vector<16x1xf32>, vector<16x127xf32> -> vector<16x128xf32>
    %224 = vector.extract_strided_slice %217 {offsets = [0, 1], sizes = [16, 127], strides = [1, 1]} : vector<16x128xf32> to vector<16x127xf32>
    %225 = vector.extract_strided_slice %217 {offsets = [0, 0], sizes = [16, 1], strides = [1, 1]} : vector<16x128xf32> to vector<16x1xf32>
    %226 = tpu.concatenate %224, %225 in 1 : vector<16x127xf32>, vector<16x1xf32> -> vector<16x128xf32>
    %227 = arith.select %18, %226, %223 : vector<16x128xi1>, vector<16x128xf32>
    %228 = arith.select %36, %223, %226 : vector<16x128xi1>, vector<16x128xf32>
    %229 = vector.extract_strided_slice %214 {offsets = [0, 127], sizes = [16, 1], strides = [1, 1]} : vector<16x128xf32> to vector<16x1xf32>
    %230 = vector.extract_strided_slice %214 {offsets = [0, 0], sizes = [16, 127], strides = [1, 1]} : vector<16x128xf32> to vector<16x127xf32>
    %231 = tpu.concatenate %229, %230 in 1 : vector<16x1xf32>, vector<16x127xf32> -> vector<16x128xf32>
    %232 = vector.extract_strided_slice %214 {offsets = [0, 1], sizes = [16, 127], strides = [1, 1]} : vector<16x128xf32> to vector<16x127xf32>
    %233 = vector.extract_strided_slice %214 {offsets = [0, 0], sizes = [16, 1], strides = [1, 1]} : vector<16x128xf32> to vector<16x1xf32>
    %234 = tpu.concatenate %232, %233 in 1 : vector<16x127xf32>, vector<16x1xf32> -> vector<16x128xf32>
    %235 = arith.select %18, %234, %231 : vector<16x128xi1>, vector<16x128xf32>
    %236 = arith.select %36, %231, %234 : vector<16x128xi1>, vector<16x128xf32>
    %237 = vector.extract_strided_slice %220 {offsets = [0, 127], sizes = [16, 1], strides = [1, 1]} : vector<16x128xf32> to vector<16x1xf32>
    %238 = vector.extract_strided_slice %220 {offsets = [0, 0], sizes = [16, 127], strides = [1, 1]} : vector<16x128xf32> to vector<16x127xf32>
    %239 = tpu.concatenate %237, %238 in 1 : vector<16x1xf32>, vector<16x127xf32> -> vector<16x128xf32>
    %240 = vector.extract_strided_slice %220 {offsets = [0, 1], sizes = [16, 127], strides = [1, 1]} : vector<16x128xf32> to vector<16x127xf32>
    %241 = vector.extract_strided_slice %220 {offsets = [0, 0], sizes = [16, 1], strides = [1, 1]} : vector<16x128xf32> to vector<16x1xf32>
    %242 = tpu.concatenate %240, %241 in 1 : vector<16x127xf32>, vector<16x1xf32> -> vector<16x128xf32>
    %243 = arith.select %18, %242, %239 : vector<16x128xi1>, vector<16x128xf32>
    %244 = arith.select %36, %239, %242 : vector<16x128xi1>, vector<16x128xf32>
    %c9 = arith.constant 9 : index
    %c0_55 = arith.constant 0 : index
    %245 = vector.load %arg2[%c9, %c0_55] : memref<144x128xf32, #tpu.memory_space<vmem>>, vector<1x128xf32>
    %246 = vector.broadcast %245 : vector<1x128xf32> to vector<16x128xf32>
    %247 = arith.mulf %227, %246 : vector<16x128xf32>
    %248 = arith.addf %105, %247 : vector<16x128xf32>
    %c10 = arith.constant 10 : index
    %c0_56 = arith.constant 0 : index
    %249 = vector.load %arg2[%c10, %c0_56] : memref<144x128xf32, #tpu.memory_space<vmem>>, vector<1x128xf32>
    %250 = vector.broadcast %249 : vector<1x128xf32> to vector<16x128xf32>
    %251 = arith.mulf %217, %250 : vector<16x128xf32>
    %252 = arith.addf %248, %251 : vector<16x128xf32>
    %c11 = arith.constant 11 : index
    %c0_57 = arith.constant 0 : index
    %253 = vector.load %arg2[%c11, %c0_57] : memref<144x128xf32, #tpu.memory_space<vmem>>, vector<1x128xf32>
    %254 = vector.broadcast %253 : vector<1x128xf32> to vector<16x128xf32>
    %255 = arith.mulf %228, %254 : vector<16x128xf32>
    %256 = arith.addf %252, %255 : vector<16x128xf32>
    %c12 = arith.constant 12 : index
    %c0_58 = arith.constant 0 : index
    %257 = vector.load %arg2[%c12, %c0_58] : memref<144x128xf32, #tpu.memory_space<vmem>>, vector<1x128xf32>
    %258 = vector.broadcast %257 : vector<1x128xf32> to vector<16x128xf32>
    %259 = arith.mulf %235, %258 : vector<16x128xf32>
    %260 = arith.addf %256, %259 : vector<16x128xf32>
    %c13 = arith.constant 13 : index
    %c0_59 = arith.constant 0 : index
    %261 = vector.load %arg2[%c13, %c0_59] : memref<144x128xf32, #tpu.memory_space<vmem>>, vector<1x128xf32>
    %262 = vector.broadcast %261 : vector<1x128xf32> to vector<16x128xf32>
    %263 = arith.mulf %214, %262 : vector<16x128xf32>
    %264 = arith.addf %260, %263 : vector<16x128xf32>
    %c14 = arith.constant 14 : index
    %c0_60 = arith.constant 0 : index
    %265 = vector.load %arg2[%c14, %c0_60] : memref<144x128xf32, #tpu.memory_space<vmem>>, vector<1x128xf32>
    %266 = vector.broadcast %265 : vector<1x128xf32> to vector<16x128xf32>
    %267 = arith.mulf %236, %266 : vector<16x128xf32>
    %268 = arith.addf %264, %267 : vector<16x128xf32>
    %c15 = arith.constant 15 : index
    %c0_61 = arith.constant 0 : index
    %269 = vector.load %arg2[%c15, %c0_61] : memref<144x128xf32, #tpu.memory_space<vmem>>, vector<1x128xf32>
    %270 = vector.broadcast %269 : vector<1x128xf32> to vector<16x128xf32>
    %271 = arith.mulf %243, %270 : vector<16x128xf32>
    %272 = arith.addf %268, %271 : vector<16x128xf32>
    %c16 = arith.constant 16 : index
    %c0_62 = arith.constant 0 : index
    %273 = vector.load %arg2[%c16, %c0_62] : memref<144x128xf32, #tpu.memory_space<vmem>>, vector<1x128xf32>
    %274 = vector.broadcast %273 : vector<1x128xf32> to vector<16x128xf32>
    %275 = arith.mulf %220, %274 : vector<16x128xf32>
    %276 = arith.addf %272, %275 : vector<16x128xf32>
    %c17 = arith.constant 17 : index
    %c0_63 = arith.constant 0 : index
    %277 = vector.load %arg2[%c17, %c0_63] : memref<144x128xf32, #tpu.memory_space<vmem>>, vector<1x128xf32>
    %278 = vector.broadcast %277 : vector<1x128xf32> to vector<16x128xf32>
    %279 = arith.mulf %244, %278 : vector<16x128xf32>
    %280 = arith.addf %276, %279 : vector<16x128xf32>
    %c45 = arith.constant 45 : index
    %c0_64 = arith.constant 0 : index
    %281 = vector.load %arg2[%c45, %c0_64] : memref<144x128xf32, #tpu.memory_space<vmem>>, vector<1x128xf32>
    %282 = vector.broadcast %281 : vector<1x128xf32> to vector<16x128xf32>
    %283 = arith.mulf %227, %282 : vector<16x128xf32>
    %284 = arith.addf %140, %283 : vector<16x128xf32>
    %c46 = arith.constant 46 : index
    %c0_65 = arith.constant 0 : index
    %285 = vector.load %arg2[%c46, %c0_65] : memref<144x128xf32, #tpu.memory_space<vmem>>, vector<1x128xf32>
    %286 = vector.broadcast %285 : vector<1x128xf32> to vector<16x128xf32>
    %287 = arith.mulf %217, %286 : vector<16x128xf32>
    %288 = arith.addf %284, %287 : vector<16x128xf32>
    %c47 = arith.constant 47 : index
    %c0_66 = arith.constant 0 : index
    %289 = vector.load %arg2[%c47, %c0_66] : memref<144x128xf32, #tpu.memory_space<vmem>>, vector<1x128xf32>
    %290 = vector.broadcast %289 : vector<1x128xf32> to vector<16x128xf32>
    %291 = arith.mulf %228, %290 : vector<16x128xf32>
    %292 = arith.addf %288, %291 : vector<16x128xf32>
    %c48 = arith.constant 48 : index
    %c0_67 = arith.constant 0 : index
    %293 = vector.load %arg2[%c48, %c0_67] : memref<144x128xf32, #tpu.memory_space<vmem>>, vector<1x128xf32>
    %294 = vector.broadcast %293 : vector<1x128xf32> to vector<16x128xf32>
    %295 = arith.mulf %235, %294 : vector<16x128xf32>
    %296 = arith.addf %292, %295 : vector<16x128xf32>
    %c49 = arith.constant 49 : index
    %c0_68 = arith.constant 0 : index
    %297 = vector.load %arg2[%c49, %c0_68] : memref<144x128xf32, #tpu.memory_space<vmem>>, vector<1x128xf32>
    %298 = vector.broadcast %297 : vector<1x128xf32> to vector<16x128xf32>
    %299 = arith.mulf %214, %298 : vector<16x128xf32>
    %300 = arith.addf %296, %299 : vector<16x128xf32>
    %c50 = arith.constant 50 : index
    %c0_69 = arith.constant 0 : index
    %301 = vector.load %arg2[%c50, %c0_69] : memref<144x128xf32, #tpu.memory_space<vmem>>, vector<1x128xf32>
    %302 = vector.broadcast %301 : vector<1x128xf32> to vector<16x128xf32>
    %303 = arith.mulf %236, %302 : vector<16x128xf32>
    %304 = arith.addf %300, %303 : vector<16x128xf32>
    %c51 = arith.constant 51 : index
    %c0_70 = arith.constant 0 : index
    %305 = vector.load %arg2[%c51, %c0_70] : memref<144x128xf32, #tpu.memory_space<vmem>>, vector<1x128xf32>
    %306 = vector.broadcast %305 : vector<1x128xf32> to vector<16x128xf32>
    %307 = arith.mulf %243, %306 : vector<16x128xf32>
    %308 = arith.addf %304, %307 : vector<16x128xf32>
    %c52 = arith.constant 52 : index
    %c0_71 = arith.constant 0 : index
    %309 = vector.load %arg2[%c52, %c0_71] : memref<144x128xf32, #tpu.memory_space<vmem>>, vector<1x128xf32>
    %310 = vector.broadcast %309 : vector<1x128xf32> to vector<16x128xf32>
    %311 = arith.mulf %220, %310 : vector<16x128xf32>
    %312 = arith.addf %308, %311 : vector<16x128xf32>
    %c53 = arith.constant 53 : index
    %c0_72 = arith.constant 0 : index
    %313 = vector.load %arg2[%c53, %c0_72] : memref<144x128xf32, #tpu.memory_space<vmem>>, vector<1x128xf32>
    %314 = vector.broadcast %313 : vector<1x128xf32> to vector<16x128xf32>
    %315 = arith.mulf %244, %314 : vector<16x128xf32>
    %316 = arith.addf %312, %315 : vector<16x128xf32>
    %c81 = arith.constant 81 : index
    %c0_73 = arith.constant 0 : index
    %317 = vector.load %arg2[%c81, %c0_73] : memref<144x128xf32, #tpu.memory_space<vmem>>, vector<1x128xf32>
    %318 = vector.broadcast %317 : vector<1x128xf32> to vector<16x128xf32>
    %319 = arith.mulf %227, %318 : vector<16x128xf32>
    %320 = arith.addf %175, %319 : vector<16x128xf32>
    %c82 = arith.constant 82 : index
    %c0_74 = arith.constant 0 : index
    %321 = vector.load %arg2[%c82, %c0_74] : memref<144x128xf32, #tpu.memory_space<vmem>>, vector<1x128xf32>
    %322 = vector.broadcast %321 : vector<1x128xf32> to vector<16x128xf32>
    %323 = arith.mulf %217, %322 : vector<16x128xf32>
    %324 = arith.addf %320, %323 : vector<16x128xf32>
    %c83 = arith.constant 83 : index
    %c0_75 = arith.constant 0 : index
    %325 = vector.load %arg2[%c83, %c0_75] : memref<144x128xf32, #tpu.memory_space<vmem>>, vector<1x128xf32>
    %326 = vector.broadcast %325 : vector<1x128xf32> to vector<16x128xf32>
    %327 = arith.mulf %228, %326 : vector<16x128xf32>
    %328 = arith.addf %324, %327 : vector<16x128xf32>
    %c84 = arith.constant 84 : index
    %c0_76 = arith.constant 0 : index
    %329 = vector.load %arg2[%c84, %c0_76] : memref<144x128xf32, #tpu.memory_space<vmem>>, vector<1x128xf32>
    %330 = vector.broadcast %329 : vector<1x128xf32> to vector<16x128xf32>
    %331 = arith.mulf %235, %330 : vector<16x128xf32>
    %332 = arith.addf %328, %331 : vector<16x128xf32>
    %c85 = arith.constant 85 : index
    %c0_77 = arith.constant 0 : index
    %333 = vector.load %arg2[%c85, %c0_77] : memref<144x128xf32, #tpu.memory_space<vmem>>, vector<1x128xf32>
    %334 = vector.broadcast %333 : vector<1x128xf32> to vector<16x128xf32>
    %335 = arith.mulf %214, %334 : vector<16x128xf32>
    %336 = arith.addf %332, %335 : vector<16x128xf32>
    %c86 = arith.constant 86 : index
    %c0_78 = arith.constant 0 : index
    %337 = vector.load %arg2[%c86, %c0_78] : memref<144x128xf32, #tpu.memory_space<vmem>>, vector<1x128xf32>
    %338 = vector.broadcast %337 : vector<1x128xf32> to vector<16x128xf32>
    %339 = arith.mulf %236, %338 : vector<16x128xf32>
    %340 = arith.addf %336, %339 : vector<16x128xf32>
    %c87 = arith.constant 87 : index
    %c0_79 = arith.constant 0 : index
    %341 = vector.load %arg2[%c87, %c0_79] : memref<144x128xf32, #tpu.memory_space<vmem>>, vector<1x128xf32>
    %342 = vector.broadcast %341 : vector<1x128xf32> to vector<16x128xf32>
    %343 = arith.mulf %243, %342 : vector<16x128xf32>
    %344 = arith.addf %340, %343 : vector<16x128xf32>
    %c88 = arith.constant 88 : index
    %c0_80 = arith.constant 0 : index
    %345 = vector.load %arg2[%c88, %c0_80] : memref<144x128xf32, #tpu.memory_space<vmem>>, vector<1x128xf32>
    %346 = vector.broadcast %345 : vector<1x128xf32> to vector<16x128xf32>
    %347 = arith.mulf %220, %346 : vector<16x128xf32>
    %348 = arith.addf %344, %347 : vector<16x128xf32>
    %c89 = arith.constant 89 : index
    %c0_81 = arith.constant 0 : index
    %349 = vector.load %arg2[%c89, %c0_81] : memref<144x128xf32, #tpu.memory_space<vmem>>, vector<1x128xf32>
    %350 = vector.broadcast %349 : vector<1x128xf32> to vector<16x128xf32>
    %351 = arith.mulf %244, %350 : vector<16x128xf32>
    %352 = arith.addf %348, %351 : vector<16x128xf32>
    %c117 = arith.constant 117 : index
    %c0_82 = arith.constant 0 : index
    %353 = vector.load %arg2[%c117, %c0_82] : memref<144x128xf32, #tpu.memory_space<vmem>>, vector<1x128xf32>
    %354 = vector.broadcast %353 : vector<1x128xf32> to vector<16x128xf32>
    %355 = arith.mulf %227, %354 : vector<16x128xf32>
    %356 = arith.addf %210, %355 : vector<16x128xf32>
    %c118 = arith.constant 118 : index
    %c0_83 = arith.constant 0 : index
    %357 = vector.load %arg2[%c118, %c0_83] : memref<144x128xf32, #tpu.memory_space<vmem>>, vector<1x128xf32>
    %358 = vector.broadcast %357 : vector<1x128xf32> to vector<16x128xf32>
    %359 = arith.mulf %217, %358 : vector<16x128xf32>
    %360 = arith.addf %356, %359 : vector<16x128xf32>
    %c119 = arith.constant 119 : index
    %c0_84 = arith.constant 0 : index
    %361 = vector.load %arg2[%c119, %c0_84] : memref<144x128xf32, #tpu.memory_space<vmem>>, vector<1x128xf32>
    %362 = vector.broadcast %361 : vector<1x128xf32> to vector<16x128xf32>
    %363 = arith.mulf %228, %362 : vector<16x128xf32>
    %364 = arith.addf %360, %363 : vector<16x128xf32>
    %c120 = arith.constant 120 : index
    %c0_85 = arith.constant 0 : index
    %365 = vector.load %arg2[%c120, %c0_85] : memref<144x128xf32, #tpu.memory_space<vmem>>, vector<1x128xf32>
    %366 = vector.broadcast %365 : vector<1x128xf32> to vector<16x128xf32>
    %367 = arith.mulf %235, %366 : vector<16x128xf32>
    %368 = arith.addf %364, %367 : vector<16x128xf32>
    %c121 = arith.constant 121 : index
    %c0_86 = arith.constant 0 : index
    %369 = vector.load %arg2[%c121, %c0_86] : memref<144x128xf32, #tpu.memory_space<vmem>>, vector<1x128xf32>
    %370 = vector.broadcast %369 : vector<1x128xf32> to vector<16x128xf32>
    %371 = arith.mulf %214, %370 : vector<16x128xf32>
    %372 = arith.addf %368, %371 : vector<16x128xf32>
    %c122 = arith.constant 122 : index
    %c0_87 = arith.constant 0 : index
    %373 = vector.load %arg2[%c122, %c0_87] : memref<144x128xf32, #tpu.memory_space<vmem>>, vector<1x128xf32>
    %374 = vector.broadcast %373 : vector<1x128xf32> to vector<16x128xf32>
    %375 = arith.mulf %236, %374 : vector<16x128xf32>
    %376 = arith.addf %372, %375 : vector<16x128xf32>
    %c123 = arith.constant 123 : index
    %c0_88 = arith.constant 0 : index
    %377 = vector.load %arg2[%c123, %c0_88] : memref<144x128xf32, #tpu.memory_space<vmem>>, vector<1x128xf32>
    %378 = vector.broadcast %377 : vector<1x128xf32> to vector<16x128xf32>
    %379 = arith.mulf %243, %378 : vector<16x128xf32>
    %380 = arith.addf %376, %379 : vector<16x128xf32>
    %c124 = arith.constant 124 : index
    %c0_89 = arith.constant 0 : index
    %381 = vector.load %arg2[%c124, %c0_89] : memref<144x128xf32, #tpu.memory_space<vmem>>, vector<1x128xf32>
    %382 = vector.broadcast %381 : vector<1x128xf32> to vector<16x128xf32>
    %383 = arith.mulf %220, %382 : vector<16x128xf32>
    %384 = arith.addf %380, %383 : vector<16x128xf32>
    %c125 = arith.constant 125 : index
    %c0_90 = arith.constant 0 : index
    %385 = vector.load %arg2[%c125, %c0_90] : memref<144x128xf32, #tpu.memory_space<vmem>>, vector<1x128xf32>
    %386 = vector.broadcast %385 : vector<1x128xf32> to vector<16x128xf32>
    %387 = arith.mulf %244, %386 : vector<16x128xf32>
    %388 = arith.addf %384, %387 : vector<16x128xf32>
    %c0_91 = arith.constant 0 : index
    %c2_92 = arith.constant 2 : index
    %c0_93 = arith.constant 0 : index
    %c0_94 = arith.constant 0 : index
    %389 = vector.load %arg1[%c0_91, %c2_92, %c0_93, %c0_94] : memref<1x4x16x128xf32, #tpu.memory_space<vmem>>, vector<1x1x16x128xf32>
    %390 = vector.shape_cast %389 : vector<1x1x16x128xf32> to vector<16x128xf32>
    %cst_95 = arith.constant 0.000000e+00 : f32
    %391 = vector.broadcast %cst_95 : f32 to vector<16x128xf32>
    %392 = arith.maximumf %390, %391 : vector<16x128xf32>
    %393 = vector.extract_strided_slice %392 {offsets = [1, 0], sizes = [1, 128], strides = [1, 1]} : vector<16x128xf32> to vector<1x128xf32>
    %394 = vector.extract_strided_slice %392 {offsets = [0, 0], sizes = [15, 128], strides = [1, 1]} : vector<16x128xf32> to vector<15x128xf32>
    %395 = tpu.concatenate %393, %394 in 0 : vector<1x128xf32>, vector<15x128xf32> -> vector<16x128xf32>
    %396 = vector.extract_strided_slice %392 {offsets = [1, 0], sizes = [15, 128], strides = [1, 1]} : vector<16x128xf32> to vector<15x128xf32>
    %397 = vector.extract_strided_slice %392 {offsets = [14, 0], sizes = [1, 128], strides = [1, 1]} : vector<16x128xf32> to vector<1x128xf32>
    %398 = tpu.concatenate %396, %397 in 0 : vector<15x128xf32>, vector<1x128xf32> -> vector<16x128xf32>
    %399 = vector.extract_strided_slice %395 {offsets = [0, 127], sizes = [16, 1], strides = [1, 1]} : vector<16x128xf32> to vector<16x1xf32>
    %400 = vector.extract_strided_slice %395 {offsets = [0, 0], sizes = [16, 127], strides = [1, 1]} : vector<16x128xf32> to vector<16x127xf32>
    %401 = tpu.concatenate %399, %400 in 1 : vector<16x1xf32>, vector<16x127xf32> -> vector<16x128xf32>
    %402 = vector.extract_strided_slice %395 {offsets = [0, 1], sizes = [16, 127], strides = [1, 1]} : vector<16x128xf32> to vector<16x127xf32>
    %403 = vector.extract_strided_slice %395 {offsets = [0, 0], sizes = [16, 1], strides = [1, 1]} : vector<16x128xf32> to vector<16x1xf32>
    %404 = tpu.concatenate %402, %403 in 1 : vector<16x127xf32>, vector<16x1xf32> -> vector<16x128xf32>
    %405 = arith.select %18, %404, %401 : vector<16x128xi1>, vector<16x128xf32>
    %406 = arith.select %36, %401, %404 : vector<16x128xi1>, vector<16x128xf32>
    %407 = vector.extract_strided_slice %392 {offsets = [0, 127], sizes = [16, 1], strides = [1, 1]} : vector<16x128xf32> to vector<16x1xf32>
    %408 = vector.extract_strided_slice %392 {offsets = [0, 0], sizes = [16, 127], strides = [1, 1]} : vector<16x128xf32> to vector<16x127xf32>
    %409 = tpu.concatenate %407, %408 in 1 : vector<16x1xf32>, vector<16x127xf32> -> vector<16x128xf32>
    %410 = vector.extract_strided_slice %392 {offsets = [0, 1], sizes = [16, 127], strides = [1, 1]} : vector<16x128xf32> to vector<16x127xf32>
    %411 = vector.extract_strided_slice %392 {offsets = [0, 0], sizes = [16, 1], strides = [1, 1]} : vector<16x128xf32> to vector<16x1xf32>
    %412 = tpu.concatenate %410, %411 in 1 : vector<16x127xf32>, vector<16x1xf32> -> vector<16x128xf32>
    %413 = arith.select %18, %412, %409 : vector<16x128xi1>, vector<16x128xf32>
    %414 = arith.select %36, %409, %412 : vector<16x128xi1>, vector<16x128xf32>
    %415 = vector.extract_strided_slice %398 {offsets = [0, 127], sizes = [16, 1], strides = [1, 1]} : vector<16x128xf32> to vector<16x1xf32>
    %416 = vector.extract_strided_slice %398 {offsets = [0, 0], sizes = [16, 127], strides = [1, 1]} : vector<16x128xf32> to vector<16x127xf32>
    %417 = tpu.concatenate %415, %416 in 1 : vector<16x1xf32>, vector<16x127xf32> -> vector<16x128xf32>
    %418 = vector.extract_strided_slice %398 {offsets = [0, 1], sizes = [16, 127], strides = [1, 1]} : vector<16x128xf32> to vector<16x127xf32>
    %419 = vector.extract_strided_slice %398 {offsets = [0, 0], sizes = [16, 1], strides = [1, 1]} : vector<16x128xf32> to vector<16x1xf32>
    %420 = tpu.concatenate %418, %419 in 1 : vector<16x127xf32>, vector<16x1xf32> -> vector<16x128xf32>
    %421 = arith.select %18, %420, %417 : vector<16x128xi1>, vector<16x128xf32>
    %422 = arith.select %36, %417, %420 : vector<16x128xi1>, vector<16x128xf32>
    %c18 = arith.constant 18 : index
    %c0_96 = arith.constant 0 : index
    %423 = vector.load %arg2[%c18, %c0_96] : memref<144x128xf32, #tpu.memory_space<vmem>>, vector<1x128xf32>
    %424 = vector.broadcast %423 : vector<1x128xf32> to vector<16x128xf32>
    %425 = arith.mulf %405, %424 : vector<16x128xf32>
    %426 = arith.addf %280, %425 : vector<16x128xf32>
    %c19 = arith.constant 19 : index
    %c0_97 = arith.constant 0 : index
    %427 = vector.load %arg2[%c19, %c0_97] : memref<144x128xf32, #tpu.memory_space<vmem>>, vector<1x128xf32>
    %428 = vector.broadcast %427 : vector<1x128xf32> to vector<16x128xf32>
    %429 = arith.mulf %395, %428 : vector<16x128xf32>
    %430 = arith.addf %426, %429 : vector<16x128xf32>
    %c20 = arith.constant 20 : index
    %c0_98 = arith.constant 0 : index
    %431 = vector.load %arg2[%c20, %c0_98] : memref<144x128xf32, #tpu.memory_space<vmem>>, vector<1x128xf32>
    %432 = vector.broadcast %431 : vector<1x128xf32> to vector<16x128xf32>
    %433 = arith.mulf %406, %432 : vector<16x128xf32>
    %434 = arith.addf %430, %433 : vector<16x128xf32>
    %c21 = arith.constant 21 : index
    %c0_99 = arith.constant 0 : index
    %435 = vector.load %arg2[%c21, %c0_99] : memref<144x128xf32, #tpu.memory_space<vmem>>, vector<1x128xf32>
    %436 = vector.broadcast %435 : vector<1x128xf32> to vector<16x128xf32>
    %437 = arith.mulf %413, %436 : vector<16x128xf32>
    %438 = arith.addf %434, %437 : vector<16x128xf32>
    %c22 = arith.constant 22 : index
    %c0_100 = arith.constant 0 : index
    %439 = vector.load %arg2[%c22, %c0_100] : memref<144x128xf32, #tpu.memory_space<vmem>>, vector<1x128xf32>
    %440 = vector.broadcast %439 : vector<1x128xf32> to vector<16x128xf32>
    %441 = arith.mulf %392, %440 : vector<16x128xf32>
    %442 = arith.addf %438, %441 : vector<16x128xf32>
    %c23 = arith.constant 23 : index
    %c0_101 = arith.constant 0 : index
    %443 = vector.load %arg2[%c23, %c0_101] : memref<144x128xf32, #tpu.memory_space<vmem>>, vector<1x128xf32>
    %444 = vector.broadcast %443 : vector<1x128xf32> to vector<16x128xf32>
    %445 = arith.mulf %414, %444 : vector<16x128xf32>
    %446 = arith.addf %442, %445 : vector<16x128xf32>
    %c24 = arith.constant 24 : index
    %c0_102 = arith.constant 0 : index
    %447 = vector.load %arg2[%c24, %c0_102] : memref<144x128xf32, #tpu.memory_space<vmem>>, vector<1x128xf32>
    %448 = vector.broadcast %447 : vector<1x128xf32> to vector<16x128xf32>
    %449 = arith.mulf %421, %448 : vector<16x128xf32>
    %450 = arith.addf %446, %449 : vector<16x128xf32>
    %c25 = arith.constant 25 : index
    %c0_103 = arith.constant 0 : index
    %451 = vector.load %arg2[%c25, %c0_103] : memref<144x128xf32, #tpu.memory_space<vmem>>, vector<1x128xf32>
    %452 = vector.broadcast %451 : vector<1x128xf32> to vector<16x128xf32>
    %453 = arith.mulf %398, %452 : vector<16x128xf32>
    %454 = arith.addf %450, %453 : vector<16x128xf32>
    %c26 = arith.constant 26 : index
    %c0_104 = arith.constant 0 : index
    %455 = vector.load %arg2[%c26, %c0_104] : memref<144x128xf32, #tpu.memory_space<vmem>>, vector<1x128xf32>
    %456 = vector.broadcast %455 : vector<1x128xf32> to vector<16x128xf32>
    %457 = arith.mulf %422, %456 : vector<16x128xf32>
    %458 = arith.addf %454, %457 : vector<16x128xf32>
    %c54 = arith.constant 54 : index
    %c0_105 = arith.constant 0 : index
    %459 = vector.load %arg2[%c54, %c0_105] : memref<144x128xf32, #tpu.memory_space<vmem>>, vector<1x128xf32>
    %460 = vector.broadcast %459 : vector<1x128xf32> to vector<16x128xf32>
    %461 = arith.mulf %405, %460 : vector<16x128xf32>
    %462 = arith.addf %316, %461 : vector<16x128xf32>
    %c55 = arith.constant 55 : index
    %c0_106 = arith.constant 0 : index
    %463 = vector.load %arg2[%c55, %c0_106] : memref<144x128xf32, #tpu.memory_space<vmem>>, vector<1x128xf32>
    %464 = vector.broadcast %463 : vector<1x128xf32> to vector<16x128xf32>
    %465 = arith.mulf %395, %464 : vector<16x128xf32>
    %466 = arith.addf %462, %465 : vector<16x128xf32>
    %c56 = arith.constant 56 : index
    %c0_107 = arith.constant 0 : index
    %467 = vector.load %arg2[%c56, %c0_107] : memref<144x128xf32, #tpu.memory_space<vmem>>, vector<1x128xf32>
    %468 = vector.broadcast %467 : vector<1x128xf32> to vector<16x128xf32>
    %469 = arith.mulf %406, %468 : vector<16x128xf32>
    %470 = arith.addf %466, %469 : vector<16x128xf32>
    %c57 = arith.constant 57 : index
    %c0_108 = arith.constant 0 : index
    %471 = vector.load %arg2[%c57, %c0_108] : memref<144x128xf32, #tpu.memory_space<vmem>>, vector<1x128xf32>
    %472 = vector.broadcast %471 : vector<1x128xf32> to vector<16x128xf32>
    %473 = arith.mulf %413, %472 : vector<16x128xf32>
    %474 = arith.addf %470, %473 : vector<16x128xf32>
    %c58 = arith.constant 58 : index
    %c0_109 = arith.constant 0 : index
    %475 = vector.load %arg2[%c58, %c0_109] : memref<144x128xf32, #tpu.memory_space<vmem>>, vector<1x128xf32>
    %476 = vector.broadcast %475 : vector<1x128xf32> to vector<16x128xf32>
    %477 = arith.mulf %392, %476 : vector<16x128xf32>
    %478 = arith.addf %474, %477 : vector<16x128xf32>
    %c59 = arith.constant 59 : index
    %c0_110 = arith.constant 0 : index
    %479 = vector.load %arg2[%c59, %c0_110] : memref<144x128xf32, #tpu.memory_space<vmem>>, vector<1x128xf32>
    %480 = vector.broadcast %479 : vector<1x128xf32> to vector<16x128xf32>
    %481 = arith.mulf %414, %480 : vector<16x128xf32>
    %482 = arith.addf %478, %481 : vector<16x128xf32>
    %c60 = arith.constant 60 : index
    %c0_111 = arith.constant 0 : index
    %483 = vector.load %arg2[%c60, %c0_111] : memref<144x128xf32, #tpu.memory_space<vmem>>, vector<1x128xf32>
    %484 = vector.broadcast %483 : vector<1x128xf32> to vector<16x128xf32>
    %485 = arith.mulf %421, %484 : vector<16x128xf32>
    %486 = arith.addf %482, %485 : vector<16x128xf32>
    %c61 = arith.constant 61 : index
    %c0_112 = arith.constant 0 : index
    %487 = vector.load %arg2[%c61, %c0_112] : memref<144x128xf32, #tpu.memory_space<vmem>>, vector<1x128xf32>
    %488 = vector.broadcast %487 : vector<1x128xf32> to vector<16x128xf32>
    %489 = arith.mulf %398, %488 : vector<16x128xf32>
    %490 = arith.addf %486, %489 : vector<16x128xf32>
    %c62 = arith.constant 62 : index
    %c0_113 = arith.constant 0 : index
    %491 = vector.load %arg2[%c62, %c0_113] : memref<144x128xf32, #tpu.memory_space<vmem>>, vector<1x128xf32>
    %492 = vector.broadcast %491 : vector<1x128xf32> to vector<16x128xf32>
    %493 = arith.mulf %422, %492 : vector<16x128xf32>
    %494 = arith.addf %490, %493 : vector<16x128xf32>
    %c90 = arith.constant 90 : index
    %c0_114 = arith.constant 0 : index
    %495 = vector.load %arg2[%c90, %c0_114] : memref<144x128xf32, #tpu.memory_space<vmem>>, vector<1x128xf32>
    %496 = vector.broadcast %495 : vector<1x128xf32> to vector<16x128xf32>
    %497 = arith.mulf %405, %496 : vector<16x128xf32>
    %498 = arith.addf %352, %497 : vector<16x128xf32>
    %c91 = arith.constant 91 : index
    %c0_115 = arith.constant 0 : index
    %499 = vector.load %arg2[%c91, %c0_115] : memref<144x128xf32, #tpu.memory_space<vmem>>, vector<1x128xf32>
    %500 = vector.broadcast %499 : vector<1x128xf32> to vector<16x128xf32>
    %501 = arith.mulf %395, %500 : vector<16x128xf32>
    %502 = arith.addf %498, %501 : vector<16x128xf32>
    %c92 = arith.constant 92 : index
    %c0_116 = arith.constant 0 : index
    %503 = vector.load %arg2[%c92, %c0_116] : memref<144x128xf32, #tpu.memory_space<vmem>>, vector<1x128xf32>
    %504 = vector.broadcast %503 : vector<1x128xf32> to vector<16x128xf32>
    %505 = arith.mulf %406, %504 : vector<16x128xf32>
    %506 = arith.addf %502, %505 : vector<16x128xf32>
    %c93 = arith.constant 93 : index
    %c0_117 = arith.constant 0 : index
    %507 = vector.load %arg2[%c93, %c0_117] : memref<144x128xf32, #tpu.memory_space<vmem>>, vector<1x128xf32>
    %508 = vector.broadcast %507 : vector<1x128xf32> to vector<16x128xf32>
    %509 = arith.mulf %413, %508 : vector<16x128xf32>
    %510 = arith.addf %506, %509 : vector<16x128xf32>
    %c94 = arith.constant 94 : index
    %c0_118 = arith.constant 0 : index
    %511 = vector.load %arg2[%c94, %c0_118] : memref<144x128xf32, #tpu.memory_space<vmem>>, vector<1x128xf32>
    %512 = vector.broadcast %511 : vector<1x128xf32> to vector<16x128xf32>
    %513 = arith.mulf %392, %512 : vector<16x128xf32>
    %514 = arith.addf %510, %513 : vector<16x128xf32>
    %c95 = arith.constant 95 : index
    %c0_119 = arith.constant 0 : index
    %515 = vector.load %arg2[%c95, %c0_119] : memref<144x128xf32, #tpu.memory_space<vmem>>, vector<1x128xf32>
    %516 = vector.broadcast %515 : vector<1x128xf32> to vector<16x128xf32>
    %517 = arith.mulf %414, %516 : vector<16x128xf32>
    %518 = arith.addf %514, %517 : vector<16x128xf32>
    %c96 = arith.constant 96 : index
    %c0_120 = arith.constant 0 : index
    %519 = vector.load %arg2[%c96, %c0_120] : memref<144x128xf32, #tpu.memory_space<vmem>>, vector<1x128xf32>
    %520 = vector.broadcast %519 : vector<1x128xf32> to vector<16x128xf32>
    %521 = arith.mulf %421, %520 : vector<16x128xf32>
    %522 = arith.addf %518, %521 : vector<16x128xf32>
    %c97 = arith.constant 97 : index
    %c0_121 = arith.constant 0 : index
    %523 = vector.load %arg2[%c97, %c0_121] : memref<144x128xf32, #tpu.memory_space<vmem>>, vector<1x128xf32>
    %524 = vector.broadcast %523 : vector<1x128xf32> to vector<16x128xf32>
    %525 = arith.mulf %398, %524 : vector<16x128xf32>
    %526 = arith.addf %522, %525 : vector<16x128xf32>
    %c98 = arith.constant 98 : index
    %c0_122 = arith.constant 0 : index
    %527 = vector.load %arg2[%c98, %c0_122] : memref<144x128xf32, #tpu.memory_space<vmem>>, vector<1x128xf32>
    %528 = vector.broadcast %527 : vector<1x128xf32> to vector<16x128xf32>
    %529 = arith.mulf %422, %528 : vector<16x128xf32>
    %530 = arith.addf %526, %529 : vector<16x128xf32>
    %c126 = arith.constant 126 : index
    %c0_123 = arith.constant 0 : index
    %531 = vector.load %arg2[%c126, %c0_123] : memref<144x128xf32, #tpu.memory_space<vmem>>, vector<1x128xf32>
    %532 = vector.broadcast %531 : vector<1x128xf32> to vector<16x128xf32>
    %533 = arith.mulf %405, %532 : vector<16x128xf32>
    %534 = arith.addf %388, %533 : vector<16x128xf32>
    %c127 = arith.constant 127 : index
    %c0_124 = arith.constant 0 : index
    %535 = vector.load %arg2[%c127, %c0_124] : memref<144x128xf32, #tpu.memory_space<vmem>>, vector<1x128xf32>
    %536 = vector.broadcast %535 : vector<1x128xf32> to vector<16x128xf32>
    %537 = arith.mulf %395, %536 : vector<16x128xf32>
    %538 = arith.addf %534, %537 : vector<16x128xf32>
    %c128 = arith.constant 128 : index
    %c0_125 = arith.constant 0 : index
    %539 = vector.load %arg2[%c128, %c0_125] : memref<144x128xf32, #tpu.memory_space<vmem>>, vector<1x128xf32>
    %540 = vector.broadcast %539 : vector<1x128xf32> to vector<16x128xf32>
    %541 = arith.mulf %406, %540 : vector<16x128xf32>
    %542 = arith.addf %538, %541 : vector<16x128xf32>
    %c129 = arith.constant 129 : index
    %c0_126 = arith.constant 0 : index
    %543 = vector.load %arg2[%c129, %c0_126] : memref<144x128xf32, #tpu.memory_space<vmem>>, vector<1x128xf32>
    %544 = vector.broadcast %543 : vector<1x128xf32> to vector<16x128xf32>
    %545 = arith.mulf %413, %544 : vector<16x128xf32>
    %546 = arith.addf %542, %545 : vector<16x128xf32>
    %c130 = arith.constant 130 : index
    %c0_127 = arith.constant 0 : index
    %547 = vector.load %arg2[%c130, %c0_127] : memref<144x128xf32, #tpu.memory_space<vmem>>, vector<1x128xf32>
    %548 = vector.broadcast %547 : vector<1x128xf32> to vector<16x128xf32>
    %549 = arith.mulf %392, %548 : vector<16x128xf32>
    %550 = arith.addf %546, %549 : vector<16x128xf32>
    %c131 = arith.constant 131 : index
    %c0_128 = arith.constant 0 : index
    %551 = vector.load %arg2[%c131, %c0_128] : memref<144x128xf32, #tpu.memory_space<vmem>>, vector<1x128xf32>
    %552 = vector.broadcast %551 : vector<1x128xf32> to vector<16x128xf32>
    %553 = arith.mulf %414, %552 : vector<16x128xf32>
    %554 = arith.addf %550, %553 : vector<16x128xf32>
    %c132 = arith.constant 132 : index
    %c0_129 = arith.constant 0 : index
    %555 = vector.load %arg2[%c132, %c0_129] : memref<144x128xf32, #tpu.memory_space<vmem>>, vector<1x128xf32>
    %556 = vector.broadcast %555 : vector<1x128xf32> to vector<16x128xf32>
    %557 = arith.mulf %421, %556 : vector<16x128xf32>
    %558 = arith.addf %554, %557 : vector<16x128xf32>
    %c133 = arith.constant 133 : index
    %c0_130 = arith.constant 0 : index
    %559 = vector.load %arg2[%c133, %c0_130] : memref<144x128xf32, #tpu.memory_space<vmem>>, vector<1x128xf32>
    %560 = vector.broadcast %559 : vector<1x128xf32> to vector<16x128xf32>
    %561 = arith.mulf %398, %560 : vector<16x128xf32>
    %562 = arith.addf %558, %561 : vector<16x128xf32>
    %c134 = arith.constant 134 : index
    %c0_131 = arith.constant 0 : index
    %563 = vector.load %arg2[%c134, %c0_131] : memref<144x128xf32, #tpu.memory_space<vmem>>, vector<1x128xf32>
    %564 = vector.broadcast %563 : vector<1x128xf32> to vector<16x128xf32>
    %565 = arith.mulf %422, %564 : vector<16x128xf32>
    %566 = arith.addf %562, %565 : vector<16x128xf32>
    %c0_132 = arith.constant 0 : index
    %c3_133 = arith.constant 3 : index
    %c0_134 = arith.constant 0 : index
    %c0_135 = arith.constant 0 : index
    %567 = vector.load %arg1[%c0_132, %c3_133, %c0_134, %c0_135] : memref<1x4x16x128xf32, #tpu.memory_space<vmem>>, vector<1x1x16x128xf32>
    %568 = vector.shape_cast %567 : vector<1x1x16x128xf32> to vector<16x128xf32>
    %cst_136 = arith.constant 0.000000e+00 : f32
    %569 = vector.broadcast %cst_136 : f32 to vector<16x128xf32>
    %570 = arith.maximumf %568, %569 : vector<16x128xf32>
    %571 = vector.extract_strided_slice %570 {offsets = [1, 0], sizes = [1, 128], strides = [1, 1]} : vector<16x128xf32> to vector<1x128xf32>
    %572 = vector.extract_strided_slice %570 {offsets = [0, 0], sizes = [15, 128], strides = [1, 1]} : vector<16x128xf32> to vector<15x128xf32>
    %573 = tpu.concatenate %571, %572 in 0 : vector<1x128xf32>, vector<15x128xf32> -> vector<16x128xf32>
    %574 = vector.extract_strided_slice %570 {offsets = [1, 0], sizes = [15, 128], strides = [1, 1]} : vector<16x128xf32> to vector<15x128xf32>
    %575 = vector.extract_strided_slice %570 {offsets = [14, 0], sizes = [1, 128], strides = [1, 1]} : vector<16x128xf32> to vector<1x128xf32>
    %576 = tpu.concatenate %574, %575 in 0 : vector<15x128xf32>, vector<1x128xf32> -> vector<16x128xf32>
    %577 = vector.extract_strided_slice %573 {offsets = [0, 127], sizes = [16, 1], strides = [1, 1]} : vector<16x128xf32> to vector<16x1xf32>
    %578 = vector.extract_strided_slice %573 {offsets = [0, 0], sizes = [16, 127], strides = [1, 1]} : vector<16x128xf32> to vector<16x127xf32>
    %579 = tpu.concatenate %577, %578 in 1 : vector<16x1xf32>, vector<16x127xf32> -> vector<16x128xf32>
    %580 = vector.extract_strided_slice %573 {offsets = [0, 1], sizes = [16, 127], strides = [1, 1]} : vector<16x128xf32> to vector<16x127xf32>
    %581 = vector.extract_strided_slice %573 {offsets = [0, 0], sizes = [16, 1], strides = [1, 1]} : vector<16x128xf32> to vector<16x1xf32>
    %582 = tpu.concatenate %580, %581 in 1 : vector<16x127xf32>, vector<16x1xf32> -> vector<16x128xf32>
    %583 = arith.select %18, %582, %579 : vector<16x128xi1>, vector<16x128xf32>
    %584 = arith.select %36, %579, %582 : vector<16x128xi1>, vector<16x128xf32>
    %585 = vector.extract_strided_slice %570 {offsets = [0, 127], sizes = [16, 1], strides = [1, 1]} : vector<16x128xf32> to vector<16x1xf32>
    %586 = vector.extract_strided_slice %570 {offsets = [0, 0], sizes = [16, 127], strides = [1, 1]} : vector<16x128xf32> to vector<16x127xf32>
    %587 = tpu.concatenate %585, %586 in 1 : vector<16x1xf32>, vector<16x127xf32> -> vector<16x128xf32>
    %588 = vector.extract_strided_slice %570 {offsets = [0, 1], sizes = [16, 127], strides = [1, 1]} : vector<16x128xf32> to vector<16x127xf32>
    %589 = vector.extract_strided_slice %570 {offsets = [0, 0], sizes = [16, 1], strides = [1, 1]} : vector<16x128xf32> to vector<16x1xf32>
    %590 = tpu.concatenate %588, %589 in 1 : vector<16x127xf32>, vector<16x1xf32> -> vector<16x128xf32>
    %591 = arith.select %18, %590, %587 : vector<16x128xi1>, vector<16x128xf32>
    %592 = arith.select %36, %587, %590 : vector<16x128xi1>, vector<16x128xf32>
    %593 = vector.extract_strided_slice %576 {offsets = [0, 127], sizes = [16, 1], strides = [1, 1]} : vector<16x128xf32> to vector<16x1xf32>
    %594 = vector.extract_strided_slice %576 {offsets = [0, 0], sizes = [16, 127], strides = [1, 1]} : vector<16x128xf32> to vector<16x127xf32>
    %595 = tpu.concatenate %593, %594 in 1 : vector<16x1xf32>, vector<16x127xf32> -> vector<16x128xf32>
    %596 = vector.extract_strided_slice %576 {offsets = [0, 1], sizes = [16, 127], strides = [1, 1]} : vector<16x128xf32> to vector<16x127xf32>
    %597 = vector.extract_strided_slice %576 {offsets = [0, 0], sizes = [16, 1], strides = [1, 1]} : vector<16x128xf32> to vector<16x1xf32>
    %598 = tpu.concatenate %596, %597 in 1 : vector<16x127xf32>, vector<16x1xf32> -> vector<16x128xf32>
    %599 = arith.select %18, %598, %595 : vector<16x128xi1>, vector<16x128xf32>
    %600 = arith.select %36, %595, %598 : vector<16x128xi1>, vector<16x128xf32>
    %c27 = arith.constant 27 : index
    %c0_137 = arith.constant 0 : index
    %601 = vector.load %arg2[%c27, %c0_137] : memref<144x128xf32, #tpu.memory_space<vmem>>, vector<1x128xf32>
    %602 = vector.broadcast %601 : vector<1x128xf32> to vector<16x128xf32>
    %603 = arith.mulf %583, %602 : vector<16x128xf32>
    %604 = arith.addf %458, %603 : vector<16x128xf32>
    %c28 = arith.constant 28 : index
    %c0_138 = arith.constant 0 : index
    %605 = vector.load %arg2[%c28, %c0_138] : memref<144x128xf32, #tpu.memory_space<vmem>>, vector<1x128xf32>
    %606 = vector.broadcast %605 : vector<1x128xf32> to vector<16x128xf32>
    %607 = arith.mulf %573, %606 : vector<16x128xf32>
    %608 = arith.addf %604, %607 : vector<16x128xf32>
    %c29 = arith.constant 29 : index
    %c0_139 = arith.constant 0 : index
    %609 = vector.load %arg2[%c29, %c0_139] : memref<144x128xf32, #tpu.memory_space<vmem>>, vector<1x128xf32>
    %610 = vector.broadcast %609 : vector<1x128xf32> to vector<16x128xf32>
    %611 = arith.mulf %584, %610 : vector<16x128xf32>
    %612 = arith.addf %608, %611 : vector<16x128xf32>
    %c30 = arith.constant 30 : index
    %c0_140 = arith.constant 0 : index
    %613 = vector.load %arg2[%c30, %c0_140] : memref<144x128xf32, #tpu.memory_space<vmem>>, vector<1x128xf32>
    %614 = vector.broadcast %613 : vector<1x128xf32> to vector<16x128xf32>
    %615 = arith.mulf %591, %614 : vector<16x128xf32>
    %616 = arith.addf %612, %615 : vector<16x128xf32>
    %c31 = arith.constant 31 : index
    %c0_141 = arith.constant 0 : index
    %617 = vector.load %arg2[%c31, %c0_141] : memref<144x128xf32, #tpu.memory_space<vmem>>, vector<1x128xf32>
    %618 = vector.broadcast %617 : vector<1x128xf32> to vector<16x128xf32>
    %619 = arith.mulf %570, %618 : vector<16x128xf32>
    %620 = arith.addf %616, %619 : vector<16x128xf32>
    %c32 = arith.constant 32 : index
    %c0_142 = arith.constant 0 : index
    %621 = vector.load %arg2[%c32, %c0_142] : memref<144x128xf32, #tpu.memory_space<vmem>>, vector<1x128xf32>
    %622 = vector.broadcast %621 : vector<1x128xf32> to vector<16x128xf32>
    %623 = arith.mulf %592, %622 : vector<16x128xf32>
    %624 = arith.addf %620, %623 : vector<16x128xf32>
    %c33 = arith.constant 33 : index
    %c0_143 = arith.constant 0 : index
    %625 = vector.load %arg2[%c33, %c0_143] : memref<144x128xf32, #tpu.memory_space<vmem>>, vector<1x128xf32>
    %626 = vector.broadcast %625 : vector<1x128xf32> to vector<16x128xf32>
    %627 = arith.mulf %599, %626 : vector<16x128xf32>
    %628 = arith.addf %624, %627 : vector<16x128xf32>
    %c34 = arith.constant 34 : index
    %c0_144 = arith.constant 0 : index
    %629 = vector.load %arg2[%c34, %c0_144] : memref<144x128xf32, #tpu.memory_space<vmem>>, vector<1x128xf32>
    %630 = vector.broadcast %629 : vector<1x128xf32> to vector<16x128xf32>
    %631 = arith.mulf %576, %630 : vector<16x128xf32>
    %632 = arith.addf %628, %631 : vector<16x128xf32>
    %c35 = arith.constant 35 : index
    %c0_145 = arith.constant 0 : index
    %633 = vector.load %arg2[%c35, %c0_145] : memref<144x128xf32, #tpu.memory_space<vmem>>, vector<1x128xf32>
    %634 = vector.broadcast %633 : vector<1x128xf32> to vector<16x128xf32>
    %635 = arith.mulf %600, %634 : vector<16x128xf32>
    %636 = arith.addf %632, %635 : vector<16x128xf32>
    %c63 = arith.constant 63 : index
    %c0_146 = arith.constant 0 : index
    %637 = vector.load %arg2[%c63, %c0_146] : memref<144x128xf32, #tpu.memory_space<vmem>>, vector<1x128xf32>
    %638 = vector.broadcast %637 : vector<1x128xf32> to vector<16x128xf32>
    %639 = arith.mulf %583, %638 : vector<16x128xf32>
    %640 = arith.addf %494, %639 : vector<16x128xf32>
    %c64 = arith.constant 64 : index
    %c0_147 = arith.constant 0 : index
    %641 = vector.load %arg2[%c64, %c0_147] : memref<144x128xf32, #tpu.memory_space<vmem>>, vector<1x128xf32>
    %642 = vector.broadcast %641 : vector<1x128xf32> to vector<16x128xf32>
    %643 = arith.mulf %573, %642 : vector<16x128xf32>
    %644 = arith.addf %640, %643 : vector<16x128xf32>
    %c65 = arith.constant 65 : index
    %c0_148 = arith.constant 0 : index
    %645 = vector.load %arg2[%c65, %c0_148] : memref<144x128xf32, #tpu.memory_space<vmem>>, vector<1x128xf32>
    %646 = vector.broadcast %645 : vector<1x128xf32> to vector<16x128xf32>
    %647 = arith.mulf %584, %646 : vector<16x128xf32>
    %648 = arith.addf %644, %647 : vector<16x128xf32>
    %c66 = arith.constant 66 : index
    %c0_149 = arith.constant 0 : index
    %649 = vector.load %arg2[%c66, %c0_149] : memref<144x128xf32, #tpu.memory_space<vmem>>, vector<1x128xf32>
    %650 = vector.broadcast %649 : vector<1x128xf32> to vector<16x128xf32>
    %651 = arith.mulf %591, %650 : vector<16x128xf32>
    %652 = arith.addf %648, %651 : vector<16x128xf32>
    %c67 = arith.constant 67 : index
    %c0_150 = arith.constant 0 : index
    %653 = vector.load %arg2[%c67, %c0_150] : memref<144x128xf32, #tpu.memory_space<vmem>>, vector<1x128xf32>
    %654 = vector.broadcast %653 : vector<1x128xf32> to vector<16x128xf32>
    %655 = arith.mulf %570, %654 : vector<16x128xf32>
    %656 = arith.addf %652, %655 : vector<16x128xf32>
    %c68 = arith.constant 68 : index
    %c0_151 = arith.constant 0 : index
    %657 = vector.load %arg2[%c68, %c0_151] : memref<144x128xf32, #tpu.memory_space<vmem>>, vector<1x128xf32>
    %658 = vector.broadcast %657 : vector<1x128xf32> to vector<16x128xf32>
    %659 = arith.mulf %592, %658 : vector<16x128xf32>
    %660 = arith.addf %656, %659 : vector<16x128xf32>
    %c69 = arith.constant 69 : index
    %c0_152 = arith.constant 0 : index
    %661 = vector.load %arg2[%c69, %c0_152] : memref<144x128xf32, #tpu.memory_space<vmem>>, vector<1x128xf32>
    %662 = vector.broadcast %661 : vector<1x128xf32> to vector<16x128xf32>
    %663 = arith.mulf %599, %662 : vector<16x128xf32>
    %664 = arith.addf %660, %663 : vector<16x128xf32>
    %c70 = arith.constant 70 : index
    %c0_153 = arith.constant 0 : index
    %665 = vector.load %arg2[%c70, %c0_153] : memref<144x128xf32, #tpu.memory_space<vmem>>, vector<1x128xf32>
    %666 = vector.broadcast %665 : vector<1x128xf32> to vector<16x128xf32>
    %667 = arith.mulf %576, %666 : vector<16x128xf32>
    %668 = arith.addf %664, %667 : vector<16x128xf32>
    %c71 = arith.constant 71 : index
    %c0_154 = arith.constant 0 : index
    %669 = vector.load %arg2[%c71, %c0_154] : memref<144x128xf32, #tpu.memory_space<vmem>>, vector<1x128xf32>
    %670 = vector.broadcast %669 : vector<1x128xf32> to vector<16x128xf32>
    %671 = arith.mulf %600, %670 : vector<16x128xf32>
    %672 = arith.addf %668, %671 : vector<16x128xf32>
    %c99 = arith.constant 99 : index
    %c0_155 = arith.constant 0 : index
    %673 = vector.load %arg2[%c99, %c0_155] : memref<144x128xf32, #tpu.memory_space<vmem>>, vector<1x128xf32>
    %674 = vector.broadcast %673 : vector<1x128xf32> to vector<16x128xf32>
    %675 = arith.mulf %583, %674 : vector<16x128xf32>
    %676 = arith.addf %530, %675 : vector<16x128xf32>
    %c100 = arith.constant 100 : index
    %c0_156 = arith.constant 0 : index
    %677 = vector.load %arg2[%c100, %c0_156] : memref<144x128xf32, #tpu.memory_space<vmem>>, vector<1x128xf32>
    %678 = vector.broadcast %677 : vector<1x128xf32> to vector<16x128xf32>
    %679 = arith.mulf %573, %678 : vector<16x128xf32>
    %680 = arith.addf %676, %679 : vector<16x128xf32>
    %c101 = arith.constant 101 : index
    %c0_157 = arith.constant 0 : index
    %681 = vector.load %arg2[%c101, %c0_157] : memref<144x128xf32, #tpu.memory_space<vmem>>, vector<1x128xf32>
    %682 = vector.broadcast %681 : vector<1x128xf32> to vector<16x128xf32>
    %683 = arith.mulf %584, %682 : vector<16x128xf32>
    %684 = arith.addf %680, %683 : vector<16x128xf32>
    %c102 = arith.constant 102 : index
    %c0_158 = arith.constant 0 : index
    %685 = vector.load %arg2[%c102, %c0_158] : memref<144x128xf32, #tpu.memory_space<vmem>>, vector<1x128xf32>
    %686 = vector.broadcast %685 : vector<1x128xf32> to vector<16x128xf32>
    %687 = arith.mulf %591, %686 : vector<16x128xf32>
    %688 = arith.addf %684, %687 : vector<16x128xf32>
    %c103 = arith.constant 103 : index
    %c0_159 = arith.constant 0 : index
    %689 = vector.load %arg2[%c103, %c0_159] : memref<144x128xf32, #tpu.memory_space<vmem>>, vector<1x128xf32>
    %690 = vector.broadcast %689 : vector<1x128xf32> to vector<16x128xf32>
    %691 = arith.mulf %570, %690 : vector<16x128xf32>
    %692 = arith.addf %688, %691 : vector<16x128xf32>
    %c104 = arith.constant 104 : index
    %c0_160 = arith.constant 0 : index
    %693 = vector.load %arg2[%c104, %c0_160] : memref<144x128xf32, #tpu.memory_space<vmem>>, vector<1x128xf32>
    %694 = vector.broadcast %693 : vector<1x128xf32> to vector<16x128xf32>
    %695 = arith.mulf %592, %694 : vector<16x128xf32>
    %696 = arith.addf %692, %695 : vector<16x128xf32>
    %c105 = arith.constant 105 : index
    %c0_161 = arith.constant 0 : index
    %697 = vector.load %arg2[%c105, %c0_161] : memref<144x128xf32, #tpu.memory_space<vmem>>, vector<1x128xf32>
    %698 = vector.broadcast %697 : vector<1x128xf32> to vector<16x128xf32>
    %699 = arith.mulf %599, %698 : vector<16x128xf32>
    %700 = arith.addf %696, %699 : vector<16x128xf32>
    %c106 = arith.constant 106 : index
    %c0_162 = arith.constant 0 : index
    %701 = vector.load %arg2[%c106, %c0_162] : memref<144x128xf32, #tpu.memory_space<vmem>>, vector<1x128xf32>
    %702 = vector.broadcast %701 : vector<1x128xf32> to vector<16x128xf32>
    %703 = arith.mulf %576, %702 : vector<16x128xf32>
    %704 = arith.addf %700, %703 : vector<16x128xf32>
    %c107 = arith.constant 107 : index
    %c0_163 = arith.constant 0 : index
    %705 = vector.load %arg2[%c107, %c0_163] : memref<144x128xf32, #tpu.memory_space<vmem>>, vector<1x128xf32>
    %706 = vector.broadcast %705 : vector<1x128xf32> to vector<16x128xf32>
    %707 = arith.mulf %600, %706 : vector<16x128xf32>
    %708 = arith.addf %704, %707 : vector<16x128xf32>
    %c135 = arith.constant 135 : index
    %c0_164 = arith.constant 0 : index
    %709 = vector.load %arg2[%c135, %c0_164] : memref<144x128xf32, #tpu.memory_space<vmem>>, vector<1x128xf32>
    %710 = vector.broadcast %709 : vector<1x128xf32> to vector<16x128xf32>
    %711 = arith.mulf %583, %710 : vector<16x128xf32>
    %712 = arith.addf %566, %711 : vector<16x128xf32>
    %c136 = arith.constant 136 : index
    %c0_165 = arith.constant 0 : index
    %713 = vector.load %arg2[%c136, %c0_165] : memref<144x128xf32, #tpu.memory_space<vmem>>, vector<1x128xf32>
    %714 = vector.broadcast %713 : vector<1x128xf32> to vector<16x128xf32>
    %715 = arith.mulf %573, %714 : vector<16x128xf32>
    %716 = arith.addf %712, %715 : vector<16x128xf32>
    %c137 = arith.constant 137 : index
    %c0_166 = arith.constant 0 : index
    %717 = vector.load %arg2[%c137, %c0_166] : memref<144x128xf32, #tpu.memory_space<vmem>>, vector<1x128xf32>
    %718 = vector.broadcast %717 : vector<1x128xf32> to vector<16x128xf32>
    %719 = arith.mulf %584, %718 : vector<16x128xf32>
    %720 = arith.addf %716, %719 : vector<16x128xf32>
    %c138 = arith.constant 138 : index
    %c0_167 = arith.constant 0 : index
    %721 = vector.load %arg2[%c138, %c0_167] : memref<144x128xf32, #tpu.memory_space<vmem>>, vector<1x128xf32>
    %722 = vector.broadcast %721 : vector<1x128xf32> to vector<16x128xf32>
    %723 = arith.mulf %591, %722 : vector<16x128xf32>
    %724 = arith.addf %720, %723 : vector<16x128xf32>
    %c139 = arith.constant 139 : index
    %c0_168 = arith.constant 0 : index
    %725 = vector.load %arg2[%c139, %c0_168] : memref<144x128xf32, #tpu.memory_space<vmem>>, vector<1x128xf32>
    %726 = vector.broadcast %725 : vector<1x128xf32> to vector<16x128xf32>
    %727 = arith.mulf %570, %726 : vector<16x128xf32>
    %728 = arith.addf %724, %727 : vector<16x128xf32>
    %c140 = arith.constant 140 : index
    %c0_169 = arith.constant 0 : index
    %729 = vector.load %arg2[%c140, %c0_169] : memref<144x128xf32, #tpu.memory_space<vmem>>, vector<1x128xf32>
    %730 = vector.broadcast %729 : vector<1x128xf32> to vector<16x128xf32>
    %731 = arith.mulf %592, %730 : vector<16x128xf32>
    %732 = arith.addf %728, %731 : vector<16x128xf32>
    %c141 = arith.constant 141 : index
    %c0_170 = arith.constant 0 : index
    %733 = vector.load %arg2[%c141, %c0_170] : memref<144x128xf32, #tpu.memory_space<vmem>>, vector<1x128xf32>
    %734 = vector.broadcast %733 : vector<1x128xf32> to vector<16x128xf32>
    %735 = arith.mulf %599, %734 : vector<16x128xf32>
    %736 = arith.addf %732, %735 : vector<16x128xf32>
    %c142 = arith.constant 142 : index
    %c0_171 = arith.constant 0 : index
    %737 = vector.load %arg2[%c142, %c0_171] : memref<144x128xf32, #tpu.memory_space<vmem>>, vector<1x128xf32>
    %738 = vector.broadcast %737 : vector<1x128xf32> to vector<16x128xf32>
    %739 = arith.mulf %576, %738 : vector<16x128xf32>
    %740 = arith.addf %736, %739 : vector<16x128xf32>
    %c143 = arith.constant 143 : index
    %c0_172 = arith.constant 0 : index
    %741 = vector.load %arg2[%c143, %c0_172] : memref<144x128xf32, #tpu.memory_space<vmem>>, vector<1x128xf32>
    %742 = vector.broadcast %741 : vector<1x128xf32> to vector<16x128xf32>
    %743 = arith.mulf %600, %742 : vector<16x128xf32>
    %744 = arith.addf %740, %743 : vector<16x128xf32>
    %c0_173 = arith.constant 0 : index
    %c0_174 = arith.constant 0 : index
    %745 = vector.load %arg3[%c0_173, %c0_174] : memref<4x128xf32, #tpu.memory_space<vmem>>, vector<1x128xf32>
    %746 = vector.broadcast %745 : vector<1x128xf32> to vector<16x128xf32>
    %747 = arith.addf %636, %746 : vector<16x128xf32>
    %cst_175 = arith.constant 0.000000e+00 : f32
    %748 = vector.broadcast %cst_175 : f32 to vector<16x128xf32>
    %749 = arith.maximumf %747, %748 : vector<16x128xf32>
    %c1_176 = arith.constant 1 : index
    %c0_177 = arith.constant 0 : index
    %750 = vector.load %arg3[%c1_176, %c0_177] : memref<4x128xf32, #tpu.memory_space<vmem>>, vector<1x128xf32>
    %751 = vector.broadcast %750 : vector<1x128xf32> to vector<16x128xf32>
    %752 = arith.addf %672, %751 : vector<16x128xf32>
    %cst_178 = arith.constant 0.000000e+00 : f32
    %753 = vector.broadcast %cst_178 : f32 to vector<16x128xf32>
    %754 = arith.maximumf %752, %753 : vector<16x128xf32>
    %c2_179 = arith.constant 2 : index
    %c0_180 = arith.constant 0 : index
    %755 = vector.load %arg3[%c2_179, %c0_180] : memref<4x128xf32, #tpu.memory_space<vmem>>, vector<1x128xf32>
    %756 = vector.broadcast %755 : vector<1x128xf32> to vector<16x128xf32>
    %757 = arith.addf %708, %756 : vector<16x128xf32>
    %cst_181 = arith.constant 0.000000e+00 : f32
    %758 = vector.broadcast %cst_181 : f32 to vector<16x128xf32>
    %759 = arith.maximumf %757, %758 : vector<16x128xf32>
    %c3_182 = arith.constant 3 : index
    %c0_183 = arith.constant 0 : index
    %760 = vector.load %arg3[%c3_182, %c0_183] : memref<4x128xf32, #tpu.memory_space<vmem>>, vector<1x128xf32>
    %761 = vector.broadcast %760 : vector<1x128xf32> to vector<16x128xf32>
    %762 = arith.addf %744, %761 : vector<16x128xf32>
    %cst_184 = arith.constant 0.000000e+00 : f32
    %763 = vector.broadcast %cst_184 : f32 to vector<16x128xf32>
    %764 = arith.maximumf %762, %763 : vector<16x128xf32>
    %c0_185 = arith.constant 0 : index
    %c0_186 = arith.constant 0 : index
    %c0_187 = arith.constant 0 : index
    %c0_188 = arith.constant 0 : index
    %765 = vector.load %arg1[%c0_185, %c0_186, %c0_187, %c0_188] : memref<1x4x16x128xf32, #tpu.memory_space<vmem>>, vector<1x1x16x128xf32>
    %766 = vector.shape_cast %765 : vector<1x1x16x128xf32> to vector<16x128xf32>
    %c0_189 = arith.constant 0 : index
    %c0_190 = arith.constant 0 : index
    %767 = vector.load %arg5[%c0_189, %c0_190] : memref<32x128xf32, #tpu.memory_space<vmem>>, vector<1x128xf32>
    %768 = vector.broadcast %767 : vector<1x128xf32> to vector<16x128xf32>
    %769 = arith.mulf %766, %768 : vector<16x128xf32>
    %c4_191 = arith.constant 4 : index
    %c0_192 = arith.constant 0 : index
    %770 = vector.load %arg5[%c4_191, %c0_192] : memref<32x128xf32, #tpu.memory_space<vmem>>, vector<1x128xf32>
    %771 = vector.broadcast %770 : vector<1x128xf32> to vector<16x128xf32>
    %772 = arith.mulf %766, %771 : vector<16x128xf32>
    %c8_193 = arith.constant 8 : index
    %c0_194 = arith.constant 0 : index
    %773 = vector.load %arg5[%c8_193, %c0_194] : memref<32x128xf32, #tpu.memory_space<vmem>>, vector<1x128xf32>
    %774 = vector.broadcast %773 : vector<1x128xf32> to vector<16x128xf32>
    %775 = arith.mulf %766, %774 : vector<16x128xf32>
    %c12_195 = arith.constant 12 : index
    %c0_196 = arith.constant 0 : index
    %776 = vector.load %arg5[%c12_195, %c0_196] : memref<32x128xf32, #tpu.memory_space<vmem>>, vector<1x128xf32>
    %777 = vector.broadcast %776 : vector<1x128xf32> to vector<16x128xf32>
    %778 = arith.mulf %766, %777 : vector<16x128xf32>
    %c16_197 = arith.constant 16 : index
    %c0_198 = arith.constant 0 : index
    %779 = vector.load %arg5[%c16_197, %c0_198] : memref<32x128xf32, #tpu.memory_space<vmem>>, vector<1x128xf32>
    %780 = vector.broadcast %779 : vector<1x128xf32> to vector<16x128xf32>
    %781 = arith.mulf %766, %780 : vector<16x128xf32>
    %c20_199 = arith.constant 20 : index
    %c0_200 = arith.constant 0 : index
    %782 = vector.load %arg5[%c20_199, %c0_200] : memref<32x128xf32, #tpu.memory_space<vmem>>, vector<1x128xf32>
    %783 = vector.broadcast %782 : vector<1x128xf32> to vector<16x128xf32>
    %784 = arith.mulf %766, %783 : vector<16x128xf32>
    %c24_201 = arith.constant 24 : index
    %c0_202 = arith.constant 0 : index
    %785 = vector.load %arg5[%c24_201, %c0_202] : memref<32x128xf32, #tpu.memory_space<vmem>>, vector<1x128xf32>
    %786 = vector.broadcast %785 : vector<1x128xf32> to vector<16x128xf32>
    %787 = arith.mulf %766, %786 : vector<16x128xf32>
    %c28_203 = arith.constant 28 : index
    %c0_204 = arith.constant 0 : index
    %788 = vector.load %arg5[%c28_203, %c0_204] : memref<32x128xf32, #tpu.memory_space<vmem>>, vector<1x128xf32>
    %789 = vector.broadcast %788 : vector<1x128xf32> to vector<16x128xf32>
    %790 = arith.mulf %766, %789 : vector<16x128xf32>
    %c0_205 = arith.constant 0 : index
    %c1_206 = arith.constant 1 : index
    %c0_207 = arith.constant 0 : index
    %c0_208 = arith.constant 0 : index
    %791 = vector.load %arg1[%c0_205, %c1_206, %c0_207, %c0_208] : memref<1x4x16x128xf32, #tpu.memory_space<vmem>>, vector<1x1x16x128xf32>
    %792 = vector.shape_cast %791 : vector<1x1x16x128xf32> to vector<16x128xf32>
    %c1_209 = arith.constant 1 : index
    %c0_210 = arith.constant 0 : index
    %793 = vector.load %arg5[%c1_209, %c0_210] : memref<32x128xf32, #tpu.memory_space<vmem>>, vector<1x128xf32>
    %794 = vector.broadcast %793 : vector<1x128xf32> to vector<16x128xf32>
    %795 = arith.mulf %792, %794 : vector<16x128xf32>
    %796 = arith.addf %769, %795 : vector<16x128xf32>
    %c5_211 = arith.constant 5 : index
    %c0_212 = arith.constant 0 : index
    %797 = vector.load %arg5[%c5_211, %c0_212] : memref<32x128xf32, #tpu.memory_space<vmem>>, vector<1x128xf32>
    %798 = vector.broadcast %797 : vector<1x128xf32> to vector<16x128xf32>
    %799 = arith.mulf %792, %798 : vector<16x128xf32>
    %800 = arith.addf %772, %799 : vector<16x128xf32>
    %c9_213 = arith.constant 9 : index
    %c0_214 = arith.constant 0 : index
    %801 = vector.load %arg5[%c9_213, %c0_214] : memref<32x128xf32, #tpu.memory_space<vmem>>, vector<1x128xf32>
    %802 = vector.broadcast %801 : vector<1x128xf32> to vector<16x128xf32>
    %803 = arith.mulf %792, %802 : vector<16x128xf32>
    %804 = arith.addf %775, %803 : vector<16x128xf32>
    %c13_215 = arith.constant 13 : index
    %c0_216 = arith.constant 0 : index
    %805 = vector.load %arg5[%c13_215, %c0_216] : memref<32x128xf32, #tpu.memory_space<vmem>>, vector<1x128xf32>
    %806 = vector.broadcast %805 : vector<1x128xf32> to vector<16x128xf32>
    %807 = arith.mulf %792, %806 : vector<16x128xf32>
    %808 = arith.addf %778, %807 : vector<16x128xf32>
    %c17_217 = arith.constant 17 : index
    %c0_218 = arith.constant 0 : index
    %809 = vector.load %arg5[%c17_217, %c0_218] : memref<32x128xf32, #tpu.memory_space<vmem>>, vector<1x128xf32>
    %810 = vector.broadcast %809 : vector<1x128xf32> to vector<16x128xf32>
    %811 = arith.mulf %792, %810 : vector<16x128xf32>
    %812 = arith.addf %781, %811 : vector<16x128xf32>
    %c21_219 = arith.constant 21 : index
    %c0_220 = arith.constant 0 : index
    %813 = vector.load %arg5[%c21_219, %c0_220] : memref<32x128xf32, #tpu.memory_space<vmem>>, vector<1x128xf32>
    %814 = vector.broadcast %813 : vector<1x128xf32> to vector<16x128xf32>
    %815 = arith.mulf %792, %814 : vector<16x128xf32>
    %816 = arith.addf %784, %815 : vector<16x128xf32>
    %c25_221 = arith.constant 25 : index
    %c0_222 = arith.constant 0 : index
    %817 = vector.load %arg5[%c25_221, %c0_222] : memref<32x128xf32, #tpu.memory_space<vmem>>, vector<1x128xf32>
    %818 = vector.broadcast %817 : vector<1x128xf32> to vector<16x128xf32>
    %819 = arith.mulf %792, %818 : vector<16x128xf32>
    %820 = arith.addf %787, %819 : vector<16x128xf32>
    %c29_223 = arith.constant 29 : index
    %c0_224 = arith.constant 0 : index
    %821 = vector.load %arg5[%c29_223, %c0_224] : memref<32x128xf32, #tpu.memory_space<vmem>>, vector<1x128xf32>
    %822 = vector.broadcast %821 : vector<1x128xf32> to vector<16x128xf32>
    %823 = arith.mulf %792, %822 : vector<16x128xf32>
    %824 = arith.addf %790, %823 : vector<16x128xf32>
    %c0_225 = arith.constant 0 : index
    %c2_226 = arith.constant 2 : index
    %c0_227 = arith.constant 0 : index
    %c0_228 = arith.constant 0 : index
    %825 = vector.load %arg1[%c0_225, %c2_226, %c0_227, %c0_228] : memref<1x4x16x128xf32, #tpu.memory_space<vmem>>, vector<1x1x16x128xf32>
    %826 = vector.shape_cast %825 : vector<1x1x16x128xf32> to vector<16x128xf32>
    %c2_229 = arith.constant 2 : index
    %c0_230 = arith.constant 0 : index
    %827 = vector.load %arg5[%c2_229, %c0_230] : memref<32x128xf32, #tpu.memory_space<vmem>>, vector<1x128xf32>
    %828 = vector.broadcast %827 : vector<1x128xf32> to vector<16x128xf32>
    %829 = arith.mulf %826, %828 : vector<16x128xf32>
    %830 = arith.addf %796, %829 : vector<16x128xf32>
    %c6_231 = arith.constant 6 : index
    %c0_232 = arith.constant 0 : index
    %831 = vector.load %arg5[%c6_231, %c0_232] : memref<32x128xf32, #tpu.memory_space<vmem>>, vector<1x128xf32>
    %832 = vector.broadcast %831 : vector<1x128xf32> to vector<16x128xf32>
    %833 = arith.mulf %826, %832 : vector<16x128xf32>
    %834 = arith.addf %800, %833 : vector<16x128xf32>
    %c10_233 = arith.constant 10 : index
    %c0_234 = arith.constant 0 : index
    %835 = vector.load %arg5[%c10_233, %c0_234] : memref<32x128xf32, #tpu.memory_space<vmem>>, vector<1x128xf32>
    %836 = vector.broadcast %835 : vector<1x128xf32> to vector<16x128xf32>
    %837 = arith.mulf %826, %836 : vector<16x128xf32>
    %838 = arith.addf %804, %837 : vector<16x128xf32>
    %c14_235 = arith.constant 14 : index
    %c0_236 = arith.constant 0 : index
    %839 = vector.load %arg5[%c14_235, %c0_236] : memref<32x128xf32, #tpu.memory_space<vmem>>, vector<1x128xf32>
    %840 = vector.broadcast %839 : vector<1x128xf32> to vector<16x128xf32>
    %841 = arith.mulf %826, %840 : vector<16x128xf32>
    %842 = arith.addf %808, %841 : vector<16x128xf32>
    %c18_237 = arith.constant 18 : index
    %c0_238 = arith.constant 0 : index
    %843 = vector.load %arg5[%c18_237, %c0_238] : memref<32x128xf32, #tpu.memory_space<vmem>>, vector<1x128xf32>
    %844 = vector.broadcast %843 : vector<1x128xf32> to vector<16x128xf32>
    %845 = arith.mulf %826, %844 : vector<16x128xf32>
    %846 = arith.addf %812, %845 : vector<16x128xf32>
    %c22_239 = arith.constant 22 : index
    %c0_240 = arith.constant 0 : index
    %847 = vector.load %arg5[%c22_239, %c0_240] : memref<32x128xf32, #tpu.memory_space<vmem>>, vector<1x128xf32>
    %848 = vector.broadcast %847 : vector<1x128xf32> to vector<16x128xf32>
    %849 = arith.mulf %826, %848 : vector<16x128xf32>
    %850 = arith.addf %816, %849 : vector<16x128xf32>
    %c26_241 = arith.constant 26 : index
    %c0_242 = arith.constant 0 : index
    %851 = vector.load %arg5[%c26_241, %c0_242] : memref<32x128xf32, #tpu.memory_space<vmem>>, vector<1x128xf32>
    %852 = vector.broadcast %851 : vector<1x128xf32> to vector<16x128xf32>
    %853 = arith.mulf %826, %852 : vector<16x128xf32>
    %854 = arith.addf %820, %853 : vector<16x128xf32>
    %c30_243 = arith.constant 30 : index
    %c0_244 = arith.constant 0 : index
    %855 = vector.load %arg5[%c30_243, %c0_244] : memref<32x128xf32, #tpu.memory_space<vmem>>, vector<1x128xf32>
    %856 = vector.broadcast %855 : vector<1x128xf32> to vector<16x128xf32>
    %857 = arith.mulf %826, %856 : vector<16x128xf32>
    %858 = arith.addf %824, %857 : vector<16x128xf32>
    %c0_245 = arith.constant 0 : index
    %c3_246 = arith.constant 3 : index
    %c0_247 = arith.constant 0 : index
    %c0_248 = arith.constant 0 : index
    %859 = vector.load %arg1[%c0_245, %c3_246, %c0_247, %c0_248] : memref<1x4x16x128xf32, #tpu.memory_space<vmem>>, vector<1x1x16x128xf32>
    %860 = vector.shape_cast %859 : vector<1x1x16x128xf32> to vector<16x128xf32>
    %c3_249 = arith.constant 3 : index
    %c0_250 = arith.constant 0 : index
    %861 = vector.load %arg5[%c3_249, %c0_250] : memref<32x128xf32, #tpu.memory_space<vmem>>, vector<1x128xf32>
    %862 = vector.broadcast %861 : vector<1x128xf32> to vector<16x128xf32>
    %863 = arith.mulf %860, %862 : vector<16x128xf32>
    %864 = arith.addf %830, %863 : vector<16x128xf32>
    %c7_251 = arith.constant 7 : index
    %c0_252 = arith.constant 0 : index
    %865 = vector.load %arg5[%c7_251, %c0_252] : memref<32x128xf32, #tpu.memory_space<vmem>>, vector<1x128xf32>
    %866 = vector.broadcast %865 : vector<1x128xf32> to vector<16x128xf32>
    %867 = arith.mulf %860, %866 : vector<16x128xf32>
    %868 = arith.addf %834, %867 : vector<16x128xf32>
    %c11_253 = arith.constant 11 : index
    %c0_254 = arith.constant 0 : index
    %869 = vector.load %arg5[%c11_253, %c0_254] : memref<32x128xf32, #tpu.memory_space<vmem>>, vector<1x128xf32>
    %870 = vector.broadcast %869 : vector<1x128xf32> to vector<16x128xf32>
    %871 = arith.mulf %860, %870 : vector<16x128xf32>
    %872 = arith.addf %838, %871 : vector<16x128xf32>
    %c15_255 = arith.constant 15 : index
    %c0_256 = arith.constant 0 : index
    %873 = vector.load %arg5[%c15_255, %c0_256] : memref<32x128xf32, #tpu.memory_space<vmem>>, vector<1x128xf32>
    %874 = vector.broadcast %873 : vector<1x128xf32> to vector<16x128xf32>
    %875 = arith.mulf %860, %874 : vector<16x128xf32>
    %876 = arith.addf %842, %875 : vector<16x128xf32>
    %c19_257 = arith.constant 19 : index
    %c0_258 = arith.constant 0 : index
    %877 = vector.load %arg5[%c19_257, %c0_258] : memref<32x128xf32, #tpu.memory_space<vmem>>, vector<1x128xf32>
    %878 = vector.broadcast %877 : vector<1x128xf32> to vector<16x128xf32>
    %879 = arith.mulf %860, %878 : vector<16x128xf32>
    %880 = arith.addf %846, %879 : vector<16x128xf32>
    %c23_259 = arith.constant 23 : index
    %c0_260 = arith.constant 0 : index
    %881 = vector.load %arg5[%c23_259, %c0_260] : memref<32x128xf32, #tpu.memory_space<vmem>>, vector<1x128xf32>
    %882 = vector.broadcast %881 : vector<1x128xf32> to vector<16x128xf32>
    %883 = arith.mulf %860, %882 : vector<16x128xf32>
    %884 = arith.addf %850, %883 : vector<16x128xf32>
    %c27_261 = arith.constant 27 : index
    %c0_262 = arith.constant 0 : index
    %885 = vector.load %arg5[%c27_261, %c0_262] : memref<32x128xf32, #tpu.memory_space<vmem>>, vector<1x128xf32>
    %886 = vector.broadcast %885 : vector<1x128xf32> to vector<16x128xf32>
    %887 = arith.mulf %860, %886 : vector<16x128xf32>
    %888 = arith.addf %854, %887 : vector<16x128xf32>
    %c31_263 = arith.constant 31 : index
    %c0_264 = arith.constant 0 : index
    %889 = vector.load %arg5[%c31_263, %c0_264] : memref<32x128xf32, #tpu.memory_space<vmem>>, vector<1x128xf32>
    %890 = vector.broadcast %889 : vector<1x128xf32> to vector<16x128xf32>
    %891 = arith.mulf %860, %890 : vector<16x128xf32>
    %892 = arith.addf %858, %891 : vector<16x128xf32>
    %893 = vector.extract_strided_slice %749 {offsets = [1, 0], sizes = [1, 128], strides = [1, 1]} : vector<16x128xf32> to vector<1x128xf32>
    %894 = vector.extract_strided_slice %749 {offsets = [0, 0], sizes = [15, 128], strides = [1, 1]} : vector<16x128xf32> to vector<15x128xf32>
    %895 = tpu.concatenate %893, %894 in 0 : vector<1x128xf32>, vector<15x128xf32> -> vector<16x128xf32>
    %896 = vector.extract_strided_slice %749 {offsets = [1, 0], sizes = [15, 128], strides = [1, 1]} : vector<16x128xf32> to vector<15x128xf32>
    %897 = vector.extract_strided_slice %749 {offsets = [14, 0], sizes = [1, 128], strides = [1, 1]} : vector<16x128xf32> to vector<1x128xf32>
    %898 = tpu.concatenate %896, %897 in 0 : vector<15x128xf32>, vector<1x128xf32> -> vector<16x128xf32>
    %899 = vector.extract_strided_slice %895 {offsets = [0, 127], sizes = [16, 1], strides = [1, 1]} : vector<16x128xf32> to vector<16x1xf32>
    %900 = vector.extract_strided_slice %895 {offsets = [0, 0], sizes = [16, 127], strides = [1, 1]} : vector<16x128xf32> to vector<16x127xf32>
    %901 = tpu.concatenate %899, %900 in 1 : vector<16x1xf32>, vector<16x127xf32> -> vector<16x128xf32>
    %902 = vector.extract_strided_slice %895 {offsets = [0, 1], sizes = [16, 127], strides = [1, 1]} : vector<16x128xf32> to vector<16x127xf32>
    %903 = vector.extract_strided_slice %895 {offsets = [0, 0], sizes = [16, 1], strides = [1, 1]} : vector<16x128xf32> to vector<16x1xf32>
    %904 = tpu.concatenate %902, %903 in 1 : vector<16x127xf32>, vector<16x1xf32> -> vector<16x128xf32>
    %905 = arith.select %18, %904, %901 : vector<16x128xi1>, vector<16x128xf32>
    %906 = arith.select %36, %901, %904 : vector<16x128xi1>, vector<16x128xf32>
    %907 = vector.extract_strided_slice %749 {offsets = [0, 127], sizes = [16, 1], strides = [1, 1]} : vector<16x128xf32> to vector<16x1xf32>
    %908 = vector.extract_strided_slice %749 {offsets = [0, 0], sizes = [16, 127], strides = [1, 1]} : vector<16x128xf32> to vector<16x127xf32>
    %909 = tpu.concatenate %907, %908 in 1 : vector<16x1xf32>, vector<16x127xf32> -> vector<16x128xf32>
    %910 = vector.extract_strided_slice %749 {offsets = [0, 1], sizes = [16, 127], strides = [1, 1]} : vector<16x128xf32> to vector<16x127xf32>
    %911 = vector.extract_strided_slice %749 {offsets = [0, 0], sizes = [16, 1], strides = [1, 1]} : vector<16x128xf32> to vector<16x1xf32>
    %912 = tpu.concatenate %910, %911 in 1 : vector<16x127xf32>, vector<16x1xf32> -> vector<16x128xf32>
    %913 = arith.select %18, %912, %909 : vector<16x128xi1>, vector<16x128xf32>
    %914 = arith.select %36, %909, %912 : vector<16x128xi1>, vector<16x128xf32>
    %915 = vector.extract_strided_slice %898 {offsets = [0, 127], sizes = [16, 1], strides = [1, 1]} : vector<16x128xf32> to vector<16x1xf32>
    %916 = vector.extract_strided_slice %898 {offsets = [0, 0], sizes = [16, 127], strides = [1, 1]} : vector<16x128xf32> to vector<16x127xf32>
    %917 = tpu.concatenate %915, %916 in 1 : vector<16x1xf32>, vector<16x127xf32> -> vector<16x128xf32>
    %918 = vector.extract_strided_slice %898 {offsets = [0, 1], sizes = [16, 127], strides = [1, 1]} : vector<16x128xf32> to vector<16x127xf32>
    %919 = vector.extract_strided_slice %898 {offsets = [0, 0], sizes = [16, 1], strides = [1, 1]} : vector<16x128xf32> to vector<16x1xf32>
    %920 = tpu.concatenate %918, %919 in 1 : vector<16x127xf32>, vector<16x1xf32> -> vector<16x128xf32>
    %921 = arith.select %18, %920, %917 : vector<16x128xi1>, vector<16x128xf32>
    %922 = arith.select %36, %917, %920 : vector<16x128xi1>, vector<16x128xf32>
    %c0_265 = arith.constant 0 : index
    %c0_266 = arith.constant 0 : index
    %923 = vector.load %arg4[%c0_265, %c0_266] : memref<288x128xf32, #tpu.memory_space<vmem>>, vector<1x128xf32>
    %924 = vector.broadcast %923 : vector<1x128xf32> to vector<16x128xf32>
    %925 = arith.mulf %905, %924 : vector<16x128xf32>
    %926 = arith.addf %864, %925 : vector<16x128xf32>
    %c1_267 = arith.constant 1 : index
    %c0_268 = arith.constant 0 : index
    %927 = vector.load %arg4[%c1_267, %c0_268] : memref<288x128xf32, #tpu.memory_space<vmem>>, vector<1x128xf32>
    %928 = vector.broadcast %927 : vector<1x128xf32> to vector<16x128xf32>
    %929 = arith.mulf %895, %928 : vector<16x128xf32>
    %930 = arith.addf %926, %929 : vector<16x128xf32>
    %c2_269 = arith.constant 2 : index
    %c0_270 = arith.constant 0 : index
    %931 = vector.load %arg4[%c2_269, %c0_270] : memref<288x128xf32, #tpu.memory_space<vmem>>, vector<1x128xf32>
    %932 = vector.broadcast %931 : vector<1x128xf32> to vector<16x128xf32>
    %933 = arith.mulf %906, %932 : vector<16x128xf32>
    %934 = arith.addf %930, %933 : vector<16x128xf32>
    %c3_271 = arith.constant 3 : index
    %c0_272 = arith.constant 0 : index
    %935 = vector.load %arg4[%c3_271, %c0_272] : memref<288x128xf32, #tpu.memory_space<vmem>>, vector<1x128xf32>
    %936 = vector.broadcast %935 : vector<1x128xf32> to vector<16x128xf32>
    %937 = arith.mulf %913, %936 : vector<16x128xf32>
    %938 = arith.addf %934, %937 : vector<16x128xf32>
    %c4_273 = arith.constant 4 : index
    %c0_274 = arith.constant 0 : index
    %939 = vector.load %arg4[%c4_273, %c0_274] : memref<288x128xf32, #tpu.memory_space<vmem>>, vector<1x128xf32>
    %940 = vector.broadcast %939 : vector<1x128xf32> to vector<16x128xf32>
    %941 = arith.mulf %749, %940 : vector<16x128xf32>
    %942 = arith.addf %938, %941 : vector<16x128xf32>
    %c5_275 = arith.constant 5 : index
    %c0_276 = arith.constant 0 : index
    %943 = vector.load %arg4[%c5_275, %c0_276] : memref<288x128xf32, #tpu.memory_space<vmem>>, vector<1x128xf32>
    %944 = vector.broadcast %943 : vector<1x128xf32> to vector<16x128xf32>
    %945 = arith.mulf %914, %944 : vector<16x128xf32>
    %946 = arith.addf %942, %945 : vector<16x128xf32>
    %c6_277 = arith.constant 6 : index
    %c0_278 = arith.constant 0 : index
    %947 = vector.load %arg4[%c6_277, %c0_278] : memref<288x128xf32, #tpu.memory_space<vmem>>, vector<1x128xf32>
    %948 = vector.broadcast %947 : vector<1x128xf32> to vector<16x128xf32>
    %949 = arith.mulf %921, %948 : vector<16x128xf32>
    %950 = arith.addf %946, %949 : vector<16x128xf32>
    %c7_279 = arith.constant 7 : index
    %c0_280 = arith.constant 0 : index
    %951 = vector.load %arg4[%c7_279, %c0_280] : memref<288x128xf32, #tpu.memory_space<vmem>>, vector<1x128xf32>
    %952 = vector.broadcast %951 : vector<1x128xf32> to vector<16x128xf32>
    %953 = arith.mulf %898, %952 : vector<16x128xf32>
    %954 = arith.addf %950, %953 : vector<16x128xf32>
    %c8_281 = arith.constant 8 : index
    %c0_282 = arith.constant 0 : index
    %955 = vector.load %arg4[%c8_281, %c0_282] : memref<288x128xf32, #tpu.memory_space<vmem>>, vector<1x128xf32>
    %956 = vector.broadcast %955 : vector<1x128xf32> to vector<16x128xf32>
    %957 = arith.mulf %922, %956 : vector<16x128xf32>
    %958 = arith.addf %954, %957 : vector<16x128xf32>
    %c36_283 = arith.constant 36 : index
    %c0_284 = arith.constant 0 : index
    %959 = vector.load %arg4[%c36_283, %c0_284] : memref<288x128xf32, #tpu.memory_space<vmem>>, vector<1x128xf32>
    %960 = vector.broadcast %959 : vector<1x128xf32> to vector<16x128xf32>
    %961 = arith.mulf %905, %960 : vector<16x128xf32>
    %962 = arith.addf %868, %961 : vector<16x128xf32>
    %c37_285 = arith.constant 37 : index
    %c0_286 = arith.constant 0 : index
    %963 = vector.load %arg4[%c37_285, %c0_286] : memref<288x128xf32, #tpu.memory_space<vmem>>, vector<1x128xf32>
    %964 = vector.broadcast %963 : vector<1x128xf32> to vector<16x128xf32>
    %965 = arith.mulf %895, %964 : vector<16x128xf32>
    %966 = arith.addf %962, %965 : vector<16x128xf32>
    %c38_287 = arith.constant 38 : index
    %c0_288 = arith.constant 0 : index
    %967 = vector.load %arg4[%c38_287, %c0_288] : memref<288x128xf32, #tpu.memory_space<vmem>>, vector<1x128xf32>
    %968 = vector.broadcast %967 : vector<1x128xf32> to vector<16x128xf32>
    %969 = arith.mulf %906, %968 : vector<16x128xf32>
    %970 = arith.addf %966, %969 : vector<16x128xf32>
    %c39_289 = arith.constant 39 : index
    %c0_290 = arith.constant 0 : index
    %971 = vector.load %arg4[%c39_289, %c0_290] : memref<288x128xf32, #tpu.memory_space<vmem>>, vector<1x128xf32>
    %972 = vector.broadcast %971 : vector<1x128xf32> to vector<16x128xf32>
    %973 = arith.mulf %913, %972 : vector<16x128xf32>
    %974 = arith.addf %970, %973 : vector<16x128xf32>
    %c40_291 = arith.constant 40 : index
    %c0_292 = arith.constant 0 : index
    %975 = vector.load %arg4[%c40_291, %c0_292] : memref<288x128xf32, #tpu.memory_space<vmem>>, vector<1x128xf32>
    %976 = vector.broadcast %975 : vector<1x128xf32> to vector<16x128xf32>
    %977 = arith.mulf %749, %976 : vector<16x128xf32>
    %978 = arith.addf %974, %977 : vector<16x128xf32>
    %c41_293 = arith.constant 41 : index
    %c0_294 = arith.constant 0 : index
    %979 = vector.load %arg4[%c41_293, %c0_294] : memref<288x128xf32, #tpu.memory_space<vmem>>, vector<1x128xf32>
    %980 = vector.broadcast %979 : vector<1x128xf32> to vector<16x128xf32>
    %981 = arith.mulf %914, %980 : vector<16x128xf32>
    %982 = arith.addf %978, %981 : vector<16x128xf32>
    %c42_295 = arith.constant 42 : index
    %c0_296 = arith.constant 0 : index
    %983 = vector.load %arg4[%c42_295, %c0_296] : memref<288x128xf32, #tpu.memory_space<vmem>>, vector<1x128xf32>
    %984 = vector.broadcast %983 : vector<1x128xf32> to vector<16x128xf32>
    %985 = arith.mulf %921, %984 : vector<16x128xf32>
    %986 = arith.addf %982, %985 : vector<16x128xf32>
    %c43_297 = arith.constant 43 : index
    %c0_298 = arith.constant 0 : index
    %987 = vector.load %arg4[%c43_297, %c0_298] : memref<288x128xf32, #tpu.memory_space<vmem>>, vector<1x128xf32>
    %988 = vector.broadcast %987 : vector<1x128xf32> to vector<16x128xf32>
    %989 = arith.mulf %898, %988 : vector<16x128xf32>
    %990 = arith.addf %986, %989 : vector<16x128xf32>
    %c44_299 = arith.constant 44 : index
    %c0_300 = arith.constant 0 : index
    %991 = vector.load %arg4[%c44_299, %c0_300] : memref<288x128xf32, #tpu.memory_space<vmem>>, vector<1x128xf32>
    %992 = vector.broadcast %991 : vector<1x128xf32> to vector<16x128xf32>
    %993 = arith.mulf %922, %992 : vector<16x128xf32>
    %994 = arith.addf %990, %993 : vector<16x128xf32>
    %c72_301 = arith.constant 72 : index
    %c0_302 = arith.constant 0 : index
    %995 = vector.load %arg4[%c72_301, %c0_302] : memref<288x128xf32, #tpu.memory_space<vmem>>, vector<1x128xf32>
    %996 = vector.broadcast %995 : vector<1x128xf32> to vector<16x128xf32>
    %997 = arith.mulf %905, %996 : vector<16x128xf32>
    %998 = arith.addf %872, %997 : vector<16x128xf32>
    %c73_303 = arith.constant 73 : index
    %c0_304 = arith.constant 0 : index
    %999 = vector.load %arg4[%c73_303, %c0_304] : memref<288x128xf32, #tpu.memory_space<vmem>>, vector<1x128xf32>
    %1000 = vector.broadcast %999 : vector<1x128xf32> to vector<16x128xf32>
    %1001 = arith.mulf %895, %1000 : vector<16x128xf32>
    %1002 = arith.addf %998, %1001 : vector<16x128xf32>
    %c74_305 = arith.constant 74 : index
    %c0_306 = arith.constant 0 : index
    %1003 = vector.load %arg4[%c74_305, %c0_306] : memref<288x128xf32, #tpu.memory_space<vmem>>, vector<1x128xf32>
    %1004 = vector.broadcast %1003 : vector<1x128xf32> to vector<16x128xf32>
    %1005 = arith.mulf %906, %1004 : vector<16x128xf32>
    %1006 = arith.addf %1002, %1005 : vector<16x128xf32>
    %c75_307 = arith.constant 75 : index
    %c0_308 = arith.constant 0 : index
    %1007 = vector.load %arg4[%c75_307, %c0_308] : memref<288x128xf32, #tpu.memory_space<vmem>>, vector<1x128xf32>
    %1008 = vector.broadcast %1007 : vector<1x128xf32> to vector<16x128xf32>
    %1009 = arith.mulf %913, %1008 : vector<16x128xf32>
    %1010 = arith.addf %1006, %1009 : vector<16x128xf32>
    %c76_309 = arith.constant 76 : index
    %c0_310 = arith.constant 0 : index
    %1011 = vector.load %arg4[%c76_309, %c0_310] : memref<288x128xf32, #tpu.memory_space<vmem>>, vector<1x128xf32>
    %1012 = vector.broadcast %1011 : vector<1x128xf32> to vector<16x128xf32>
    %1013 = arith.mulf %749, %1012 : vector<16x128xf32>
    %1014 = arith.addf %1010, %1013 : vector<16x128xf32>
    %c77_311 = arith.constant 77 : index
    %c0_312 = arith.constant 0 : index
    %1015 = vector.load %arg4[%c77_311, %c0_312] : memref<288x128xf32, #tpu.memory_space<vmem>>, vector<1x128xf32>
    %1016 = vector.broadcast %1015 : vector<1x128xf32> to vector<16x128xf32>
    %1017 = arith.mulf %914, %1016 : vector<16x128xf32>
    %1018 = arith.addf %1014, %1017 : vector<16x128xf32>
    %c78_313 = arith.constant 78 : index
    %c0_314 = arith.constant 0 : index
    %1019 = vector.load %arg4[%c78_313, %c0_314] : memref<288x128xf32, #tpu.memory_space<vmem>>, vector<1x128xf32>
    %1020 = vector.broadcast %1019 : vector<1x128xf32> to vector<16x128xf32>
    %1021 = arith.mulf %921, %1020 : vector<16x128xf32>
    %1022 = arith.addf %1018, %1021 : vector<16x128xf32>
    %c79_315 = arith.constant 79 : index
    %c0_316 = arith.constant 0 : index
    %1023 = vector.load %arg4[%c79_315, %c0_316] : memref<288x128xf32, #tpu.memory_space<vmem>>, vector<1x128xf32>
    %1024 = vector.broadcast %1023 : vector<1x128xf32> to vector<16x128xf32>
    %1025 = arith.mulf %898, %1024 : vector<16x128xf32>
    %1026 = arith.addf %1022, %1025 : vector<16x128xf32>
    %c80_317 = arith.constant 80 : index
    %c0_318 = arith.constant 0 : index
    %1027 = vector.load %arg4[%c80_317, %c0_318] : memref<288x128xf32, #tpu.memory_space<vmem>>, vector<1x128xf32>
    %1028 = vector.broadcast %1027 : vector<1x128xf32> to vector<16x128xf32>
    %1029 = arith.mulf %922, %1028 : vector<16x128xf32>
    %1030 = arith.addf %1026, %1029 : vector<16x128xf32>
    %c108_319 = arith.constant 108 : index
    %c0_320 = arith.constant 0 : index
    %1031 = vector.load %arg4[%c108_319, %c0_320] : memref<288x128xf32, #tpu.memory_space<vmem>>, vector<1x128xf32>
    %1032 = vector.broadcast %1031 : vector<1x128xf32> to vector<16x128xf32>
    %1033 = arith.mulf %905, %1032 : vector<16x128xf32>
    %1034 = arith.addf %876, %1033 : vector<16x128xf32>
    %c109_321 = arith.constant 109 : index
    %c0_322 = arith.constant 0 : index
    %1035 = vector.load %arg4[%c109_321, %c0_322] : memref<288x128xf32, #tpu.memory_space<vmem>>, vector<1x128xf32>
    %1036 = vector.broadcast %1035 : vector<1x128xf32> to vector<16x128xf32>
    %1037 = arith.mulf %895, %1036 : vector<16x128xf32>
    %1038 = arith.addf %1034, %1037 : vector<16x128xf32>
    %c110_323 = arith.constant 110 : index
    %c0_324 = arith.constant 0 : index
    %1039 = vector.load %arg4[%c110_323, %c0_324] : memref<288x128xf32, #tpu.memory_space<vmem>>, vector<1x128xf32>
    %1040 = vector.broadcast %1039 : vector<1x128xf32> to vector<16x128xf32>
    %1041 = arith.mulf %906, %1040 : vector<16x128xf32>
    %1042 = arith.addf %1038, %1041 : vector<16x128xf32>
    %c111_325 = arith.constant 111 : index
    %c0_326 = arith.constant 0 : index
    %1043 = vector.load %arg4[%c111_325, %c0_326] : memref<288x128xf32, #tpu.memory_space<vmem>>, vector<1x128xf32>
    %1044 = vector.broadcast %1043 : vector<1x128xf32> to vector<16x128xf32>
    %1045 = arith.mulf %913, %1044 : vector<16x128xf32>
    %1046 = arith.addf %1042, %1045 : vector<16x128xf32>
    %c112_327 = arith.constant 112 : index
    %c0_328 = arith.constant 0 : index
    %1047 = vector.load %arg4[%c112_327, %c0_328] : memref<288x128xf32, #tpu.memory_space<vmem>>, vector<1x128xf32>
    %1048 = vector.broadcast %1047 : vector<1x128xf32> to vector<16x128xf32>
    %1049 = arith.mulf %749, %1048 : vector<16x128xf32>
    %1050 = arith.addf %1046, %1049 : vector<16x128xf32>
    %c113_329 = arith.constant 113 : index
    %c0_330 = arith.constant 0 : index
    %1051 = vector.load %arg4[%c113_329, %c0_330] : memref<288x128xf32, #tpu.memory_space<vmem>>, vector<1x128xf32>
    %1052 = vector.broadcast %1051 : vector<1x128xf32> to vector<16x128xf32>
    %1053 = arith.mulf %914, %1052 : vector<16x128xf32>
    %1054 = arith.addf %1050, %1053 : vector<16x128xf32>
    %c114_331 = arith.constant 114 : index
    %c0_332 = arith.constant 0 : index
    %1055 = vector.load %arg4[%c114_331, %c0_332] : memref<288x128xf32, #tpu.memory_space<vmem>>, vector<1x128xf32>
    %1056 = vector.broadcast %1055 : vector<1x128xf32> to vector<16x128xf32>
    %1057 = arith.mulf %921, %1056 : vector<16x128xf32>
    %1058 = arith.addf %1054, %1057 : vector<16x128xf32>
    %c115_333 = arith.constant 115 : index
    %c0_334 = arith.constant 0 : index
    %1059 = vector.load %arg4[%c115_333, %c0_334] : memref<288x128xf32, #tpu.memory_space<vmem>>, vector<1x128xf32>
    %1060 = vector.broadcast %1059 : vector<1x128xf32> to vector<16x128xf32>
    %1061 = arith.mulf %898, %1060 : vector<16x128xf32>
    %1062 = arith.addf %1058, %1061 : vector<16x128xf32>
    %c116_335 = arith.constant 116 : index
    %c0_336 = arith.constant 0 : index
    %1063 = vector.load %arg4[%c116_335, %c0_336] : memref<288x128xf32, #tpu.memory_space<vmem>>, vector<1x128xf32>
    %1064 = vector.broadcast %1063 : vector<1x128xf32> to vector<16x128xf32>
    %1065 = arith.mulf %922, %1064 : vector<16x128xf32>
    %1066 = arith.addf %1062, %1065 : vector<16x128xf32>
    %c144 = arith.constant 144 : index
    %c0_337 = arith.constant 0 : index
    %1067 = vector.load %arg4[%c144, %c0_337] : memref<288x128xf32, #tpu.memory_space<vmem>>, vector<1x128xf32>
    %1068 = vector.broadcast %1067 : vector<1x128xf32> to vector<16x128xf32>
    %1069 = arith.mulf %905, %1068 : vector<16x128xf32>
    %1070 = arith.addf %880, %1069 : vector<16x128xf32>
    %c145 = arith.constant 145 : index
    %c0_338 = arith.constant 0 : index
    %1071 = vector.load %arg4[%c145, %c0_338] : memref<288x128xf32, #tpu.memory_space<vmem>>, vector<1x128xf32>
    %1072 = vector.broadcast %1071 : vector<1x128xf32> to vector<16x128xf32>
    %1073 = arith.mulf %895, %1072 : vector<16x128xf32>
    %1074 = arith.addf %1070, %1073 : vector<16x128xf32>
    %c146 = arith.constant 146 : index
    %c0_339 = arith.constant 0 : index
    %1075 = vector.load %arg4[%c146, %c0_339] : memref<288x128xf32, #tpu.memory_space<vmem>>, vector<1x128xf32>
    %1076 = vector.broadcast %1075 : vector<1x128xf32> to vector<16x128xf32>
    %1077 = arith.mulf %906, %1076 : vector<16x128xf32>
    %1078 = arith.addf %1074, %1077 : vector<16x128xf32>
    %c147 = arith.constant 147 : index
    %c0_340 = arith.constant 0 : index
    %1079 = vector.load %arg4[%c147, %c0_340] : memref<288x128xf32, #tpu.memory_space<vmem>>, vector<1x128xf32>
    %1080 = vector.broadcast %1079 : vector<1x128xf32> to vector<16x128xf32>
    %1081 = arith.mulf %913, %1080 : vector<16x128xf32>
    %1082 = arith.addf %1078, %1081 : vector<16x128xf32>
    %c148 = arith.constant 148 : index
    %c0_341 = arith.constant 0 : index
    %1083 = vector.load %arg4[%c148, %c0_341] : memref<288x128xf32, #tpu.memory_space<vmem>>, vector<1x128xf32>
    %1084 = vector.broadcast %1083 : vector<1x128xf32> to vector<16x128xf32>
    %1085 = arith.mulf %749, %1084 : vector<16x128xf32>
    %1086 = arith.addf %1082, %1085 : vector<16x128xf32>
    %c149 = arith.constant 149 : index
    %c0_342 = arith.constant 0 : index
    %1087 = vector.load %arg4[%c149, %c0_342] : memref<288x128xf32, #tpu.memory_space<vmem>>, vector<1x128xf32>
    %1088 = vector.broadcast %1087 : vector<1x128xf32> to vector<16x128xf32>
    %1089 = arith.mulf %914, %1088 : vector<16x128xf32>
    %1090 = arith.addf %1086, %1089 : vector<16x128xf32>
    %c150 = arith.constant 150 : index
    %c0_343 = arith.constant 0 : index
    %1091 = vector.load %arg4[%c150, %c0_343] : memref<288x128xf32, #tpu.memory_space<vmem>>, vector<1x128xf32>
    %1092 = vector.broadcast %1091 : vector<1x128xf32> to vector<16x128xf32>
    %1093 = arith.mulf %921, %1092 : vector<16x128xf32>
    %1094 = arith.addf %1090, %1093 : vector<16x128xf32>
    %c151 = arith.constant 151 : index
    %c0_344 = arith.constant 0 : index
    %1095 = vector.load %arg4[%c151, %c0_344] : memref<288x128xf32, #tpu.memory_space<vmem>>, vector<1x128xf32>
    %1096 = vector.broadcast %1095 : vector<1x128xf32> to vector<16x128xf32>
    %1097 = arith.mulf %898, %1096 : vector<16x128xf32>
    %1098 = arith.addf %1094, %1097 : vector<16x128xf32>
    %c152 = arith.constant 152 : index
    %c0_345 = arith.constant 0 : index
    %1099 = vector.load %arg4[%c152, %c0_345] : memref<288x128xf32, #tpu.memory_space<vmem>>, vector<1x128xf32>
    %1100 = vector.broadcast %1099 : vector<1x128xf32> to vector<16x128xf32>
    %1101 = arith.mulf %922, %1100 : vector<16x128xf32>
    %1102 = arith.addf %1098, %1101 : vector<16x128xf32>
    %c180 = arith.constant 180 : index
    %c0_346 = arith.constant 0 : index
    %1103 = vector.load %arg4[%c180, %c0_346] : memref<288x128xf32, #tpu.memory_space<vmem>>, vector<1x128xf32>
    %1104 = vector.broadcast %1103 : vector<1x128xf32> to vector<16x128xf32>
    %1105 = arith.mulf %905, %1104 : vector<16x128xf32>
    %1106 = arith.addf %884, %1105 : vector<16x128xf32>
    %c181 = arith.constant 181 : index
    %c0_347 = arith.constant 0 : index
    %1107 = vector.load %arg4[%c181, %c0_347] : memref<288x128xf32, #tpu.memory_space<vmem>>, vector<1x128xf32>
    %1108 = vector.broadcast %1107 : vector<1x128xf32> to vector<16x128xf32>
    %1109 = arith.mulf %895, %1108 : vector<16x128xf32>
    %1110 = arith.addf %1106, %1109 : vector<16x128xf32>
    %c182 = arith.constant 182 : index
    %c0_348 = arith.constant 0 : index
    %1111 = vector.load %arg4[%c182, %c0_348] : memref<288x128xf32, #tpu.memory_space<vmem>>, vector<1x128xf32>
    %1112 = vector.broadcast %1111 : vector<1x128xf32> to vector<16x128xf32>
    %1113 = arith.mulf %906, %1112 : vector<16x128xf32>
    %1114 = arith.addf %1110, %1113 : vector<16x128xf32>
    %c183 = arith.constant 183 : index
    %c0_349 = arith.constant 0 : index
    %1115 = vector.load %arg4[%c183, %c0_349] : memref<288x128xf32, #tpu.memory_space<vmem>>, vector<1x128xf32>
    %1116 = vector.broadcast %1115 : vector<1x128xf32> to vector<16x128xf32>
    %1117 = arith.mulf %913, %1116 : vector<16x128xf32>
    %1118 = arith.addf %1114, %1117 : vector<16x128xf32>
    %c184 = arith.constant 184 : index
    %c0_350 = arith.constant 0 : index
    %1119 = vector.load %arg4[%c184, %c0_350] : memref<288x128xf32, #tpu.memory_space<vmem>>, vector<1x128xf32>
    %1120 = vector.broadcast %1119 : vector<1x128xf32> to vector<16x128xf32>
    %1121 = arith.mulf %749, %1120 : vector<16x128xf32>
    %1122 = arith.addf %1118, %1121 : vector<16x128xf32>
    %c185 = arith.constant 185 : index
    %c0_351 = arith.constant 0 : index
    %1123 = vector.load %arg4[%c185, %c0_351] : memref<288x128xf32, #tpu.memory_space<vmem>>, vector<1x128xf32>
    %1124 = vector.broadcast %1123 : vector<1x128xf32> to vector<16x128xf32>
    %1125 = arith.mulf %914, %1124 : vector<16x128xf32>
    %1126 = arith.addf %1122, %1125 : vector<16x128xf32>
    %c186 = arith.constant 186 : index
    %c0_352 = arith.constant 0 : index
    %1127 = vector.load %arg4[%c186, %c0_352] : memref<288x128xf32, #tpu.memory_space<vmem>>, vector<1x128xf32>
    %1128 = vector.broadcast %1127 : vector<1x128xf32> to vector<16x128xf32>
    %1129 = arith.mulf %921, %1128 : vector<16x128xf32>
    %1130 = arith.addf %1126, %1129 : vector<16x128xf32>
    %c187 = arith.constant 187 : index
    %c0_353 = arith.constant 0 : index
    %1131 = vector.load %arg4[%c187, %c0_353] : memref<288x128xf32, #tpu.memory_space<vmem>>, vector<1x128xf32>
    %1132 = vector.broadcast %1131 : vector<1x128xf32> to vector<16x128xf32>
    %1133 = arith.mulf %898, %1132 : vector<16x128xf32>
    %1134 = arith.addf %1130, %1133 : vector<16x128xf32>
    %c188 = arith.constant 188 : index
    %c0_354 = arith.constant 0 : index
    %1135 = vector.load %arg4[%c188, %c0_354] : memref<288x128xf32, #tpu.memory_space<vmem>>, vector<1x128xf32>
    %1136 = vector.broadcast %1135 : vector<1x128xf32> to vector<16x128xf32>
    %1137 = arith.mulf %922, %1136 : vector<16x128xf32>
    %1138 = arith.addf %1134, %1137 : vector<16x128xf32>
    %c216 = arith.constant 216 : index
    %c0_355 = arith.constant 0 : index
    %1139 = vector.load %arg4[%c216, %c0_355] : memref<288x128xf32, #tpu.memory_space<vmem>>, vector<1x128xf32>
    %1140 = vector.broadcast %1139 : vector<1x128xf32> to vector<16x128xf32>
    %1141 = arith.mulf %905, %1140 : vector<16x128xf32>
    %1142 = arith.addf %888, %1141 : vector<16x128xf32>
    %c217 = arith.constant 217 : index
    %c0_356 = arith.constant 0 : index
    %1143 = vector.load %arg4[%c217, %c0_356] : memref<288x128xf32, #tpu.memory_space<vmem>>, vector<1x128xf32>
    %1144 = vector.broadcast %1143 : vector<1x128xf32> to vector<16x128xf32>
    %1145 = arith.mulf %895, %1144 : vector<16x128xf32>
    %1146 = arith.addf %1142, %1145 : vector<16x128xf32>
    %c218 = arith.constant 218 : index
    %c0_357 = arith.constant 0 : index
    %1147 = vector.load %arg4[%c218, %c0_357] : memref<288x128xf32, #tpu.memory_space<vmem>>, vector<1x128xf32>
    %1148 = vector.broadcast %1147 : vector<1x128xf32> to vector<16x128xf32>
    %1149 = arith.mulf %906, %1148 : vector<16x128xf32>
    %1150 = arith.addf %1146, %1149 : vector<16x128xf32>
    %c219 = arith.constant 219 : index
    %c0_358 = arith.constant 0 : index
    %1151 = vector.load %arg4[%c219, %c0_358] : memref<288x128xf32, #tpu.memory_space<vmem>>, vector<1x128xf32>
    %1152 = vector.broadcast %1151 : vector<1x128xf32> to vector<16x128xf32>
    %1153 = arith.mulf %913, %1152 : vector<16x128xf32>
    %1154 = arith.addf %1150, %1153 : vector<16x128xf32>
    %c220 = arith.constant 220 : index
    %c0_359 = arith.constant 0 : index
    %1155 = vector.load %arg4[%c220, %c0_359] : memref<288x128xf32, #tpu.memory_space<vmem>>, vector<1x128xf32>
    %1156 = vector.broadcast %1155 : vector<1x128xf32> to vector<16x128xf32>
    %1157 = arith.mulf %749, %1156 : vector<16x128xf32>
    %1158 = arith.addf %1154, %1157 : vector<16x128xf32>
    %c221 = arith.constant 221 : index
    %c0_360 = arith.constant 0 : index
    %1159 = vector.load %arg4[%c221, %c0_360] : memref<288x128xf32, #tpu.memory_space<vmem>>, vector<1x128xf32>
    %1160 = vector.broadcast %1159 : vector<1x128xf32> to vector<16x128xf32>
    %1161 = arith.mulf %914, %1160 : vector<16x128xf32>
    %1162 = arith.addf %1158, %1161 : vector<16x128xf32>
    %c222 = arith.constant 222 : index
    %c0_361 = arith.constant 0 : index
    %1163 = vector.load %arg4[%c222, %c0_361] : memref<288x128xf32, #tpu.memory_space<vmem>>, vector<1x128xf32>
    %1164 = vector.broadcast %1163 : vector<1x128xf32> to vector<16x128xf32>
    %1165 = arith.mulf %921, %1164 : vector<16x128xf32>
    %1166 = arith.addf %1162, %1165 : vector<16x128xf32>
    %c223 = arith.constant 223 : index
    %c0_362 = arith.constant 0 : index
    %1167 = vector.load %arg4[%c223, %c0_362] : memref<288x128xf32, #tpu.memory_space<vmem>>, vector<1x128xf32>
    %1168 = vector.broadcast %1167 : vector<1x128xf32> to vector<16x128xf32>
    %1169 = arith.mulf %898, %1168 : vector<16x128xf32>
    %1170 = arith.addf %1166, %1169 : vector<16x128xf32>
    %c224 = arith.constant 224 : index
    %c0_363 = arith.constant 0 : index
    %1171 = vector.load %arg4[%c224, %c0_363] : memref<288x128xf32, #tpu.memory_space<vmem>>, vector<1x128xf32>
    %1172 = vector.broadcast %1171 : vector<1x128xf32> to vector<16x128xf32>
    %1173 = arith.mulf %922, %1172 : vector<16x128xf32>
    %1174 = arith.addf %1170, %1173 : vector<16x128xf32>
    %c252 = arith.constant 252 : index
    %c0_364 = arith.constant 0 : index
    %1175 = vector.load %arg4[%c252, %c0_364] : memref<288x128xf32, #tpu.memory_space<vmem>>, vector<1x128xf32>
    %1176 = vector.broadcast %1175 : vector<1x128xf32> to vector<16x128xf32>
    %1177 = arith.mulf %905, %1176 : vector<16x128xf32>
    %1178 = arith.addf %892, %1177 : vector<16x128xf32>
    %c253 = arith.constant 253 : index
    %c0_365 = arith.constant 0 : index
    %1179 = vector.load %arg4[%c253, %c0_365] : memref<288x128xf32, #tpu.memory_space<vmem>>, vector<1x128xf32>
    %1180 = vector.broadcast %1179 : vector<1x128xf32> to vector<16x128xf32>
    %1181 = arith.mulf %895, %1180 : vector<16x128xf32>
    %1182 = arith.addf %1178, %1181 : vector<16x128xf32>
    %c254 = arith.constant 254 : index
    %c0_366 = arith.constant 0 : index
    %1183 = vector.load %arg4[%c254, %c0_366] : memref<288x128xf32, #tpu.memory_space<vmem>>, vector<1x128xf32>
    %1184 = vector.broadcast %1183 : vector<1x128xf32> to vector<16x128xf32>
    %1185 = arith.mulf %906, %1184 : vector<16x128xf32>
    %1186 = arith.addf %1182, %1185 : vector<16x128xf32>
    %c255 = arith.constant 255 : index
    %c0_367 = arith.constant 0 : index
    %1187 = vector.load %arg4[%c255, %c0_367] : memref<288x128xf32, #tpu.memory_space<vmem>>, vector<1x128xf32>
    %1188 = vector.broadcast %1187 : vector<1x128xf32> to vector<16x128xf32>
    %1189 = arith.mulf %913, %1188 : vector<16x128xf32>
    %1190 = arith.addf %1186, %1189 : vector<16x128xf32>
    %c256 = arith.constant 256 : index
    %c0_368 = arith.constant 0 : index
    %1191 = vector.load %arg4[%c256, %c0_368] : memref<288x128xf32, #tpu.memory_space<vmem>>, vector<1x128xf32>
    %1192 = vector.broadcast %1191 : vector<1x128xf32> to vector<16x128xf32>
    %1193 = arith.mulf %749, %1192 : vector<16x128xf32>
    %1194 = arith.addf %1190, %1193 : vector<16x128xf32>
    %c257 = arith.constant 257 : index
    %c0_369 = arith.constant 0 : index
    %1195 = vector.load %arg4[%c257, %c0_369] : memref<288x128xf32, #tpu.memory_space<vmem>>, vector<1x128xf32>
    %1196 = vector.broadcast %1195 : vector<1x128xf32> to vector<16x128xf32>
    %1197 = arith.mulf %914, %1196 : vector<16x128xf32>
    %1198 = arith.addf %1194, %1197 : vector<16x128xf32>
    %c258 = arith.constant 258 : index
    %c0_370 = arith.constant 0 : index
    %1199 = vector.load %arg4[%c258, %c0_370] : memref<288x128xf32, #tpu.memory_space<vmem>>, vector<1x128xf32>
    %1200 = vector.broadcast %1199 : vector<1x128xf32> to vector<16x128xf32>
    %1201 = arith.mulf %921, %1200 : vector<16x128xf32>
    %1202 = arith.addf %1198, %1201 : vector<16x128xf32>
    %c259 = arith.constant 259 : index
    %c0_371 = arith.constant 0 : index
    %1203 = vector.load %arg4[%c259, %c0_371] : memref<288x128xf32, #tpu.memory_space<vmem>>, vector<1x128xf32>
    %1204 = vector.broadcast %1203 : vector<1x128xf32> to vector<16x128xf32>
    %1205 = arith.mulf %898, %1204 : vector<16x128xf32>
    %1206 = arith.addf %1202, %1205 : vector<16x128xf32>
    %c260 = arith.constant 260 : index
    %c0_372 = arith.constant 0 : index
    %1207 = vector.load %arg4[%c260, %c0_372] : memref<288x128xf32, #tpu.memory_space<vmem>>, vector<1x128xf32>
    %1208 = vector.broadcast %1207 : vector<1x128xf32> to vector<16x128xf32>
    %1209 = arith.mulf %922, %1208 : vector<16x128xf32>
    %1210 = arith.addf %1206, %1209 : vector<16x128xf32>
    %1211 = vector.extract_strided_slice %754 {offsets = [1, 0], sizes = [1, 128], strides = [1, 1]} : vector<16x128xf32> to vector<1x128xf32>
    %1212 = vector.extract_strided_slice %754 {offsets = [0, 0], sizes = [15, 128], strides = [1, 1]} : vector<16x128xf32> to vector<15x128xf32>
    %1213 = tpu.concatenate %1211, %1212 in 0 : vector<1x128xf32>, vector<15x128xf32> -> vector<16x128xf32>
    %1214 = vector.extract_strided_slice %754 {offsets = [1, 0], sizes = [15, 128], strides = [1, 1]} : vector<16x128xf32> to vector<15x128xf32>
    %1215 = vector.extract_strided_slice %754 {offsets = [14, 0], sizes = [1, 128], strides = [1, 1]} : vector<16x128xf32> to vector<1x128xf32>
    %1216 = tpu.concatenate %1214, %1215 in 0 : vector<15x128xf32>, vector<1x128xf32> -> vector<16x128xf32>
    %1217 = vector.extract_strided_slice %1213 {offsets = [0, 127], sizes = [16, 1], strides = [1, 1]} : vector<16x128xf32> to vector<16x1xf32>
    %1218 = vector.extract_strided_slice %1213 {offsets = [0, 0], sizes = [16, 127], strides = [1, 1]} : vector<16x128xf32> to vector<16x127xf32>
    %1219 = tpu.concatenate %1217, %1218 in 1 : vector<16x1xf32>, vector<16x127xf32> -> vector<16x128xf32>
    %1220 = vector.extract_strided_slice %1213 {offsets = [0, 1], sizes = [16, 127], strides = [1, 1]} : vector<16x128xf32> to vector<16x127xf32>
    %1221 = vector.extract_strided_slice %1213 {offsets = [0, 0], sizes = [16, 1], strides = [1, 1]} : vector<16x128xf32> to vector<16x1xf32>
    %1222 = tpu.concatenate %1220, %1221 in 1 : vector<16x127xf32>, vector<16x1xf32> -> vector<16x128xf32>
    %1223 = arith.select %18, %1222, %1219 : vector<16x128xi1>, vector<16x128xf32>
    %1224 = arith.select %36, %1219, %1222 : vector<16x128xi1>, vector<16x128xf32>
    %1225 = vector.extract_strided_slice %754 {offsets = [0, 127], sizes = [16, 1], strides = [1, 1]} : vector<16x128xf32> to vector<16x1xf32>
    %1226 = vector.extract_strided_slice %754 {offsets = [0, 0], sizes = [16, 127], strides = [1, 1]} : vector<16x128xf32> to vector<16x127xf32>
    %1227 = tpu.concatenate %1225, %1226 in 1 : vector<16x1xf32>, vector<16x127xf32> -> vector<16x128xf32>
    %1228 = vector.extract_strided_slice %754 {offsets = [0, 1], sizes = [16, 127], strides = [1, 1]} : vector<16x128xf32> to vector<16x127xf32>
    %1229 = vector.extract_strided_slice %754 {offsets = [0, 0], sizes = [16, 1], strides = [1, 1]} : vector<16x128xf32> to vector<16x1xf32>
    %1230 = tpu.concatenate %1228, %1229 in 1 : vector<16x127xf32>, vector<16x1xf32> -> vector<16x128xf32>
    %1231 = arith.select %18, %1230, %1227 : vector<16x128xi1>, vector<16x128xf32>
    %1232 = arith.select %36, %1227, %1230 : vector<16x128xi1>, vector<16x128xf32>
    %1233 = vector.extract_strided_slice %1216 {offsets = [0, 127], sizes = [16, 1], strides = [1, 1]} : vector<16x128xf32> to vector<16x1xf32>
    %1234 = vector.extract_strided_slice %1216 {offsets = [0, 0], sizes = [16, 127], strides = [1, 1]} : vector<16x128xf32> to vector<16x127xf32>
    %1235 = tpu.concatenate %1233, %1234 in 1 : vector<16x1xf32>, vector<16x127xf32> -> vector<16x128xf32>
    %1236 = vector.extract_strided_slice %1216 {offsets = [0, 1], sizes = [16, 127], strides = [1, 1]} : vector<16x128xf32> to vector<16x127xf32>
    %1237 = vector.extract_strided_slice %1216 {offsets = [0, 0], sizes = [16, 1], strides = [1, 1]} : vector<16x128xf32> to vector<16x1xf32>
    %1238 = tpu.concatenate %1236, %1237 in 1 : vector<16x127xf32>, vector<16x1xf32> -> vector<16x128xf32>
    %1239 = arith.select %18, %1238, %1235 : vector<16x128xi1>, vector<16x128xf32>
    %1240 = arith.select %36, %1235, %1238 : vector<16x128xi1>, vector<16x128xf32>
    %c9_373 = arith.constant 9 : index
    %c0_374 = arith.constant 0 : index
    %1241 = vector.load %arg4[%c9_373, %c0_374] : memref<288x128xf32, #tpu.memory_space<vmem>>, vector<1x128xf32>
    %1242 = vector.broadcast %1241 : vector<1x128xf32> to vector<16x128xf32>
    %1243 = arith.mulf %1223, %1242 : vector<16x128xf32>
    %1244 = arith.addf %958, %1243 : vector<16x128xf32>
    %c10_375 = arith.constant 10 : index
    %c0_376 = arith.constant 0 : index
    %1245 = vector.load %arg4[%c10_375, %c0_376] : memref<288x128xf32, #tpu.memory_space<vmem>>, vector<1x128xf32>
    %1246 = vector.broadcast %1245 : vector<1x128xf32> to vector<16x128xf32>
    %1247 = arith.mulf %1213, %1246 : vector<16x128xf32>
    %1248 = arith.addf %1244, %1247 : vector<16x128xf32>
    %c11_377 = arith.constant 11 : index
    %c0_378 = arith.constant 0 : index
    %1249 = vector.load %arg4[%c11_377, %c0_378] : memref<288x128xf32, #tpu.memory_space<vmem>>, vector<1x128xf32>
    %1250 = vector.broadcast %1249 : vector<1x128xf32> to vector<16x128xf32>
    %1251 = arith.mulf %1224, %1250 : vector<16x128xf32>
    %1252 = arith.addf %1248, %1251 : vector<16x128xf32>
    %c12_379 = arith.constant 12 : index
    %c0_380 = arith.constant 0 : index
    %1253 = vector.load %arg4[%c12_379, %c0_380] : memref<288x128xf32, #tpu.memory_space<vmem>>, vector<1x128xf32>
    %1254 = vector.broadcast %1253 : vector<1x128xf32> to vector<16x128xf32>
    %1255 = arith.mulf %1231, %1254 : vector<16x128xf32>
    %1256 = arith.addf %1252, %1255 : vector<16x128xf32>
    %c13_381 = arith.constant 13 : index
    %c0_382 = arith.constant 0 : index
    %1257 = vector.load %arg4[%c13_381, %c0_382] : memref<288x128xf32, #tpu.memory_space<vmem>>, vector<1x128xf32>
    %1258 = vector.broadcast %1257 : vector<1x128xf32> to vector<16x128xf32>
    %1259 = arith.mulf %754, %1258 : vector<16x128xf32>
    %1260 = arith.addf %1256, %1259 : vector<16x128xf32>
    %c14_383 = arith.constant 14 : index
    %c0_384 = arith.constant 0 : index
    %1261 = vector.load %arg4[%c14_383, %c0_384] : memref<288x128xf32, #tpu.memory_space<vmem>>, vector<1x128xf32>
    %1262 = vector.broadcast %1261 : vector<1x128xf32> to vector<16x128xf32>
    %1263 = arith.mulf %1232, %1262 : vector<16x128xf32>
    %1264 = arith.addf %1260, %1263 : vector<16x128xf32>
    %c15_385 = arith.constant 15 : index
    %c0_386 = arith.constant 0 : index
    %1265 = vector.load %arg4[%c15_385, %c0_386] : memref<288x128xf32, #tpu.memory_space<vmem>>, vector<1x128xf32>
    %1266 = vector.broadcast %1265 : vector<1x128xf32> to vector<16x128xf32>
    %1267 = arith.mulf %1239, %1266 : vector<16x128xf32>
    %1268 = arith.addf %1264, %1267 : vector<16x128xf32>
    %c16_387 = arith.constant 16 : index
    %c0_388 = arith.constant 0 : index
    %1269 = vector.load %arg4[%c16_387, %c0_388] : memref<288x128xf32, #tpu.memory_space<vmem>>, vector<1x128xf32>
    %1270 = vector.broadcast %1269 : vector<1x128xf32> to vector<16x128xf32>
    %1271 = arith.mulf %1216, %1270 : vector<16x128xf32>
    %1272 = arith.addf %1268, %1271 : vector<16x128xf32>
    %c17_389 = arith.constant 17 : index
    %c0_390 = arith.constant 0 : index
    %1273 = vector.load %arg4[%c17_389, %c0_390] : memref<288x128xf32, #tpu.memory_space<vmem>>, vector<1x128xf32>
    %1274 = vector.broadcast %1273 : vector<1x128xf32> to vector<16x128xf32>
    %1275 = arith.mulf %1240, %1274 : vector<16x128xf32>
    %1276 = arith.addf %1272, %1275 : vector<16x128xf32>
    %c45_391 = arith.constant 45 : index
    %c0_392 = arith.constant 0 : index
    %1277 = vector.load %arg4[%c45_391, %c0_392] : memref<288x128xf32, #tpu.memory_space<vmem>>, vector<1x128xf32>
    %1278 = vector.broadcast %1277 : vector<1x128xf32> to vector<16x128xf32>
    %1279 = arith.mulf %1223, %1278 : vector<16x128xf32>
    %1280 = arith.addf %994, %1279 : vector<16x128xf32>
    %c46_393 = arith.constant 46 : index
    %c0_394 = arith.constant 0 : index
    %1281 = vector.load %arg4[%c46_393, %c0_394] : memref<288x128xf32, #tpu.memory_space<vmem>>, vector<1x128xf32>
    %1282 = vector.broadcast %1281 : vector<1x128xf32> to vector<16x128xf32>
    %1283 = arith.mulf %1213, %1282 : vector<16x128xf32>
    %1284 = arith.addf %1280, %1283 : vector<16x128xf32>
    %c47_395 = arith.constant 47 : index
    %c0_396 = arith.constant 0 : index
    %1285 = vector.load %arg4[%c47_395, %c0_396] : memref<288x128xf32, #tpu.memory_space<vmem>>, vector<1x128xf32>
    %1286 = vector.broadcast %1285 : vector<1x128xf32> to vector<16x128xf32>
    %1287 = arith.mulf %1224, %1286 : vector<16x128xf32>
    %1288 = arith.addf %1284, %1287 : vector<16x128xf32>
    %c48_397 = arith.constant 48 : index
    %c0_398 = arith.constant 0 : index
    %1289 = vector.load %arg4[%c48_397, %c0_398] : memref<288x128xf32, #tpu.memory_space<vmem>>, vector<1x128xf32>
    %1290 = vector.broadcast %1289 : vector<1x128xf32> to vector<16x128xf32>
    %1291 = arith.mulf %1231, %1290 : vector<16x128xf32>
    %1292 = arith.addf %1288, %1291 : vector<16x128xf32>
    %c49_399 = arith.constant 49 : index
    %c0_400 = arith.constant 0 : index
    %1293 = vector.load %arg4[%c49_399, %c0_400] : memref<288x128xf32, #tpu.memory_space<vmem>>, vector<1x128xf32>
    %1294 = vector.broadcast %1293 : vector<1x128xf32> to vector<16x128xf32>
    %1295 = arith.mulf %754, %1294 : vector<16x128xf32>
    %1296 = arith.addf %1292, %1295 : vector<16x128xf32>
    %c50_401 = arith.constant 50 : index
    %c0_402 = arith.constant 0 : index
    %1297 = vector.load %arg4[%c50_401, %c0_402] : memref<288x128xf32, #tpu.memory_space<vmem>>, vector<1x128xf32>
    %1298 = vector.broadcast %1297 : vector<1x128xf32> to vector<16x128xf32>
    %1299 = arith.mulf %1232, %1298 : vector<16x128xf32>
    %1300 = arith.addf %1296, %1299 : vector<16x128xf32>
    %c51_403 = arith.constant 51 : index
    %c0_404 = arith.constant 0 : index
    %1301 = vector.load %arg4[%c51_403, %c0_404] : memref<288x128xf32, #tpu.memory_space<vmem>>, vector<1x128xf32>
    %1302 = vector.broadcast %1301 : vector<1x128xf32> to vector<16x128xf32>
    %1303 = arith.mulf %1239, %1302 : vector<16x128xf32>
    %1304 = arith.addf %1300, %1303 : vector<16x128xf32>
    %c52_405 = arith.constant 52 : index
    %c0_406 = arith.constant 0 : index
    %1305 = vector.load %arg4[%c52_405, %c0_406] : memref<288x128xf32, #tpu.memory_space<vmem>>, vector<1x128xf32>
    %1306 = vector.broadcast %1305 : vector<1x128xf32> to vector<16x128xf32>
    %1307 = arith.mulf %1216, %1306 : vector<16x128xf32>
    %1308 = arith.addf %1304, %1307 : vector<16x128xf32>
    %c53_407 = arith.constant 53 : index
    %c0_408 = arith.constant 0 : index
    %1309 = vector.load %arg4[%c53_407, %c0_408] : memref<288x128xf32, #tpu.memory_space<vmem>>, vector<1x128xf32>
    %1310 = vector.broadcast %1309 : vector<1x128xf32> to vector<16x128xf32>
    %1311 = arith.mulf %1240, %1310 : vector<16x128xf32>
    %1312 = arith.addf %1308, %1311 : vector<16x128xf32>
    %c81_409 = arith.constant 81 : index
    %c0_410 = arith.constant 0 : index
    %1313 = vector.load %arg4[%c81_409, %c0_410] : memref<288x128xf32, #tpu.memory_space<vmem>>, vector<1x128xf32>
    %1314 = vector.broadcast %1313 : vector<1x128xf32> to vector<16x128xf32>
    %1315 = arith.mulf %1223, %1314 : vector<16x128xf32>
    %1316 = arith.addf %1030, %1315 : vector<16x128xf32>
    %c82_411 = arith.constant 82 : index
    %c0_412 = arith.constant 0 : index
    %1317 = vector.load %arg4[%c82_411, %c0_412] : memref<288x128xf32, #tpu.memory_space<vmem>>, vector<1x128xf32>
    %1318 = vector.broadcast %1317 : vector<1x128xf32> to vector<16x128xf32>
    %1319 = arith.mulf %1213, %1318 : vector<16x128xf32>
    %1320 = arith.addf %1316, %1319 : vector<16x128xf32>
    %c83_413 = arith.constant 83 : index
    %c0_414 = arith.constant 0 : index
    %1321 = vector.load %arg4[%c83_413, %c0_414] : memref<288x128xf32, #tpu.memory_space<vmem>>, vector<1x128xf32>
    %1322 = vector.broadcast %1321 : vector<1x128xf32> to vector<16x128xf32>
    %1323 = arith.mulf %1224, %1322 : vector<16x128xf32>
    %1324 = arith.addf %1320, %1323 : vector<16x128xf32>
    %c84_415 = arith.constant 84 : index
    %c0_416 = arith.constant 0 : index
    %1325 = vector.load %arg4[%c84_415, %c0_416] : memref<288x128xf32, #tpu.memory_space<vmem>>, vector<1x128xf32>
    %1326 = vector.broadcast %1325 : vector<1x128xf32> to vector<16x128xf32>
    %1327 = arith.mulf %1231, %1326 : vector<16x128xf32>
    %1328 = arith.addf %1324, %1327 : vector<16x128xf32>
    %c85_417 = arith.constant 85 : index
    %c0_418 = arith.constant 0 : index
    %1329 = vector.load %arg4[%c85_417, %c0_418] : memref<288x128xf32, #tpu.memory_space<vmem>>, vector<1x128xf32>
    %1330 = vector.broadcast %1329 : vector<1x128xf32> to vector<16x128xf32>
    %1331 = arith.mulf %754, %1330 : vector<16x128xf32>
    %1332 = arith.addf %1328, %1331 : vector<16x128xf32>
    %c86_419 = arith.constant 86 : index
    %c0_420 = arith.constant 0 : index
    %1333 = vector.load %arg4[%c86_419, %c0_420] : memref<288x128xf32, #tpu.memory_space<vmem>>, vector<1x128xf32>
    %1334 = vector.broadcast %1333 : vector<1x128xf32> to vector<16x128xf32>
    %1335 = arith.mulf %1232, %1334 : vector<16x128xf32>
    %1336 = arith.addf %1332, %1335 : vector<16x128xf32>
    %c87_421 = arith.constant 87 : index
    %c0_422 = arith.constant 0 : index
    %1337 = vector.load %arg4[%c87_421, %c0_422] : memref<288x128xf32, #tpu.memory_space<vmem>>, vector<1x128xf32>
    %1338 = vector.broadcast %1337 : vector<1x128xf32> to vector<16x128xf32>
    %1339 = arith.mulf %1239, %1338 : vector<16x128xf32>
    %1340 = arith.addf %1336, %1339 : vector<16x128xf32>
    %c88_423 = arith.constant 88 : index
    %c0_424 = arith.constant 0 : index
    %1341 = vector.load %arg4[%c88_423, %c0_424] : memref<288x128xf32, #tpu.memory_space<vmem>>, vector<1x128xf32>
    %1342 = vector.broadcast %1341 : vector<1x128xf32> to vector<16x128xf32>
    %1343 = arith.mulf %1216, %1342 : vector<16x128xf32>
    %1344 = arith.addf %1340, %1343 : vector<16x128xf32>
    %c89_425 = arith.constant 89 : index
    %c0_426 = arith.constant 0 : index
    %1345 = vector.load %arg4[%c89_425, %c0_426] : memref<288x128xf32, #tpu.memory_space<vmem>>, vector<1x128xf32>
    %1346 = vector.broadcast %1345 : vector<1x128xf32> to vector<16x128xf32>
    %1347 = arith.mulf %1240, %1346 : vector<16x128xf32>
    %1348 = arith.addf %1344, %1347 : vector<16x128xf32>
    %c117_427 = arith.constant 117 : index
    %c0_428 = arith.constant 0 : index
    %1349 = vector.load %arg4[%c117_427, %c0_428] : memref<288x128xf32, #tpu.memory_space<vmem>>, vector<1x128xf32>
    %1350 = vector.broadcast %1349 : vector<1x128xf32> to vector<16x128xf32>
    %1351 = arith.mulf %1223, %1350 : vector<16x128xf32>
    %1352 = arith.addf %1066, %1351 : vector<16x128xf32>
    %c118_429 = arith.constant 118 : index
    %c0_430 = arith.constant 0 : index
    %1353 = vector.load %arg4[%c118_429, %c0_430] : memref<288x128xf32, #tpu.memory_space<vmem>>, vector<1x128xf32>
    %1354 = vector.broadcast %1353 : vector<1x128xf32> to vector<16x128xf32>
    %1355 = arith.mulf %1213, %1354 : vector<16x128xf32>
    %1356 = arith.addf %1352, %1355 : vector<16x128xf32>
    %c119_431 = arith.constant 119 : index
    %c0_432 = arith.constant 0 : index
    %1357 = vector.load %arg4[%c119_431, %c0_432] : memref<288x128xf32, #tpu.memory_space<vmem>>, vector<1x128xf32>
    %1358 = vector.broadcast %1357 : vector<1x128xf32> to vector<16x128xf32>
    %1359 = arith.mulf %1224, %1358 : vector<16x128xf32>
    %1360 = arith.addf %1356, %1359 : vector<16x128xf32>
    %c120_433 = arith.constant 120 : index
    %c0_434 = arith.constant 0 : index
    %1361 = vector.load %arg4[%c120_433, %c0_434] : memref<288x128xf32, #tpu.memory_space<vmem>>, vector<1x128xf32>
    %1362 = vector.broadcast %1361 : vector<1x128xf32> to vector<16x128xf32>
    %1363 = arith.mulf %1231, %1362 : vector<16x128xf32>
    %1364 = arith.addf %1360, %1363 : vector<16x128xf32>
    %c121_435 = arith.constant 121 : index
    %c0_436 = arith.constant 0 : index
    %1365 = vector.load %arg4[%c121_435, %c0_436] : memref<288x128xf32, #tpu.memory_space<vmem>>, vector<1x128xf32>
    %1366 = vector.broadcast %1365 : vector<1x128xf32> to vector<16x128xf32>
    %1367 = arith.mulf %754, %1366 : vector<16x128xf32>
    %1368 = arith.addf %1364, %1367 : vector<16x128xf32>
    %c122_437 = arith.constant 122 : index
    %c0_438 = arith.constant 0 : index
    %1369 = vector.load %arg4[%c122_437, %c0_438] : memref<288x128xf32, #tpu.memory_space<vmem>>, vector<1x128xf32>
    %1370 = vector.broadcast %1369 : vector<1x128xf32> to vector<16x128xf32>
    %1371 = arith.mulf %1232, %1370 : vector<16x128xf32>
    %1372 = arith.addf %1368, %1371 : vector<16x128xf32>
    %c123_439 = arith.constant 123 : index
    %c0_440 = arith.constant 0 : index
    %1373 = vector.load %arg4[%c123_439, %c0_440] : memref<288x128xf32, #tpu.memory_space<vmem>>, vector<1x128xf32>
    %1374 = vector.broadcast %1373 : vector<1x128xf32> to vector<16x128xf32>
    %1375 = arith.mulf %1239, %1374 : vector<16x128xf32>
    %1376 = arith.addf %1372, %1375 : vector<16x128xf32>
    %c124_441 = arith.constant 124 : index
    %c0_442 = arith.constant 0 : index
    %1377 = vector.load %arg4[%c124_441, %c0_442] : memref<288x128xf32, #tpu.memory_space<vmem>>, vector<1x128xf32>
    %1378 = vector.broadcast %1377 : vector<1x128xf32> to vector<16x128xf32>
    %1379 = arith.mulf %1216, %1378 : vector<16x128xf32>
    %1380 = arith.addf %1376, %1379 : vector<16x128xf32>
    %c125_443 = arith.constant 125 : index
    %c0_444 = arith.constant 0 : index
    %1381 = vector.load %arg4[%c125_443, %c0_444] : memref<288x128xf32, #tpu.memory_space<vmem>>, vector<1x128xf32>
    %1382 = vector.broadcast %1381 : vector<1x128xf32> to vector<16x128xf32>
    %1383 = arith.mulf %1240, %1382 : vector<16x128xf32>
    %1384 = arith.addf %1380, %1383 : vector<16x128xf32>
    %c153 = arith.constant 153 : index
    %c0_445 = arith.constant 0 : index
    %1385 = vector.load %arg4[%c153, %c0_445] : memref<288x128xf32, #tpu.memory_space<vmem>>, vector<1x128xf32>
    %1386 = vector.broadcast %1385 : vector<1x128xf32> to vector<16x128xf32>
    %1387 = arith.mulf %1223, %1386 : vector<16x128xf32>
    %1388 = arith.addf %1102, %1387 : vector<16x128xf32>
    %c154 = arith.constant 154 : index
    %c0_446 = arith.constant 0 : index
    %1389 = vector.load %arg4[%c154, %c0_446] : memref<288x128xf32, #tpu.memory_space<vmem>>, vector<1x128xf32>
    %1390 = vector.broadcast %1389 : vector<1x128xf32> to vector<16x128xf32>
    %1391 = arith.mulf %1213, %1390 : vector<16x128xf32>
    %1392 = arith.addf %1388, %1391 : vector<16x128xf32>
    %c155 = arith.constant 155 : index
    %c0_447 = arith.constant 0 : index
    %1393 = vector.load %arg4[%c155, %c0_447] : memref<288x128xf32, #tpu.memory_space<vmem>>, vector<1x128xf32>
    %1394 = vector.broadcast %1393 : vector<1x128xf32> to vector<16x128xf32>
    %1395 = arith.mulf %1224, %1394 : vector<16x128xf32>
    %1396 = arith.addf %1392, %1395 : vector<16x128xf32>
    %c156 = arith.constant 156 : index
    %c0_448 = arith.constant 0 : index
    %1397 = vector.load %arg4[%c156, %c0_448] : memref<288x128xf32, #tpu.memory_space<vmem>>, vector<1x128xf32>
    %1398 = vector.broadcast %1397 : vector<1x128xf32> to vector<16x128xf32>
    %1399 = arith.mulf %1231, %1398 : vector<16x128xf32>
    %1400 = arith.addf %1396, %1399 : vector<16x128xf32>
    %c157 = arith.constant 157 : index
    %c0_449 = arith.constant 0 : index
    %1401 = vector.load %arg4[%c157, %c0_449] : memref<288x128xf32, #tpu.memory_space<vmem>>, vector<1x128xf32>
    %1402 = vector.broadcast %1401 : vector<1x128xf32> to vector<16x128xf32>
    %1403 = arith.mulf %754, %1402 : vector<16x128xf32>
    %1404 = arith.addf %1400, %1403 : vector<16x128xf32>
    %c158 = arith.constant 158 : index
    %c0_450 = arith.constant 0 : index
    %1405 = vector.load %arg4[%c158, %c0_450] : memref<288x128xf32, #tpu.memory_space<vmem>>, vector<1x128xf32>
    %1406 = vector.broadcast %1405 : vector<1x128xf32> to vector<16x128xf32>
    %1407 = arith.mulf %1232, %1406 : vector<16x128xf32>
    %1408 = arith.addf %1404, %1407 : vector<16x128xf32>
    %c159 = arith.constant 159 : index
    %c0_451 = arith.constant 0 : index
    %1409 = vector.load %arg4[%c159, %c0_451] : memref<288x128xf32, #tpu.memory_space<vmem>>, vector<1x128xf32>
    %1410 = vector.broadcast %1409 : vector<1x128xf32> to vector<16x128xf32>
    %1411 = arith.mulf %1239, %1410 : vector<16x128xf32>
    %1412 = arith.addf %1408, %1411 : vector<16x128xf32>
    %c160 = arith.constant 160 : index
    %c0_452 = arith.constant 0 : index
    %1413 = vector.load %arg4[%c160, %c0_452] : memref<288x128xf32, #tpu.memory_space<vmem>>, vector<1x128xf32>
    %1414 = vector.broadcast %1413 : vector<1x128xf32> to vector<16x128xf32>
    %1415 = arith.mulf %1216, %1414 : vector<16x128xf32>
    %1416 = arith.addf %1412, %1415 : vector<16x128xf32>
    %c161 = arith.constant 161 : index
    %c0_453 = arith.constant 0 : index
    %1417 = vector.load %arg4[%c161, %c0_453] : memref<288x128xf32, #tpu.memory_space<vmem>>, vector<1x128xf32>
    %1418 = vector.broadcast %1417 : vector<1x128xf32> to vector<16x128xf32>
    %1419 = arith.mulf %1240, %1418 : vector<16x128xf32>
    %1420 = arith.addf %1416, %1419 : vector<16x128xf32>
    %c189 = arith.constant 189 : index
    %c0_454 = arith.constant 0 : index
    %1421 = vector.load %arg4[%c189, %c0_454] : memref<288x128xf32, #tpu.memory_space<vmem>>, vector<1x128xf32>
    %1422 = vector.broadcast %1421 : vector<1x128xf32> to vector<16x128xf32>
    %1423 = arith.mulf %1223, %1422 : vector<16x128xf32>
    %1424 = arith.addf %1138, %1423 : vector<16x128xf32>
    %c190 = arith.constant 190 : index
    %c0_455 = arith.constant 0 : index
    %1425 = vector.load %arg4[%c190, %c0_455] : memref<288x128xf32, #tpu.memory_space<vmem>>, vector<1x128xf32>
    %1426 = vector.broadcast %1425 : vector<1x128xf32> to vector<16x128xf32>
    %1427 = arith.mulf %1213, %1426 : vector<16x128xf32>
    %1428 = arith.addf %1424, %1427 : vector<16x128xf32>
    %c191 = arith.constant 191 : index
    %c0_456 = arith.constant 0 : index
    %1429 = vector.load %arg4[%c191, %c0_456] : memref<288x128xf32, #tpu.memory_space<vmem>>, vector<1x128xf32>
    %1430 = vector.broadcast %1429 : vector<1x128xf32> to vector<16x128xf32>
    %1431 = arith.mulf %1224, %1430 : vector<16x128xf32>
    %1432 = arith.addf %1428, %1431 : vector<16x128xf32>
    %c192 = arith.constant 192 : index
    %c0_457 = arith.constant 0 : index
    %1433 = vector.load %arg4[%c192, %c0_457] : memref<288x128xf32, #tpu.memory_space<vmem>>, vector<1x128xf32>
    %1434 = vector.broadcast %1433 : vector<1x128xf32> to vector<16x128xf32>
    %1435 = arith.mulf %1231, %1434 : vector<16x128xf32>
    %1436 = arith.addf %1432, %1435 : vector<16x128xf32>
    %c193 = arith.constant 193 : index
    %c0_458 = arith.constant 0 : index
    %1437 = vector.load %arg4[%c193, %c0_458] : memref<288x128xf32, #tpu.memory_space<vmem>>, vector<1x128xf32>
    %1438 = vector.broadcast %1437 : vector<1x128xf32> to vector<16x128xf32>
    %1439 = arith.mulf %754, %1438 : vector<16x128xf32>
    %1440 = arith.addf %1436, %1439 : vector<16x128xf32>
    %c194 = arith.constant 194 : index
    %c0_459 = arith.constant 0 : index
    %1441 = vector.load %arg4[%c194, %c0_459] : memref<288x128xf32, #tpu.memory_space<vmem>>, vector<1x128xf32>
    %1442 = vector.broadcast %1441 : vector<1x128xf32> to vector<16x128xf32>
    %1443 = arith.mulf %1232, %1442 : vector<16x128xf32>
    %1444 = arith.addf %1440, %1443 : vector<16x128xf32>
    %c195 = arith.constant 195 : index
    %c0_460 = arith.constant 0 : index
    %1445 = vector.load %arg4[%c195, %c0_460] : memref<288x128xf32, #tpu.memory_space<vmem>>, vector<1x128xf32>
    %1446 = vector.broadcast %1445 : vector<1x128xf32> to vector<16x128xf32>
    %1447 = arith.mulf %1239, %1446 : vector<16x128xf32>
    %1448 = arith.addf %1444, %1447 : vector<16x128xf32>
    %c196 = arith.constant 196 : index
    %c0_461 = arith.constant 0 : index
    %1449 = vector.load %arg4[%c196, %c0_461] : memref<288x128xf32, #tpu.memory_space<vmem>>, vector<1x128xf32>
    %1450 = vector.broadcast %1449 : vector<1x128xf32> to vector<16x128xf32>
    %1451 = arith.mulf %1216, %1450 : vector<16x128xf32>
    %1452 = arith.addf %1448, %1451 : vector<16x128xf32>
    %c197 = arith.constant 197 : index
    %c0_462 = arith.constant 0 : index
    %1453 = vector.load %arg4[%c197, %c0_462] : memref<288x128xf32, #tpu.memory_space<vmem>>, vector<1x128xf32>
    %1454 = vector.broadcast %1453 : vector<1x128xf32> to vector<16x128xf32>
    %1455 = arith.mulf %1240, %1454 : vector<16x128xf32>
    %1456 = arith.addf %1452, %1455 : vector<16x128xf32>
    %c225 = arith.constant 225 : index
    %c0_463 = arith.constant 0 : index
    %1457 = vector.load %arg4[%c225, %c0_463] : memref<288x128xf32, #tpu.memory_space<vmem>>, vector<1x128xf32>
    %1458 = vector.broadcast %1457 : vector<1x128xf32> to vector<16x128xf32>
    %1459 = arith.mulf %1223, %1458 : vector<16x128xf32>
    %1460 = arith.addf %1174, %1459 : vector<16x128xf32>
    %c226 = arith.constant 226 : index
    %c0_464 = arith.constant 0 : index
    %1461 = vector.load %arg4[%c226, %c0_464] : memref<288x128xf32, #tpu.memory_space<vmem>>, vector<1x128xf32>
    %1462 = vector.broadcast %1461 : vector<1x128xf32> to vector<16x128xf32>
    %1463 = arith.mulf %1213, %1462 : vector<16x128xf32>
    %1464 = arith.addf %1460, %1463 : vector<16x128xf32>
    %c227 = arith.constant 227 : index
    %c0_465 = arith.constant 0 : index
    %1465 = vector.load %arg4[%c227, %c0_465] : memref<288x128xf32, #tpu.memory_space<vmem>>, vector<1x128xf32>
    %1466 = vector.broadcast %1465 : vector<1x128xf32> to vector<16x128xf32>
    %1467 = arith.mulf %1224, %1466 : vector<16x128xf32>
    %1468 = arith.addf %1464, %1467 : vector<16x128xf32>
    %c228 = arith.constant 228 : index
    %c0_466 = arith.constant 0 : index
    %1469 = vector.load %arg4[%c228, %c0_466] : memref<288x128xf32, #tpu.memory_space<vmem>>, vector<1x128xf32>
    %1470 = vector.broadcast %1469 : vector<1x128xf32> to vector<16x128xf32>
    %1471 = arith.mulf %1231, %1470 : vector<16x128xf32>
    %1472 = arith.addf %1468, %1471 : vector<16x128xf32>
    %c229 = arith.constant 229 : index
    %c0_467 = arith.constant 0 : index
    %1473 = vector.load %arg4[%c229, %c0_467] : memref<288x128xf32, #tpu.memory_space<vmem>>, vector<1x128xf32>
    %1474 = vector.broadcast %1473 : vector<1x128xf32> to vector<16x128xf32>
    %1475 = arith.mulf %754, %1474 : vector<16x128xf32>
    %1476 = arith.addf %1472, %1475 : vector<16x128xf32>
    %c230 = arith.constant 230 : index
    %c0_468 = arith.constant 0 : index
    %1477 = vector.load %arg4[%c230, %c0_468] : memref<288x128xf32, #tpu.memory_space<vmem>>, vector<1x128xf32>
    %1478 = vector.broadcast %1477 : vector<1x128xf32> to vector<16x128xf32>
    %1479 = arith.mulf %1232, %1478 : vector<16x128xf32>
    %1480 = arith.addf %1476, %1479 : vector<16x128xf32>
    %c231 = arith.constant 231 : index
    %c0_469 = arith.constant 0 : index
    %1481 = vector.load %arg4[%c231, %c0_469] : memref<288x128xf32, #tpu.memory_space<vmem>>, vector<1x128xf32>
    %1482 = vector.broadcast %1481 : vector<1x128xf32> to vector<16x128xf32>
    %1483 = arith.mulf %1239, %1482 : vector<16x128xf32>
    %1484 = arith.addf %1480, %1483 : vector<16x128xf32>
    %c232 = arith.constant 232 : index
    %c0_470 = arith.constant 0 : index
    %1485 = vector.load %arg4[%c232, %c0_470] : memref<288x128xf32, #tpu.memory_space<vmem>>, vector<1x128xf32>
    %1486 = vector.broadcast %1485 : vector<1x128xf32> to vector<16x128xf32>
    %1487 = arith.mulf %1216, %1486 : vector<16x128xf32>
    %1488 = arith.addf %1484, %1487 : vector<16x128xf32>
    %c233 = arith.constant 233 : index
    %c0_471 = arith.constant 0 : index
    %1489 = vector.load %arg4[%c233, %c0_471] : memref<288x128xf32, #tpu.memory_space<vmem>>, vector<1x128xf32>
    %1490 = vector.broadcast %1489 : vector<1x128xf32> to vector<16x128xf32>
    %1491 = arith.mulf %1240, %1490 : vector<16x128xf32>
    %1492 = arith.addf %1488, %1491 : vector<16x128xf32>
    %c261 = arith.constant 261 : index
    %c0_472 = arith.constant 0 : index
    %1493 = vector.load %arg4[%c261, %c0_472] : memref<288x128xf32, #tpu.memory_space<vmem>>, vector<1x128xf32>
    %1494 = vector.broadcast %1493 : vector<1x128xf32> to vector<16x128xf32>
    %1495 = arith.mulf %1223, %1494 : vector<16x128xf32>
    %1496 = arith.addf %1210, %1495 : vector<16x128xf32>
    %c262 = arith.constant 262 : index
    %c0_473 = arith.constant 0 : index
    %1497 = vector.load %arg4[%c262, %c0_473] : memref<288x128xf32, #tpu.memory_space<vmem>>, vector<1x128xf32>
    %1498 = vector.broadcast %1497 : vector<1x128xf32> to vector<16x128xf32>
    %1499 = arith.mulf %1213, %1498 : vector<16x128xf32>
    %1500 = arith.addf %1496, %1499 : vector<16x128xf32>
    %c263 = arith.constant 263 : index
    %c0_474 = arith.constant 0 : index
    %1501 = vector.load %arg4[%c263, %c0_474] : memref<288x128xf32, #tpu.memory_space<vmem>>, vector<1x128xf32>
    %1502 = vector.broadcast %1501 : vector<1x128xf32> to vector<16x128xf32>
    %1503 = arith.mulf %1224, %1502 : vector<16x128xf32>
    %1504 = arith.addf %1500, %1503 : vector<16x128xf32>
    %c264 = arith.constant 264 : index
    %c0_475 = arith.constant 0 : index
    %1505 = vector.load %arg4[%c264, %c0_475] : memref<288x128xf32, #tpu.memory_space<vmem>>, vector<1x128xf32>
    %1506 = vector.broadcast %1505 : vector<1x128xf32> to vector<16x128xf32>
    %1507 = arith.mulf %1231, %1506 : vector<16x128xf32>
    %1508 = arith.addf %1504, %1507 : vector<16x128xf32>
    %c265 = arith.constant 265 : index
    %c0_476 = arith.constant 0 : index
    %1509 = vector.load %arg4[%c265, %c0_476] : memref<288x128xf32, #tpu.memory_space<vmem>>, vector<1x128xf32>
    %1510 = vector.broadcast %1509 : vector<1x128xf32> to vector<16x128xf32>
    %1511 = arith.mulf %754, %1510 : vector<16x128xf32>
    %1512 = arith.addf %1508, %1511 : vector<16x128xf32>
    %c266 = arith.constant 266 : index
    %c0_477 = arith.constant 0 : index
    %1513 = vector.load %arg4[%c266, %c0_477] : memref<288x128xf32, #tpu.memory_space<vmem>>, vector<1x128xf32>
    %1514 = vector.broadcast %1513 : vector<1x128xf32> to vector<16x128xf32>
    %1515 = arith.mulf %1232, %1514 : vector<16x128xf32>
    %1516 = arith.addf %1512, %1515 : vector<16x128xf32>
    %c267 = arith.constant 267 : index
    %c0_478 = arith.constant 0 : index
    %1517 = vector.load %arg4[%c267, %c0_478] : memref<288x128xf32, #tpu.memory_space<vmem>>, vector<1x128xf32>
    %1518 = vector.broadcast %1517 : vector<1x128xf32> to vector<16x128xf32>
    %1519 = arith.mulf %1239, %1518 : vector<16x128xf32>
    %1520 = arith.addf %1516, %1519 : vector<16x128xf32>
    %c268 = arith.constant 268 : index
    %c0_479 = arith.constant 0 : index
    %1521 = vector.load %arg4[%c268, %c0_479] : memref<288x128xf32, #tpu.memory_space<vmem>>, vector<1x128xf32>
    %1522 = vector.broadcast %1521 : vector<1x128xf32> to vector<16x128xf32>
    %1523 = arith.mulf %1216, %1522 : vector<16x128xf32>
    %1524 = arith.addf %1520, %1523 : vector<16x128xf32>
    %c269 = arith.constant 269 : index
    %c0_480 = arith.constant 0 : index
    %1525 = vector.load %arg4[%c269, %c0_480] : memref<288x128xf32, #tpu.memory_space<vmem>>, vector<1x128xf32>
    %1526 = vector.broadcast %1525 : vector<1x128xf32> to vector<16x128xf32>
    %1527 = arith.mulf %1240, %1526 : vector<16x128xf32>
    %1528 = arith.addf %1524, %1527 : vector<16x128xf32>
    %1529 = vector.extract_strided_slice %759 {offsets = [1, 0], sizes = [1, 128], strides = [1, 1]} : vector<16x128xf32> to vector<1x128xf32>
    %1530 = vector.extract_strided_slice %759 {offsets = [0, 0], sizes = [15, 128], strides = [1, 1]} : vector<16x128xf32> to vector<15x128xf32>
    %1531 = tpu.concatenate %1529, %1530 in 0 : vector<1x128xf32>, vector<15x128xf32> -> vector<16x128xf32>
    %1532 = vector.extract_strided_slice %759 {offsets = [1, 0], sizes = [15, 128], strides = [1, 1]} : vector<16x128xf32> to vector<15x128xf32>
    %1533 = vector.extract_strided_slice %759 {offsets = [14, 0], sizes = [1, 128], strides = [1, 1]} : vector<16x128xf32> to vector<1x128xf32>
    %1534 = tpu.concatenate %1532, %1533 in 0 : vector<15x128xf32>, vector<1x128xf32> -> vector<16x128xf32>
    %1535 = vector.extract_strided_slice %1531 {offsets = [0, 127], sizes = [16, 1], strides = [1, 1]} : vector<16x128xf32> to vector<16x1xf32>
    %1536 = vector.extract_strided_slice %1531 {offsets = [0, 0], sizes = [16, 127], strides = [1, 1]} : vector<16x128xf32> to vector<16x127xf32>
    %1537 = tpu.concatenate %1535, %1536 in 1 : vector<16x1xf32>, vector<16x127xf32> -> vector<16x128xf32>
    %1538 = vector.extract_strided_slice %1531 {offsets = [0, 1], sizes = [16, 127], strides = [1, 1]} : vector<16x128xf32> to vector<16x127xf32>
    %1539 = vector.extract_strided_slice %1531 {offsets = [0, 0], sizes = [16, 1], strides = [1, 1]} : vector<16x128xf32> to vector<16x1xf32>
    %1540 = tpu.concatenate %1538, %1539 in 1 : vector<16x127xf32>, vector<16x1xf32> -> vector<16x128xf32>
    %1541 = arith.select %18, %1540, %1537 : vector<16x128xi1>, vector<16x128xf32>
    %1542 = arith.select %36, %1537, %1540 : vector<16x128xi1>, vector<16x128xf32>
    %1543 = vector.extract_strided_slice %759 {offsets = [0, 127], sizes = [16, 1], strides = [1, 1]} : vector<16x128xf32> to vector<16x1xf32>
    %1544 = vector.extract_strided_slice %759 {offsets = [0, 0], sizes = [16, 127], strides = [1, 1]} : vector<16x128xf32> to vector<16x127xf32>
    %1545 = tpu.concatenate %1543, %1544 in 1 : vector<16x1xf32>, vector<16x127xf32> -> vector<16x128xf32>
    %1546 = vector.extract_strided_slice %759 {offsets = [0, 1], sizes = [16, 127], strides = [1, 1]} : vector<16x128xf32> to vector<16x127xf32>
    %1547 = vector.extract_strided_slice %759 {offsets = [0, 0], sizes = [16, 1], strides = [1, 1]} : vector<16x128xf32> to vector<16x1xf32>
    %1548 = tpu.concatenate %1546, %1547 in 1 : vector<16x127xf32>, vector<16x1xf32> -> vector<16x128xf32>
    %1549 = arith.select %18, %1548, %1545 : vector<16x128xi1>, vector<16x128xf32>
    %1550 = arith.select %36, %1545, %1548 : vector<16x128xi1>, vector<16x128xf32>
    %1551 = vector.extract_strided_slice %1534 {offsets = [0, 127], sizes = [16, 1], strides = [1, 1]} : vector<16x128xf32> to vector<16x1xf32>
    %1552 = vector.extract_strided_slice %1534 {offsets = [0, 0], sizes = [16, 127], strides = [1, 1]} : vector<16x128xf32> to vector<16x127xf32>
    %1553 = tpu.concatenate %1551, %1552 in 1 : vector<16x1xf32>, vector<16x127xf32> -> vector<16x128xf32>
    %1554 = vector.extract_strided_slice %1534 {offsets = [0, 1], sizes = [16, 127], strides = [1, 1]} : vector<16x128xf32> to vector<16x127xf32>
    %1555 = vector.extract_strided_slice %1534 {offsets = [0, 0], sizes = [16, 1], strides = [1, 1]} : vector<16x128xf32> to vector<16x1xf32>
    %1556 = tpu.concatenate %1554, %1555 in 1 : vector<16x127xf32>, vector<16x1xf32> -> vector<16x128xf32>
    %1557 = arith.select %18, %1556, %1553 : vector<16x128xi1>, vector<16x128xf32>
    %1558 = arith.select %36, %1553, %1556 : vector<16x128xi1>, vector<16x128xf32>
    %c18_481 = arith.constant 18 : index
    %c0_482 = arith.constant 0 : index
    %1559 = vector.load %arg4[%c18_481, %c0_482] : memref<288x128xf32, #tpu.memory_space<vmem>>, vector<1x128xf32>
    %1560 = vector.broadcast %1559 : vector<1x128xf32> to vector<16x128xf32>
    %1561 = arith.mulf %1541, %1560 : vector<16x128xf32>
    %1562 = arith.addf %1276, %1561 : vector<16x128xf32>
    %c19_483 = arith.constant 19 : index
    %c0_484 = arith.constant 0 : index
    %1563 = vector.load %arg4[%c19_483, %c0_484] : memref<288x128xf32, #tpu.memory_space<vmem>>, vector<1x128xf32>
    %1564 = vector.broadcast %1563 : vector<1x128xf32> to vector<16x128xf32>
    %1565 = arith.mulf %1531, %1564 : vector<16x128xf32>
    %1566 = arith.addf %1562, %1565 : vector<16x128xf32>
    %c20_485 = arith.constant 20 : index
    %c0_486 = arith.constant 0 : index
    %1567 = vector.load %arg4[%c20_485, %c0_486] : memref<288x128xf32, #tpu.memory_space<vmem>>, vector<1x128xf32>
    %1568 = vector.broadcast %1567 : vector<1x128xf32> to vector<16x128xf32>
    %1569 = arith.mulf %1542, %1568 : vector<16x128xf32>
    %1570 = arith.addf %1566, %1569 : vector<16x128xf32>
    %c21_487 = arith.constant 21 : index
    %c0_488 = arith.constant 0 : index
    %1571 = vector.load %arg4[%c21_487, %c0_488] : memref<288x128xf32, #tpu.memory_space<vmem>>, vector<1x128xf32>
    %1572 = vector.broadcast %1571 : vector<1x128xf32> to vector<16x128xf32>
    %1573 = arith.mulf %1549, %1572 : vector<16x128xf32>
    %1574 = arith.addf %1570, %1573 : vector<16x128xf32>
    %c22_489 = arith.constant 22 : index
    %c0_490 = arith.constant 0 : index
    %1575 = vector.load %arg4[%c22_489, %c0_490] : memref<288x128xf32, #tpu.memory_space<vmem>>, vector<1x128xf32>
    %1576 = vector.broadcast %1575 : vector<1x128xf32> to vector<16x128xf32>
    %1577 = arith.mulf %759, %1576 : vector<16x128xf32>
    %1578 = arith.addf %1574, %1577 : vector<16x128xf32>
    %c23_491 = arith.constant 23 : index
    %c0_492 = arith.constant 0 : index
    %1579 = vector.load %arg4[%c23_491, %c0_492] : memref<288x128xf32, #tpu.memory_space<vmem>>, vector<1x128xf32>
    %1580 = vector.broadcast %1579 : vector<1x128xf32> to vector<16x128xf32>
    %1581 = arith.mulf %1550, %1580 : vector<16x128xf32>
    %1582 = arith.addf %1578, %1581 : vector<16x128xf32>
    %c24_493 = arith.constant 24 : index
    %c0_494 = arith.constant 0 : index
    %1583 = vector.load %arg4[%c24_493, %c0_494] : memref<288x128xf32, #tpu.memory_space<vmem>>, vector<1x128xf32>
    %1584 = vector.broadcast %1583 : vector<1x128xf32> to vector<16x128xf32>
    %1585 = arith.mulf %1557, %1584 : vector<16x128xf32>
    %1586 = arith.addf %1582, %1585 : vector<16x128xf32>
    %c25_495 = arith.constant 25 : index
    %c0_496 = arith.constant 0 : index
    %1587 = vector.load %arg4[%c25_495, %c0_496] : memref<288x128xf32, #tpu.memory_space<vmem>>, vector<1x128xf32>
    %1588 = vector.broadcast %1587 : vector<1x128xf32> to vector<16x128xf32>
    %1589 = arith.mulf %1534, %1588 : vector<16x128xf32>
    %1590 = arith.addf %1586, %1589 : vector<16x128xf32>
    %c26_497 = arith.constant 26 : index
    %c0_498 = arith.constant 0 : index
    %1591 = vector.load %arg4[%c26_497, %c0_498] : memref<288x128xf32, #tpu.memory_space<vmem>>, vector<1x128xf32>
    %1592 = vector.broadcast %1591 : vector<1x128xf32> to vector<16x128xf32>
    %1593 = arith.mulf %1558, %1592 : vector<16x128xf32>
    %1594 = arith.addf %1590, %1593 : vector<16x128xf32>
    %c54_499 = arith.constant 54 : index
    %c0_500 = arith.constant 0 : index
    %1595 = vector.load %arg4[%c54_499, %c0_500] : memref<288x128xf32, #tpu.memory_space<vmem>>, vector<1x128xf32>
    %1596 = vector.broadcast %1595 : vector<1x128xf32> to vector<16x128xf32>
    %1597 = arith.mulf %1541, %1596 : vector<16x128xf32>
    %1598 = arith.addf %1312, %1597 : vector<16x128xf32>
    %c55_501 = arith.constant 55 : index
    %c0_502 = arith.constant 0 : index
    %1599 = vector.load %arg4[%c55_501, %c0_502] : memref<288x128xf32, #tpu.memory_space<vmem>>, vector<1x128xf32>
    %1600 = vector.broadcast %1599 : vector<1x128xf32> to vector<16x128xf32>
    %1601 = arith.mulf %1531, %1600 : vector<16x128xf32>
    %1602 = arith.addf %1598, %1601 : vector<16x128xf32>
    %c56_503 = arith.constant 56 : index
    %c0_504 = arith.constant 0 : index
    %1603 = vector.load %arg4[%c56_503, %c0_504] : memref<288x128xf32, #tpu.memory_space<vmem>>, vector<1x128xf32>
    %1604 = vector.broadcast %1603 : vector<1x128xf32> to vector<16x128xf32>
    %1605 = arith.mulf %1542, %1604 : vector<16x128xf32>
    %1606 = arith.addf %1602, %1605 : vector<16x128xf32>
    %c57_505 = arith.constant 57 : index
    %c0_506 = arith.constant 0 : index
    %1607 = vector.load %arg4[%c57_505, %c0_506] : memref<288x128xf32, #tpu.memory_space<vmem>>, vector<1x128xf32>
    %1608 = vector.broadcast %1607 : vector<1x128xf32> to vector<16x128xf32>
    %1609 = arith.mulf %1549, %1608 : vector<16x128xf32>
    %1610 = arith.addf %1606, %1609 : vector<16x128xf32>
    %c58_507 = arith.constant 58 : index
    %c0_508 = arith.constant 0 : index
    %1611 = vector.load %arg4[%c58_507, %c0_508] : memref<288x128xf32, #tpu.memory_space<vmem>>, vector<1x128xf32>
    %1612 = vector.broadcast %1611 : vector<1x128xf32> to vector<16x128xf32>
    %1613 = arith.mulf %759, %1612 : vector<16x128xf32>
    %1614 = arith.addf %1610, %1613 : vector<16x128xf32>
    %c59_509 = arith.constant 59 : index
    %c0_510 = arith.constant 0 : index
    %1615 = vector.load %arg4[%c59_509, %c0_510] : memref<288x128xf32, #tpu.memory_space<vmem>>, vector<1x128xf32>
    %1616 = vector.broadcast %1615 : vector<1x128xf32> to vector<16x128xf32>
    %1617 = arith.mulf %1550, %1616 : vector<16x128xf32>
    %1618 = arith.addf %1614, %1617 : vector<16x128xf32>
    %c60_511 = arith.constant 60 : index
    %c0_512 = arith.constant 0 : index
    %1619 = vector.load %arg4[%c60_511, %c0_512] : memref<288x128xf32, #tpu.memory_space<vmem>>, vector<1x128xf32>
    %1620 = vector.broadcast %1619 : vector<1x128xf32> to vector<16x128xf32>
    %1621 = arith.mulf %1557, %1620 : vector<16x128xf32>
    %1622 = arith.addf %1618, %1621 : vector<16x128xf32>
    %c61_513 = arith.constant 61 : index
    %c0_514 = arith.constant 0 : index
    %1623 = vector.load %arg4[%c61_513, %c0_514] : memref<288x128xf32, #tpu.memory_space<vmem>>, vector<1x128xf32>
    %1624 = vector.broadcast %1623 : vector<1x128xf32> to vector<16x128xf32>
    %1625 = arith.mulf %1534, %1624 : vector<16x128xf32>
    %1626 = arith.addf %1622, %1625 : vector<16x128xf32>
    %c62_515 = arith.constant 62 : index
    %c0_516 = arith.constant 0 : index
    %1627 = vector.load %arg4[%c62_515, %c0_516] : memref<288x128xf32, #tpu.memory_space<vmem>>, vector<1x128xf32>
    %1628 = vector.broadcast %1627 : vector<1x128xf32> to vector<16x128xf32>
    %1629 = arith.mulf %1558, %1628 : vector<16x128xf32>
    %1630 = arith.addf %1626, %1629 : vector<16x128xf32>
    %c90_517 = arith.constant 90 : index
    %c0_518 = arith.constant 0 : index
    %1631 = vector.load %arg4[%c90_517, %c0_518] : memref<288x128xf32, #tpu.memory_space<vmem>>, vector<1x128xf32>
    %1632 = vector.broadcast %1631 : vector<1x128xf32> to vector<16x128xf32>
    %1633 = arith.mulf %1541, %1632 : vector<16x128xf32>
    %1634 = arith.addf %1348, %1633 : vector<16x128xf32>
    %c91_519 = arith.constant 91 : index
    %c0_520 = arith.constant 0 : index
    %1635 = vector.load %arg4[%c91_519, %c0_520] : memref<288x128xf32, #tpu.memory_space<vmem>>, vector<1x128xf32>
    %1636 = vector.broadcast %1635 : vector<1x128xf32> to vector<16x128xf32>
    %1637 = arith.mulf %1531, %1636 : vector<16x128xf32>
    %1638 = arith.addf %1634, %1637 : vector<16x128xf32>
    %c92_521 = arith.constant 92 : index
    %c0_522 = arith.constant 0 : index
    %1639 = vector.load %arg4[%c92_521, %c0_522] : memref<288x128xf32, #tpu.memory_space<vmem>>, vector<1x128xf32>
    %1640 = vector.broadcast %1639 : vector<1x128xf32> to vector<16x128xf32>
    %1641 = arith.mulf %1542, %1640 : vector<16x128xf32>
    %1642 = arith.addf %1638, %1641 : vector<16x128xf32>
    %c93_523 = arith.constant 93 : index
    %c0_524 = arith.constant 0 : index
    %1643 = vector.load %arg4[%c93_523, %c0_524] : memref<288x128xf32, #tpu.memory_space<vmem>>, vector<1x128xf32>
    %1644 = vector.broadcast %1643 : vector<1x128xf32> to vector<16x128xf32>
    %1645 = arith.mulf %1549, %1644 : vector<16x128xf32>
    %1646 = arith.addf %1642, %1645 : vector<16x128xf32>
    %c94_525 = arith.constant 94 : index
    %c0_526 = arith.constant 0 : index
    %1647 = vector.load %arg4[%c94_525, %c0_526] : memref<288x128xf32, #tpu.memory_space<vmem>>, vector<1x128xf32>
    %1648 = vector.broadcast %1647 : vector<1x128xf32> to vector<16x128xf32>
    %1649 = arith.mulf %759, %1648 : vector<16x128xf32>
    %1650 = arith.addf %1646, %1649 : vector<16x128xf32>
    %c95_527 = arith.constant 95 : index
    %c0_528 = arith.constant 0 : index
    %1651 = vector.load %arg4[%c95_527, %c0_528] : memref<288x128xf32, #tpu.memory_space<vmem>>, vector<1x128xf32>
    %1652 = vector.broadcast %1651 : vector<1x128xf32> to vector<16x128xf32>
    %1653 = arith.mulf %1550, %1652 : vector<16x128xf32>
    %1654 = arith.addf %1650, %1653 : vector<16x128xf32>
    %c96_529 = arith.constant 96 : index
    %c0_530 = arith.constant 0 : index
    %1655 = vector.load %arg4[%c96_529, %c0_530] : memref<288x128xf32, #tpu.memory_space<vmem>>, vector<1x128xf32>
    %1656 = vector.broadcast %1655 : vector<1x128xf32> to vector<16x128xf32>
    %1657 = arith.mulf %1557, %1656 : vector<16x128xf32>
    %1658 = arith.addf %1654, %1657 : vector<16x128xf32>
    %c97_531 = arith.constant 97 : index
    %c0_532 = arith.constant 0 : index
    %1659 = vector.load %arg4[%c97_531, %c0_532] : memref<288x128xf32, #tpu.memory_space<vmem>>, vector<1x128xf32>
    %1660 = vector.broadcast %1659 : vector<1x128xf32> to vector<16x128xf32>
    %1661 = arith.mulf %1534, %1660 : vector<16x128xf32>
    %1662 = arith.addf %1658, %1661 : vector<16x128xf32>
    %c98_533 = arith.constant 98 : index
    %c0_534 = arith.constant 0 : index
    %1663 = vector.load %arg4[%c98_533, %c0_534] : memref<288x128xf32, #tpu.memory_space<vmem>>, vector<1x128xf32>
    %1664 = vector.broadcast %1663 : vector<1x128xf32> to vector<16x128xf32>
    %1665 = arith.mulf %1558, %1664 : vector<16x128xf32>
    %1666 = arith.addf %1662, %1665 : vector<16x128xf32>
    %c126_535 = arith.constant 126 : index
    %c0_536 = arith.constant 0 : index
    %1667 = vector.load %arg4[%c126_535, %c0_536] : memref<288x128xf32, #tpu.memory_space<vmem>>, vector<1x128xf32>
    %1668 = vector.broadcast %1667 : vector<1x128xf32> to vector<16x128xf32>
    %1669 = arith.mulf %1541, %1668 : vector<16x128xf32>
    %1670 = arith.addf %1384, %1669 : vector<16x128xf32>
    %c127_537 = arith.constant 127 : index
    %c0_538 = arith.constant 0 : index
    %1671 = vector.load %arg4[%c127_537, %c0_538] : memref<288x128xf32, #tpu.memory_space<vmem>>, vector<1x128xf32>
    %1672 = vector.broadcast %1671 : vector<1x128xf32> to vector<16x128xf32>
    %1673 = arith.mulf %1531, %1672 : vector<16x128xf32>
    %1674 = arith.addf %1670, %1673 : vector<16x128xf32>
    %c128_539 = arith.constant 128 : index
    %c0_540 = arith.constant 0 : index
    %1675 = vector.load %arg4[%c128_539, %c0_540] : memref<288x128xf32, #tpu.memory_space<vmem>>, vector<1x128xf32>
    %1676 = vector.broadcast %1675 : vector<1x128xf32> to vector<16x128xf32>
    %1677 = arith.mulf %1542, %1676 : vector<16x128xf32>
    %1678 = arith.addf %1674, %1677 : vector<16x128xf32>
    %c129_541 = arith.constant 129 : index
    %c0_542 = arith.constant 0 : index
    %1679 = vector.load %arg4[%c129_541, %c0_542] : memref<288x128xf32, #tpu.memory_space<vmem>>, vector<1x128xf32>
    %1680 = vector.broadcast %1679 : vector<1x128xf32> to vector<16x128xf32>
    %1681 = arith.mulf %1549, %1680 : vector<16x128xf32>
    %1682 = arith.addf %1678, %1681 : vector<16x128xf32>
    %c130_543 = arith.constant 130 : index
    %c0_544 = arith.constant 0 : index
    %1683 = vector.load %arg4[%c130_543, %c0_544] : memref<288x128xf32, #tpu.memory_space<vmem>>, vector<1x128xf32>
    %1684 = vector.broadcast %1683 : vector<1x128xf32> to vector<16x128xf32>
    %1685 = arith.mulf %759, %1684 : vector<16x128xf32>
    %1686 = arith.addf %1682, %1685 : vector<16x128xf32>
    %c131_545 = arith.constant 131 : index
    %c0_546 = arith.constant 0 : index
    %1687 = vector.load %arg4[%c131_545, %c0_546] : memref<288x128xf32, #tpu.memory_space<vmem>>, vector<1x128xf32>
    %1688 = vector.broadcast %1687 : vector<1x128xf32> to vector<16x128xf32>
    %1689 = arith.mulf %1550, %1688 : vector<16x128xf32>
    %1690 = arith.addf %1686, %1689 : vector<16x128xf32>
    %c132_547 = arith.constant 132 : index
    %c0_548 = arith.constant 0 : index
    %1691 = vector.load %arg4[%c132_547, %c0_548] : memref<288x128xf32, #tpu.memory_space<vmem>>, vector<1x128xf32>
    %1692 = vector.broadcast %1691 : vector<1x128xf32> to vector<16x128xf32>
    %1693 = arith.mulf %1557, %1692 : vector<16x128xf32>
    %1694 = arith.addf %1690, %1693 : vector<16x128xf32>
    %c133_549 = arith.constant 133 : index
    %c0_550 = arith.constant 0 : index
    %1695 = vector.load %arg4[%c133_549, %c0_550] : memref<288x128xf32, #tpu.memory_space<vmem>>, vector<1x128xf32>
    %1696 = vector.broadcast %1695 : vector<1x128xf32> to vector<16x128xf32>
    %1697 = arith.mulf %1534, %1696 : vector<16x128xf32>
    %1698 = arith.addf %1694, %1697 : vector<16x128xf32>
    %c134_551 = arith.constant 134 : index
    %c0_552 = arith.constant 0 : index
    %1699 = vector.load %arg4[%c134_551, %c0_552] : memref<288x128xf32, #tpu.memory_space<vmem>>, vector<1x128xf32>
    %1700 = vector.broadcast %1699 : vector<1x128xf32> to vector<16x128xf32>
    %1701 = arith.mulf %1558, %1700 : vector<16x128xf32>
    %1702 = arith.addf %1698, %1701 : vector<16x128xf32>
    %c162 = arith.constant 162 : index
    %c0_553 = arith.constant 0 : index
    %1703 = vector.load %arg4[%c162, %c0_553] : memref<288x128xf32, #tpu.memory_space<vmem>>, vector<1x128xf32>
    %1704 = vector.broadcast %1703 : vector<1x128xf32> to vector<16x128xf32>
    %1705 = arith.mulf %1541, %1704 : vector<16x128xf32>
    %1706 = arith.addf %1420, %1705 : vector<16x128xf32>
    %c163 = arith.constant 163 : index
    %c0_554 = arith.constant 0 : index
    %1707 = vector.load %arg4[%c163, %c0_554] : memref<288x128xf32, #tpu.memory_space<vmem>>, vector<1x128xf32>
    %1708 = vector.broadcast %1707 : vector<1x128xf32> to vector<16x128xf32>
    %1709 = arith.mulf %1531, %1708 : vector<16x128xf32>
    %1710 = arith.addf %1706, %1709 : vector<16x128xf32>
    %c164 = arith.constant 164 : index
    %c0_555 = arith.constant 0 : index
    %1711 = vector.load %arg4[%c164, %c0_555] : memref<288x128xf32, #tpu.memory_space<vmem>>, vector<1x128xf32>
    %1712 = vector.broadcast %1711 : vector<1x128xf32> to vector<16x128xf32>
    %1713 = arith.mulf %1542, %1712 : vector<16x128xf32>
    %1714 = arith.addf %1710, %1713 : vector<16x128xf32>
    %c165 = arith.constant 165 : index
    %c0_556 = arith.constant 0 : index
    %1715 = vector.load %arg4[%c165, %c0_556] : memref<288x128xf32, #tpu.memory_space<vmem>>, vector<1x128xf32>
    %1716 = vector.broadcast %1715 : vector<1x128xf32> to vector<16x128xf32>
    %1717 = arith.mulf %1549, %1716 : vector<16x128xf32>
    %1718 = arith.addf %1714, %1717 : vector<16x128xf32>
    %c166 = arith.constant 166 : index
    %c0_557 = arith.constant 0 : index
    %1719 = vector.load %arg4[%c166, %c0_557] : memref<288x128xf32, #tpu.memory_space<vmem>>, vector<1x128xf32>
    %1720 = vector.broadcast %1719 : vector<1x128xf32> to vector<16x128xf32>
    %1721 = arith.mulf %759, %1720 : vector<16x128xf32>
    %1722 = arith.addf %1718, %1721 : vector<16x128xf32>
    %c167 = arith.constant 167 : index
    %c0_558 = arith.constant 0 : index
    %1723 = vector.load %arg4[%c167, %c0_558] : memref<288x128xf32, #tpu.memory_space<vmem>>, vector<1x128xf32>
    %1724 = vector.broadcast %1723 : vector<1x128xf32> to vector<16x128xf32>
    %1725 = arith.mulf %1550, %1724 : vector<16x128xf32>
    %1726 = arith.addf %1722, %1725 : vector<16x128xf32>
    %c168 = arith.constant 168 : index
    %c0_559 = arith.constant 0 : index
    %1727 = vector.load %arg4[%c168, %c0_559] : memref<288x128xf32, #tpu.memory_space<vmem>>, vector<1x128xf32>
    %1728 = vector.broadcast %1727 : vector<1x128xf32> to vector<16x128xf32>
    %1729 = arith.mulf %1557, %1728 : vector<16x128xf32>
    %1730 = arith.addf %1726, %1729 : vector<16x128xf32>
    %c169 = arith.constant 169 : index
    %c0_560 = arith.constant 0 : index
    %1731 = vector.load %arg4[%c169, %c0_560] : memref<288x128xf32, #tpu.memory_space<vmem>>, vector<1x128xf32>
    %1732 = vector.broadcast %1731 : vector<1x128xf32> to vector<16x128xf32>
    %1733 = arith.mulf %1534, %1732 : vector<16x128xf32>
    %1734 = arith.addf %1730, %1733 : vector<16x128xf32>
    %c170 = arith.constant 170 : index
    %c0_561 = arith.constant 0 : index
    %1735 = vector.load %arg4[%c170, %c0_561] : memref<288x128xf32, #tpu.memory_space<vmem>>, vector<1x128xf32>
    %1736 = vector.broadcast %1735 : vector<1x128xf32> to vector<16x128xf32>
    %1737 = arith.mulf %1558, %1736 : vector<16x128xf32>
    %1738 = arith.addf %1734, %1737 : vector<16x128xf32>
    %c198 = arith.constant 198 : index
    %c0_562 = arith.constant 0 : index
    %1739 = vector.load %arg4[%c198, %c0_562] : memref<288x128xf32, #tpu.memory_space<vmem>>, vector<1x128xf32>
    %1740 = vector.broadcast %1739 : vector<1x128xf32> to vector<16x128xf32>
    %1741 = arith.mulf %1541, %1740 : vector<16x128xf32>
    %1742 = arith.addf %1456, %1741 : vector<16x128xf32>
    %c199 = arith.constant 199 : index
    %c0_563 = arith.constant 0 : index
    %1743 = vector.load %arg4[%c199, %c0_563] : memref<288x128xf32, #tpu.memory_space<vmem>>, vector<1x128xf32>
    %1744 = vector.broadcast %1743 : vector<1x128xf32> to vector<16x128xf32>
    %1745 = arith.mulf %1531, %1744 : vector<16x128xf32>
    %1746 = arith.addf %1742, %1745 : vector<16x128xf32>
    %c200 = arith.constant 200 : index
    %c0_564 = arith.constant 0 : index
    %1747 = vector.load %arg4[%c200, %c0_564] : memref<288x128xf32, #tpu.memory_space<vmem>>, vector<1x128xf32>
    %1748 = vector.broadcast %1747 : vector<1x128xf32> to vector<16x128xf32>
    %1749 = arith.mulf %1542, %1748 : vector<16x128xf32>
    %1750 = arith.addf %1746, %1749 : vector<16x128xf32>
    %c201 = arith.constant 201 : index
    %c0_565 = arith.constant 0 : index
    %1751 = vector.load %arg4[%c201, %c0_565] : memref<288x128xf32, #tpu.memory_space<vmem>>, vector<1x128xf32>
    %1752 = vector.broadcast %1751 : vector<1x128xf32> to vector<16x128xf32>
    %1753 = arith.mulf %1549, %1752 : vector<16x128xf32>
    %1754 = arith.addf %1750, %1753 : vector<16x128xf32>
    %c202 = arith.constant 202 : index
    %c0_566 = arith.constant 0 : index
    %1755 = vector.load %arg4[%c202, %c0_566] : memref<288x128xf32, #tpu.memory_space<vmem>>, vector<1x128xf32>
    %1756 = vector.broadcast %1755 : vector<1x128xf32> to vector<16x128xf32>
    %1757 = arith.mulf %759, %1756 : vector<16x128xf32>
    %1758 = arith.addf %1754, %1757 : vector<16x128xf32>
    %c203 = arith.constant 203 : index
    %c0_567 = arith.constant 0 : index
    %1759 = vector.load %arg4[%c203, %c0_567] : memref<288x128xf32, #tpu.memory_space<vmem>>, vector<1x128xf32>
    %1760 = vector.broadcast %1759 : vector<1x128xf32> to vector<16x128xf32>
    %1761 = arith.mulf %1550, %1760 : vector<16x128xf32>
    %1762 = arith.addf %1758, %1761 : vector<16x128xf32>
    %c204 = arith.constant 204 : index
    %c0_568 = arith.constant 0 : index
    %1763 = vector.load %arg4[%c204, %c0_568] : memref<288x128xf32, #tpu.memory_space<vmem>>, vector<1x128xf32>
    %1764 = vector.broadcast %1763 : vector<1x128xf32> to vector<16x128xf32>
    %1765 = arith.mulf %1557, %1764 : vector<16x128xf32>
    %1766 = arith.addf %1762, %1765 : vector<16x128xf32>
    %c205 = arith.constant 205 : index
    %c0_569 = arith.constant 0 : index
    %1767 = vector.load %arg4[%c205, %c0_569] : memref<288x128xf32, #tpu.memory_space<vmem>>, vector<1x128xf32>
    %1768 = vector.broadcast %1767 : vector<1x128xf32> to vector<16x128xf32>
    %1769 = arith.mulf %1534, %1768 : vector<16x128xf32>
    %1770 = arith.addf %1766, %1769 : vector<16x128xf32>
    %c206 = arith.constant 206 : index
    %c0_570 = arith.constant 0 : index
    %1771 = vector.load %arg4[%c206, %c0_570] : memref<288x128xf32, #tpu.memory_space<vmem>>, vector<1x128xf32>
    %1772 = vector.broadcast %1771 : vector<1x128xf32> to vector<16x128xf32>
    %1773 = arith.mulf %1558, %1772 : vector<16x128xf32>
    %1774 = arith.addf %1770, %1773 : vector<16x128xf32>
    %c234 = arith.constant 234 : index
    %c0_571 = arith.constant 0 : index
    %1775 = vector.load %arg4[%c234, %c0_571] : memref<288x128xf32, #tpu.memory_space<vmem>>, vector<1x128xf32>
    %1776 = vector.broadcast %1775 : vector<1x128xf32> to vector<16x128xf32>
    %1777 = arith.mulf %1541, %1776 : vector<16x128xf32>
    %1778 = arith.addf %1492, %1777 : vector<16x128xf32>
    %c235 = arith.constant 235 : index
    %c0_572 = arith.constant 0 : index
    %1779 = vector.load %arg4[%c235, %c0_572] : memref<288x128xf32, #tpu.memory_space<vmem>>, vector<1x128xf32>
    %1780 = vector.broadcast %1779 : vector<1x128xf32> to vector<16x128xf32>
    %1781 = arith.mulf %1531, %1780 : vector<16x128xf32>
    %1782 = arith.addf %1778, %1781 : vector<16x128xf32>
    %c236 = arith.constant 236 : index
    %c0_573 = arith.constant 0 : index
    %1783 = vector.load %arg4[%c236, %c0_573] : memref<288x128xf32, #tpu.memory_space<vmem>>, vector<1x128xf32>
    %1784 = vector.broadcast %1783 : vector<1x128xf32> to vector<16x128xf32>
    %1785 = arith.mulf %1542, %1784 : vector<16x128xf32>
    %1786 = arith.addf %1782, %1785 : vector<16x128xf32>
    %c237 = arith.constant 237 : index
    %c0_574 = arith.constant 0 : index
    %1787 = vector.load %arg4[%c237, %c0_574] : memref<288x128xf32, #tpu.memory_space<vmem>>, vector<1x128xf32>
    %1788 = vector.broadcast %1787 : vector<1x128xf32> to vector<16x128xf32>
    %1789 = arith.mulf %1549, %1788 : vector<16x128xf32>
    %1790 = arith.addf %1786, %1789 : vector<16x128xf32>
    %c238 = arith.constant 238 : index
    %c0_575 = arith.constant 0 : index
    %1791 = vector.load %arg4[%c238, %c0_575] : memref<288x128xf32, #tpu.memory_space<vmem>>, vector<1x128xf32>
    %1792 = vector.broadcast %1791 : vector<1x128xf32> to vector<16x128xf32>
    %1793 = arith.mulf %759, %1792 : vector<16x128xf32>
    %1794 = arith.addf %1790, %1793 : vector<16x128xf32>
    %c239 = arith.constant 239 : index
    %c0_576 = arith.constant 0 : index
    %1795 = vector.load %arg4[%c239, %c0_576] : memref<288x128xf32, #tpu.memory_space<vmem>>, vector<1x128xf32>
    %1796 = vector.broadcast %1795 : vector<1x128xf32> to vector<16x128xf32>
    %1797 = arith.mulf %1550, %1796 : vector<16x128xf32>
    %1798 = arith.addf %1794, %1797 : vector<16x128xf32>
    %c240 = arith.constant 240 : index
    %c0_577 = arith.constant 0 : index
    %1799 = vector.load %arg4[%c240, %c0_577] : memref<288x128xf32, #tpu.memory_space<vmem>>, vector<1x128xf32>
    %1800 = vector.broadcast %1799 : vector<1x128xf32> to vector<16x128xf32>
    %1801 = arith.mulf %1557, %1800 : vector<16x128xf32>
    %1802 = arith.addf %1798, %1801 : vector<16x128xf32>
    %c241 = arith.constant 241 : index
    %c0_578 = arith.constant 0 : index
    %1803 = vector.load %arg4[%c241, %c0_578] : memref<288x128xf32, #tpu.memory_space<vmem>>, vector<1x128xf32>
    %1804 = vector.broadcast %1803 : vector<1x128xf32> to vector<16x128xf32>
    %1805 = arith.mulf %1534, %1804 : vector<16x128xf32>
    %1806 = arith.addf %1802, %1805 : vector<16x128xf32>
    %c242 = arith.constant 242 : index
    %c0_579 = arith.constant 0 : index
    %1807 = vector.load %arg4[%c242, %c0_579] : memref<288x128xf32, #tpu.memory_space<vmem>>, vector<1x128xf32>
    %1808 = vector.broadcast %1807 : vector<1x128xf32> to vector<16x128xf32>
    %1809 = arith.mulf %1558, %1808 : vector<16x128xf32>
    %1810 = arith.addf %1806, %1809 : vector<16x128xf32>
    %c270 = arith.constant 270 : index
    %c0_580 = arith.constant 0 : index
    %1811 = vector.load %arg4[%c270, %c0_580] : memref<288x128xf32, #tpu.memory_space<vmem>>, vector<1x128xf32>
    %1812 = vector.broadcast %1811 : vector<1x128xf32> to vector<16x128xf32>
    %1813 = arith.mulf %1541, %1812 : vector<16x128xf32>
    %1814 = arith.addf %1528, %1813 : vector<16x128xf32>
    %c271 = arith.constant 271 : index
    %c0_581 = arith.constant 0 : index
    %1815 = vector.load %arg4[%c271, %c0_581] : memref<288x128xf32, #tpu.memory_space<vmem>>, vector<1x128xf32>
    %1816 = vector.broadcast %1815 : vector<1x128xf32> to vector<16x128xf32>
    %1817 = arith.mulf %1531, %1816 : vector<16x128xf32>
    %1818 = arith.addf %1814, %1817 : vector<16x128xf32>
    %c272 = arith.constant 272 : index
    %c0_582 = arith.constant 0 : index
    %1819 = vector.load %arg4[%c272, %c0_582] : memref<288x128xf32, #tpu.memory_space<vmem>>, vector<1x128xf32>
    %1820 = vector.broadcast %1819 : vector<1x128xf32> to vector<16x128xf32>
    %1821 = arith.mulf %1542, %1820 : vector<16x128xf32>
    %1822 = arith.addf %1818, %1821 : vector<16x128xf32>
    %c273 = arith.constant 273 : index
    %c0_583 = arith.constant 0 : index
    %1823 = vector.load %arg4[%c273, %c0_583] : memref<288x128xf32, #tpu.memory_space<vmem>>, vector<1x128xf32>
    %1824 = vector.broadcast %1823 : vector<1x128xf32> to vector<16x128xf32>
    %1825 = arith.mulf %1549, %1824 : vector<16x128xf32>
    %1826 = arith.addf %1822, %1825 : vector<16x128xf32>
    %c274 = arith.constant 274 : index
    %c0_584 = arith.constant 0 : index
    %1827 = vector.load %arg4[%c274, %c0_584] : memref<288x128xf32, #tpu.memory_space<vmem>>, vector<1x128xf32>
    %1828 = vector.broadcast %1827 : vector<1x128xf32> to vector<16x128xf32>
    %1829 = arith.mulf %759, %1828 : vector<16x128xf32>
    %1830 = arith.addf %1826, %1829 : vector<16x128xf32>
    %c275 = arith.constant 275 : index
    %c0_585 = arith.constant 0 : index
    %1831 = vector.load %arg4[%c275, %c0_585] : memref<288x128xf32, #tpu.memory_space<vmem>>, vector<1x128xf32>
    %1832 = vector.broadcast %1831 : vector<1x128xf32> to vector<16x128xf32>
    %1833 = arith.mulf %1550, %1832 : vector<16x128xf32>
    %1834 = arith.addf %1830, %1833 : vector<16x128xf32>
    %c276 = arith.constant 276 : index
    %c0_586 = arith.constant 0 : index
    %1835 = vector.load %arg4[%c276, %c0_586] : memref<288x128xf32, #tpu.memory_space<vmem>>, vector<1x128xf32>
    %1836 = vector.broadcast %1835 : vector<1x128xf32> to vector<16x128xf32>
    %1837 = arith.mulf %1557, %1836 : vector<16x128xf32>
    %1838 = arith.addf %1834, %1837 : vector<16x128xf32>
    %c277 = arith.constant 277 : index
    %c0_587 = arith.constant 0 : index
    %1839 = vector.load %arg4[%c277, %c0_587] : memref<288x128xf32, #tpu.memory_space<vmem>>, vector<1x128xf32>
    %1840 = vector.broadcast %1839 : vector<1x128xf32> to vector<16x128xf32>
    %1841 = arith.mulf %1534, %1840 : vector<16x128xf32>
    %1842 = arith.addf %1838, %1841 : vector<16x128xf32>
    %c278 = arith.constant 278 : index
    %c0_588 = arith.constant 0 : index
    %1843 = vector.load %arg4[%c278, %c0_588] : memref<288x128xf32, #tpu.memory_space<vmem>>, vector<1x128xf32>
    %1844 = vector.broadcast %1843 : vector<1x128xf32> to vector<16x128xf32>
    %1845 = arith.mulf %1558, %1844 : vector<16x128xf32>
    %1846 = arith.addf %1842, %1845 : vector<16x128xf32>
    %1847 = vector.extract_strided_slice %764 {offsets = [1, 0], sizes = [1, 128], strides = [1, 1]} : vector<16x128xf32> to vector<1x128xf32>
    %1848 = vector.extract_strided_slice %764 {offsets = [0, 0], sizes = [15, 128], strides = [1, 1]} : vector<16x128xf32> to vector<15x128xf32>
    %1849 = tpu.concatenate %1847, %1848 in 0 : vector<1x128xf32>, vector<15x128xf32> -> vector<16x128xf32>
    %1850 = vector.extract_strided_slice %764 {offsets = [1, 0], sizes = [15, 128], strides = [1, 1]} : vector<16x128xf32> to vector<15x128xf32>
    %1851 = vector.extract_strided_slice %764 {offsets = [14, 0], sizes = [1, 128], strides = [1, 1]} : vector<16x128xf32> to vector<1x128xf32>
    %1852 = tpu.concatenate %1850, %1851 in 0 : vector<15x128xf32>, vector<1x128xf32> -> vector<16x128xf32>
    %1853 = vector.extract_strided_slice %1849 {offsets = [0, 127], sizes = [16, 1], strides = [1, 1]} : vector<16x128xf32> to vector<16x1xf32>
    %1854 = vector.extract_strided_slice %1849 {offsets = [0, 0], sizes = [16, 127], strides = [1, 1]} : vector<16x128xf32> to vector<16x127xf32>
    %1855 = tpu.concatenate %1853, %1854 in 1 : vector<16x1xf32>, vector<16x127xf32> -> vector<16x128xf32>
    %1856 = vector.extract_strided_slice %1849 {offsets = [0, 1], sizes = [16, 127], strides = [1, 1]} : vector<16x128xf32> to vector<16x127xf32>
    %1857 = vector.extract_strided_slice %1849 {offsets = [0, 0], sizes = [16, 1], strides = [1, 1]} : vector<16x128xf32> to vector<16x1xf32>
    %1858 = tpu.concatenate %1856, %1857 in 1 : vector<16x127xf32>, vector<16x1xf32> -> vector<16x128xf32>
    %1859 = arith.select %18, %1858, %1855 : vector<16x128xi1>, vector<16x128xf32>
    %1860 = arith.select %36, %1855, %1858 : vector<16x128xi1>, vector<16x128xf32>
    %1861 = vector.extract_strided_slice %764 {offsets = [0, 127], sizes = [16, 1], strides = [1, 1]} : vector<16x128xf32> to vector<16x1xf32>
    %1862 = vector.extract_strided_slice %764 {offsets = [0, 0], sizes = [16, 127], strides = [1, 1]} : vector<16x128xf32> to vector<16x127xf32>
    %1863 = tpu.concatenate %1861, %1862 in 1 : vector<16x1xf32>, vector<16x127xf32> -> vector<16x128xf32>
    %1864 = vector.extract_strided_slice %764 {offsets = [0, 1], sizes = [16, 127], strides = [1, 1]} : vector<16x128xf32> to vector<16x127xf32>
    %1865 = vector.extract_strided_slice %764 {offsets = [0, 0], sizes = [16, 1], strides = [1, 1]} : vector<16x128xf32> to vector<16x1xf32>
    %1866 = tpu.concatenate %1864, %1865 in 1 : vector<16x127xf32>, vector<16x1xf32> -> vector<16x128xf32>
    %1867 = arith.select %18, %1866, %1863 : vector<16x128xi1>, vector<16x128xf32>
    %1868 = arith.select %36, %1863, %1866 : vector<16x128xi1>, vector<16x128xf32>
    %1869 = vector.extract_strided_slice %1852 {offsets = [0, 127], sizes = [16, 1], strides = [1, 1]} : vector<16x128xf32> to vector<16x1xf32>
    %1870 = vector.extract_strided_slice %1852 {offsets = [0, 0], sizes = [16, 127], strides = [1, 1]} : vector<16x128xf32> to vector<16x127xf32>
    %1871 = tpu.concatenate %1869, %1870 in 1 : vector<16x1xf32>, vector<16x127xf32> -> vector<16x128xf32>
    %1872 = vector.extract_strided_slice %1852 {offsets = [0, 1], sizes = [16, 127], strides = [1, 1]} : vector<16x128xf32> to vector<16x127xf32>
    %1873 = vector.extract_strided_slice %1852 {offsets = [0, 0], sizes = [16, 1], strides = [1, 1]} : vector<16x128xf32> to vector<16x1xf32>
    %1874 = tpu.concatenate %1872, %1873 in 1 : vector<16x127xf32>, vector<16x1xf32> -> vector<16x128xf32>
    %1875 = arith.select %18, %1874, %1871 : vector<16x128xi1>, vector<16x128xf32>
    %1876 = arith.select %36, %1871, %1874 : vector<16x128xi1>, vector<16x128xf32>
    %c27_589 = arith.constant 27 : index
    %c0_590 = arith.constant 0 : index
    %1877 = vector.load %arg4[%c27_589, %c0_590] : memref<288x128xf32, #tpu.memory_space<vmem>>, vector<1x128xf32>
    %1878 = vector.broadcast %1877 : vector<1x128xf32> to vector<16x128xf32>
    %1879 = arith.mulf %1859, %1878 : vector<16x128xf32>
    %1880 = arith.addf %1594, %1879 : vector<16x128xf32>
    %c28_591 = arith.constant 28 : index
    %c0_592 = arith.constant 0 : index
    %1881 = vector.load %arg4[%c28_591, %c0_592] : memref<288x128xf32, #tpu.memory_space<vmem>>, vector<1x128xf32>
    %1882 = vector.broadcast %1881 : vector<1x128xf32> to vector<16x128xf32>
    %1883 = arith.mulf %1849, %1882 : vector<16x128xf32>
    %1884 = arith.addf %1880, %1883 : vector<16x128xf32>
    %c29_593 = arith.constant 29 : index
    %c0_594 = arith.constant 0 : index
    %1885 = vector.load %arg4[%c29_593, %c0_594] : memref<288x128xf32, #tpu.memory_space<vmem>>, vector<1x128xf32>
    %1886 = vector.broadcast %1885 : vector<1x128xf32> to vector<16x128xf32>
    %1887 = arith.mulf %1860, %1886 : vector<16x128xf32>
    %1888 = arith.addf %1884, %1887 : vector<16x128xf32>
    %c30_595 = arith.constant 30 : index
    %c0_596 = arith.constant 0 : index
    %1889 = vector.load %arg4[%c30_595, %c0_596] : memref<288x128xf32, #tpu.memory_space<vmem>>, vector<1x128xf32>
    %1890 = vector.broadcast %1889 : vector<1x128xf32> to vector<16x128xf32>
    %1891 = arith.mulf %1867, %1890 : vector<16x128xf32>
    %1892 = arith.addf %1888, %1891 : vector<16x128xf32>
    %c31_597 = arith.constant 31 : index
    %c0_598 = arith.constant 0 : index
    %1893 = vector.load %arg4[%c31_597, %c0_598] : memref<288x128xf32, #tpu.memory_space<vmem>>, vector<1x128xf32>
    %1894 = vector.broadcast %1893 : vector<1x128xf32> to vector<16x128xf32>
    %1895 = arith.mulf %764, %1894 : vector<16x128xf32>
    %1896 = arith.addf %1892, %1895 : vector<16x128xf32>
    %c32_599 = arith.constant 32 : index
    %c0_600 = arith.constant 0 : index
    %1897 = vector.load %arg4[%c32_599, %c0_600] : memref<288x128xf32, #tpu.memory_space<vmem>>, vector<1x128xf32>
    %1898 = vector.broadcast %1897 : vector<1x128xf32> to vector<16x128xf32>
    %1899 = arith.mulf %1868, %1898 : vector<16x128xf32>
    %1900 = arith.addf %1896, %1899 : vector<16x128xf32>
    %c33_601 = arith.constant 33 : index
    %c0_602 = arith.constant 0 : index
    %1901 = vector.load %arg4[%c33_601, %c0_602] : memref<288x128xf32, #tpu.memory_space<vmem>>, vector<1x128xf32>
    %1902 = vector.broadcast %1901 : vector<1x128xf32> to vector<16x128xf32>
    %1903 = arith.mulf %1875, %1902 : vector<16x128xf32>
    %1904 = arith.addf %1900, %1903 : vector<16x128xf32>
    %c34_603 = arith.constant 34 : index
    %c0_604 = arith.constant 0 : index
    %1905 = vector.load %arg4[%c34_603, %c0_604] : memref<288x128xf32, #tpu.memory_space<vmem>>, vector<1x128xf32>
    %1906 = vector.broadcast %1905 : vector<1x128xf32> to vector<16x128xf32>
    %1907 = arith.mulf %1852, %1906 : vector<16x128xf32>
    %1908 = arith.addf %1904, %1907 : vector<16x128xf32>
    %c35_605 = arith.constant 35 : index
    %c0_606 = arith.constant 0 : index
    %1909 = vector.load %arg4[%c35_605, %c0_606] : memref<288x128xf32, #tpu.memory_space<vmem>>, vector<1x128xf32>
    %1910 = vector.broadcast %1909 : vector<1x128xf32> to vector<16x128xf32>
    %1911 = arith.mulf %1876, %1910 : vector<16x128xf32>
    %1912 = arith.addf %1908, %1911 : vector<16x128xf32>
    %c63_607 = arith.constant 63 : index
    %c0_608 = arith.constant 0 : index
    %1913 = vector.load %arg4[%c63_607, %c0_608] : memref<288x128xf32, #tpu.memory_space<vmem>>, vector<1x128xf32>
    %1914 = vector.broadcast %1913 : vector<1x128xf32> to vector<16x128xf32>
    %1915 = arith.mulf %1859, %1914 : vector<16x128xf32>
    %1916 = arith.addf %1630, %1915 : vector<16x128xf32>
    %c64_609 = arith.constant 64 : index
    %c0_610 = arith.constant 0 : index
    %1917 = vector.load %arg4[%c64_609, %c0_610] : memref<288x128xf32, #tpu.memory_space<vmem>>, vector<1x128xf32>
    %1918 = vector.broadcast %1917 : vector<1x128xf32> to vector<16x128xf32>
    %1919 = arith.mulf %1849, %1918 : vector<16x128xf32>
    %1920 = arith.addf %1916, %1919 : vector<16x128xf32>
    %c65_611 = arith.constant 65 : index
    %c0_612 = arith.constant 0 : index
    %1921 = vector.load %arg4[%c65_611, %c0_612] : memref<288x128xf32, #tpu.memory_space<vmem>>, vector<1x128xf32>
    %1922 = vector.broadcast %1921 : vector<1x128xf32> to vector<16x128xf32>
    %1923 = arith.mulf %1860, %1922 : vector<16x128xf32>
    %1924 = arith.addf %1920, %1923 : vector<16x128xf32>
    %c66_613 = arith.constant 66 : index
    %c0_614 = arith.constant 0 : index
    %1925 = vector.load %arg4[%c66_613, %c0_614] : memref<288x128xf32, #tpu.memory_space<vmem>>, vector<1x128xf32>
    %1926 = vector.broadcast %1925 : vector<1x128xf32> to vector<16x128xf32>
    %1927 = arith.mulf %1867, %1926 : vector<16x128xf32>
    %1928 = arith.addf %1924, %1927 : vector<16x128xf32>
    %c67_615 = arith.constant 67 : index
    %c0_616 = arith.constant 0 : index
    %1929 = vector.load %arg4[%c67_615, %c0_616] : memref<288x128xf32, #tpu.memory_space<vmem>>, vector<1x128xf32>
    %1930 = vector.broadcast %1929 : vector<1x128xf32> to vector<16x128xf32>
    %1931 = arith.mulf %764, %1930 : vector<16x128xf32>
    %1932 = arith.addf %1928, %1931 : vector<16x128xf32>
    %c68_617 = arith.constant 68 : index
    %c0_618 = arith.constant 0 : index
    %1933 = vector.load %arg4[%c68_617, %c0_618] : memref<288x128xf32, #tpu.memory_space<vmem>>, vector<1x128xf32>
    %1934 = vector.broadcast %1933 : vector<1x128xf32> to vector<16x128xf32>
    %1935 = arith.mulf %1868, %1934 : vector<16x128xf32>
    %1936 = arith.addf %1932, %1935 : vector<16x128xf32>
    %c69_619 = arith.constant 69 : index
    %c0_620 = arith.constant 0 : index
    %1937 = vector.load %arg4[%c69_619, %c0_620] : memref<288x128xf32, #tpu.memory_space<vmem>>, vector<1x128xf32>
    %1938 = vector.broadcast %1937 : vector<1x128xf32> to vector<16x128xf32>
    %1939 = arith.mulf %1875, %1938 : vector<16x128xf32>
    %1940 = arith.addf %1936, %1939 : vector<16x128xf32>
    %c70_621 = arith.constant 70 : index
    %c0_622 = arith.constant 0 : index
    %1941 = vector.load %arg4[%c70_621, %c0_622] : memref<288x128xf32, #tpu.memory_space<vmem>>, vector<1x128xf32>
    %1942 = vector.broadcast %1941 : vector<1x128xf32> to vector<16x128xf32>
    %1943 = arith.mulf %1852, %1942 : vector<16x128xf32>
    %1944 = arith.addf %1940, %1943 : vector<16x128xf32>
    %c71_623 = arith.constant 71 : index
    %c0_624 = arith.constant 0 : index
    %1945 = vector.load %arg4[%c71_623, %c0_624] : memref<288x128xf32, #tpu.memory_space<vmem>>, vector<1x128xf32>
    %1946 = vector.broadcast %1945 : vector<1x128xf32> to vector<16x128xf32>
    %1947 = arith.mulf %1876, %1946 : vector<16x128xf32>
    %1948 = arith.addf %1944, %1947 : vector<16x128xf32>
    %c99_625 = arith.constant 99 : index
    %c0_626 = arith.constant 0 : index
    %1949 = vector.load %arg4[%c99_625, %c0_626] : memref<288x128xf32, #tpu.memory_space<vmem>>, vector<1x128xf32>
    %1950 = vector.broadcast %1949 : vector<1x128xf32> to vector<16x128xf32>
    %1951 = arith.mulf %1859, %1950 : vector<16x128xf32>
    %1952 = arith.addf %1666, %1951 : vector<16x128xf32>
    %c100_627 = arith.constant 100 : index
    %c0_628 = arith.constant 0 : index
    %1953 = vector.load %arg4[%c100_627, %c0_628] : memref<288x128xf32, #tpu.memory_space<vmem>>, vector<1x128xf32>
    %1954 = vector.broadcast %1953 : vector<1x128xf32> to vector<16x128xf32>
    %1955 = arith.mulf %1849, %1954 : vector<16x128xf32>
    %1956 = arith.addf %1952, %1955 : vector<16x128xf32>
    %c101_629 = arith.constant 101 : index
    %c0_630 = arith.constant 0 : index
    %1957 = vector.load %arg4[%c101_629, %c0_630] : memref<288x128xf32, #tpu.memory_space<vmem>>, vector<1x128xf32>
    %1958 = vector.broadcast %1957 : vector<1x128xf32> to vector<16x128xf32>
    %1959 = arith.mulf %1860, %1958 : vector<16x128xf32>
    %1960 = arith.addf %1956, %1959 : vector<16x128xf32>
    %c102_631 = arith.constant 102 : index
    %c0_632 = arith.constant 0 : index
    %1961 = vector.load %arg4[%c102_631, %c0_632] : memref<288x128xf32, #tpu.memory_space<vmem>>, vector<1x128xf32>
    %1962 = vector.broadcast %1961 : vector<1x128xf32> to vector<16x128xf32>
    %1963 = arith.mulf %1867, %1962 : vector<16x128xf32>
    %1964 = arith.addf %1960, %1963 : vector<16x128xf32>
    %c103_633 = arith.constant 103 : index
    %c0_634 = arith.constant 0 : index
    %1965 = vector.load %arg4[%c103_633, %c0_634] : memref<288x128xf32, #tpu.memory_space<vmem>>, vector<1x128xf32>
    %1966 = vector.broadcast %1965 : vector<1x128xf32> to vector<16x128xf32>
    %1967 = arith.mulf %764, %1966 : vector<16x128xf32>
    %1968 = arith.addf %1964, %1967 : vector<16x128xf32>
    %c104_635 = arith.constant 104 : index
    %c0_636 = arith.constant 0 : index
    %1969 = vector.load %arg4[%c104_635, %c0_636] : memref<288x128xf32, #tpu.memory_space<vmem>>, vector<1x128xf32>
    %1970 = vector.broadcast %1969 : vector<1x128xf32> to vector<16x128xf32>
    %1971 = arith.mulf %1868, %1970 : vector<16x128xf32>
    %1972 = arith.addf %1968, %1971 : vector<16x128xf32>
    %c105_637 = arith.constant 105 : index
    %c0_638 = arith.constant 0 : index
    %1973 = vector.load %arg4[%c105_637, %c0_638] : memref<288x128xf32, #tpu.memory_space<vmem>>, vector<1x128xf32>
    %1974 = vector.broadcast %1973 : vector<1x128xf32> to vector<16x128xf32>
    %1975 = arith.mulf %1875, %1974 : vector<16x128xf32>
    %1976 = arith.addf %1972, %1975 : vector<16x128xf32>
    %c106_639 = arith.constant 106 : index
    %c0_640 = arith.constant 0 : index
    %1977 = vector.load %arg4[%c106_639, %c0_640] : memref<288x128xf32, #tpu.memory_space<vmem>>, vector<1x128xf32>
    %1978 = vector.broadcast %1977 : vector<1x128xf32> to vector<16x128xf32>
    %1979 = arith.mulf %1852, %1978 : vector<16x128xf32>
    %1980 = arith.addf %1976, %1979 : vector<16x128xf32>
    %c107_641 = arith.constant 107 : index
    %c0_642 = arith.constant 0 : index
    %1981 = vector.load %arg4[%c107_641, %c0_642] : memref<288x128xf32, #tpu.memory_space<vmem>>, vector<1x128xf32>
    %1982 = vector.broadcast %1981 : vector<1x128xf32> to vector<16x128xf32>
    %1983 = arith.mulf %1876, %1982 : vector<16x128xf32>
    %1984 = arith.addf %1980, %1983 : vector<16x128xf32>
    %c135_643 = arith.constant 135 : index
    %c0_644 = arith.constant 0 : index
    %1985 = vector.load %arg4[%c135_643, %c0_644] : memref<288x128xf32, #tpu.memory_space<vmem>>, vector<1x128xf32>
    %1986 = vector.broadcast %1985 : vector<1x128xf32> to vector<16x128xf32>
    %1987 = arith.mulf %1859, %1986 : vector<16x128xf32>
    %1988 = arith.addf %1702, %1987 : vector<16x128xf32>
    %c136_645 = arith.constant 136 : index
    %c0_646 = arith.constant 0 : index
    %1989 = vector.load %arg4[%c136_645, %c0_646] : memref<288x128xf32, #tpu.memory_space<vmem>>, vector<1x128xf32>
    %1990 = vector.broadcast %1989 : vector<1x128xf32> to vector<16x128xf32>
    %1991 = arith.mulf %1849, %1990 : vector<16x128xf32>
    %1992 = arith.addf %1988, %1991 : vector<16x128xf32>
    %c137_647 = arith.constant 137 : index
    %c0_648 = arith.constant 0 : index
    %1993 = vector.load %arg4[%c137_647, %c0_648] : memref<288x128xf32, #tpu.memory_space<vmem>>, vector<1x128xf32>
    %1994 = vector.broadcast %1993 : vector<1x128xf32> to vector<16x128xf32>
    %1995 = arith.mulf %1860, %1994 : vector<16x128xf32>
    %1996 = arith.addf %1992, %1995 : vector<16x128xf32>
    %c138_649 = arith.constant 138 : index
    %c0_650 = arith.constant 0 : index
    %1997 = vector.load %arg4[%c138_649, %c0_650] : memref<288x128xf32, #tpu.memory_space<vmem>>, vector<1x128xf32>
    %1998 = vector.broadcast %1997 : vector<1x128xf32> to vector<16x128xf32>
    %1999 = arith.mulf %1867, %1998 : vector<16x128xf32>
    %2000 = arith.addf %1996, %1999 : vector<16x128xf32>
    %c139_651 = arith.constant 139 : index
    %c0_652 = arith.constant 0 : index
    %2001 = vector.load %arg4[%c139_651, %c0_652] : memref<288x128xf32, #tpu.memory_space<vmem>>, vector<1x128xf32>
    %2002 = vector.broadcast %2001 : vector<1x128xf32> to vector<16x128xf32>
    %2003 = arith.mulf %764, %2002 : vector<16x128xf32>
    %2004 = arith.addf %2000, %2003 : vector<16x128xf32>
    %c140_653 = arith.constant 140 : index
    %c0_654 = arith.constant 0 : index
    %2005 = vector.load %arg4[%c140_653, %c0_654] : memref<288x128xf32, #tpu.memory_space<vmem>>, vector<1x128xf32>
    %2006 = vector.broadcast %2005 : vector<1x128xf32> to vector<16x128xf32>
    %2007 = arith.mulf %1868, %2006 : vector<16x128xf32>
    %2008 = arith.addf %2004, %2007 : vector<16x128xf32>
    %c141_655 = arith.constant 141 : index
    %c0_656 = arith.constant 0 : index
    %2009 = vector.load %arg4[%c141_655, %c0_656] : memref<288x128xf32, #tpu.memory_space<vmem>>, vector<1x128xf32>
    %2010 = vector.broadcast %2009 : vector<1x128xf32> to vector<16x128xf32>
    %2011 = arith.mulf %1875, %2010 : vector<16x128xf32>
    %2012 = arith.addf %2008, %2011 : vector<16x128xf32>
    %c142_657 = arith.constant 142 : index
    %c0_658 = arith.constant 0 : index
    %2013 = vector.load %arg4[%c142_657, %c0_658] : memref<288x128xf32, #tpu.memory_space<vmem>>, vector<1x128xf32>
    %2014 = vector.broadcast %2013 : vector<1x128xf32> to vector<16x128xf32>
    %2015 = arith.mulf %1852, %2014 : vector<16x128xf32>
    %2016 = arith.addf %2012, %2015 : vector<16x128xf32>
    %c143_659 = arith.constant 143 : index
    %c0_660 = arith.constant 0 : index
    %2017 = vector.load %arg4[%c143_659, %c0_660] : memref<288x128xf32, #tpu.memory_space<vmem>>, vector<1x128xf32>
    %2018 = vector.broadcast %2017 : vector<1x128xf32> to vector<16x128xf32>
    %2019 = arith.mulf %1876, %2018 : vector<16x128xf32>
    %2020 = arith.addf %2016, %2019 : vector<16x128xf32>
    %c171 = arith.constant 171 : index
    %c0_661 = arith.constant 0 : index
    %2021 = vector.load %arg4[%c171, %c0_661] : memref<288x128xf32, #tpu.memory_space<vmem>>, vector<1x128xf32>
    %2022 = vector.broadcast %2021 : vector<1x128xf32> to vector<16x128xf32>
    %2023 = arith.mulf %1859, %2022 : vector<16x128xf32>
    %2024 = arith.addf %1738, %2023 : vector<16x128xf32>
    %c172 = arith.constant 172 : index
    %c0_662 = arith.constant 0 : index
    %2025 = vector.load %arg4[%c172, %c0_662] : memref<288x128xf32, #tpu.memory_space<vmem>>, vector<1x128xf32>
    %2026 = vector.broadcast %2025 : vector<1x128xf32> to vector<16x128xf32>
    %2027 = arith.mulf %1849, %2026 : vector<16x128xf32>
    %2028 = arith.addf %2024, %2027 : vector<16x128xf32>
    %c173 = arith.constant 173 : index
    %c0_663 = arith.constant 0 : index
    %2029 = vector.load %arg4[%c173, %c0_663] : memref<288x128xf32, #tpu.memory_space<vmem>>, vector<1x128xf32>
    %2030 = vector.broadcast %2029 : vector<1x128xf32> to vector<16x128xf32>
    %2031 = arith.mulf %1860, %2030 : vector<16x128xf32>
    %2032 = arith.addf %2028, %2031 : vector<16x128xf32>
    %c174 = arith.constant 174 : index
    %c0_664 = arith.constant 0 : index
    %2033 = vector.load %arg4[%c174, %c0_664] : memref<288x128xf32, #tpu.memory_space<vmem>>, vector<1x128xf32>
    %2034 = vector.broadcast %2033 : vector<1x128xf32> to vector<16x128xf32>
    %2035 = arith.mulf %1867, %2034 : vector<16x128xf32>
    %2036 = arith.addf %2032, %2035 : vector<16x128xf32>
    %c175 = arith.constant 175 : index
    %c0_665 = arith.constant 0 : index
    %2037 = vector.load %arg4[%c175, %c0_665] : memref<288x128xf32, #tpu.memory_space<vmem>>, vector<1x128xf32>
    %2038 = vector.broadcast %2037 : vector<1x128xf32> to vector<16x128xf32>
    %2039 = arith.mulf %764, %2038 : vector<16x128xf32>
    %2040 = arith.addf %2036, %2039 : vector<16x128xf32>
    %c176 = arith.constant 176 : index
    %c0_666 = arith.constant 0 : index
    %2041 = vector.load %arg4[%c176, %c0_666] : memref<288x128xf32, #tpu.memory_space<vmem>>, vector<1x128xf32>
    %2042 = vector.broadcast %2041 : vector<1x128xf32> to vector<16x128xf32>
    %2043 = arith.mulf %1868, %2042 : vector<16x128xf32>
    %2044 = arith.addf %2040, %2043 : vector<16x128xf32>
    %c177 = arith.constant 177 : index
    %c0_667 = arith.constant 0 : index
    %2045 = vector.load %arg4[%c177, %c0_667] : memref<288x128xf32, #tpu.memory_space<vmem>>, vector<1x128xf32>
    %2046 = vector.broadcast %2045 : vector<1x128xf32> to vector<16x128xf32>
    %2047 = arith.mulf %1875, %2046 : vector<16x128xf32>
    %2048 = arith.addf %2044, %2047 : vector<16x128xf32>
    %c178 = arith.constant 178 : index
    %c0_668 = arith.constant 0 : index
    %2049 = vector.load %arg4[%c178, %c0_668] : memref<288x128xf32, #tpu.memory_space<vmem>>, vector<1x128xf32>
    %2050 = vector.broadcast %2049 : vector<1x128xf32> to vector<16x128xf32>
    %2051 = arith.mulf %1852, %2050 : vector<16x128xf32>
    %2052 = arith.addf %2048, %2051 : vector<16x128xf32>
    %c179 = arith.constant 179 : index
    %c0_669 = arith.constant 0 : index
    %2053 = vector.load %arg4[%c179, %c0_669] : memref<288x128xf32, #tpu.memory_space<vmem>>, vector<1x128xf32>
    %2054 = vector.broadcast %2053 : vector<1x128xf32> to vector<16x128xf32>
    %2055 = arith.mulf %1876, %2054 : vector<16x128xf32>
    %2056 = arith.addf %2052, %2055 : vector<16x128xf32>
    %c207 = arith.constant 207 : index
    %c0_670 = arith.constant 0 : index
    %2057 = vector.load %arg4[%c207, %c0_670] : memref<288x128xf32, #tpu.memory_space<vmem>>, vector<1x128xf32>
    %2058 = vector.broadcast %2057 : vector<1x128xf32> to vector<16x128xf32>
    %2059 = arith.mulf %1859, %2058 : vector<16x128xf32>
    %2060 = arith.addf %1774, %2059 : vector<16x128xf32>
    %c208 = arith.constant 208 : index
    %c0_671 = arith.constant 0 : index
    %2061 = vector.load %arg4[%c208, %c0_671] : memref<288x128xf32, #tpu.memory_space<vmem>>, vector<1x128xf32>
    %2062 = vector.broadcast %2061 : vector<1x128xf32> to vector<16x128xf32>
    %2063 = arith.mulf %1849, %2062 : vector<16x128xf32>
    %2064 = arith.addf %2060, %2063 : vector<16x128xf32>
    %c209 = arith.constant 209 : index
    %c0_672 = arith.constant 0 : index
    %2065 = vector.load %arg4[%c209, %c0_672] : memref<288x128xf32, #tpu.memory_space<vmem>>, vector<1x128xf32>
    %2066 = vector.broadcast %2065 : vector<1x128xf32> to vector<16x128xf32>
    %2067 = arith.mulf %1860, %2066 : vector<16x128xf32>
    %2068 = arith.addf %2064, %2067 : vector<16x128xf32>
    %c210 = arith.constant 210 : index
    %c0_673 = arith.constant 0 : index
    %2069 = vector.load %arg4[%c210, %c0_673] : memref<288x128xf32, #tpu.memory_space<vmem>>, vector<1x128xf32>
    %2070 = vector.broadcast %2069 : vector<1x128xf32> to vector<16x128xf32>
    %2071 = arith.mulf %1867, %2070 : vector<16x128xf32>
    %2072 = arith.addf %2068, %2071 : vector<16x128xf32>
    %c211 = arith.constant 211 : index
    %c0_674 = arith.constant 0 : index
    %2073 = vector.load %arg4[%c211, %c0_674] : memref<288x128xf32, #tpu.memory_space<vmem>>, vector<1x128xf32>
    %2074 = vector.broadcast %2073 : vector<1x128xf32> to vector<16x128xf32>
    %2075 = arith.mulf %764, %2074 : vector<16x128xf32>
    %2076 = arith.addf %2072, %2075 : vector<16x128xf32>
    %c212 = arith.constant 212 : index
    %c0_675 = arith.constant 0 : index
    %2077 = vector.load %arg4[%c212, %c0_675] : memref<288x128xf32, #tpu.memory_space<vmem>>, vector<1x128xf32>
    %2078 = vector.broadcast %2077 : vector<1x128xf32> to vector<16x128xf32>
    %2079 = arith.mulf %1868, %2078 : vector<16x128xf32>
    %2080 = arith.addf %2076, %2079 : vector<16x128xf32>
    %c213 = arith.constant 213 : index
    %c0_676 = arith.constant 0 : index
    %2081 = vector.load %arg4[%c213, %c0_676] : memref<288x128xf32, #tpu.memory_space<vmem>>, vector<1x128xf32>
    %2082 = vector.broadcast %2081 : vector<1x128xf32> to vector<16x128xf32>
    %2083 = arith.mulf %1875, %2082 : vector<16x128xf32>
    %2084 = arith.addf %2080, %2083 : vector<16x128xf32>
    %c214 = arith.constant 214 : index
    %c0_677 = arith.constant 0 : index
    %2085 = vector.load %arg4[%c214, %c0_677] : memref<288x128xf32, #tpu.memory_space<vmem>>, vector<1x128xf32>
    %2086 = vector.broadcast %2085 : vector<1x128xf32> to vector<16x128xf32>
    %2087 = arith.mulf %1852, %2086 : vector<16x128xf32>
    %2088 = arith.addf %2084, %2087 : vector<16x128xf32>
    %c215 = arith.constant 215 : index
    %c0_678 = arith.constant 0 : index
    %2089 = vector.load %arg4[%c215, %c0_678] : memref<288x128xf32, #tpu.memory_space<vmem>>, vector<1x128xf32>
    %2090 = vector.broadcast %2089 : vector<1x128xf32> to vector<16x128xf32>
    %2091 = arith.mulf %1876, %2090 : vector<16x128xf32>
    %2092 = arith.addf %2088, %2091 : vector<16x128xf32>
    %c243 = arith.constant 243 : index
    %c0_679 = arith.constant 0 : index
    %2093 = vector.load %arg4[%c243, %c0_679] : memref<288x128xf32, #tpu.memory_space<vmem>>, vector<1x128xf32>
    %2094 = vector.broadcast %2093 : vector<1x128xf32> to vector<16x128xf32>
    %2095 = arith.mulf %1859, %2094 : vector<16x128xf32>
    %2096 = arith.addf %1810, %2095 : vector<16x128xf32>
    %c244 = arith.constant 244 : index
    %c0_680 = arith.constant 0 : index
    %2097 = vector.load %arg4[%c244, %c0_680] : memref<288x128xf32, #tpu.memory_space<vmem>>, vector<1x128xf32>
    %2098 = vector.broadcast %2097 : vector<1x128xf32> to vector<16x128xf32>
    %2099 = arith.mulf %1849, %2098 : vector<16x128xf32>
    %2100 = arith.addf %2096, %2099 : vector<16x128xf32>
    %c245 = arith.constant 245 : index
    %c0_681 = arith.constant 0 : index
    %2101 = vector.load %arg4[%c245, %c0_681] : memref<288x128xf32, #tpu.memory_space<vmem>>, vector<1x128xf32>
    %2102 = vector.broadcast %2101 : vector<1x128xf32> to vector<16x128xf32>
    %2103 = arith.mulf %1860, %2102 : vector<16x128xf32>
    %2104 = arith.addf %2100, %2103 : vector<16x128xf32>
    %c246 = arith.constant 246 : index
    %c0_682 = arith.constant 0 : index
    %2105 = vector.load %arg4[%c246, %c0_682] : memref<288x128xf32, #tpu.memory_space<vmem>>, vector<1x128xf32>
    %2106 = vector.broadcast %2105 : vector<1x128xf32> to vector<16x128xf32>
    %2107 = arith.mulf %1867, %2106 : vector<16x128xf32>
    %2108 = arith.addf %2104, %2107 : vector<16x128xf32>
    %c247 = arith.constant 247 : index
    %c0_683 = arith.constant 0 : index
    %2109 = vector.load %arg4[%c247, %c0_683] : memref<288x128xf32, #tpu.memory_space<vmem>>, vector<1x128xf32>
    %2110 = vector.broadcast %2109 : vector<1x128xf32> to vector<16x128xf32>
    %2111 = arith.mulf %764, %2110 : vector<16x128xf32>
    %2112 = arith.addf %2108, %2111 : vector<16x128xf32>
    %c248 = arith.constant 248 : index
    %c0_684 = arith.constant 0 : index
    %2113 = vector.load %arg4[%c248, %c0_684] : memref<288x128xf32, #tpu.memory_space<vmem>>, vector<1x128xf32>
    %2114 = vector.broadcast %2113 : vector<1x128xf32> to vector<16x128xf32>
    %2115 = arith.mulf %1868, %2114 : vector<16x128xf32>
    %2116 = arith.addf %2112, %2115 : vector<16x128xf32>
    %c249 = arith.constant 249 : index
    %c0_685 = arith.constant 0 : index
    %2117 = vector.load %arg4[%c249, %c0_685] : memref<288x128xf32, #tpu.memory_space<vmem>>, vector<1x128xf32>
    %2118 = vector.broadcast %2117 : vector<1x128xf32> to vector<16x128xf32>
    %2119 = arith.mulf %1875, %2118 : vector<16x128xf32>
    %2120 = arith.addf %2116, %2119 : vector<16x128xf32>
    %c250 = arith.constant 250 : index
    %c0_686 = arith.constant 0 : index
    %2121 = vector.load %arg4[%c250, %c0_686] : memref<288x128xf32, #tpu.memory_space<vmem>>, vector<1x128xf32>
    %2122 = vector.broadcast %2121 : vector<1x128xf32> to vector<16x128xf32>
    %2123 = arith.mulf %1852, %2122 : vector<16x128xf32>
    %2124 = arith.addf %2120, %2123 : vector<16x128xf32>
    %c251 = arith.constant 251 : index
    %c0_687 = arith.constant 0 : index
    %2125 = vector.load %arg4[%c251, %c0_687] : memref<288x128xf32, #tpu.memory_space<vmem>>, vector<1x128xf32>
    %2126 = vector.broadcast %2125 : vector<1x128xf32> to vector<16x128xf32>
    %2127 = arith.mulf %1876, %2126 : vector<16x128xf32>
    %2128 = arith.addf %2124, %2127 : vector<16x128xf32>
    %c279 = arith.constant 279 : index
    %c0_688 = arith.constant 0 : index
    %2129 = vector.load %arg4[%c279, %c0_688] : memref<288x128xf32, #tpu.memory_space<vmem>>, vector<1x128xf32>
    %2130 = vector.broadcast %2129 : vector<1x128xf32> to vector<16x128xf32>
    %2131 = arith.mulf %1859, %2130 : vector<16x128xf32>
    %2132 = arith.addf %1846, %2131 : vector<16x128xf32>
    %c280 = arith.constant 280 : index
    %c0_689 = arith.constant 0 : index
    %2133 = vector.load %arg4[%c280, %c0_689] : memref<288x128xf32, #tpu.memory_space<vmem>>, vector<1x128xf32>
    %2134 = vector.broadcast %2133 : vector<1x128xf32> to vector<16x128xf32>
    %2135 = arith.mulf %1849, %2134 : vector<16x128xf32>
    %2136 = arith.addf %2132, %2135 : vector<16x128xf32>
    %c281 = arith.constant 281 : index
    %c0_690 = arith.constant 0 : index
    %2137 = vector.load %arg4[%c281, %c0_690] : memref<288x128xf32, #tpu.memory_space<vmem>>, vector<1x128xf32>
    %2138 = vector.broadcast %2137 : vector<1x128xf32> to vector<16x128xf32>
    %2139 = arith.mulf %1860, %2138 : vector<16x128xf32>
    %2140 = arith.addf %2136, %2139 : vector<16x128xf32>
    %c282 = arith.constant 282 : index
    %c0_691 = arith.constant 0 : index
    %2141 = vector.load %arg4[%c282, %c0_691] : memref<288x128xf32, #tpu.memory_space<vmem>>, vector<1x128xf32>
    %2142 = vector.broadcast %2141 : vector<1x128xf32> to vector<16x128xf32>
    %2143 = arith.mulf %1867, %2142 : vector<16x128xf32>
    %2144 = arith.addf %2140, %2143 : vector<16x128xf32>
    %c283 = arith.constant 283 : index
    %c0_692 = arith.constant 0 : index
    %2145 = vector.load %arg4[%c283, %c0_692] : memref<288x128xf32, #tpu.memory_space<vmem>>, vector<1x128xf32>
    %2146 = vector.broadcast %2145 : vector<1x128xf32> to vector<16x128xf32>
    %2147 = arith.mulf %764, %2146 : vector<16x128xf32>
    %2148 = arith.addf %2144, %2147 : vector<16x128xf32>
    %c284 = arith.constant 284 : index
    %c0_693 = arith.constant 0 : index
    %2149 = vector.load %arg4[%c284, %c0_693] : memref<288x128xf32, #tpu.memory_space<vmem>>, vector<1x128xf32>
    %2150 = vector.broadcast %2149 : vector<1x128xf32> to vector<16x128xf32>
    %2151 = arith.mulf %1868, %2150 : vector<16x128xf32>
    %2152 = arith.addf %2148, %2151 : vector<16x128xf32>
    %c285 = arith.constant 285 : index
    %c0_694 = arith.constant 0 : index
    %2153 = vector.load %arg4[%c285, %c0_694] : memref<288x128xf32, #tpu.memory_space<vmem>>, vector<1x128xf32>
    %2154 = vector.broadcast %2153 : vector<1x128xf32> to vector<16x128xf32>
    %2155 = arith.mulf %1875, %2154 : vector<16x128xf32>
    %2156 = arith.addf %2152, %2155 : vector<16x128xf32>
    %c286 = arith.constant 286 : index
    %c0_695 = arith.constant 0 : index
    %2157 = vector.load %arg4[%c286, %c0_695] : memref<288x128xf32, #tpu.memory_space<vmem>>, vector<1x128xf32>
    %2158 = vector.broadcast %2157 : vector<1x128xf32> to vector<16x128xf32>
    %2159 = arith.mulf %1852, %2158 : vector<16x128xf32>
    %2160 = arith.addf %2156, %2159 : vector<16x128xf32>
    %c287 = arith.constant 287 : index
    %c0_696 = arith.constant 0 : index
    %2161 = vector.load %arg4[%c287, %c0_696] : memref<288x128xf32, #tpu.memory_space<vmem>>, vector<1x128xf32>
    %2162 = vector.broadcast %2161 : vector<1x128xf32> to vector<16x128xf32>
    %2163 = arith.mulf %1876, %2162 : vector<16x128xf32>
    %2164 = arith.addf %2160, %2163 : vector<16x128xf32>
    %2165 = tpu.concatenate %1912, %1948, %1984, %2020, %2056, %2092, %2128, %2164 in 0 : vector<16x128xf32>, vector<16x128xf32>, vector<16x128xf32>, vector<16x128xf32>, vector<16x128xf32>, vector<16x128xf32>, vector<16x128xf32>, vector<16x128xf32> -> vector<128x128xf32>
    %c0_697 = arith.constant 0 : index
    %c0_698 = arith.constant 0 : index
    %2166 = vector.load %arg6[%c0_697, %c0_698] : memref<64x128xf32, #tpu.memory_space<vmem>>, vector<64x128xf32>
    %cst_699 = arith.constant dense<0.000000e+00> : vector<64x128xf32>
    %2167 = tpu.matmul %2166, %2165, %cst_699 {dimension_numbers = #tpu.dot_dimension_numbers<[1], [0], [0], [1], [0, 0, 1, 1], [], []>} : vector<64x128xf32>, vector<128x128xf32>, vector<64x128xf32> -> vector<64x128xf32>
    %c0_700 = arith.constant 0 : index
    %c0_701 = arith.constant 0 : index
    %2168 = vector.load %arg7[%c0_700, %c0_701] : memref<128x64xf32, #tpu.memory_space<vmem>>, vector<128x64xf32>
    %cst_702 = arith.constant dense<0.000000e+00> : vector<64x64xf32>
    %2169 = tpu.matmul %2167, %2168, %cst_702 {dimension_numbers = #tpu.dot_dimension_numbers<[1], [0], [0], [1], [0, 0, 1, 1], [], []>} : vector<64x128xf32>, vector<128x64xf32>, vector<64x64xf32> -> vector<64x64xf32>
    %c0_703 = arith.constant 0 : index
    %c0_704 = arith.constant 0 : index
    %2170 = vector.load %arg8[%c0_703, %c0_704] : memref<64x64xf32, #tpu.memory_space<vmem>>, vector<64x64xf32>
    %2171 = arith.addf %2169, %2170 : vector<64x64xf32>
    %2172 = vector.extract_strided_slice %2171 {offsets = [0, 0], sizes = [32, 64], strides = [1, 1]} : vector<64x64xf32> to vector<32x64xf32>
    %2173 = vector.extract_strided_slice %2171 {offsets = [32, 0], sizes = [32, 64], strides = [1, 1]} : vector<64x64xf32> to vector<32x64xf32>
    %2174 = tpu.concatenate %2172, %2173 in 1 : vector<32x64xf32>, vector<32x64xf32> -> vector<32x128xf32>
    %c0_705 = arith.constant 0 : index
    %c0_706 = arith.constant 0 : index
    %c0_707 = arith.constant 0 : index
    %2175 = vector.load %arg9[%c0_705, %c0_706, %c0_707] : memref<1x32x128xf32, #tpu.memory_space<vmem>>, vector<1x32x128xf32>
    %2176 = vector.shape_cast %2175 : vector<1x32x128xf32> to vector<32x128xf32>
    %2177 = vector.shape_cast %2174 : vector<32x128xf32> to vector<1x32x128xf32>
    tpu.vector_store %arg9[%c0_705, %c0_706, %c0_707], %2177 {strides = array<i32>} : memref<1x32x128xf32, #tpu.memory_space<vmem>>, vector<1x32x128xf32>,
    return
  }
  func.func @transform_0(%arg0: i32) -> (i32, i32, i32, i32) {
    %c0_i32 = arith.constant 0 : i32
    %c0_i32_0 = arith.constant 0 : i32
    %c0_i32_1 = arith.constant 0 : i32
    %c0_i32_2 = arith.constant 0 : i32
    return %arg0, %c0_i32, %c0_i32_0, %c0_i32_1 : i32, i32, i32, i32
  }
  func.func @transform_1(%arg0: i32) -> (i32, i32) {
    %c0_i32 = arith.constant 0 : i32
    %c0_i32_0 = arith.constant 0 : i32
    %c0_i32_1 = arith.constant 0 : i32
    return %c0_i32, %c0_i32_0 : i32, i32
  }
  func.func @transform_2(%arg0: i32) -> (i32, i32) {
    %c0_i32 = arith.constant 0 : i32
    %c0_i32_0 = arith.constant 0 : i32
    %c0_i32_1 = arith.constant 0 : i32
    return %c0_i32, %c0_i32_0 : i32, i32
  }
  func.func @transform_3(%arg0: i32) -> (i32, i32) {
    %c0_i32 = arith.constant 0 : i32
    %c0_i32_0 = arith.constant 0 : i32
    %c0_i32_1 = arith.constant 0 : i32
    return %c0_i32, %c0_i32_0 : i32, i32
  }
  func.func @transform_4(%arg0: i32) -> (i32, i32) {
    %c0_i32 = arith.constant 0 : i32
    %c0_i32_0 = arith.constant 0 : i32
    %c0_i32_1 = arith.constant 0 : i32
    return %c0_i32, %c0_i32_0 : i32, i32
  }
  func.func @transform_5(%arg0: i32) -> (i32, i32) {
    %c0_i32 = arith.constant 0 : i32
    %c0_i32_0 = arith.constant 0 : i32
    %c0_i32_1 = arith.constant 0 : i32
    return %c0_i32, %c0_i32_0 : i32, i32
  }
  func.func @transform_6(%arg0: i32) -> (i32, i32) {
    %c0_i32 = arith.constant 0 : i32
    %c0_i32_0 = arith.constant 0 : i32
    %c0_i32_1 = arith.constant 0 : i32
    return %c0_i32, %c0_i32_0 : i32, i32
  }
  func.func @transform_7(%arg0: i32) -> (i32, i32) {
    %c0_i32 = arith.constant 0 : i32
    %c0_i32_0 = arith.constant 0 : i32
    %c0_i32_1 = arith.constant 0 : i32
    return %c0_i32, %c0_i32_0 : i32, i32
  }
  func.func @transform_8(%arg0: i32) -> (i32, i32, i32) {
    %c0_i32 = arith.constant 0 : i32
    %c0_i32_0 = arith.constant 0 : i32
    %c0_i32_1 = arith.constant 0 : i32
    return %arg0, %c0_i32, %c0_i32_0 : i32, i32, i32
  }
}

</mosaic_0001>

<llo_original>
// kernel: basic_block_forward.1
$region0: #{basic_block_forward.1}
  #allocation0 [shape = 'u32[]', space=smem, size = 0x4, offset = 0x4, fixed_abs, tag = 'smem constant byte address 0x4 - core index']
  #allocation1 [shape = 'u32[144,128]{1,0:T(1,128)}', space=vmem, size = 0x12000, scoped, tag = 'internal scratch']
  %s0 = inlined_call_operand.vmem [shape: f32[1,4,16,128], index: 0, kind: input, shape index: {}]
  %s1 = inlined_call_operand.vmem [shape: f32[144,128], index: 1, kind: input, shape index: {}]
  %s2 = inlined_call_operand.vmem [shape: f32[4,128], index: 2, kind: input, shape index: {}]
  %s3 = inlined_call_operand.vmem [shape: f32[288,128], index: 3, kind: input, shape index: {}]
  %s4 = inlined_call_operand.vmem [shape: f32[32,128], index: 4, kind: input, shape index: {}]
  %s5 = inlined_call_operand.vmem [shape: f32[64,128], index: 5, kind: input, shape index: {}]
  %s6 = inlined_call_operand.vmem [shape: f32[128,64], index: 6, kind: input, shape index: {}]
  %s7 = inlined_call_operand.vmem [shape: f32[64,64], index: 7, kind: input, shape index: {}]
  %s8 = inlined_call_operand.vmem [shape: f32[1,32,128], index: 8, kind: output, shape index: {}]
  %s9 = sld [smem:[#allocation0]]
  $region42: #{basic_block_forward.1} parent=0
    _
  %s11 = ssub.s32 1, %s9
  %s12 = scalar_select 0, %s11, %s9
  // Predicated region
  $region2: #{basic_block_forward.1} parent=0 // pred_check
    _
  $region3: #{basic_block_forward.1} parent=0 // pred_check_branch
    %14 = sbr.rel (0) target = $region5
  $region4: #{basic_block_forward.1} parent=0 // pred_region
    _
  $region5: #{basic_block_forward.1} parent=0 // pred_fallthru
    _
  // Predicated region
  $region6: #{basic_block_forward.1} parent=0 // pred_check
    _
  $region7: #{basic_block_forward.1} parent=0 // pred_check_branch
    %16 = sbr.rel (0) target = $region9
  $region8: #{basic_block_forward.1} parent=0 // pred_region
    _
  $region9: #{basic_block_forward.1} parent=0 // pred_fallthru
    _
  // Predicated region
  $region10: #{basic_block_forward.1} parent=0 // pred_check
    _
  $region11: #{basic_block_forward.1} parent=0 // pred_check_branch
    %18 = sbr.rel (0) target = $region13
  $region12: #{basic_block_forward.1} parent=0 // pred_region
    _
  $region13: #{basic_block_forward.1} parent=0 // pred_fallthru
    _
  // Predicated region
  $region14: #{basic_block_forward.1} parent=0 // pred_check
    _
  $region15: #{basic_block_forward.1} parent=0 // pred_check_branch
    %20 = sbr.rel (0) target = $region17
  $region16: #{basic_block_forward.1} parent=0 // pred_region
    _
  $region17: #{basic_block_forward.1} parent=0 // pred_fallthru
    _
  // Predicated region
  $region18: #{basic_block_forward.1} parent=0 // pred_check
    _
  $region19: #{basic_block_forward.1} parent=0 // pred_check_branch
    %22 = sbr.rel (0) target = $region21
  $region20: #{basic_block_forward.1} parent=0 // pred_region
    _
  $region21: #{basic_block_forward.1} parent=0 // pred_fallthru
    _
  // Predicated region
  $region22: #{basic_block_forward.1} parent=0 // pred_check
    _
  $region23: #{basic_block_forward.1} parent=0 // pred_check_branch
    %24 = sbr.rel (0) target = $region25
  $region24: #{basic_block_forward.1} parent=0 // pred_region
    _
  $region25: #{basic_block_forward.1} parent=0 // pred_fallthru
    _
  // Predicated region
  $region26: #{basic_block_forward.1} parent=0 // pred_check
    _
  $region27: #{basic_block_forward.1} parent=0 // pred_check_branch
    %26 = sbr.rel (0) target = $region29
  $region28: #{basic_block_forward.1} parent=0 // pred_region
    _
  $region29: #{basic_block_forward.1} parent=0 // pred_fallthru
    _
  // Predicated region
  $region30: #{basic_block_forward.1} parent=0 // pred_check
    _
  $region31: #{basic_block_forward.1} parent=0 // pred_check_branch
    %28 = sbr.rel (0) target = $region33
  $region32: #{basic_block_forward.1} parent=0 // pred_region
    _
  $region33: #{basic_block_forward.1} parent=0 // pred_fallthru
    _
  %v29 = vlaneseq
  %v30 = vand.u32 %v29, 127
  %vm31 = vcmp.lt.s32.totalorder %v30, 0
  %v32 = vsub.s32 0, %v30
  %v33 = vsel %vm31, %v32, %v30
  %v34 = vshrl.u32 %v33, 4
  %v35 = vand.u32 %v33, 15
  %v36 = vsub.s32 0, %v35
  %v37 = vsel %vm31, %v36, %v35
  %vm38 = vcmp.ne.s32.totalorder %v37, 0
  %vm39 = vcmp.lt.s32.totalorder %v37, 0
  %vm40 = vmand %vm39, %vm38
  %v41 = vadd.s32 %v37, 16
  %v42 = vsel %vm40, %v41, %v37
  %vm43 = vcmp.eq.s32.totalorder %v42, 0
  %vm44 = vcmp.eq.s32.totalorder %v42, 15
  %v45 = vld [vmem:[%s0] sm:$0xff]
  %v46 = vld [vmem:[%s0 + $0x8] sm:$0xff]
  %v47 = vmax.f32 %v45, 0.0
  %v48 = vmax.f32 %v46, 0.0
  %v50 = vrot.slane %v47, 1
  %vm53 = vcmask 1040384
  %v54 = vrot.slane %v47, 7
  %v55 = vrot.slane %v48, 7
  %v56 = vsel %vm53, %v54, %v55
  %v59 = vsel %vm53, %v50, %v54
  %vm60 = vcmask 1046528
  %v61 = vrot.slane %v48, 1
  %v62 = vsel %vm60, %v50, %v61
  %v66 = vsel %vm60, %v61, %v55
  %68 = vrot.lane.b32.xlu0 %v59, 1
  %v69 = vpop.permute.xlu0 %68
  %70 = vrot.lane.b32.xlu0 %v56, 1
  %v71 = vpop.permute.xlu0 %70
  %74 = vrot.lane.b32.xlu0 %v59, 127
  %v75 = vpop.permute.xlu0 %74
  %76 = vrot.lane.b32.xlu0 %v56, 127
  %v77 = vpop.permute.xlu0 %76
  %v80 = vsel %vm43, %v75, %v69
  %v81 = vsel %vm43, %v77, %v71
  %v82 = vsel %vm44, %v69, %v75
  %v83 = vsel %vm44, %v71, %v77
  %84 = vrot.lane.b32.xlu0 %v47, 1
  %v85 = vpop.permute.xlu0 %84
  %86 = vrot.lane.b32.xlu0 %v48, 1
  %v87 = vpop.permute.xlu0 %86
  %90 = vrot.lane.b32.xlu0 %v47, 127
  %v91 = vpop.permute.xlu0 %90
  %92 = vrot.lane.b32.xlu0 %v48, 127
  %v93 = vpop.permute.xlu0 %92
  %v96 = vsel %vm43, %v91, %v85
  %v97 = vsel %vm43, %v93, %v87
  %v98 = vsel %vm44, %v85, %v91
  %v99 = vsel %vm44, %v87, %v93
  %101 = vrot.lane.b32.xlu0 %v62, 1
  %v102 = vpop.permute.xlu0 %101
  %103 = vrot.lane.b32.xlu0 %v66, 1
  %v104 = vpop.permute.xlu0 %103
  %107 = vrot.lane.b32.xlu0 %v62, 127
  %v108 = vpop.permute.xlu0 %107
  %109 = vrot.lane.b32.xlu0 %v66, 127
  %v110 = vpop.permute.xlu0 %109
  %v113 = vsel %vm43, %v108, %v102
  %v114 = vsel %vm43, %v110, %v104
  %v115 = vsel %vm44, %v102, %v108
  %v116 = vsel %vm44, %v104, %v110
  %v117 = vld [vmem:[%s1] sm:$0x1]
  %v118 = vlaneseq
  %v119 = vshrl.u32 %v118, 7
  %v120 = vsub.s32 0, %v119
  %v121 = vrot.slane %v117, %v120
  %v122 = vmul.f32 %v80, %v121
  %v123 = vmul.f32 %v81, %v121
  %v124 = vld [vmem:[%s1 + $0x1] sm:$0x1]
  %v125 = vlaneseq
  %v126 = vshrl.u32 %v125, 7
  %v127 = vsub.s32 0, %v126
  %v128 = vrot.slane %v124, %v127
  %v129 = vmul.f32 %v59, %v128
  %v130 = vmul.f32 %v56, %v128
  %v131 = vadd.f32 %v122, %v129
  %v132 = vadd.f32 %v123, %v130
  %v133 = vld [vmem:[%s1 + $0x2] sm:$0x1]
  %v134 = vlaneseq
  %v135 = vshrl.u32 %v134, 7
  %v136 = vsub.s32 0, %v135
  %v137 = vrot.slane %v133, %v136
  %v138 = vmul.f32 %v82, %v137
  %v139 = vmul.f32 %v83, %v137
  %v140 = vadd.f32 %v131, %v138
  %v141 = vadd.f32 %v132, %v139
  %v142 = vld [vmem:[%s1 + $0x3] sm:$0x1]
  %v143 = vlaneseq
  %v144 = vshrl.u32 %v143, 7
  %v145 = vsub.s32 0, %v144
  %v146 = vrot.slane %v142, %v145
  %v147 = vmul.f32 %v96, %v146
  %v148 = vmul.f32 %v97, %v146
  %v149 = vadd.f32 %v140, %v147
  %v150 = vadd.f32 %v141, %v148
  %v151 = vld [vmem:[%s1 + $0x4] sm:$0x1]
  %v152 = vlaneseq
  %v153 = vshrl.u32 %v152, 7
  %v154 = vsub.s32 0, %v153
  %v155 = vrot.slane %v151, %v154
  %v156 = vmul.f32 %v47, %v155
  %v157 = vmul.f32 %v48, %v155
  %v158 = vadd.f32 %v149, %v156
  %v159 = vadd.f32 %v150, %v157
  %v160 = vld [vmem:[%s1 + $0x5] sm:$0x1]
  %v161 = vlaneseq
  %v162 = vshrl.u32 %v161, 7
  %v163 = vsub.s32 0, %v162
  %v164 = vrot.slane %v160, %v163
  %v165 = vmul.f32 %v98, %v164
  %v166 = vmul.f32 %v99, %v164
  %v167 = vadd.f32 %v158, %v165
  %v168 = vadd.f32 %v159, %v166
  %v169 = vld [vmem:[%s1 + $0x6] sm:$0x1]
  %v170 = vlaneseq
  %v171 = vshrl.u32 %v170, 7
  %v172 = vsub.s32 0, %v171
  %v173 = vrot.slane %v169, %v172
  %v174 = vmul.f32 %v113, %v173
  %v175 = vmul.f32 %v114, %v173
  %v176 = vadd.f32 %v167, %v174
  %v177 = vadd.f32 %v168, %v175
  %v178 = vld [vmem:[%s1 + $0x7] sm:$0x1]
  %v179 = vlaneseq
  %v180 = vshrl.u32 %v179, 7
  %v181 = vsub.s32 0, %v180
  %v182 = vrot.slane %v178, %v181
  %v183 = vmul.f32 %v62, %v182
  %v184 = vmul.f32 %v66, %v182
  %v185 = vadd.f32 %v176, %v183
  %v186 = vadd.f32 %v177, %v184
  %v187 = vld [vmem:[%s1 + $0x8] sm:$0x1]
  %v188 = vlaneseq
  %v189 = vshrl.u32 %v188, 7
  %v190 = vsub.s32 0, %v189
  %v191 = vrot.slane %v187, %v190
  %v192 = vmul.f32 %v115, %v191
  %v193 = vmul.f32 %v116, %v191
  %v194 = vadd.f32 %v185, %v192
  %v195 = vadd.f32 %v186, %v193
  %v196 = vld [vmem:[%s1 + $0x24] sm:$0x1]
  %v197 = vlaneseq
  %v198 = vshrl.u32 %v197, 7
  %v199 = vsub.s32 0, %v198
  %v200 = vrot.slane %v196, %v199
  %v201 = vmul.f32 %v80, %v200
  %v202 = vmul.f32 %v81, %v200
  %v203 = vld [vmem:[%s1 + $0x25] sm:$0x1]
  %v204 = vlaneseq
  %v205 = vshrl.u32 %v204, 7
  %v206 = vsub.s32 0, %v205
  %v207 = vrot.slane %v203, %v206
  %v208 = vmul.f32 %v59, %v207
  %v209 = vmul.f32 %v56, %v207
  %v210 = vadd.f32 %v201, %v208
  %v211 = vadd.f32 %v202, %v209
  %v212 = vld [vmem:[%s1 + $0x26] sm:$0x1]
  %v213 = vlaneseq
  %v214 = vshrl.u32 %v213, 7
  %v215 = vsub.s32 0, %v214
  %v216 = vrot.slane %v212, %v215
  %v217 = vmul.f32 %v82, %v216
  %v218 = vmul.f32 %v83, %v216
  %v219 = vadd.f32 %v210, %v217
  %v220 = vadd.f32 %v211, %v218
  %v221 = vld [vmem:[%s1 + $0x27] sm:$0x1]
  %v222 = vlaneseq
  %v223 = vshrl.u32 %v222, 7
  %v224 = vsub.s32 0, %v223
  %v225 = vrot.slane %v221, %v224
  %v226 = vmul.f32 %v96, %v225
  %v227 = vmul.f32 %v97, %v225
  %v228 = vadd.f32 %v219, %v226
  %v229 = vadd.f32 %v220, %v227
  %v230 = vld [vmem:[%s1 + $0x28] sm:$0x1]
  %v231 = vlaneseq
  %v232 = vshrl.u32 %v231, 7
  %v233 = vsub.s32 0, %v232
  %v234 = vrot.slane %v230, %v233
  %v235 = vmul.f32 %v47, %v234
  %v236 = vmul.f32 %v48, %v234
  %v237 = vadd.f32 %v228, %v235
  %v238 = vadd.f32 %v229, %v236
  %v239 = vld [vmem:[%s1 + $0x29] sm:$0x1]
  %v240 = vlaneseq
  %v241 = vshrl.u32 %v240, 7
  %v242 = vsub.s32 0, %v241
  %v243 = vrot.slane %v239, %v242
  %v244 = vmul.f32 %v98, %v243
  %v245 = vmul.f32 %v99, %v243
  %v246 = vadd.f32 %v237, %v244
  %v247 = vadd.f32 %v238, %v245
  %v248 = vld [vmem:[%s1 + $0x2a] sm:$0x1]
  %v249 = vlaneseq
  %v250 = vshrl.u32 %v249, 7
  %v251 = vsub.s32 0, %v250
  %v252 = vrot.slane %v248, %v251
  %v253 = vmul.f32 %v113, %v252
  %v254 = vmul.f32 %v114, %v252
  %v255 = vadd.f32 %v246, %v253
  %v256 = vadd.f32 %v247, %v254
  %v257 = vld [vmem:[%s1 + $0x2b] sm:$0x1]
  %v258 = vlaneseq
  %v259 = vshrl.u32 %v258, 7
  %v260 = vsub.s32 0, %v259
  %v261 = vrot.slane %v257, %v260
  %v262 = vmul.f32 %v62, %v261
  %v263 = vmul.f32 %v66, %v261
  %v264 = vadd.f32 %v255, %v262
  %v265 = vadd.f32 %v256, %v263
  %v266 = vld [vmem:[%s1 + $0x2c] sm:$0x1]
  %v267 = vlaneseq
  %v268 = vshrl.u32 %v267, 7
  %v269 = vsub.s32 0, %v268
  %v270 = vrot.slane %v266, %v269
  %v271 = vmul.f32 %v115, %v270
  %v272 = vmul.f32 %v116, %v270
  %v273 = vadd.f32 %v264, %v271
  %v274 = vadd.f32 %v265, %v272
  %v275 = vld [vmem:[%s1 + $0x48] sm:$0x1]
  %v276 = vlaneseq
  %v277 = vshrl.u32 %v276, 7
  %v278 = vsub.s32 0, %v277
  %v279 = vrot.slane %v275, %v278
  %v280 = vmul.f32 %v80, %v279
  %v281 = vmul.f32 %v81, %v279
  %v282 = vld [vmem:[%s1 + $0x49] sm:$0x1]
  %v283 = vlaneseq
  %v284 = vshrl.u32 %v283, 7
  %v285 = vsub.s32 0, %v284
  %v286 = vrot.slane %v282, %v285
  %v287 = vmul.f32 %v59, %v286
  %v288 = vmul.f32 %v56, %v286
  %v289 = vadd.f32 %v280, %v287
  %v290 = vadd.f32 %v281, %v288
  %v291 = vld [vmem:[%s1 + $0x4a] sm:$0x1]
  %v292 = vlaneseq
  %v293 = vshrl.u32 %v292, 7
  %v294 = vsub.s32 0, %v293
  %v295 = vrot.slane %v291, %v294
  %v296 = vmul.f32 %v82, %v295
  %v297 = vmul.f32 %v83, %v295
  %v298 = vadd.f32 %v289, %v296
  %v299 = vadd.f32 %v290, %v297
  %v300 = vld [vmem:[%s1 + $0x4b] sm:$0x1]
  %v301 = vlaneseq
  %v302 = vshrl.u32 %v301, 7
  %v303 = vsub.s32 0, %v302
  %v304 = vrot.slane %v300, %v303
  %v305 = vmul.f32 %v96, %v304
  %v306 = vmul.f32 %v97, %v304
  %v307 = vadd.f32 %v298, %v305
  %v308 = vadd.f32 %v299, %v306
  %v309 = vld [vmem:[%s1 + $0x4c] sm:$0x1]
  %v310 = vlaneseq
  %v311 = vshrl.u32 %v310, 7
  %v312 = vsub.s32 0, %v311
  %v313 = vrot.slane %v309, %v312
  %v314 = vmul.f32 %v47, %v313
  %v315 = vmul.f32 %v48, %v313
  %v316 = vadd.f32 %v307, %v314
  %v317 = vadd.f32 %v308, %v315
  %v318 = vld [vmem:[%s1 + $0x4d] sm:$0x1]
  %v319 = vlaneseq
  %v320 = vshrl.u32 %v319, 7
  %v321 = vsub.s32 0, %v320
  %v322 = vrot.slane %v318, %v321
  %v323 = vmul.f32 %v98, %v322
  %v324 = vmul.f32 %v99, %v322
  %v325 = vadd.f32 %v316, %v323
  %v326 = vadd.f32 %v317, %v324
  %v327 = vld [vmem:[%s1 + $0x4e] sm:$0x1]
  %v328 = vlaneseq
  %v329 = vshrl.u32 %v328, 7
  %v330 = vsub.s32 0, %v329
  %v331 = vrot.slane %v327, %v330
  %v332 = vmul.f32 %v113, %v331
  %v333 = vmul.f32 %v114, %v331
  %v334 = vadd.f32 %v325, %v332
  %v335 = vadd.f32 %v326, %v333
  %v336 = vld [vmem:[%s1 + $0x4f] sm:$0x1]
  %v337 = vlaneseq
  %v338 = vshrl.u32 %v337, 7
  %v339 = vsub.s32 0, %v338
  %v340 = vrot.slane %v336, %v339
  %v341 = vmul.f32 %v62, %v340
  %v342 = vmul.f32 %v66, %v340
  %v343 = vadd.f32 %v334, %v341
  %v344 = vadd.f32 %v335, %v342
  %v345 = vld [vmem:[%s1 + $0x50] sm:$0x1]
  %v346 = vlaneseq
  %v347 = vshrl.u32 %v346, 7
  %v348 = vsub.s32 0, %v347
  %v349 = vrot.slane %v345, %v348
  %v350 = vmul.f32 %v115, %v349
  %v351 = vmul.f32 %v116, %v349
  %v352 = vadd.f32 %v343, %v350
  %v353 = vadd.f32 %v344, %v351
  %v354 = vld [vmem:[%s1 + $0x6c] sm:$0x1]
  %v355 = vlaneseq
  %v356 = vshrl.u32 %v355, 7
  %v357 = vsub.s32 0, %v356
  %v358 = vrot.slane %v354, %v357
  %v359 = vmul.f32 %v80, %v358
  %v360 = vmul.f32 %v81, %v358
  %v361 = vld [vmem:[%s1 + $0x6d] sm:$0x1]
  %v362 = vlaneseq
  %v363 = vshrl.u32 %v362, 7
  %v364 = vsub.s32 0, %v363
  %v365 = vrot.slane %v361, %v364
  %v366 = vmul.f32 %v59, %v365
  %v367 = vmul.f32 %v56, %v365
  %v368 = vadd.f32 %v359, %v366
  %v369 = vadd.f32 %v360, %v367
  %v370 = vld [vmem:[%s1 + $0x6e] sm:$0x1]
  %v371 = vlaneseq
  %v372 = vshrl.u32 %v371, 7
  %v373 = vsub.s32 0, %v372
  %v374 = vrot.slane %v370, %v373
  %v375 = vmul.f32 %v82, %v374
  %v376 = vmul.f32 %v83, %v374
  %v377 = vadd.f32 %v368, %v375
  %v378 = vadd.f32 %v369, %v376
  %v379 = vld [vmem:[%s1 + $0x6f] sm:$0x1]
  %v380 = vlaneseq
  %v381 = vshrl.u32 %v380, 7
  %v382 = vsub.s32 0, %v381
  %v383 = vrot.slane %v379, %v382
  %v384 = vmul.f32 %v96, %v383
  %v385 = vmul.f32 %v97, %v383
  %v386 = vadd.f32 %v377, %v384
  %v387 = vadd.f32 %v378, %v385
  %v388 = vld [vmem:[%s1 + $0x70] sm:$0x1]
  %v389 = vlaneseq
  %v390 = vshrl.u32 %v389, 7
  %v391 = vsub.s32 0, %v390
  %v392 = vrot.slane %v388, %v391
  %v393 = vmul.f32 %v47, %v392
  %v394 = vmul.f32 %v48, %v392
  %v395 = vadd.f32 %v386, %v393
  %v396 = vadd.f32 %v387, %v394
  %v397 = vld [vmem:[%s1 + $0x71] sm:$0x1]
  %v398 = vlaneseq
  %v399 = vshrl.u32 %v398, 7
  %v400 = vsub.s32 0, %v399
  %v401 = vrot.slane %v397, %v400
  %v402 = vmul.f32 %v98, %v401
  %v403 = vmul.f32 %v99, %v401
  %v404 = vadd.f32 %v395, %v402
  %v405 = vadd.f32 %v396, %v403
  %v406 = vld [vmem:[%s1 + $0x72] sm:$0x1]
  %v407 = vlaneseq
  %v408 = vshrl.u32 %v407, 7
  %v409 = vsub.s32 0, %v408
  %v410 = vrot.slane %v406, %v409
  %v411 = vmul.f32 %v113, %v410
  %v412 = vmul.f32 %v114, %v410
  %v413 = vadd.f32 %v404, %v411
  %v414 = vadd.f32 %v405, %v412
  %v415 = vld [vmem:[%s1 + $0x73] sm:$0x1]
  %v416 = vlaneseq
  %v417 = vshrl.u32 %v416, 7
  %v418 = vsub.s32 0, %v417
  %v419 = vrot.slane %v415, %v418
  %v420 = vmul.f32 %v62, %v419
  %v421 = vmul.f32 %v66, %v419
  %v422 = vadd.f32 %v413, %v420
  %v423 = vadd.f32 %v414, %v421
  %v424 = vld [vmem:[%s1 + $0x74] sm:$0x1]
  %v425 = vlaneseq
  %v426 = vshrl.u32 %v425, 7
  %v427 = vsub.s32 0, %v426
  %v428 = vrot.slane %v424, %v427
  %v429 = vmul.f32 %v115, %v428
  %v430 = vmul.f32 %v116, %v428
  %v431 = vadd.f32 %v422, %v429
  %v432 = vadd.f32 %v423, %v430
  %s433 = scalar_lea.vmem %s0, 16
  %v434 = vld [vmem:[%s433] sm:$0xff]
  %v435 = vld [vmem:[%s433 + $0x8] sm:$0xff]
  %v436 = vmax.f32 %v434, 0.0
  %v437 = vmax.f32 %v435, 0.0
  %v439 = vrot.slane %v436, 1
  %v442 = vrot.slane %v436, 7
  %v443 = vrot.slane %v437, 7
  %v444 = vsel %vm53, %v442, %v443
  %v447 = vsel %vm53, %v439, %v442
  %v448 = vrot.slane %v437, 1
  %v449 = vsel %vm60, %v439, %v448
  %v453 = vsel %vm60, %v448, %v443
  %455 = vrot.lane.b32.xlu0 %v447, 1
  %v456 = vpop.permute.xlu0 %455
  %457 = vrot.lane.b32.xlu0 %v444, 1
  %v458 = vpop.permute.xlu0 %457
  %461 = vrot.lane.b32.xlu0 %v447, 127
  %v462 = vpop.permute.xlu0 %461
  %463 = vrot.lane.b32.xlu0 %v444, 127
  %v464 = vpop.permute.xlu0 %463
  %v467 = vsel %vm43, %v462, %v456
  %v468 = vsel %vm43, %v464, %v458
  %v469 = vsel %vm44, %v456, %v462
  %v470 = vsel %vm44, %v458, %v464
  %471 = vrot.lane.b32.xlu0 %v436, 1
  %v472 = vpop.permute.xlu0 %471
  %473 = vrot.lane.b32.xlu0 %v437, 1
  %v474 = vpop.permute.xlu0 %473
  %477 = vrot.lane.b32.xlu0 %v436, 127
  %v478 = vpop.permute.xlu0 %477
  %479 = vrot.lane.b32.xlu0 %v437, 127
  %v480 = vpop.permute.xlu0 %479
  %v483 = vsel %vm43, %v478, %v472
  %v484 = vsel %vm43, %v480, %v474
  %v485 = vsel %vm44, %v472, %v478
  %v486 = vsel %vm44, %v474, %v480
  %488 = vrot.lane.b32.xlu0 %v449, 1
  %v489 = vpop.permute.xlu0 %488
  %490 = vrot.lane.b32.xlu0 %v453, 1
  %v491 = vpop.permute.xlu0 %490
  %494 = vrot.lane.b32.xlu0 %v449, 127
  %v495 = vpop.permute.xlu0 %494
  %496 = vrot.lane.b32.xlu0 %v453, 127
  %v497 = vpop.permute.xlu0 %496
  %v500 = vsel %vm43, %v495, %v489
  %v501 = vsel %vm43, %v497, %v491
  %v502 = vsel %vm44, %v489, %v495
  %v503 = vsel %vm44, %v491, %v497
  %v504 = vld [vmem:[%s1 + $0x9] sm:$0x1]
  %v505 = vlaneseq
  %v506 = vshrl.u32 %v505, 7
  %v507 = vsub.s32 0, %v506
  %v508 = vrot.slane %v504, %v507
  %v509 = vmul.f32 %v467, %v508
  %v510 = vmul.f32 %v468, %v508
  %v511 = vadd.f32 %v194, %v509
  %v512 = vadd.f32 %v195, %v510
  %v513 = vld [vmem:[%s1 + $0xa] sm:$0x1]
  %v514 = vlaneseq
  %v515 = vshrl.u32 %v514, 7
  %v516 = vsub.s32 0, %v515
  %v517 = vrot.slane %v513, %v516
  %v518 = vmul.f32 %v447, %v517
  %v519 = vmul.f32 %v444, %v517
  %v520 = vadd.f32 %v511, %v518
  %v521 = vadd.f32 %v512, %v519
  %v522 = vld [vmem:[%s1 + $0xb] sm:$0x1]
  %v523 = vlaneseq
  %v524 = vshrl.u32 %v523, 7
  %v525 = vsub.s32 0, %v524
  %v526 = vrot.slane %v522, %v525
  %v527 = vmul.f32 %v469, %v526
  %v528 = vmul.f32 %v470, %v526
  %v529 = vadd.f32 %v520, %v527
  %v530 = vadd.f32 %v521, %v528
  %v531 = vld [vmem:[%s1 + $0xc] sm:$0x1]
  %v532 = vlaneseq
  %v533 = vshrl.u32 %v532, 7
  %v534 = vsub.s32 0, %v533
  %v535 = vrot.slane %v531, %v534
  %v536 = vmul.f32 %v483, %v535
  %v537 = vmul.f32 %v484, %v535
  %v538 = vadd.f32 %v529, %v536
  %v539 = vadd.f32 %v530, %v537
  %v540 = vld [vmem:[%s1 + $0xd] sm:$0x1]
  %v541 = vlaneseq
  %v542 = vshrl.u32 %v541, 7
  %v543 = vsub.s32 0, %v542
  %v544 = vrot.slane %v540, %v543
  %v545 = vmul.f32 %v436, %v544
  %v546 = vmul.f32 %v437, %v544
  %v547 = vadd.f32 %v538, %v545
  %v548 = vadd.f32 %v539, %v546
  %v549 = vld [vmem:[%s1 + $0xe] sm:$0x1]
  %v550 = vlaneseq
  %v551 = vshrl.u32 %v550, 7
  %v552 = vsub.s32 0, %v551
  %v553 = vrot.slane %v549, %v552
  %v554 = vmul.f32 %v485, %v553
  %v555 = vmul.f32 %v486, %v553
  %v556 = vadd.f32 %v547, %v554
  %v557 = vadd.f32 %v548, %v555
  %v558 = vld [vmem:[%s1 + $0xf] sm:$0x1]
  %v559 = vlaneseq
  %v560 = vshrl.u32 %v559, 7
  %v561 = vsub.s32 0, %v560
  %v562 = vrot.slane %v558, %v561
  %v563 = vmul.f32 %v500, %v562
  %v564 = vmul.f32 %v501, %v562
  %v565 = vadd.f32 %v556, %v563
  %v566 = vadd.f32 %v557, %v564
  %v567 = vld [vmem:[%s1 + $0x10] sm:$0x1]
  %v568 = vlaneseq
  %v569 = vshrl.u32 %v568, 7
  %v570 = vsub.s32 0, %v569
  %v571 = vrot.slane %v567, %v570
  %v572 = vmul.f32 %v449, %v571
  %v573 = vmul.f32 %v453, %v571
  %v574 = vadd.f32 %v565, %v572
  %v575 = vadd.f32 %v566, %v573
  %v576 = vld [vmem:[%s1 + $0x11] sm:$0x1]
  %v577 = vlaneseq
  %v578 = vshrl.u32 %v577, 7
  %v579 = vsub.s32 0, %v578
  %v580 = vrot.slane %v576, %v579
  %v581 = vmul.f32 %v502, %v580
  %v582 = vmul.f32 %v503, %v580
  %v583 = vadd.f32 %v574, %v581
  %v584 = vadd.f32 %v575, %v582
  %v585 = vld [vmem:[%s1 + $0x2d] sm:$0x1]
  %v586 = vlaneseq
  %v587 = vshrl.u32 %v586, 7
  %v588 = vsub.s32 0, %v587
  %v589 = vrot.slane %v585, %v588
  %v590 = vmul.f32 %v467, %v589
  %v591 = vmul.f32 %v468, %v589
  %v592 = vadd.f32 %v273, %v590
  %v593 = vadd.f32 %v274, %v591
  %v594 = vld [vmem:[%s1 + $0x2e] sm:$0x1]
  %v595 = vlaneseq
  %v596 = vshrl.u32 %v595, 7
  %v597 = vsub.s32 0, %v596
  %v598 = vrot.slane %v594, %v597
  %v599 = vmul.f32 %v447, %v598
  %v600 = vmul.f32 %v444, %v598
  %v601 = vadd.f32 %v592, %v599
  %v602 = vadd.f32 %v593, %v600
  %v603 = vld [vmem:[%s1 + $0x2f] sm:$0x1]
  %v604 = vlaneseq
  %v605 = vshrl.u32 %v604, 7
  %v606 = vsub.s32 0, %v605
  %v607 = vrot.slane %v603, %v606
  %v608 = vmul.f32 %v469, %v607
  %v609 = vmul.f32 %v470, %v607
  %v610 = vadd.f32 %v601, %v608
  %v611 = vadd.f32 %v602, %v609
  %v612 = vld [vmem:[%s1 + $0x30] sm:$0x1]
  %v613 = vlaneseq
  %v614 = vshrl.u32 %v613, 7
  %v615 = vsub.s32 0, %v614
  %v616 = vrot.slane %v612, %v615
  %v617 = vmul.f32 %v483, %v616
  %v618 = vmul.f32 %v484, %v616
  %v619 = vadd.f32 %v610, %v617
  %v620 = vadd.f32 %v611, %v618
  %v621 = vld [vmem:[%s1 + $0x31] sm:$0x1]
  %v622 = vlaneseq
  %v623 = vshrl.u32 %v622, 7
  %v624 = vsub.s32 0, %v623
  %v625 = vrot.slane %v621, %v624
  %v626 = vmul.f32 %v436, %v625
  %v627 = vmul.f32 %v437, %v625
  %v628 = vadd.f32 %v619, %v626
  %v629 = vadd.f32 %v620, %v627
  %v630 = vld [vmem:[%s1 + $0x32] sm:$0x1]
  %v631 = vlaneseq
  %v632 = vshrl.u32 %v631, 7
  %v633 = vsub.s32 0, %v632
  %v634 = vrot.slane %v630, %v633
  %v635 = vmul.f32 %v485, %v634
  %v636 = vmul.f32 %v486, %v634
  %v637 = vadd.f32 %v628, %v635
  %v638 = vadd.f32 %v629, %v636
  %v639 = vld [vmem:[%s1 + $0x33] sm:$0x1]
  %v640 = vlaneseq
  %v641 = vshrl.u32 %v640, 7
  %v642 = vsub.s32 0, %v641
  %v643 = vrot.slane %v639, %v642
  %v644 = vmul.f32 %v500, %v643
  %v645 = vmul.f32 %v501, %v643
  %v646 = vadd.f32 %v637, %v644
  %v647 = vadd.f32 %v638, %v645
  %v648 = vld [vmem:[%s1 + $0x34] sm:$0x1]
  %v649 = vlaneseq
  %v650 = vshrl.u32 %v649, 7
  %v651 = vsub.s32 0, %v650
  %v652 = vrot.slane %v648, %v651
  %v653 = vmul.f32 %v449, %v652
  %v654 = vmul.f32 %v453, %v652
  %v655 = vadd.f32 %v646, %v653
  %v656 = vadd.f32 %v647, %v654
  %v657 = vld [vmem:[%s1 + $0x35] sm:$0x1]
  %v658 = vlaneseq
  %v659 = vshrl.u32 %v658, 7
  %v660 = vsub.s32 0, %v659
  %v661 = vrot.slane %v657, %v660
  %v662 = vmul.f32 %v502, %v661
  %v663 = vmul.f32 %v503, %v661
  %v664 = vadd.f32 %v655, %v662
  %v665 = vadd.f32 %v656, %v663
  %v666 = vld [vmem:[%s1 + $0x51] sm:$0x1]
  %v667 = vlaneseq
  %v668 = vshrl.u32 %v667, 7
  %v669 = vsub.s32 0, %v668
  %v670 = vrot.slane %v666, %v669
  %v671 = vmul.f32 %v467, %v670
  %v672 = vmul.f32 %v468, %v670
  %v673 = vadd.f32 %v352, %v671
  %v674 = vadd.f32 %v353, %v672
  %v675 = vld [vmem:[%s1 + $0x52] sm:$0x1]
  %v676 = vlaneseq
  %v677 = vshrl.u32 %v676, 7
  %v678 = vsub.s32 0, %v677
  %v679 = vrot.slane %v675, %v678
  %v680 = vmul.f32 %v447, %v679
  %v681 = vmul.f32 %v444, %v679
  %v682 = vadd.f32 %v673, %v680
  %v683 = vadd.f32 %v674, %v681
  %v684 = vld [vmem:[%s1 + $0x53] sm:$0x1]
  %v685 = vlaneseq
  %v686 = vshrl.u32 %v685, 7
  %v687 = vsub.s32 0, %v686
  %v688 = vrot.slane %v684, %v687
  %v689 = vmul.f32 %v469, %v688
  %v690 = vmul.f32 %v470, %v688
  %v691 = vadd.f32 %v682, %v689
  %v692 = vadd.f32 %v683, %v690
  %v693 = vld [vmem:[%s1 + $0x54] sm:$0x1]
  %v694 = vlaneseq
  %v695 = vshrl.u32 %v694, 7
  %v696 = vsub.s32 0, %v695
  %v697 = vrot.slane %v693, %v696
  %v698 = vmul.f32 %v483, %v697
  %v699 = vmul.f32 %v484, %v697
  %v700 = vadd.f32 %v691, %v698
  %v701 = vadd.f32 %v692, %v699
  %v702 = vld [vmem:[%s1 + $0x55] sm:$0x1]
  %v703 = vlaneseq
  %v704 = vshrl.u32 %v703, 7
  %v705 = vsub.s32 0, %v704
  %v706 = vrot.slane %v702, %v705
  %v707 = vmul.f32 %v436, %v706
  %v708 = vmul.f32 %v437, %v706
  %v709 = vadd.f32 %v700, %v707
  %v710 = vadd.f32 %v701, %v708
  %v711 = vld [vmem:[%s1 + $0x56] sm:$0x1]
  %v712 = vlaneseq
  %v713 = vshrl.u32 %v712, 7
  %v714 = vsub.s32 0, %v713
  %v715 = vrot.slane %v711, %v714
  %v716 = vmul.f32 %v485, %v715
  %v717 = vmul.f32 %v486, %v715
  %v718 = vadd.f32 %v709, %v716
  %v719 = vadd.f32 %v710, %v717
  %v720 = vld [vmem:[%s1 + $0x57] sm:$0x1]
  %v721 = vlaneseq
  %v722 = vshrl.u32 %v721, 7
  %v723 = vsub.s32 0, %v722
  %v724 = vrot.slane %v720, %v723
  %v725 = vmul.f32 %v500, %v724
  %v726 = vmul.f32 %v501, %v724
  %v727 = vadd.f32 %v718, %v725
  %v728 = vadd.f32 %v719, %v726
  %v729 = vld [vmem:[%s1 + $0x58] sm:$0x1]
  %v730 = vlaneseq
  %v731 = vshrl.u32 %v730, 7
  %v732 = vsub.s32 0, %v731
  %v733 = vrot.slane %v729, %v732
  %v734 = vmul.f32 %v449, %v733
  %v735 = vmul.f32 %v453, %v733
  %v736 = vadd.f32 %v727, %v734
  %v737 = vadd.f32 %v728, %v735
  %v738 = vld [vmem:[%s1 + $0x59] sm:$0x1]
  %v739 = vlaneseq
  %v740 = vshrl.u32 %v739, 7
  %v741 = vsub.s32 0, %v740
  %v742 = vrot.slane %v738, %v741
  %v743 = vmul.f32 %v502, %v742
  %v744 = vmul.f32 %v503, %v742
  %v745 = vadd.f32 %v736, %v743
  %v746 = vadd.f32 %v737, %v744
  %v747 = vld [vmem:[%s1 + $0x75] sm:$0x1]
  %v748 = vlaneseq
  %v749 = vshrl.u32 %v748, 7
  %v750 = vsub.s32 0, %v749
  %v751 = vrot.slane %v747, %v750
  %v752 = vmul.f32 %v467, %v751
  %v753 = vmul.f32 %v468, %v751
  %v754 = vadd.f32 %v431, %v752
  %v755 = vadd.f32 %v432, %v753
  %v756 = vld [vmem:[%s1 + $0x76] sm:$0x1]
  %v757 = vlaneseq
  %v758 = vshrl.u32 %v757, 7
  %v759 = vsub.s32 0, %v758
  %v760 = vrot.slane %v756, %v759
  %v761 = vmul.f32 %v447, %v760
  %v762 = vmul.f32 %v444, %v760
  %v763 = vadd.f32 %v754, %v761
  %v764 = vadd.f32 %v755, %v762
  %v765 = vld [vmem:[%s1 + $0x77] sm:$0x1]
  %v766 = vlaneseq
  %v767 = vshrl.u32 %v766, 7
  %v768 = vsub.s32 0, %v767
  %v769 = vrot.slane %v765, %v768
  %v770 = vmul.f32 %v469, %v769
  %v771 = vmul.f32 %v470, %v769
  %v772 = vadd.f32 %v763, %v770
  %v773 = vadd.f32 %v764, %v771
  %v774 = vld [vmem:[%s1 + $0x78] sm:$0x1]
  %v775 = vlaneseq
  %v776 = vshrl.u32 %v775, 7
  %v777 = vsub.s32 0, %v776
  %v778 = vrot.slane %v774, %v777
  %v779 = vmul.f32 %v483, %v778
  %v780 = vmul.f32 %v484, %v778
  %v781 = vadd.f32 %v772, %v779
  %v782 = vadd.f32 %v773, %v780
  %v783 = vld [vmem:[%s1 + $0x79] sm:$0x1]
  %v784 = vlaneseq
  %v785 = vshrl.u32 %v784, 7
  %v786 = vsub.s32 0, %v785
  %v787 = vrot.slane %v783, %v786
  %v788 = vmul.f32 %v436, %v787
  %v789 = vmul.f32 %v437, %v787
  %v790 = vadd.f32 %v781, %v788
  %v791 = vadd.f32 %v782, %v789
  %v792 = vld [vmem:[%s1 + $0x7a] sm:$0x1]
  %v793 = vlaneseq
  %v794 = vshrl.u32 %v793, 7
  %v795 = vsub.s32 0, %v794
  %v796 = vrot.slane %v792, %v795
  %v797 = vmul.f32 %v485, %v796
  %v798 = vmul.f32 %v486, %v796
  %v799 = vadd.f32 %v790, %v797
  %v800 = vadd.f32 %v791, %v798
  %v801 = vld [vmem:[%s1 + $0x7b] sm:$0x1]
  %v802 = vlaneseq
  %v803 = vshrl.u32 %v802, 7
  %v804 = vsub.s32 0, %v803
  %v805 = vrot.slane %v801, %v804
  %v806 = vmul.f32 %v500, %v805
  %v807 = vmul.f32 %v501, %v805
  %v808 = vadd.f32 %v799, %v806
  %v809 = vadd.f32 %v800, %v807
  %v810 = vld [vmem:[%s1 + $0x7c] sm:$0x1]
  %v811 = vlaneseq
  %v812 = vshrl.u32 %v811, 7
  %v813 = vsub.s32 0, %v812
  %v814 = vrot.slane %v810, %v813
  %v815 = vmul.f32 %v449, %v814
  %v816 = vmul.f32 %v453, %v814
  %v817 = vadd.f32 %v808, %v815
  %v818 = vadd.f32 %v809, %v816
  %v819 = vld [vmem:[%s1 + $0x7d] sm:$0x1]
  %v820 = vlaneseq
  %v821 = vshrl.u32 %v820, 7
  %v822 = vsub.s32 0, %v821
  %v823 = vrot.slane %v819, %v822
  %v824 = vmul.f32 %v502, %v823
  %v825 = vmul.f32 %v503, %v823
  %v826 = vadd.f32 %v817, %v824
  %v827 = vadd.f32 %v818, %v825
  %s828 = scalar_lea.vmem %s0, 32
  %v829 = vld [vmem:[%s828] sm:$0xff]
  %v830 = vld [vmem:[%s828 + $0x8] sm:$0xff]
  %v831 = vmax.f32 %v829, 0.0
  %v832 = vmax.f32 %v830, 0.0
  %v834 = vrot.slane %v831, 1
  %v837 = vrot.slane %v831, 7
  %v838 = vrot.slane %v832, 7
  %v839 = vsel %vm53, %v837, %v838
  %v842 = vsel %vm53, %v834, %v837
  %v843 = vrot.slane %v832, 1
  %v844 = vsel %vm60, %v834, %v843
  %v848 = vsel %vm60, %v843, %v838
  %850 = vrot.lane.b32.xlu0 %v842, 1
  %v851 = vpop.permute.xlu0 %850
  %852 = vrot.lane.b32.xlu0 %v839, 1
  %v853 = vpop.permute.xlu0 %852
  %856 = vrot.lane.b32.xlu0 %v842, 127
  %v857 = vpop.permute.xlu0 %856
  %858 = vrot.lane.b32.xlu0 %v839, 127
  %v859 = vpop.permute.xlu0 %858
  %v862 = vsel %vm43, %v857, %v851
  %v863 = vsel %vm43, %v859, %v853
  %v864 = vsel %vm44, %v851, %v857
  %v865 = vsel %vm44, %v853, %v859
  %866 = vrot.lane.b32.xlu0 %v831, 1
  %v867 = vpop.permute.xlu0 %866
  %868 = vrot.lane.b32.xlu0 %v832, 1
  %v869 = vpop.permute.xlu0 %868
  %872 = vrot.lane.b32.xlu0 %v831, 127
  %v873 = vpop.permute.xlu0 %872
  %874 = vrot.lane.b32.xlu0 %v832, 127
  %v875 = vpop.permute.xlu0 %874
  %v878 = vsel %vm43, %v873, %v867
  %v879 = vsel %vm43, %v875, %v869
  %v880 = vsel %vm44, %v867, %v873
  %v881 = vsel %vm44, %v869, %v875
  %883 = vrot.lane.b32.xlu0 %v844, 1
  %v884 = vpop.permute.xlu0 %883
  %885 = vrot.lane.b32.xlu0 %v848, 1
  %v886 = vpop.permute.xlu0 %885
  %889 = vrot.lane.b32.xlu0 %v844, 127
  %v890 = vpop.permute.xlu0 %889
  %891 = vrot.lane.b32.xlu0 %v848, 127
  %v892 = vpop.permute.xlu0 %891
  %v895 = vsel %vm43, %v890, %v884
  %v896 = vsel %vm43, %v892, %v886
  %v897 = vsel %vm44, %v884, %v890
  %v898 = vsel %vm44, %v886, %v892
  %v899 = vld [vmem:[%s1 + $0x12] sm:$0x1]
  %v900 = vlaneseq
  %v901 = vshrl.u32 %v900, 7
  %v902 = vsub.s32 0, %v901
  %v903 = vrot.slane %v899, %v902
  %v904 = vmul.f32 %v862, %v903
  %v905 = vmul.f32 %v863, %v903
  %v906 = vadd.f32 %v583, %v904
  %v907 = vadd.f32 %v584, %v905
  %v908 = vld [vmem:[%s1 + $0x13] sm:$0x1]
  %v909 = vlaneseq
  %v910 = vshrl.u32 %v909, 7
  %v911 = vsub.s32 0, %v910
  %v912 = vrot.slane %v908, %v911
  %v913 = vmul.f32 %v842, %v912
  %v914 = vmul.f32 %v839, %v912
  %v915 = vadd.f32 %v906, %v913
  %v916 = vadd.f32 %v907, %v914
  %v917 = vld [vmem:[%s1 + $0x14] sm:$0x1]
  %v918 = vlaneseq
  %v919 = vshrl.u32 %v918, 7
  %v920 = vsub.s32 0, %v919
  %v921 = vrot.slane %v917, %v920
  %v922 = vmul.f32 %v864, %v921
  %v923 = vmul.f32 %v865, %v921
  %v924 = vadd.f32 %v915, %v922
  %v925 = vadd.f32 %v916, %v923
  %v926 = vld [vmem:[%s1 + $0x15] sm:$0x1]
  %v927 = vlaneseq
  %v928 = vshrl.u32 %v927, 7
  %v929 = vsub.s32 0, %v928
  %v930 = vrot.slane %v926, %v929
  %v931 = vmul.f32 %v878, %v930
  %v932 = vmul.f32 %v879, %v930
  %v933 = vadd.f32 %v924, %v931
  %v934 = vadd.f32 %v925, %v932
  %v935 = vld [vmem:[%s1 + $0x16] sm:$0x1]
  %v936 = vlaneseq
  %v937 = vshrl.u32 %v936, 7
  %v938 = vsub.s32 0, %v937
  %v939 = vrot.slane %v935, %v938
  %v940 = vmul.f32 %v831, %v939
  %v941 = vmul.f32 %v832, %v939
  %v942 = vadd.f32 %v933, %v940
  %v943 = vadd.f32 %v934, %v941
  %v944 = vld [vmem:[%s1 + $0x17] sm:$0x1]
  %v945 = vlaneseq
  %v946 = vshrl.u32 %v945, 7
  %v947 = vsub.s32 0, %v946
  %v948 = vrot.slane %v944, %v947
  %v949 = vmul.f32 %v880, %v948
  %v950 = vmul.f32 %v881, %v948
  %v951 = vadd.f32 %v942, %v949
  %v952 = vadd.f32 %v943, %v950
  %v953 = vld [vmem:[%s1 + $0x18] sm:$0x1]
  %v954 = vlaneseq
  %v955 = vshrl.u32 %v954, 7
  %v956 = vsub.s32 0, %v955
  %v957 = vrot.slane %v953, %v956
  %v958 = vmul.f32 %v895, %v957
  %v959 = vmul.f32 %v896, %v957
  %v960 = vadd.f32 %v951, %v958
  %v961 = vadd.f32 %v952, %v959
  %v962 = vld [vmem:[%s1 + $0x19] sm:$0x1]
  %v963 = vlaneseq
  %v964 = vshrl.u32 %v963, 7
  %v965 = vsub.s32 0, %v964
  %v966 = vrot.slane %v962, %v965
  %v967 = vmul.f32 %v844, %v966
  %v968 = vmul.f32 %v848, %v966
  %v969 = vadd.f32 %v960, %v967
  %v970 = vadd.f32 %v961, %v968
  %v971 = vld [vmem:[%s1 + $0x1a] sm:$0x1]
  %v972 = vlaneseq
  %v973 = vshrl.u32 %v972, 7
  %v974 = vsub.s32 0, %v973
  %v975 = vrot.slane %v971, %v974
  %v976 = vmul.f32 %v897, %v975
  %v977 = vmul.f32 %v898, %v975
  %v978 = vadd.f32 %v969, %v976
  %v979 = vadd.f32 %v970, %v977
  %v980 = vld [vmem:[%s1 + $0x36] sm:$0x1]
  %v981 = vlaneseq
  %v982 = vshrl.u32 %v981, 7
  %v983 = vsub.s32 0, %v982
  %v984 = vrot.slane %v980, %v983
  %v985 = vmul.f32 %v862, %v984
  %v986 = vmul.f32 %v863, %v984
  %v987 = vadd.f32 %v664, %v985
  %v988 = vadd.f32 %v665, %v986
  %v989 = vld [vmem:[%s1 + $0x37] sm:$0x1]
  %v990 = vlaneseq
  %v991 = vshrl.u32 %v990, 7
  %v992 = vsub.s32 0, %v991
  %v993 = vrot.slane %v989, %v992
  %v994 = vmul.f32 %v842, %v993
  %v995 = vmul.f32 %v839, %v993
  %v996 = vadd.f32 %v987, %v994
  %v997 = vadd.f32 %v988, %v995
  %v998 = vld [vmem:[%s1 + $0x38] sm:$0x1]
  %v999 = vlaneseq
  %v1000 = vshrl.u32 %v999, 7
  %v1001 = vsub.s32 0, %v1000
  %v1002 = vrot.slane %v998, %v1001
  %v1003 = vmul.f32 %v864, %v1002
  %v1004 = vmul.f32 %v865, %v1002
  %v1005 = vadd.f32 %v996, %v1003
  %v1006 = vadd.f32 %v997, %v1004
  %v1007 = vld [vmem:[%s1 + $0x39] sm:$0x1]
  %v1008 = vlaneseq
  %v1009 = vshrl.u32 %v1008, 7
  %v1010 = vsub.s32 0, %v1009
  %v1011 = vrot.slane %v1007, %v1010
  %v1012 = vmul.f32 %v878, %v1011
  %v1013 = vmul.f32 %v879, %v1011
  %v1014 = vadd.f32 %v1005, %v1012
  %v1015 = vadd.f32 %v1006, %v1013
  %v1016 = vld [vmem:[%s1 + $0x3a] sm:$0x1]
  %v1017 = vlaneseq
  %v1018 = vshrl.u32 %v1017, 7
  %v1019 = vsub.s32 0, %v1018
  %v1020 = vrot.slane %v1016, %v1019
  %v1021 = vmul.f32 %v831, %v1020
  %v1022 = vmul.f32 %v832, %v1020
  %v1023 = vadd.f32 %v1014, %v1021
  %v1024 = vadd.f32 %v1015, %v1022
  %v1025 = vld [vmem:[%s1 + $0x3b] sm:$0x1]
  %v1026 = vlaneseq
  %v1027 = vshrl.u32 %v1026, 7
  %v1028 = vsub.s32 0, %v1027
  %v1029 = vrot.slane %v1025, %v1028
  %v1030 = vmul.f32 %v880, %v1029
  %v1031 = vmul.f32 %v881, %v1029
  %v1032 = vadd.f32 %v1023, %v1030
  %v1033 = vadd.f32 %v1024, %v1031
  %v1034 = vld [vmem:[%s1 + $0x3c] sm:$0x1]
  %v1035 = vlaneseq
  %v1036 = vshrl.u32 %v1035, 7
  %v1037 = vsub.s32 0, %v1036
  %v1038 = vrot.slane %v1034, %v1037
  %v1039 = vmul.f32 %v895, %v1038
  %v1040 = vmul.f32 %v896, %v1038
  %v1041 = vadd.f32 %v1032, %v1039
  %v1042 = vadd.f32 %v1033, %v1040
  %v1043 = vld [vmem:[%s1 + $0x3d] sm:$0x1]
  %v1044 = vlaneseq
  %v1045 = vshrl.u32 %v1044, 7
  %v1046 = vsub.s32 0, %v1045
  %v1047 = vrot.slane %v1043, %v1046
  %v1048 = vmul.f32 %v844, %v1047
  %v1049 = vmul.f32 %v848, %v1047
  %v1050 = vadd.f32 %v1041, %v1048
  %v1051 = vadd.f32 %v1042, %v1049
  %v1052 = vld [vmem:[%s1 + $0x3e] sm:$0x1]
  %v1053 = vlaneseq
  %v1054 = vshrl.u32 %v1053, 7
  %v1055 = vsub.s32 0, %v1054
  %v1056 = vrot.slane %v1052, %v1055
  %v1057 = vmul.f32 %v897, %v1056
  %v1058 = vmul.f32 %v898, %v1056
  %v1059 = vadd.f32 %v1050, %v1057
  %v1060 = vadd.f32 %v1051, %v1058
  %v1061 = vld [vmem:[%s1 + $0x5a] sm:$0x1]
  %v1062 = vlaneseq
  %v1063 = vshrl.u32 %v1062, 7
  %v1064 = vsub.s32 0, %v1063
  %v1065 = vrot.slane %v1061, %v1064
  %v1066 = vmul.f32 %v862, %v1065
  %v1067 = vmul.f32 %v863, %v1065
  %v1068 = vadd.f32 %v745, %v1066
  %v1069 = vadd.f32 %v746, %v1067
  %v1070 = vld [vmem:[%s1 + $0x5b] sm:$0x1]
  %v1071 = vlaneseq
  %v1072 = vshrl.u32 %v1071, 7
  %v1073 = vsub.s32 0, %v1072
  %v1074 = vrot.slane %v1070, %v1073
  %v1075 = vmul.f32 %v842, %v1074
  %v1076 = vmul.f32 %v839, %v1074
  %v1077 = vadd.f32 %v1068, %v1075
  %v1078 = vadd.f32 %v1069, %v1076
  %v1079 = vld [vmem:[%s1 + $0x5c] sm:$0x1]
  %v1080 = vlaneseq
  %v1081 = vshrl.u32 %v1080, 7
  %v1082 = vsub.s32 0, %v1081
  %v1083 = vrot.slane %v1079, %v1082
  %v1084 = vmul.f32 %v864, %v1083
  %v1085 = vmul.f32 %v865, %v1083
  %v1086 = vadd.f32 %v1077, %v1084
  %v1087 = vadd.f32 %v1078, %v1085
  %v1088 = vld [vmem:[%s1 + $0x5d] sm:$0x1]
  %v1089 = vlaneseq
  %v1090 = vshrl.u32 %v1089, 7
  %v1091 = vsub.s32 0, %v1090
  %v1092 = vrot.slane %v1088, %v1091
  %v1093 = vmul.f32 %v878, %v1092
  %v1094 = vmul.f32 %v879, %v1092
  %v1095 = vadd.f32 %v1086, %v1093
  %v1096 = vadd.f32 %v1087, %v1094
  %v1097 = vld [vmem:[%s1 + $0x5e] sm:$0x1]
  %v1098 = vlaneseq
  %v1099 = vshrl.u32 %v1098, 7
  %v1100 = vsub.s32 0, %v1099
  %v1101 = vrot.slane %v1097, %v1100
  %v1102 = vmul.f32 %v831, %v1101
  %v1103 = vmul.f32 %v832, %v1101
  %v1104 = vadd.f32 %v1095, %v1102
  %v1105 = vadd.f32 %v1096, %v1103
  %v1106 = vld [vmem:[%s1 + $0x5f] sm:$0x1]
  %v1107 = vlaneseq
  %v1108 = vshrl.u32 %v1107, 7
  %v1109 = vsub.s32 0, %v1108
  %v1110 = vrot.slane %v1106, %v1109
  %v1111 = vmul.f32 %v880, %v1110
  %v1112 = vmul.f32 %v881, %v1110
  %v1113 = vadd.f32 %v1104, %v1111
  %v1114 = vadd.f32 %v1105, %v1112
  %v1115 = vld [vmem:[%s1 + $0x60] sm:$0x1]
  %v1116 = vlaneseq
  %v1117 = vshrl.u32 %v1116, 7
  %v1118 = vsub.s32 0, %v1117
  %v1119 = vrot.slane %v1115, %v1118
  %v1120 = vmul.f32 %v895, %v1119
  %v1121 = vmul.f32 %v896, %v1119
  %v1122 = vadd.f32 %v1113, %v1120
  %v1123 = vadd.f32 %v1114, %v1121
  %v1124 = vld [vmem:[%s1 + $0x61] sm:$0x1]
  %v1125 = vlaneseq
  %v1126 = vshrl.u32 %v1125, 7
  %v1127 = vsub.s32 0, %v1126
  %v1128 = vrot.slane %v1124, %v1127
  %v1129 = vmul.f32 %v844, %v1128
  %v1130 = vmul.f32 %v848, %v1128
  %v1131 = vadd.f32 %v1122, %v1129
  %v1132 = vadd.f32 %v1123, %v1130
  %v1133 = vld [vmem:[%s1 + $0x62] sm:$0x1]
  %v1134 = vlaneseq
  %v1135 = vshrl.u32 %v1134, 7
  %v1136 = vsub.s32 0, %v1135
  %v1137 = vrot.slane %v1133, %v1136
  %v1138 = vmul.f32 %v897, %v1137
  %v1139 = vmul.f32 %v898, %v1137
  %v1140 = vadd.f32 %v1131, %v1138
  %v1141 = vadd.f32 %v1132, %v1139
  %v1142 = vld [vmem:[%s1 + $0x7e] sm:$0x1]
  %v1143 = vlaneseq
  %v1144 = vshrl.u32 %v1143, 7
  %v1145 = vsub.s32 0, %v1144
  %v1146 = vrot.slane %v1142, %v1145
  %v1147 = vmul.f32 %v862, %v1146
  %v1148 = vmul.f32 %v863, %v1146
  %v1149 = vadd.f32 %v826, %v1147
  %v1150 = vadd.f32 %v827, %v1148
  %v1151 = vld [vmem:[%s1 + $0x7f] sm:$0x1]
  %v1152 = vlaneseq
  %v1153 = vshrl.u32 %v1152, 7
  %v1154 = vsub.s32 0, %v1153
  %v1155 = vrot.slane %v1151, %v1154
  %v1156 = vmul.f32 %v842, %v1155
  %v1157 = vmul.f32 %v839, %v1155
  %v1158 = vadd.f32 %v1149, %v1156
  %v1159 = vadd.f32 %v1150, %v1157
  %v1160 = vld [vmem:[%s1 + $0x80] sm:$0x1]
  %v1161 = vlaneseq
  %v1162 = vshrl.u32 %v1161, 7
  %v1163 = vsub.s32 0, %v1162
  %v1164 = vrot.slane %v1160, %v1163
  %v1165 = vmul.f32 %v864, %v1164
  %v1166 = vmul.f32 %v865, %v1164
  %v1167 = vadd.f32 %v1158, %v1165
  %v1168 = vadd.f32 %v1159, %v1166
  %v1169 = vld [vmem:[%s1 + $0x81] sm:$0x1]
  %v1170 = vlaneseq
  %v1171 = vshrl.u32 %v1170, 7
  %v1172 = vsub.s32 0, %v1171
  %v1173 = vrot.slane %v1169, %v1172
  %v1174 = vmul.f32 %v878, %v1173
  %v1175 = vmul.f32 %v879, %v1173
  %v1176 = vadd.f32 %v1167, %v1174
  %v1177 = vadd.f32 %v1168, %v1175
  %v1178 = vld [vmem:[%s1 + $0x82] sm:$0x1]
  %v1179 = vlaneseq
  %v1180 = vshrl.u32 %v1179, 7
  %v1181 = vsub.s32 0, %v1180
  %v1182 = vrot.slane %v1178, %v1181
  %v1183 = vmul.f32 %v831, %v1182
  %v1184 = vmul.f32 %v832, %v1182
  %v1185 = vadd.f32 %v1176, %v1183
  %v1186 = vadd.f32 %v1177, %v1184
  %v1187 = vld [vmem:[%s1 + $0x83] sm:$0x1]
  %v1188 = vlaneseq
  %v1189 = vshrl.u32 %v1188, 7
  %v1190 = vsub.s32 0, %v1189
  %v1191 = vrot.slane %v1187, %v1190
  %v1192 = vmul.f32 %v880, %v1191
  %v1193 = vmul.f32 %v881, %v1191
  %v1194 = vadd.f32 %v1185, %v1192
  %v1195 = vadd.f32 %v1186, %v1193
  %v1196 = vld [vmem:[%s1 + $0x84] sm:$0x1]
  %v1197 = vlaneseq
  %v1198 = vshrl.u32 %v1197, 7
  %v1199 = vsub.s32 0, %v1198
  %v1200 = vrot.slane %v1196, %v1199
  %v1201 = vmul.f32 %v895, %v1200
  %v1202 = vmul.f32 %v896, %v1200
  %v1203 = vadd.f32 %v1194, %v1201
  %v1204 = vadd.f32 %v1195, %v1202
  %v1205 = vld [vmem:[%s1 + $0x85] sm:$0x1]
  %v1206 = vlaneseq
  %v1207 = vshrl.u32 %v1206, 7
  %v1208 = vsub.s32 0, %v1207
  %v1209 = vrot.slane %v1205, %v1208
  %v1210 = vmul.f32 %v844, %v1209
  %v1211 = vmul.f32 %v848, %v1209
  %v1212 = vadd.f32 %v1203, %v1210
  %v1213 = vadd.f32 %v1204, %v1211
  %v1214 = vld [vmem:[%s1 + $0x86] sm:$0x1]
  %v1215 = vlaneseq
  %v1216 = vshrl.u32 %v1215, 7
  %v1217 = vsub.s32 0, %v1216
  %v1218 = vrot.slane %v1214, %v1217
  %v1219 = vmul.f32 %v897, %v1218
  %v1220 = vmul.f32 %v898, %v1218
  %v1221 = vadd.f32 %v1212, %v1219
  %v1222 = vadd.f32 %v1213, %v1220
  %s1223 = scalar_lea.vmem %s0, 48
  %v1224 = vld [vmem:[%s1223] sm:$0xff]
  %v1225 = vld [vmem:[%s1223 + $0x8] sm:$0xff]
  %v1226 = vmax.f32 %v1224, 0.0
  %v1227 = vmax.f32 %v1225, 0.0
  %v1229 = vrot.slane %v1226, 1
  %v1232 = vrot.slane %v1226, 7
  %v1233 = vrot.slane %v1227, 7
  %v1234 = vsel %vm53, %v1232, %v1233
  %v1237 = vsel %vm53, %v1229, %v1232
  %v1238 = vrot.slane %v1227, 1
  %v1239 = vsel %vm60, %v1229, %v1238
  %v1243 = vsel %vm60, %v1238, %v1233
  %1245 = vrot.lane.b32.xlu0 %v1237, 1
  %v1246 = vpop.permute.xlu0 %1245
  %1247 = vrot.lane.b32.xlu0 %v1234, 1
  %v1248 = vpop.permute.xlu0 %1247
  %1251 = vrot.lane.b32.xlu0 %v1237, 127
  %v1252 = vpop.permute.xlu0 %1251
  %1253 = vrot.lane.b32.xlu0 %v1234, 127
  %v1254 = vpop.permute.xlu0 %1253
  %v1257 = vsel %vm43, %v1252, %v1246
  %v1258 = vsel %vm43, %v1254, %v1248
  %v1259 = vsel %vm44, %v1246, %v1252
  %v1260 = vsel %vm44, %v1248, %v1254
  %1261 = vrot.lane.b32.xlu0 %v1226, 1
  %v1262 = vpop.permute.xlu0 %1261
  %1263 = vrot.lane.b32.xlu0 %v1227, 1
  %v1264 = vpop.permute.xlu0 %1263
  %1267 = vrot.lane.b32.xlu0 %v1226, 127
  %v1268 = vpop.permute.xlu0 %1267
  %1269 = vrot.lane.b32.xlu0 %v1227, 127
  %v1270 = vpop.permute.xlu0 %1269
  %v1273 = vsel %vm43, %v1268, %v1262
  %v1274 = vsel %vm43, %v1270, %v1264
  %v1275 = vsel %vm44, %v1262, %v1268
  %v1276 = vsel %vm44, %v1264, %v1270
  %1278 = vrot.lane.b32.xlu0 %v1239, 1
  %v1279 = vpop.permute.xlu0 %1278
  %1280 = vrot.lane.b32.xlu0 %v1243, 1
  %v1281 = vpop.permute.xlu0 %1280
  %1284 = vrot.lane.b32.xlu0 %v1239, 127
  %v1285 = vpop.permute.xlu0 %1284
  %1286 = vrot.lane.b32.xlu0 %v1243, 127
  %v1287 = vpop.permute.xlu0 %1286
  %v1290 = vsel %vm43, %v1285, %v1279
  %v1291 = vsel %vm43, %v1287, %v1281
  %v1292 = vsel %vm44, %v1279, %v1285
  %v1293 = vsel %vm44, %v1281, %v1287
  %v1294 = vld [vmem:[%s1 + $0x1b] sm:$0x1]
  %v1295 = vlaneseq
  %v1296 = vshrl.u32 %v1295, 7
  %v1297 = vsub.s32 0, %v1296
  %v1298 = vrot.slane %v1294, %v1297
  %v1299 = vmul.f32 %v1257, %v1298
  %v1300 = vmul.f32 %v1258, %v1298
  %v1301 = vadd.f32 %v978, %v1299
  %v1302 = vadd.f32 %v979, %v1300
  %v1303 = vld [vmem:[%s1 + $0x1c] sm:$0x1]
  %v1304 = vlaneseq
  %v1305 = vshrl.u32 %v1304, 7
  %v1306 = vsub.s32 0, %v1305
  %v1307 = vrot.slane %v1303, %v1306
  %v1308 = vmul.f32 %v1237, %v1307
  %v1309 = vmul.f32 %v1234, %v1307
  %v1310 = vadd.f32 %v1301, %v1308
  %v1311 = vadd.f32 %v1302, %v1309
  %v1312 = vld [vmem:[%s1 + $0x1d] sm:$0x1]
  %v1313 = vlaneseq
  %v1314 = vshrl.u32 %v1313, 7
  %v1315 = vsub.s32 0, %v1314
  %v1316 = vrot.slane %v1312, %v1315
  %v1317 = vmul.f32 %v1259, %v1316
  %v1318 = vmul.f32 %v1260, %v1316
  %v1319 = vadd.f32 %v1310, %v1317
  %v1320 = vadd.f32 %v1311, %v1318
  %v1321 = vld [vmem:[%s1 + $0x1e] sm:$0x1]
  %v1322 = vlaneseq
  %v1323 = vshrl.u32 %v1322, 7
  %v1324 = vsub.s32 0, %v1323
  %v1325 = vrot.slane %v1321, %v1324
  %v1326 = vmul.f32 %v1273, %v1325
  %v1327 = vmul.f32 %v1274, %v1325
  %v1328 = vadd.f32 %v1319, %v1326
  %v1329 = vadd.f32 %v1320, %v1327
  %v1330 = vld [vmem:[%s1 + $0x1f] sm:$0x1]
  %v1331 = vlaneseq
  %v1332 = vshrl.u32 %v1331, 7
  %v1333 = vsub.s32 0, %v1332
  %v1334 = vrot.slane %v1330, %v1333
  %v1335 = vmul.f32 %v1226, %v1334
  %v1336 = vmul.f32 %v1227, %v1334
  %v1337 = vadd.f32 %v1328, %v1335
  %v1338 = vadd.f32 %v1329, %v1336
  %v1339 = vld [vmem:[%s1 + $0x20] sm:$0x1]
  %v1340 = vlaneseq
  %v1341 = vshrl.u32 %v1340, 7
  %v1342 = vsub.s32 0, %v1341
  %v1343 = vrot.slane %v1339, %v1342
  %v1344 = vmul.f32 %v1275, %v1343
  %v1345 = vmul.f32 %v1276, %v1343
  %v1346 = vadd.f32 %v1337, %v1344
  %v1347 = vadd.f32 %v1338, %v1345
  %v1348 = vld [vmem:[%s1 + $0x21] sm:$0x1]
  %v1349 = vlaneseq
  %v1350 = vshrl.u32 %v1349, 7
  %v1351 = vsub.s32 0, %v1350
  %v1352 = vrot.slane %v1348, %v1351
  %v1353 = vmul.f32 %v1290, %v1352
  %v1354 = vmul.f32 %v1291, %v1352
  %v1355 = vadd.f32 %v1346, %v1353
  %v1356 = vadd.f32 %v1347, %v1354
  %v1357 = vld [vmem:[%s1 + $0x22] sm:$0x1]
  %v1358 = vlaneseq
  %v1359 = vshrl.u32 %v1358, 7
  %v1360 = vsub.s32 0, %v1359
  %v1361 = vrot.slane %v1357, %v1360
  %v1362 = vmul.f32 %v1239, %v1361
  %v1363 = vmul.f32 %v1243, %v1361
  %v1364 = vadd.f32 %v1355, %v1362
  %v1365 = vadd.f32 %v1356, %v1363
  %v1366 = vld [vmem:[%s1 + $0x23] sm:$0x1]
  %v1367 = vlaneseq
  %v1368 = vshrl.u32 %v1367, 7
  %v1369 = vsub.s32 0, %v1368
  %v1370 = vrot.slane %v1366, %v1369
  %v1371 = vmul.f32 %v1292, %v1370
  %v1372 = vmul.f32 %v1293, %v1370
  %v1373 = vadd.f32 %v1364, %v1371
  %v1374 = vadd.f32 %v1365, %v1372
  %v1375 = vld [vmem:[%s1 + $0x3f] sm:$0x1]
  %v1376 = vlaneseq
  %v1377 = vshrl.u32 %v1376, 7
  %v1378 = vsub.s32 0, %v1377
  %v1379 = vrot.slane %v1375, %v1378
  %v1380 = vmul.f32 %v1257, %v1379
  %v1381 = vmul.f32 %v1258, %v1379
  %v1382 = vadd.f32 %v1059, %v1380
  %v1383 = vadd.f32 %v1060, %v1381
  %v1384 = vld [vmem:[%s1 + $0x40] sm:$0x1]
  %v1385 = vlaneseq
  %v1386 = vshrl.u32 %v1385, 7
  %v1387 = vsub.s32 0, %v1386
  %v1388 = vrot.slane %v1384, %v1387
  %v1389 = vmul.f32 %v1237, %v1388
  %v1390 = vmul.f32 %v1234, %v1388
  %v1391 = vadd.f32 %v1382, %v1389
  %v1392 = vadd.f32 %v1383, %v1390
  %v1393 = vld [vmem:[%s1 + $0x41] sm:$0x1]
  %v1394 = vlaneseq
  %v1395 = vshrl.u32 %v1394, 7
  %v1396 = vsub.s32 0, %v1395
  %v1397 = vrot.slane %v1393, %v1396
  %v1398 = vmul.f32 %v1259, %v1397
  %v1399 = vmul.f32 %v1260, %v1397
  %v1400 = vadd.f32 %v1391, %v1398
  %v1401 = vadd.f32 %v1392, %v1399
  %v1402 = vld [vmem:[%s1 + $0x42] sm:$0x1]
  %v1403 = vlaneseq
  %v1404 = vshrl.u32 %v1403, 7
  %v1405 = vsub.s32 0, %v1404
  %v1406 = vrot.slane %v1402, %v1405
  %v1407 = vmul.f32 %v1273, %v1406
  %v1408 = vmul.f32 %v1274, %v1406
  %v1409 = vadd.f32 %v1400, %v1407
  %v1410 = vadd.f32 %v1401, %v1408
  %v1411 = vld [vmem:[%s1 + $0x43] sm:$0x1]
  %v1412 = vlaneseq
  %v1413 = vshrl.u32 %v1412, 7
  %v1414 = vsub.s32 0, %v1413
  %v1415 = vrot.slane %v1411, %v1414
  %v1416 = vmul.f32 %v1226, %v1415
  %v1417 = vmul.f32 %v1227, %v1415
  %v1418 = vadd.f32 %v1409, %v1416
  %v1419 = vadd.f32 %v1410, %v1417
  %v1420 = vld [vmem:[%s1 + $0x44] sm:$0x1]
  %v1421 = vlaneseq
  %v1422 = vshrl.u32 %v1421, 7
  %v1423 = vsub.s32 0, %v1422
  %v1424 = vrot.slane %v1420, %v1423
  %v1425 = vmul.f32 %v1275, %v1424
  %v1426 = vmul.f32 %v1276, %v1424
  %v1427 = vadd.f32 %v1418, %v1425
  %v1428 = vadd.f32 %v1419, %v1426
  %v1429 = vld [vmem:[%s1 + $0x45] sm:$0x1]
  %v1430 = vlaneseq
  %v1431 = vshrl.u32 %v1430, 7
  %v1432 = vsub.s32 0, %v1431
  %v1433 = vrot.slane %v1429, %v1432
  %v1434 = vmul.f32 %v1290, %v1433
  %v1435 = vmul.f32 %v1291, %v1433
  %v1436 = vadd.f32 %v1427, %v1434
  %v1437 = vadd.f32 %v1428, %v1435
  %v1438 = vld [vmem:[%s1 + $0x46] sm:$0x1]
  %v1439 = vlaneseq
  %v1440 = vshrl.u32 %v1439, 7
  %v1441 = vsub.s32 0, %v1440
  %v1442 = vrot.slane %v1438, %v1441
  %v1443 = vmul.f32 %v1239, %v1442
  %v1444 = vmul.f32 %v1243, %v1442
  %v1445 = vadd.f32 %v1436, %v1443
  %v1446 = vadd.f32 %v1437, %v1444
  %v1447 = vld [vmem:[%s1 + $0x47] sm:$0x1]
  %v1448 = vlaneseq
  %v1449 = vshrl.u32 %v1448, 7
  %v1450 = vsub.s32 0, %v1449
  %v1451 = vrot.slane %v1447, %v1450
  %v1452 = vmul.f32 %v1292, %v1451
  %v1453 = vmul.f32 %v1293, %v1451
  %v1454 = vadd.f32 %v1445, %v1452
  %v1455 = vadd.f32 %v1446, %v1453
  %v1456 = vld [vmem:[%s1 + $0x63] sm:$0x1]
  %v1457 = vlaneseq
  %v1458 = vshrl.u32 %v1457, 7
  %v1459 = vsub.s32 0, %v1458
  %v1460 = vrot.slane %v1456, %v1459
  %v1461 = vmul.f32 %v1257, %v1460
  %v1462 = vmul.f32 %v1258, %v1460
  %v1463 = vadd.f32 %v1140, %v1461
  %v1464 = vadd.f32 %v1141, %v1462
  %v1465 = vld [vmem:[%s1 + $0x64] sm:$0x1]
  %v1466 = vlaneseq
  %v1467 = vshrl.u32 %v1466, 7
  %v1468 = vsub.s32 0, %v1467
  %v1469 = vrot.slane %v1465, %v1468
  %v1470 = vmul.f32 %v1237, %v1469
  %v1471 = vmul.f32 %v1234, %v1469
  %v1472 = vadd.f32 %v1463, %v1470
  %v1473 = vadd.f32 %v1464, %v1471
  %v1474 = vld [vmem:[%s1 + $0x65] sm:$0x1]
  %v1475 = vlaneseq
  %v1476 = vshrl.u32 %v1475, 7
  %v1477 = vsub.s32 0, %v1476
  %v1478 = vrot.slane %v1474, %v1477
  %v1479 = vmul.f32 %v1259, %v1478
  %v1480 = vmul.f32 %v1260, %v1478
  %v1481 = vadd.f32 %v1472, %v1479
  %v1482 = vadd.f32 %v1473, %v1480
  %v1483 = vld [vmem:[%s1 + $0x66] sm:$0x1]
  %v1484 = vlaneseq
  %v1485 = vshrl.u32 %v1484, 7
  %v1486 = vsub.s32 0, %v1485
  %v1487 = vrot.slane %v1483, %v1486
  %v1488 = vmul.f32 %v1273, %v1487
  %v1489 = vmul.f32 %v1274, %v1487
  %v1490 = vadd.f32 %v1481, %v1488
  %v1491 = vadd.f32 %v1482, %v1489
  %v1492 = vld [vmem:[%s1 + $0x67] sm:$0x1]
  %v1493 = vlaneseq
  %v1494 = vshrl.u32 %v1493, 7
  %v1495 = vsub.s32 0, %v1494
  %v1496 = vrot.slane %v1492, %v1495
  %v1497 = vmul.f32 %v1226, %v1496
  %v1498 = vmul.f32 %v1227, %v1496
  %v1499 = vadd.f32 %v1490, %v1497
  %v1500 = vadd.f32 %v1491, %v1498
  %v1501 = vld [vmem:[%s1 + $0x68] sm:$0x1]
  %v1502 = vlaneseq
  %v1503 = vshrl.u32 %v1502, 7
  %v1504 = vsub.s32 0, %v1503
  %v1505 = vrot.slane %v1501, %v1504
  %v1506 = vmul.f32 %v1275, %v1505
  %v1507 = vmul.f32 %v1276, %v1505
  %v1508 = vadd.f32 %v1499, %v1506
  %v1509 = vadd.f32 %v1500, %v1507
  %v1510 = vld [vmem:[%s1 + $0x69] sm:$0x1]
  %v1511 = vlaneseq
  %v1512 = vshrl.u32 %v1511, 7
  %v1513 = vsub.s32 0, %v1512
  %v1514 = vrot.slane %v1510, %v1513
  %v1515 = vmul.f32 %v1290, %v1514
  %v1516 = vmul.f32 %v1291, %v1514
  %v1517 = vadd.f32 %v1508, %v1515
  %v1518 = vadd.f32 %v1509, %v1516
  %v1519 = vld [vmem:[%s1 + $0x6a] sm:$0x1]
  %v1520 = vlaneseq
  %v1521 = vshrl.u32 %v1520, 7
  %v1522 = vsub.s32 0, %v1521
  %v1523 = vrot.slane %v1519, %v1522
  %v1524 = vmul.f32 %v1239, %v1523
  %v1525 = vmul.f32 %v1243, %v1523
  %v1526 = vadd.f32 %v1517, %v1524
  %v1527 = vadd.f32 %v1518, %v1525
  %v1528 = vld [vmem:[%s1 + $0x6b] sm:$0x1]
  %v1529 = vlaneseq
  %v1530 = vshrl.u32 %v1529, 7
  %v1531 = vsub.s32 0, %v1530
  %v1532 = vrot.slane %v1528, %v1531
  %v1533 = vmul.f32 %v1292, %v1532
  %v1534 = vmul.f32 %v1293, %v1532
  %v1535 = vadd.f32 %v1526, %v1533
  %v1536 = vadd.f32 %v1527, %v1534
  %v1537 = vld [vmem:[%s1 + $0x87] sm:$0x1]
  %v1538 = vlaneseq
  %v1539 = vshrl.u32 %v1538, 7
  %v1540 = vsub.s32 0, %v1539
  %v1541 = vrot.slane %v1537, %v1540
  %v1542 = vmul.f32 %v1257, %v1541
  %v1543 = vmul.f32 %v1258, %v1541
  %v1544 = vadd.f32 %v1221, %v1542
  %v1545 = vadd.f32 %v1222, %v1543
  %v1546 = vld [vmem:[%s1 + $0x88] sm:$0x1]
  %v1547 = vlaneseq
  %v1548 = vshrl.u32 %v1547, 7
  %v1549 = vsub.s32 0, %v1548
  %v1550 = vrot.slane %v1546, %v1549
  %v1551 = vmul.f32 %v1237, %v1550
  %v1552 = vmul.f32 %v1234, %v1550
  %v1553 = vadd.f32 %v1544, %v1551
  %v1554 = vadd.f32 %v1545, %v1552
  %v1555 = vld [vmem:[%s1 + $0x89] sm:$0x1]
  %v1556 = vlaneseq
  %v1557 = vshrl.u32 %v1556, 7
  %v1558 = vsub.s32 0, %v1557
  %v1559 = vrot.slane %v1555, %v1558
  %v1560 = vmul.f32 %v1259, %v1559
  %v1561 = vmul.f32 %v1260, %v1559
  %v1562 = vadd.f32 %v1553, %v1560
  %v1563 = vadd.f32 %v1554, %v1561
  %v1564 = vld [vmem:[%s1 + $0x8a] sm:$0x1]
  %v1565 = vlaneseq
  %v1566 = vshrl.u32 %v1565, 7
  %v1567 = vsub.s32 0, %v1566
  %v1568 = vrot.slane %v1564, %v1567
  %v1569 = vmul.f32 %v1273, %v1568
  %v1570 = vmul.f32 %v1274, %v1568
  %v1571 = vadd.f32 %v1562, %v1569
  %v1572 = vadd.f32 %v1563, %v1570
  %v1573 = vld [vmem:[%s1 + $0x8b] sm:$0x1]
  %v1574 = vlaneseq
  %v1575 = vshrl.u32 %v1574, 7
  %v1576 = vsub.s32 0, %v1575
  %v1577 = vrot.slane %v1573, %v1576
  %v1578 = vmul.f32 %v1226, %v1577
  %v1579 = vmul.f32 %v1227, %v1577
  %v1580 = vadd.f32 %v1571, %v1578
  %v1581 = vadd.f32 %v1572, %v1579
  %v1582 = vld [vmem:[%s1 + $0x8c] sm:$0x1]
  %v1583 = vlaneseq
  %v1584 = vshrl.u32 %v1583, 7
  %v1585 = vsub.s32 0, %v1584
  %v1586 = vrot.slane %v1582, %v1585
  %v1587 = vmul.f32 %v1275, %v1586
  %v1588 = vmul.f32 %v1276, %v1586
  %v1589 = vadd.f32 %v1580, %v1587
  %v1590 = vadd.f32 %v1581, %v1588
  %v1591 = vld [vmem:[%s1 + $0x8d] sm:$0x1]
  %v1592 = vlaneseq
  %v1593 = vshrl.u32 %v1592, 7
  %v1594 = vsub.s32 0, %v1593
  %v1595 = vrot.slane %v1591, %v1594
  %v1596 = vmul.f32 %v1290, %v1595
  %v1597 = vmul.f32 %v1291, %v1595
  %v1598 = vadd.f32 %v1589, %v1596
  %v1599 = vadd.f32 %v1590, %v1597
  %v1600 = vld [vmem:[%s1 + $0x8e] sm:$0x1]
  %v1601 = vlaneseq
  %v1602 = vshrl.u32 %v1601, 7
  %v1603 = vsub.s32 0, %v1602
  %v1604 = vrot.slane %v1600, %v1603
  %v1605 = vmul.f32 %v1239, %v1604
  %v1606 = vmul.f32 %v1243, %v1604
  %v1607 = vadd.f32 %v1598, %v1605
  %v1608 = vadd.f32 %v1599, %v1606
  %v1609 = vld [vmem:[%s1 + $0x8f] sm:$0x1]
  %v1610 = vlaneseq
  %v1611 = vshrl.u32 %v1610, 7
  %v1612 = vsub.s32 0, %v1611
  %v1613 = vrot.slane %v1609, %v1612
  %v1614 = vmul.f32 %v1292, %v1613
  %v1615 = vmul.f32 %v1293, %v1613
  %v1616 = vadd.f32 %v1607, %v1614
  %v1617 = vadd.f32 %v1608, %v1615
  %v1618 = vld [vmem:[%s2] sm:$0x1]
  %v1619 = vlaneseq
  %v1620 = vshrl.u32 %v1619, 7
  %v1621 = vsub.s32 0, %v1620
  %v1622 = vrot.slane %v1618, %v1621
  %v1623 = vadd.f32 %v1373, %v1622
  %v1624 = vadd.f32 %v1374, %v1622
  %v1625 = vmax.f32 %v1623, 0.0
  %v1626 = vmax.f32 %v1624, 0.0
  %v1627 = vld [vmem:[%s2 + $0x1] sm:$0x1]
  %v1628 = vlaneseq
  %v1629 = vshrl.u32 %v1628, 7
  %v1630 = vsub.s32 0, %v1629
  %v1631 = vrot.slane %v1627, %v1630
  %v1632 = vadd.f32 %v1454, %v1631
  %v1633 = vadd.f32 %v1455, %v1631
  %v1634 = vmax.f32 %v1632, 0.0
  %v1635 = vmax.f32 %v1633, 0.0
  %v1636 = vld [vmem:[%s2 + $0x2] sm:$0x1]
  %v1637 = vlaneseq
  %v1638 = vshrl.u32 %v1637, 7
  %v1639 = vsub.s32 0, %v1638
  %v1640 = vrot.slane %v1636, %v1639
  %v1641 = vadd.f32 %v1535, %v1640
  %v1642 = vadd.f32 %v1536, %v1640
  %v1643 = vmax.f32 %v1641, 0.0
  %v1644 = vmax.f32 %v1642, 0.0
  %v1645 = vld [vmem:[%s2 + $0x3] sm:$0x1]
  %v1646 = vlaneseq
  %v1647 = vshrl.u32 %v1646, 7
  %v1648 = vsub.s32 0, %v1647
  %v1649 = vrot.slane %v1645, %v1648
  %v1650 = vadd.f32 %v1616, %v1649
  %v1651 = vadd.f32 %v1617, %v1649
  %v1652 = vmax.f32 %v1650, 0.0
  %v1653 = vmax.f32 %v1651, 0.0
  %v1654 = vld [vmem:[%s4] sm:$0x1]
  %v1655 = vlaneseq
  %v1656 = vshrl.u32 %v1655, 7
  %v1657 = vsub.s32 0, %v1656
  %v1658 = vrot.slane %v1654, %v1657
  %v1659 = vmul.f32 %v45, %v1658
  %v1660 = vmul.f32 %v46, %v1658
  %v1661 = vld [vmem:[%s4 + $0x4] sm:$0x1]
  %v1662 = vlaneseq
  %v1663 = vshrl.u32 %v1662, 7
  %v1664 = vsub.s32 0, %v1663
  %v1665 = vrot.slane %v1661, %v1664
  %v1666 = vmul.f32 %v45, %v1665
  %v1667 = vmul.f32 %v46, %v1665
  %v1668 = vld [vmem:[%s4 + $0x8] sm:$0x1]
  %v1669 = vlaneseq
  %v1670 = vshrl.u32 %v1669, 7
  %v1671 = vsub.s32 0, %v1670
  %v1672 = vrot.slane %v1668, %v1671
  %v1673 = vmul.f32 %v45, %v1672
  %v1674 = vmul.f32 %v46, %v1672
  %v1675 = vld [vmem:[%s4 + $0xc] sm:$0x1]
  %v1676 = vlaneseq
  %v1677 = vshrl.u32 %v1676, 7
  %v1678 = vsub.s32 0, %v1677
  %v1679 = vrot.slane %v1675, %v1678
  %v1680 = vmul.f32 %v45, %v1679
  %v1681 = vmul.f32 %v46, %v1679
  %v1682 = vld [vmem:[%s4 + $0x10] sm:$0x1]
  %v1683 = vlaneseq
  %v1684 = vshrl.u32 %v1683, 7
  %v1685 = vsub.s32 0, %v1684
  %v1686 = vrot.slane %v1682, %v1685
  %v1687 = vmul.f32 %v45, %v1686
  %v1688 = vmul.f32 %v46, %v1686
  %v1689 = vld [vmem:[%s4 + $0x14] sm:$0x1]
  %v1690 = vlaneseq
  %v1691 = vshrl.u32 %v1690, 7
  %v1692 = vsub.s32 0, %v1691
  %v1693 = vrot.slane %v1689, %v1692
  %v1694 = vmul.f32 %v45, %v1693
  %v1695 = vmul.f32 %v46, %v1693
  %v1696 = vld [vmem:[%s4 + $0x18] sm:$0x1]
  %v1697 = vlaneseq
  %v1698 = vshrl.u32 %v1697, 7
  %v1699 = vsub.s32 0, %v1698
  %v1700 = vrot.slane %v1696, %v1699
  %v1701 = vmul.f32 %v45, %v1700
  %v1702 = vmul.f32 %v46, %v1700
  %v1703 = vld [vmem:[%s4 + $0x1c] sm:$0x1]
  %v1704 = vlaneseq
  %v1705 = vshrl.u32 %v1704, 7
  %v1706 = vsub.s32 0, %v1705
  %v1707 = vrot.slane %v1703, %v1706
  %v1708 = vmul.f32 %v45, %v1707
  %v1709 = vmul.f32 %v46, %v1707
  %v1710 = vld [vmem:[%s4 + $0x1] sm:$0x1]
  %v1711 = vlaneseq
  %v1712 = vshrl.u32 %v1711, 7
  %v1713 = vsub.s32 0, %v1712
  %v1714 = vrot.slane %v1710, %v1713
  %v1715 = vmul.f32 %v434, %v1714
  %v1716 = vmul.f32 %v435, %v1714
  %v1717 = vadd.f32 %v1659, %v1715
  %v1718 = vadd.f32 %v1660, %v1716
  %v1719 = vld [vmem:[%s4 + $0x5] sm:$0x1]
  %v1720 = vlaneseq
  %v1721 = vshrl.u32 %v1720, 7
  %v1722 = vsub.s32 0, %v1721
  %v1723 = vrot.slane %v1719, %v1722
  %v1724 = vmul.f32 %v434, %v1723
  %v1725 = vmul.f32 %v435, %v1723
  %v1726 = vadd.f32 %v1666, %v1724
  %v1727 = vadd.f32 %v1667, %v1725
  %v1728 = vld [vmem:[%s4 + $0x9] sm:$0x1]
  %v1729 = vlaneseq
  %v1730 = vshrl.u32 %v1729, 7
  %v1731 = vsub.s32 0, %v1730
  %v1732 = vrot.slane %v1728, %v1731
  %v1733 = vmul.f32 %v434, %v1732
  %v1734 = vmul.f32 %v435, %v1732
  %v1735 = vadd.f32 %v1673, %v1733
  %v1736 = vadd.f32 %v1674, %v1734
  %v1737 = vld [vmem:[%s4 + $0xd] sm:$0x1]
  %v1738 = vlaneseq
  %v1739 = vshrl.u32 %v1738, 7
  %v1740 = vsub.s32 0, %v1739
  %v1741 = vrot.slane %v1737, %v1740
  %v1742 = vmul.f32 %v434, %v1741
  %v1743 = vmul.f32 %v435, %v1741
  %v1744 = vadd.f32 %v1680, %v1742
  %v1745 = vadd.f32 %v1681, %v1743
  %v1746 = vld [vmem:[%s4 + $0x11] sm:$0x1]
  %v1747 = vlaneseq
  %v1748 = vshrl.u32 %v1747, 7
  %v1749 = vsub.s32 0, %v1748
  %v1750 = vrot.slane %v1746, %v1749
  %v1751 = vmul.f32 %v434, %v1750
  %v1752 = vmul.f32 %v435, %v1750
  %v1753 = vadd.f32 %v1687, %v1751
  %v1754 = vadd.f32 %v1688, %v1752
  %v1755 = vld [vmem:[%s4 + $0x15] sm:$0x1]
  %v1756 = vlaneseq
  %v1757 = vshrl.u32 %v1756, 7
  %v1758 = vsub.s32 0, %v1757
  %v1759 = vrot.slane %v1755, %v1758
  %v1760 = vmul.f32 %v434, %v1759
  %v1761 = vmul.f32 %v435, %v1759
  %v1762 = vadd.f32 %v1694, %v1760
  %v1763 = vadd.f32 %v1695, %v1761
  %v1764 = vld [vmem:[%s4 + $0x19] sm:$0x1]
  %v1765 = vlaneseq
  %v1766 = vshrl.u32 %v1765, 7
  %v1767 = vsub.s32 0, %v1766
  %v1768 = vrot.slane %v1764, %v1767
  %v1769 = vmul.f32 %v434, %v1768
  %v1770 = vmul.f32 %v435, %v1768
  %v1771 = vadd.f32 %v1701, %v1769
  %v1772 = vadd.f32 %v1702, %v1770
  %v1773 = vld [vmem:[%s4 + $0x1d] sm:$0x1]
  %v1774 = vlaneseq
  %v1775 = vshrl.u32 %v1774, 7
  %v1776 = vsub.s32 0, %v1775
  %v1777 = vrot.slane %v1773, %v1776
  %v1778 = vmul.f32 %v434, %v1777
  %v1779 = vmul.f32 %v435, %v1777
  %v1780 = vadd.f32 %v1708, %v1778
  %v1781 = vadd.f32 %v1709, %v1779
  %v1782 = vld [vmem:[%s4 + $0x2] sm:$0x1]
  %v1783 = vlaneseq
  %v1784 = vshrl.u32 %v1783, 7
  %v1785 = vsub.s32 0, %v1784
  %v1786 = vrot.slane %v1782, %v1785
  %v1787 = vmul.f32 %v829, %v1786
  %v1788 = vmul.f32 %v830, %v1786
  %v1789 = vadd.f32 %v1717, %v1787
  %v1790 = vadd.f32 %v1718, %v1788
  %v1791 = vld [vmem:[%s4 + $0x6] sm:$0x1]
  %v1792 = vlaneseq
  %v1793 = vshrl.u32 %v1792, 7
  %v1794 = vsub.s32 0, %v1793
  %v1795 = vrot.slane %v1791, %v1794
  %v1796 = vmul.f32 %v829, %v1795
  %v1797 = vmul.f32 %v830, %v1795
  %v1798 = vadd.f32 %v1726, %v1796
  %v1799 = vadd.f32 %v1727, %v1797
  %v1800 = vld [vmem:[%s4 + $0xa] sm:$0x1]
  %v1801 = vlaneseq
  %v1802 = vshrl.u32 %v1801, 7
  %v1803 = vsub.s32 0, %v1802
  %v1804 = vrot.slane %v1800, %v1803
  %v1805 = vmul.f32 %v829, %v1804
  %v1806 = vmul.f32 %v830, %v1804
  %v1807 = vadd.f32 %v1735, %v1805
  %v1808 = vadd.f32 %v1736, %v1806
  %v1809 = vld [vmem:[%s4 + $0xe] sm:$0x1]
  %v1810 = vlaneseq
  %v1811 = vshrl.u32 %v1810, 7
  %v1812 = vsub.s32 0, %v1811
  %v1813 = vrot.slane %v1809, %v1812
  %v1814 = vmul.f32 %v829, %v1813
  %v1815 = vmul.f32 %v830, %v1813
  %v1816 = vadd.f32 %v1744, %v1814
  %v1817 = vadd.f32 %v1745, %v1815
  %v1818 = vld [vmem:[%s4 + $0x12] sm:$0x1]
  %v1819 = vlaneseq
  %v1820 = vshrl.u32 %v1819, 7
  %v1821 = vsub.s32 0, %v1820
  %v1822 = vrot.slane %v1818, %v1821
  %v1823 = vmul.f32 %v829, %v1822
  %v1824 = vmul.f32 %v830, %v1822
  %v1825 = vadd.f32 %v1753, %v1823
  %v1826 = vadd.f32 %v1754, %v1824
  %v1827 = vld [vmem:[%s4 + $0x16] sm:$0x1]
  %v1828 = vlaneseq
  %v1829 = vshrl.u32 %v1828, 7
  %v1830 = vsub.s32 0, %v1829
  %v1831 = vrot.slane %v1827, %v1830
  %v1832 = vmul.f32 %v829, %v1831
  %v1833 = vmul.f32 %v830, %v1831
  %v1834 = vadd.f32 %v1762, %v1832
  %v1835 = vadd.f32 %v1763, %v1833
  %v1836 = vld [vmem:[%s4 + $0x1a] sm:$0x1]
  %v1837 = vlaneseq
  %v1838 = vshrl.u32 %v1837, 7
  %v1839 = vsub.s32 0, %v1838
  %v1840 = vrot.slane %v1836, %v1839
  %v1841 = vmul.f32 %v829, %v1840
  %v1842 = vmul.f32 %v830, %v1840
  %v1843 = vadd.f32 %v1771, %v1841
  %v1844 = vadd.f32 %v1772, %v1842
  %v1845 = vld [vmem:[%s4 + $0x1e] sm:$0x1]
  %v1846 = vlaneseq
  %v1847 = vshrl.u32 %v1846, 7
  %v1848 = vsub.s32 0, %v1847
  %v1849 = vrot.slane %v1845, %v1848
  %v1850 = vmul.f32 %v829, %v1849
  %v1851 = vmul.f32 %v830, %v1849
  %v1852 = vadd.f32 %v1780, %v1850
  %v1853 = vadd.f32 %v1781, %v1851
  %v1854 = vld [vmem:[%s4 + $0x3] sm:$0x1]
  %v1855 = vlaneseq
  %v1856 = vshrl.u32 %v1855, 7
  %v1857 = vsub.s32 0, %v1856
  %v1858 = vrot.slane %v1854, %v1857
  %v1859 = vmul.f32 %v1224, %v1858
  %v1860 = vmul.f32 %v1225, %v1858
  %v1861 = vadd.f32 %v1789, %v1859
  %v1862 = vadd.f32 %v1790, %v1860
  %v1863 = vld [vmem:[%s4 + $0x7] sm:$0x1]
  %v1864 = vlaneseq
  %v1865 = vshrl.u32 %v1864, 7
  %v1866 = vsub.s32 0, %v1865
  %v1867 = vrot.slane %v1863, %v1866
  %v1868 = vmul.f32 %v1224, %v1867
  %v1869 = vmul.f32 %v1225, %v1867
  %v1870 = vadd.f32 %v1798, %v1868
  %v1871 = vadd.f32 %v1799, %v1869
  %v1872 = vld [vmem:[%s4 + $0xb] sm:$0x1]
  %v1873 = vlaneseq
  %v1874 = vshrl.u32 %v1873, 7
  %v1875 = vsub.s32 0, %v1874
  %v1876 = vrot.slane %v1872, %v1875
  %v1877 = vmul.f32 %v1224, %v1876
  %v1878 = vmul.f32 %v1225, %v1876
  %v1879 = vadd.f32 %v1807, %v1877
  %v1880 = vadd.f32 %v1808, %v1878
  %v1881 = vld [vmem:[%s4 + $0xf] sm:$0x1]
  %v1882 = vlaneseq
  %v1883 = vshrl.u32 %v1882, 7
  %v1884 = vsub.s32 0, %v1883
  %v1885 = vrot.slane %v1881, %v1884
  %v1886 = vmul.f32 %v1224, %v1885
  %v1887 = vmul.f32 %v1225, %v1885
  %v1888 = vadd.f32 %v1816, %v1886
  %v1889 = vadd.f32 %v1817, %v1887
  %v1890 = vld [vmem:[%s4 + $0x13] sm:$0x1]
  %v1891 = vlaneseq
  %v1892 = vshrl.u32 %v1891, 7
  %v1893 = vsub.s32 0, %v1892
  %v1894 = vrot.slane %v1890, %v1893
  %v1895 = vmul.f32 %v1224, %v1894
  %v1896 = vmul.f32 %v1225, %v1894
  %v1897 = vadd.f32 %v1825, %v1895
  %v1898 = vadd.f32 %v1826, %v1896
  %v1899 = vld [vmem:[%s4 + $0x17] sm:$0x1]
  %v1900 = vlaneseq
  %v1901 = vshrl.u32 %v1900, 7
  %v1902 = vsub.s32 0, %v1901
  %v1903 = vrot.slane %v1899, %v1902
  %v1904 = vmul.f32 %v1224, %v1903
  %v1905 = vmul.f32 %v1225, %v1903
  %v1906 = vadd.f32 %v1834, %v1904
  %v1907 = vadd.f32 %v1835, %v1905
  %v1908 = vld [vmem:[%s4 + $0x1b] sm:$0x1]
  %v1909 = vlaneseq
  %v1910 = vshrl.u32 %v1909, 7
  %v1911 = vsub.s32 0, %v1910
  %v1912 = vrot.slane %v1908, %v1911
  %v1913 = vmul.f32 %v1224, %v1912
  %v1914 = vmul.f32 %v1225, %v1912
  %v1915 = vadd.f32 %v1843, %v1913
  %v1916 = vadd.f32 %v1844, %v1914
  %v1917 = vld [vmem:[%s4 + $0x1f] sm:$0x1]
  %v1918 = vlaneseq
  %v1919 = vshrl.u32 %v1918, 7
  %v1920 = vsub.s32 0, %v1919
  %v1921 = vrot.slane %v1917, %v1920
  %v1922 = vmul.f32 %v1224, %v1921
  %v1923 = vmul.f32 %v1225, %v1921
  %v1924 = vadd.f32 %v1852, %v1922
  %v1925 = vadd.f32 %v1853, %v1923
  %v1927 = vrot.slane %v1625, 1
  %v1930 = vrot.slane %v1625, 7
  %v1931 = vrot.slane %v1626, 7
  %v1932 = vsel %vm53, %v1930, %v1931
  %v1935 = vsel %vm53, %v1927, %v1930
  %v1936 = vrot.slane %v1626, 1
  %v1937 = vsel %vm60, %v1927, %v1936
  %v1941 = vsel %vm60, %v1936, %v1931
  %1943 = vrot.lane.b32.xlu0 %v1935, 1
  %v1944 = vpop.permute.xlu0 %1943
  %1945 = vrot.lane.b32.xlu0 %v1932, 1
  %v1946 = vpop.permute.xlu0 %1945
  %1949 = vrot.lane.b32.xlu0 %v1935, 127
  %v1950 = vpop.permute.xlu0 %1949
  %1951 = vrot.lane.b32.xlu0 %v1932, 127
  %v1952 = vpop.permute.xlu0 %1951
  %v1955 = vsel %vm43, %v1950, %v1944
  %v1956 = vsel %vm43, %v1952, %v1946
  %v1957 = vsel %vm44, %v1944, %v1950
  %v1958 = vsel %vm44, %v1946, %v1952
  %1959 = vrot.lane.b32.xlu0 %v1625, 1
  %v1960 = vpop.permute.xlu0 %1959
  %1961 = vrot.lane.b32.xlu0 %v1626, 1
  %v1962 = vpop.permute.xlu0 %1961
  %1965 = vrot.lane.b32.xlu0 %v1625, 127
  %v1966 = vpop.permute.xlu0 %1965
  %1967 = vrot.lane.b32.xlu0 %v1626, 127
  %v1968 = vpop.permute.xlu0 %1967
  %v1971 = vsel %vm43, %v1966, %v1960
  %v1972 = vsel %vm43, %v1968, %v1962
  %v1973 = vsel %vm44, %v1960, %v1966
  %v1974 = vsel %vm44, %v1962, %v1968
  %1976 = vrot.lane.b32.xlu0 %v1937, 1
  %v1977 = vpop.permute.xlu0 %1976
  %1978 = vrot.lane.b32.xlu0 %v1941, 1
  %v1979 = vpop.permute.xlu0 %1978
  %1982 = vrot.lane.b32.xlu0 %v1937, 127
  %v1983 = vpop.permute.xlu0 %1982
  %1984 = vrot.lane.b32.xlu0 %v1941, 127
  %v1985 = vpop.permute.xlu0 %1984
  %v1988 = vsel %vm43, %v1983, %v1977
  %v1989 = vsel %vm43, %v1985, %v1979
  %v1990 = vsel %vm44, %v1977, %v1983
  %v1991 = vsel %vm44, %v1979, %v1985
  %v1992 = vld [vmem:[%s3] sm:$0x1]
  %v1993 = vlaneseq
  %v1994 = vshrl.u32 %v1993, 7
  %v1995 = vsub.s32 0, %v1994
  %v1996 = vrot.slane %v1992, %v1995
  %v1997 = vmul.f32 %v1955, %v1996
  %v1998 = vmul.f32 %v1956, %v1996
  %v1999 = vadd.f32 %v1861, %v1997
  %v2000 = vadd.f32 %v1862, %v1998
  %v2001 = vld [vmem:[%s3 + $0x1] sm:$0x1]
  %v2002 = vlaneseq
  %v2003 = vshrl.u32 %v2002, 7
  %v2004 = vsub.s32 0, %v2003
  %v2005 = vrot.slane %v2001, %v2004
  %v2006 = vmul.f32 %v1935, %v2005
  %v2007 = vmul.f32 %v1932, %v2005
  %v2008 = vadd.f32 %v1999, %v2006
  %v2009 = vadd.f32 %v2000, %v2007
  %v2010 = vld [vmem:[%s3 + $0x2] sm:$0x1]
  %v2011 = vlaneseq
  %v2012 = vshrl.u32 %v2011, 7
  %v2013 = vsub.s32 0, %v2012
  %v2014 = vrot.slane %v2010, %v2013
  %v2015 = vmul.f32 %v1957, %v2014
  %v2016 = vmul.f32 %v1958, %v2014
  %v2017 = vadd.f32 %v2008, %v2015
  %v2018 = vadd.f32 %v2009, %v2016
  %v2019 = vld [vmem:[%s3 + $0x3] sm:$0x1]
  %v2020 = vlaneseq
  %v2021 = vshrl.u32 %v2020, 7
  %v2022 = vsub.s32 0, %v2021
  %v2023 = vrot.slane %v2019, %v2022
  %v2024 = vmul.f32 %v1971, %v2023
  %v2025 = vmul.f32 %v1972, %v2023
  %v2026 = vadd.f32 %v2017, %v2024
  %v2027 = vadd.f32 %v2018, %v2025
  %v2028 = vld [vmem:[%s3 + $0x4] sm:$0x1]
  %v2029 = vlaneseq
  %v2030 = vshrl.u32 %v2029, 7
  %v2031 = vsub.s32 0, %v2030
  %v2032 = vrot.slane %v2028, %v2031
  %v2033 = vmul.f32 %v1625, %v2032
  %v2034 = vmul.f32 %v1626, %v2032
  %v2035 = vadd.f32 %v2026, %v2033
  %v2036 = vadd.f32 %v2027, %v2034
  %v2037 = vld [vmem:[%s3 + $0x5] sm:$0x1]
  %v2038 = vlaneseq
  %v2039 = vshrl.u32 %v2038, 7
  %v2040 = vsub.s32 0, %v2039
  %v2041 = vrot.slane %v2037, %v2040
  %v2042 = vmul.f32 %v1973, %v2041
  %v2043 = vmul.f32 %v1974, %v2041
  %v2044 = vadd.f32 %v2035, %v2042
  %v2045 = vadd.f32 %v2036, %v2043
  %v2046 = vld [vmem:[%s3 + $0x6] sm:$0x1]
  %v2047 = vlaneseq
  %v2048 = vshrl.u32 %v2047, 7
  %v2049 = vsub.s32 0, %v2048
  %v2050 = vrot.slane %v2046, %v2049
  %v2051 = vmul.f32 %v1988, %v2050
  %v2052 = vmul.f32 %v1989, %v2050
  %v2053 = vadd.f32 %v2044, %v2051
  %v2054 = vadd.f32 %v2045, %v2052
  %v2055 = vld [vmem:[%s3 + $0x7] sm:$0x1]
  %v2056 = vlaneseq
  %v2057 = vshrl.u32 %v2056, 7
  %v2058 = vsub.s32 0, %v2057
  %v2059 = vrot.slane %v2055, %v2058
  %v2060 = vmul.f32 %v1937, %v2059
  %v2061 = vmul.f32 %v1941, %v2059
  %v2062 = vadd.f32 %v2053, %v2060
  %v2063 = vadd.f32 %v2054, %v2061
  %v2064 = vld [vmem:[%s3 + $0x8] sm:$0x1]
  %v2065 = vlaneseq
  %v2066 = vshrl.u32 %v2065, 7
  %v2067 = vsub.s32 0, %v2066
  %v2068 = vrot.slane %v2064, %v2067
  %v2069 = vmul.f32 %v1990, %v2068
  %v2070 = vmul.f32 %v1991, %v2068
  %v2071 = vadd.f32 %v2062, %v2069
  %v2072 = vadd.f32 %v2063, %v2070
  %v2073 = vld [vmem:[%s3 + $0x24] sm:$0x1]
  %v2074 = vlaneseq
  %v2075 = vshrl.u32 %v2074, 7
  %v2076 = vsub.s32 0, %v2075
  %v2077 = vrot.slane %v2073, %v2076
  %v2078 = vmul.f32 %v1955, %v2077
  %v2079 = vmul.f32 %v1956, %v2077
  %v2080 = vadd.f32 %v1870, %v2078
  %v2081 = vadd.f32 %v1871, %v2079
  %v2082 = vld [vmem:[%s3 + $0x25] sm:$0x1]
  %v2083 = vlaneseq
  %v2084 = vshrl.u32 %v2083, 7
  %v2085 = vsub.s32 0, %v2084
  %v2086 = vrot.slane %v2082, %v2085
  %v2087 = vmul.f32 %v1935, %v2086
  %v2088 = vmul.f32 %v1932, %v2086
  %v2089 = vadd.f32 %v2080, %v2087
  %v2090 = vadd.f32 %v2081, %v2088
  %v2091 = vld [vmem:[%s3 + $0x26] sm:$0x1]
  %v2092 = vlaneseq
  %v2093 = vshrl.u32 %v2092, 7
  %v2094 = vsub.s32 0, %v2093
  %v2095 = vrot.slane %v2091, %v2094
  %v2096 = vmul.f32 %v1957, %v2095
  %v2097 = vmul.f32 %v1958, %v2095
  %v2098 = vadd.f32 %v2089, %v2096
  %v2099 = vadd.f32 %v2090, %v2097
  %v2100 = vld [vmem:[%s3 + $0x27] sm:$0x1]
  %v2101 = vlaneseq
  %v2102 = vshrl.u32 %v2101, 7
  %v2103 = vsub.s32 0, %v2102
  %v2104 = vrot.slane %v2100, %v2103
  %v2105 = vmul.f32 %v1971, %v2104
  %v2106 = vmul.f32 %v1972, %v2104
  %v2107 = vadd.f32 %v2098, %v2105
  %v2108 = vadd.f32 %v2099, %v2106
  %v2109 = vld [vmem:[%s3 + $0x28] sm:$0x1]
  %v2110 = vlaneseq
  %v2111 = vshrl.u32 %v2110, 7
  %v2112 = vsub.s32 0, %v2111
  %v2113 = vrot.slane %v2109, %v2112
  %v2114 = vmul.f32 %v1625, %v2113
  %v2115 = vmul.f32 %v1626, %v2113
  %v2116 = vadd.f32 %v2107, %v2114
  %v2117 = vadd.f32 %v2108, %v2115
  %v2118 = vld [vmem:[%s3 + $0x29] sm:$0x1]
  %v2119 = vlaneseq
  %v2120 = vshrl.u32 %v2119, 7
  %v2121 = vsub.s32 0, %v2120
  %v2122 = vrot.slane %v2118, %v2121
  %v2123 = vmul.f32 %v1973, %v2122
  %v2124 = vmul.f32 %v1974, %v2122
  %v2125 = vadd.f32 %v2116, %v2123
  %v2126 = vadd.f32 %v2117, %v2124
  %v2127 = vld [vmem:[%s3 + $0x2a] sm:$0x1]
  %v2128 = vlaneseq
  %v2129 = vshrl.u32 %v2128, 7
  %v2130 = vsub.s32 0, %v2129
  %v2131 = vrot.slane %v2127, %v2130
  %v2132 = vmul.f32 %v1988, %v2131
  %v2133 = vmul.f32 %v1989, %v2131
  %v2134 = vadd.f32 %v2125, %v2132
  %v2135 = vadd.f32 %v2126, %v2133
  %v2136 = vld [vmem:[%s3 + $0x2b] sm:$0x1]
  %v2137 = vlaneseq
  %v2138 = vshrl.u32 %v2137, 7
  %v2139 = vsub.s32 0, %v2138
  %v2140 = vrot.slane %v2136, %v2139
  %v2141 = vmul.f32 %v1937, %v2140
  %v2142 = vmul.f32 %v1941, %v2140
  %v2143 = vadd.f32 %v2134, %v2141
  %v2144 = vadd.f32 %v2135, %v2142
  %v2145 = vld [vmem:[%s3 + $0x2c] sm:$0x1]
  %v2146 = vlaneseq
  %v2147 = vshrl.u32 %v2146, 7
  %v2148 = vsub.s32 0, %v2147
  %v2149 = vrot.slane %v2145, %v2148
  %v2150 = vmul.f32 %v1990, %v2149
  %v2151 = vmul.f32 %v1991, %v2149
  %v2152 = vadd.f32 %v2143, %v2150
  %v2153 = vadd.f32 %v2144, %v2151
  %v2154 = vld [vmem:[%s3 + $0x48] sm:$0x1]
  %v2155 = vlaneseq
  %v2156 = vshrl.u32 %v2155, 7
  %v2157 = vsub.s32 0, %v2156
  %v2158 = vrot.slane %v2154, %v2157
  %v2159 = vmul.f32 %v1955, %v2158
  %v2160 = vmul.f32 %v1956, %v2158
  %v2161 = vadd.f32 %v1879, %v2159
  %v2162 = vadd.f32 %v1880, %v2160
  %v2163 = vld [vmem:[%s3 + $0x49] sm:$0x1]
  %v2164 = vlaneseq
  %v2165 = vshrl.u32 %v2164, 7
  %v2166 = vsub.s32 0, %v2165
  %v2167 = vrot.slane %v2163, %v2166
  %v2168 = vmul.f32 %v1935, %v2167
  %v2169 = vmul.f32 %v1932, %v2167
  %v2170 = vadd.f32 %v2161, %v2168
  %v2171 = vadd.f32 %v2162, %v2169
  %v2172 = vld [vmem:[%s3 + $0x4a] sm:$0x1]
  %v2173 = vlaneseq
  %v2174 = vshrl.u32 %v2173, 7
  %v2175 = vsub.s32 0, %v2174
  %v2176 = vrot.slane %v2172, %v2175
  %v2177 = vmul.f32 %v1957, %v2176
  %v2178 = vmul.f32 %v1958, %v2176
  %v2179 = vadd.f32 %v2170, %v2177
  %v2180 = vadd.f32 %v2171, %v2178
  %v2181 = vld [vmem:[%s3 + $0x4b] sm:$0x1]
  %v2182 = vlaneseq
  %v2183 = vshrl.u32 %v2182, 7
  %v2184 = vsub.s32 0, %v2183
  %v2185 = vrot.slane %v2181, %v2184
  %v2186 = vmul.f32 %v1971, %v2185
  %v2187 = vmul.f32 %v1972, %v2185
  %v2188 = vadd.f32 %v2179, %v2186
  %v2189 = vadd.f32 %v2180, %v2187
  %v2190 = vld [vmem:[%s3 + $0x4c] sm:$0x1]
  %v2191 = vlaneseq
  %v2192 = vshrl.u32 %v2191, 7
  %v2193 = vsub.s32 0, %v2192
  %v2194 = vrot.slane %v2190, %v2193
  %v2195 = vmul.f32 %v1625, %v2194
  %v2196 = vmul.f32 %v1626, %v2194
  %v2197 = vadd.f32 %v2188, %v2195
  %v2198 = vadd.f32 %v2189, %v2196
  %v2199 = vld [vmem:[%s3 + $0x4d] sm:$0x1]
  %v2200 = vlaneseq
  %v2201 = vshrl.u32 %v2200, 7
  %v2202 = vsub.s32 0, %v2201
  %v2203 = vrot.slane %v2199, %v2202
  %v2204 = vmul.f32 %v1973, %v2203
  %v2205 = vmul.f32 %v1974, %v2203
  %v2206 = vadd.f32 %v2197, %v2204
  %v2207 = vadd.f32 %v2198, %v2205
  %v2208 = vld [vmem:[%s3 + $0x4e] sm:$0x1]
  %v2209 = vlaneseq
  %v2210 = vshrl.u32 %v2209, 7
  %v2211 = vsub.s32 0, %v2210
  %v2212 = vrot.slane %v2208, %v2211
  %v2213 = vmul.f32 %v1988, %v2212
  %v2214 = vmul.f32 %v1989, %v2212
  %v2215 = vadd.f32 %v2206, %v2213
  %v2216 = vadd.f32 %v2207, %v2214
  %v2217 = vld [vmem:[%s3 + $0x4f] sm:$0x1]
  %v2218 = vlaneseq
  %v2219 = vshrl.u32 %v2218, 7
  %v2220 = vsub.s32 0, %v2219
  %v2221 = vrot.slane %v2217, %v2220
  %v2222 = vmul.f32 %v1937, %v2221
  %v2223 = vmul.f32 %v1941, %v2221
  %v2224 = vadd.f32 %v2215, %v2222
  %v2225 = vadd.f32 %v2216, %v2223
  %v2226 = vld [vmem:[%s3 + $0x50] sm:$0x1]
  %v2227 = vlaneseq
  %v2228 = vshrl.u32 %v2227, 7
  %v2229 = vsub.s32 0, %v2228
  %v2230 = vrot.slane %v2226, %v2229
  %v2231 = vmul.f32 %v1990, %v2230
  %v2232 = vmul.f32 %v1991, %v2230
  %v2233 = vadd.f32 %v2224, %v2231
  %v2234 = vadd.f32 %v2225, %v2232
  %v2235 = vld [vmem:[%s3 + $0x6c] sm:$0x1]
  %v2236 = vlaneseq
  %v2237 = vshrl.u32 %v2236, 7
  %v2238 = vsub.s32 0, %v2237
  %v2239 = vrot.slane %v2235, %v2238
  %v2240 = vmul.f32 %v1955, %v2239
  %v2241 = vmul.f32 %v1956, %v2239
  %v2242 = vadd.f32 %v1888, %v2240
  %v2243 = vadd.f32 %v1889, %v2241
  %v2244 = vld [vmem:[%s3 + $0x6d] sm:$0x1]
  %v2245 = vlaneseq
  %v2246 = vshrl.u32 %v2245, 7
  %v2247 = vsub.s32 0, %v2246
  %v2248 = vrot.slane %v2244, %v2247
  %v2249 = vmul.f32 %v1935, %v2248
  %v2250 = vmul.f32 %v1932, %v2248
  %v2251 = vadd.f32 %v2242, %v2249
  %v2252 = vadd.f32 %v2243, %v2250
  %v2253 = vld [vmem:[%s3 + $0x6e] sm:$0x1]
  %v2254 = vlaneseq
  %v2255 = vshrl.u32 %v2254, 7
  %v2256 = vsub.s32 0, %v2255
  %v2257 = vrot.slane %v2253, %v2256
  %v2258 = vmul.f32 %v1957, %v2257
  %v2259 = vmul.f32 %v1958, %v2257
  %v2260 = vadd.f32 %v2251, %v2258
  %v2261 = vadd.f32 %v2252, %v2259
  %v2262 = vld [vmem:[%s3 + $0x6f] sm:$0x1]
  %v2263 = vlaneseq
  %v2264 = vshrl.u32 %v2263, 7
  %v2265 = vsub.s32 0, %v2264
  %v2266 = vrot.slane %v2262, %v2265
  %v2267 = vmul.f32 %v1971, %v2266
  %v2268 = vmul.f32 %v1972, %v2266
  %v2269 = vadd.f32 %v2260, %v2267
  %v2270 = vadd.f32 %v2261, %v2268
  %v2271 = vld [vmem:[%s3 + $0x70] sm:$0x1]
  %v2272 = vlaneseq
  %v2273 = vshrl.u32 %v2272, 7
  %v2274 = vsub.s32 0, %v2273
  %v2275 = vrot.slane %v2271, %v2274
  %v2276 = vmul.f32 %v1625, %v2275
  %v2277 = vmul.f32 %v1626, %v2275
  %v2278 = vadd.f32 %v2269, %v2276
  %v2279 = vadd.f32 %v2270, %v2277
  %v2280 = vld [vmem:[%s3 + $0x71] sm:$0x1]
  %v2281 = vlaneseq
  %v2282 = vshrl.u32 %v2281, 7
  %v2283 = vsub.s32 0, %v2282
  %v2284 = vrot.slane %v2280, %v2283
  %v2285 = vmul.f32 %v1973, %v2284
  %v2286 = vmul.f32 %v1974, %v2284
  %v2287 = vadd.f32 %v2278, %v2285
  %v2288 = vadd.f32 %v2279, %v2286
  %v2289 = vld [vmem:[%s3 + $0x72] sm:$0x1]
  %v2290 = vlaneseq
  %v2291 = vshrl.u32 %v2290, 7
  %v2292 = vsub.s32 0, %v2291
  %v2293 = vrot.slane %v2289, %v2292
  %v2294 = vmul.f32 %v1988, %v2293
  %v2295 = vmul.f32 %v1989, %v2293
  %v2296 = vadd.f32 %v2287, %v2294
  %v2297 = vadd.f32 %v2288, %v2295
  %v2298 = vld [vmem:[%s3 + $0x73] sm:$0x1]
  %v2299 = vlaneseq
  %v2300 = vshrl.u32 %v2299, 7
  %v2301 = vsub.s32 0, %v2300
  %v2302 = vrot.slane %v2298, %v2301
  %v2303 = vmul.f32 %v1937, %v2302
  %v2304 = vmul.f32 %v1941, %v2302
  %v2305 = vadd.f32 %v2296, %v2303
  %v2306 = vadd.f32 %v2297, %v2304
  %v2307 = vld [vmem:[%s3 + $0x74] sm:$0x1]
  %v2308 = vlaneseq
  %v2309 = vshrl.u32 %v2308, 7
  %v2310 = vsub.s32 0, %v2309
  %v2311 = vrot.slane %v2307, %v2310
  %v2312 = vmul.f32 %v1990, %v2311
  %v2313 = vmul.f32 %v1991, %v2311
  %v2314 = vadd.f32 %v2305, %v2312
  %v2315 = vadd.f32 %v2306, %v2313
  %v2316 = vld [vmem:[%s3 + $0x90] sm:$0x1]
  %v2317 = vlaneseq
  %v2318 = vshrl.u32 %v2317, 7
  %v2319 = vsub.s32 0, %v2318
  %v2320 = vrot.slane %v2316, %v2319
  %v2321 = vmul.f32 %v1955, %v2320
  %v2322 = vmul.f32 %v1956, %v2320
  %v2323 = vadd.f32 %v1897, %v2321
  %v2324 = vadd.f32 %v1898, %v2322
  %v2325 = vld [vmem:[%s3 + $0x91] sm:$0x1]
  %v2326 = vlaneseq
  %v2327 = vshrl.u32 %v2326, 7
  %v2328 = vsub.s32 0, %v2327
  %v2329 = vrot.slane %v2325, %v2328
  %v2330 = vmul.f32 %v1935, %v2329
  %v2331 = vmul.f32 %v1932, %v2329
  %v2332 = vadd.f32 %v2323, %v2330
  %v2333 = vadd.f32 %v2324, %v2331
  %v2334 = vld [vmem:[%s3 + $0x92] sm:$0x1]
  %v2335 = vlaneseq
  %v2336 = vshrl.u32 %v2335, 7
  %v2337 = vsub.s32 0, %v2336
  %v2338 = vrot.slane %v2334, %v2337
  %v2339 = vmul.f32 %v1957, %v2338
  %v2340 = vmul.f32 %v1958, %v2338
  %v2341 = vadd.f32 %v2332, %v2339
  %v2342 = vadd.f32 %v2333, %v2340
  %v2343 = vld [vmem:[%s3 + $0x93] sm:$0x1]
  %v2344 = vlaneseq
  %v2345 = vshrl.u32 %v2344, 7
  %v2346 = vsub.s32 0, %v2345
  %v2347 = vrot.slane %v2343, %v2346
  %v2348 = vmul.f32 %v1971, %v2347
  %v2349 = vmul.f32 %v1972, %v2347
  %v2350 = vadd.f32 %v2341, %v2348
  %v2351 = vadd.f32 %v2342, %v2349
  %v2352 = vld [vmem:[%s3 + $0x94] sm:$0x1]
  %v2353 = vlaneseq
  %v2354 = vshrl.u32 %v2353, 7
  %v2355 = vsub.s32 0, %v2354
  %v2356 = vrot.slane %v2352, %v2355
  %v2357 = vmul.f32 %v1625, %v2356
  %v2358 = vmul.f32 %v1626, %v2356
  %v2359 = vadd.f32 %v2350, %v2357
  %v2360 = vadd.f32 %v2351, %v2358
  %v2361 = vld [vmem:[%s3 + $0x95] sm:$0x1]
  %v2362 = vlaneseq
  %v2363 = vshrl.u32 %v2362, 7
  %v2364 = vsub.s32 0, %v2363
  %v2365 = vrot.slane %v2361, %v2364
  %v2366 = vmul.f32 %v1973, %v2365
  %v2367 = vmul.f32 %v1974, %v2365
  %v2368 = vadd.f32 %v2359, %v2366
  %v2369 = vadd.f32 %v2360, %v2367
  %v2370 = vld [vmem:[%s3 + $0x96] sm:$0x1]
  %v2371 = vlaneseq
  %v2372 = vshrl.u32 %v2371, 7
  %v2373 = vsub.s32 0, %v2372
  %v2374 = vrot.slane %v2370, %v2373
  %v2375 = vmul.f32 %v1988, %v2374
  %v2376 = vmul.f32 %v1989, %v2374
  %v2377 = vadd.f32 %v2368, %v2375
  %v2378 = vadd.f32 %v2369, %v2376
  %v2379 = vld [vmem:[%s3 + $0x97] sm:$0x1]
  %v2380 = vlaneseq
  %v2381 = vshrl.u32 %v2380, 7
  %v2382 = vsub.s32 0, %v2381
  %v2383 = vrot.slane %v2379, %v2382
  %v2384 = vmul.f32 %v1937, %v2383
  %v2385 = vmul.f32 %v1941, %v2383
  %v2386 = vadd.f32 %v2377, %v2384
  %v2387 = vadd.f32 %v2378, %v2385
  %v2388 = vld [vmem:[%s3 + $0x98] sm:$0x1]
  %v2389 = vlaneseq
  %v2390 = vshrl.u32 %v2389, 7
  %v2391 = vsub.s32 0, %v2390
  %v2392 = vrot.slane %v2388, %v2391
  %v2393 = vmul.f32 %v1990, %v2392
  %v2394 = vmul.f32 %v1991, %v2392
  %v2395 = vadd.f32 %v2386, %v2393
  %v2396 = vadd.f32 %v2387, %v2394
  %v2397 = vld [vmem:[%s3 + $0xb4] sm:$0x1]
  %v2398 = vlaneseq
  %v2399 = vshrl.u32 %v2398, 7
  %v2400 = vsub.s32 0, %v2399
  %v2401 = vrot.slane %v2397, %v2400
  %v2402 = vmul.f32 %v1955, %v2401
  %v2403 = vmul.f32 %v1956, %v2401
  %v2404 = vadd.f32 %v1906, %v2402
  %v2405 = vadd.f32 %v1907, %v2403
  %v2406 = vld [vmem:[%s3 + $0xb5] sm:$0x1]
  %v2407 = vlaneseq
  %v2408 = vshrl.u32 %v2407, 7
  %v2409 = vsub.s32 0, %v2408
  %v2410 = vrot.slane %v2406, %v2409
  %v2411 = vmul.f32 %v1935, %v2410
  %v2412 = vmul.f32 %v1932, %v2410
  %v2413 = vadd.f32 %v2404, %v2411
  %v2414 = vadd.f32 %v2405, %v2412
  %v2415 = vld [vmem:[%s3 + $0xb6] sm:$0x1]
  %v2416 = vlaneseq
  %v2417 = vshrl.u32 %v2416, 7
  %v2418 = vsub.s32 0, %v2417
  %v2419 = vrot.slane %v2415, %v2418
  %v2420 = vmul.f32 %v1957, %v2419
  %v2421 = vmul.f32 %v1958, %v2419
  %v2422 = vadd.f32 %v2413, %v2420
  %v2423 = vadd.f32 %v2414, %v2421
  %v2424 = vld [vmem:[%s3 + $0xb7] sm:$0x1]
  %v2425 = vlaneseq
  %v2426 = vshrl.u32 %v2425, 7
  %v2427 = vsub.s32 0, %v2426
  %v2428 = vrot.slane %v2424, %v2427
  %v2429 = vmul.f32 %v1971, %v2428
  %v2430 = vmul.f32 %v1972, %v2428
  %v2431 = vadd.f32 %v2422, %v2429
  %v2432 = vadd.f32 %v2423, %v2430
  %v2433 = vld [vmem:[%s3 + $0xb8] sm:$0x1]
  %v2434 = vlaneseq
  %v2435 = vshrl.u32 %v2434, 7
  %v2436 = vsub.s32 0, %v2435
  %v2437 = vrot.slane %v2433, %v2436
  %v2438 = vmul.f32 %v1625, %v2437
  %v2439 = vmul.f32 %v1626, %v2437
  %v2440 = vadd.f32 %v2431, %v2438
  %v2441 = vadd.f32 %v2432, %v2439
  %v2442 = vld [vmem:[%s3 + $0xb9] sm:$0x1]
  %v2443 = vlaneseq
  %v2444 = vshrl.u32 %v2443, 7
  %v2445 = vsub.s32 0, %v2444
  %v2446 = vrot.slane %v2442, %v2445
  %v2447 = vmul.f32 %v1973, %v2446
  %v2448 = vmul.f32 %v1974, %v2446
  %v2449 = vadd.f32 %v2440, %v2447
  %v2450 = vadd.f32 %v2441, %v2448
  %v2451 = vld [vmem:[%s3 + $0xba] sm:$0x1]
  %v2452 = vlaneseq
  %v2453 = vshrl.u32 %v2452, 7
  %v2454 = vsub.s32 0, %v2453
  %v2455 = vrot.slane %v2451, %v2454
  %v2456 = vmul.f32 %v1988, %v2455
  %v2457 = vmul.f32 %v1989, %v2455
  %v2458 = vadd.f32 %v2449, %v2456
  %v2459 = vadd.f32 %v2450, %v2457
  %v2460 = vld [vmem:[%s3 + $0xbb] sm:$0x1]
  %v2461 = vlaneseq
  %v2462 = vshrl.u32 %v2461, 7
  %v2463 = vsub.s32 0, %v2462
  %v2464 = vrot.slane %v2460, %v2463
  %v2465 = vmul.f32 %v1937, %v2464
  %v2466 = vmul.f32 %v1941, %v2464
  %v2467 = vadd.f32 %v2458, %v2465
  %v2468 = vadd.f32 %v2459, %v2466
  %v2469 = vld [vmem:[%s3 + $0xbc] sm:$0x1]
  %v2470 = vlaneseq
  %v2471 = vshrl.u32 %v2470, 7
  %v2472 = vsub.s32 0, %v2471
  %v2473 = vrot.slane %v2469, %v2472
  %v2474 = vmul.f32 %v1990, %v2473
  %v2475 = vmul.f32 %v1991, %v2473
  %v2476 = vadd.f32 %v2467, %v2474
  %v2477 = vadd.f32 %v2468, %v2475
  %v2478 = vld [vmem:[%s3 + $0xd8] sm:$0x1]
  %v2479 = vlaneseq
  %v2480 = vshrl.u32 %v2479, 7
  %v2481 = vsub.s32 0, %v2480
  %v2482 = vrot.slane %v2478, %v2481
  %v2483 = vmul.f32 %v1955, %v2482
  %v2484 = vmul.f32 %v1956, %v2482
  %v2485 = vadd.f32 %v1915, %v2483
  %v2486 = vadd.f32 %v1916, %v2484
  %v2487 = vld [vmem:[%s3 + $0xd9] sm:$0x1]
  %v2488 = vlaneseq
  %v2489 = vshrl.u32 %v2488, 7
  %v2490 = vsub.s32 0, %v2489
  %v2491 = vrot.slane %v2487, %v2490
  %v2492 = vmul.f32 %v1935, %v2491
  %v2493 = vmul.f32 %v1932, %v2491
  %v2494 = vadd.f32 %v2485, %v2492
  %v2495 = vadd.f32 %v2486, %v2493
  %v2496 = vld [vmem:[%s3 + $0xda] sm:$0x1]
  %v2497 = vlaneseq
  %v2498 = vshrl.u32 %v2497, 7
  %v2499 = vsub.s32 0, %v2498
  %v2500 = vrot.slane %v2496, %v2499
  %v2501 = vmul.f32 %v1957, %v2500
  %v2502 = vmul.f32 %v1958, %v2500
  %v2503 = vadd.f32 %v2494, %v2501
  %v2504 = vadd.f32 %v2495, %v2502
  %v2505 = vld [vmem:[%s3 + $0xdb] sm:$0x1]
  %v2506 = vlaneseq
  %v2507 = vshrl.u32 %v2506, 7
  %v2508 = vsub.s32 0, %v2507
  %v2509 = vrot.slane %v2505, %v2508
  %v2510 = vmul.f32 %v1971, %v2509
  %v2511 = vmul.f32 %v1972, %v2509
  %v2512 = vadd.f32 %v2503, %v2510
  %v2513 = vadd.f32 %v2504, %v2511
  %v2514 = vld [vmem:[%s3 + $0xdc] sm:$0x1]
  %v2515 = vlaneseq
  %v2516 = vshrl.u32 %v2515, 7
  %v2517 = vsub.s32 0, %v2516
  %v2518 = vrot.slane %v2514, %v2517
  %v2519 = vmul.f32 %v1625, %v2518
  %v2520 = vmul.f32 %v1626, %v2518
  %v2521 = vadd.f32 %v2512, %v2519
  %v2522 = vadd.f32 %v2513, %v2520
  %v2523 = vld [vmem:[%s3 + $0xdd] sm:$0x1]
  %v2524 = vlaneseq
  %v2525 = vshrl.u32 %v2524, 7
  %v2526 = vsub.s32 0, %v2525
  %v2527 = vrot.slane %v2523, %v2526
  %v2528 = vmul.f32 %v1973, %v2527
  %v2529 = vmul.f32 %v1974, %v2527
  %v2530 = vadd.f32 %v2521, %v2528
  %v2531 = vadd.f32 %v2522, %v2529
  %v2532 = vld [vmem:[%s3 + $0xde] sm:$0x1]
  %v2533 = vlaneseq
  %v2534 = vshrl.u32 %v2533, 7
  %v2535 = vsub.s32 0, %v2534
  %v2536 = vrot.slane %v2532, %v2535
  %v2537 = vmul.f32 %v1988, %v2536
  %v2538 = vmul.f32 %v1989, %v2536
  %v2539 = vadd.f32 %v2530, %v2537
  %v2540 = vadd.f32 %v2531, %v2538
  %v2541 = vld [vmem:[%s3 + $0xdf] sm:$0x1]
  %v2542 = vlaneseq
  %v2543 = vshrl.u32 %v2542, 7
  %v2544 = vsub.s32 0, %v2543
  %v2545 = vrot.slane %v2541, %v2544
  %v2546 = vmul.f32 %v1937, %v2545
  %v2547 = vmul.f32 %v1941, %v2545
  %v2548 = vadd.f32 %v2539, %v2546
  %v2549 = vadd.f32 %v2540, %v2547
  %v2550 = vld [vmem:[%s3 + $0xe0] sm:$0x1]
  %v2551 = vlaneseq
  %v2552 = vshrl.u32 %v2551, 7
  %v2553 = vsub.s32 0, %v2552
  %v2554 = vrot.slane %v2550, %v2553
  %v2555 = vmul.f32 %v1990, %v2554
  %v2556 = vmul.f32 %v1991, %v2554
  %v2557 = vadd.f32 %v2548, %v2555
  %v2558 = vadd.f32 %v2549, %v2556
  %v2559 = vld [vmem:[%s3 + $0xfc] sm:$0x1]
  %v2560 = vlaneseq
  %v2561 = vshrl.u32 %v2560, 7
  %v2562 = vsub.s32 0, %v2561
  %v2563 = vrot.slane %v2559, %v2562
  %v2564 = vmul.f32 %v1955, %v2563
  %v2565 = vmul.f32 %v1956, %v2563
  %v2566 = vadd.f32 %v1924, %v2564
  %v2567 = vadd.f32 %v1925, %v2565
  %v2568 = vld [vmem:[%s3 + $0xfd] sm:$0x1]
  %v2569 = vlaneseq
  %v2570 = vshrl.u32 %v2569, 7
  %v2571 = vsub.s32 0, %v2570
  %v2572 = vrot.slane %v2568, %v2571
  %v2573 = vmul.f32 %v1935, %v2572
  %v2574 = vmul.f32 %v1932, %v2572
  %v2575 = vadd.f32 %v2566, %v2573
  %v2576 = vadd.f32 %v2567, %v2574
  %v2577 = vld [vmem:[%s3 + $0xfe] sm:$0x1]
  %v2578 = vlaneseq
  %v2579 = vshrl.u32 %v2578, 7
  %v2580 = vsub.s32 0, %v2579
  %v2581 = vrot.slane %v2577, %v2580
  %v2582 = vmul.f32 %v1957, %v2581
  %v2583 = vmul.f32 %v1958, %v2581
  %v2584 = vadd.f32 %v2575, %v2582
  %v2585 = vadd.f32 %v2576, %v2583
  %v2586 = vld [vmem:[%s3 + $0xff] sm:$0x1]
  %v2587 = vlaneseq
  %v2588 = vshrl.u32 %v2587, 7
  %v2589 = vsub.s32 0, %v2588
  %v2590 = vrot.slane %v2586, %v2589
  %v2591 = vmul.f32 %v1971, %v2590
  %v2592 = vmul.f32 %v1972, %v2590
  %v2593 = vadd.f32 %v2584, %v2591
  %v2594 = vadd.f32 %v2585, %v2592
  %v2595 = vld [vmem:[%s3 + $0x100] sm:$0x1]
  %v2596 = vlaneseq
  %v2597 = vshrl.u32 %v2596, 7
  %v2598 = vsub.s32 0, %v2597
  %v2599 = vrot.slane %v2595, %v2598
  %v2600 = vmul.f32 %v1625, %v2599
  %v2601 = vmul.f32 %v1626, %v2599
  %v2602 = vadd.f32 %v2593, %v2600
  %v2603 = vadd.f32 %v2594, %v2601
  %v2604 = vld [vmem:[%s3 + $0x101] sm:$0x1]
  %v2605 = vlaneseq
  %v2606 = vshrl.u32 %v2605, 7
  %v2607 = vsub.s32 0, %v2606
  %v2608 = vrot.slane %v2604, %v2607
  %v2609 = vmul.f32 %v1973, %v2608
  %v2610 = vmul.f32 %v1974, %v2608
  %v2611 = vadd.f32 %v2602, %v2609
  %v2612 = vadd.f32 %v2603, %v2610
  %v2613 = vld [vmem:[%s3 + $0x102] sm:$0x1]
  %v2614 = vlaneseq
  %v2615 = vshrl.u32 %v2614, 7
  %v2616 = vsub.s32 0, %v2615
  %v2617 = vrot.slane %v2613, %v2616
  %v2618 = vmul.f32 %v1988, %v2617
  %v2619 = vmul.f32 %v1989, %v2617
  %v2620 = vadd.f32 %v2611, %v2618
  %v2621 = vadd.f32 %v2612, %v2619
  %v2622 = vld [vmem:[%s3 + $0x103] sm:$0x1]
  %v2623 = vlaneseq
  %v2624 = vshrl.u32 %v2623, 7
  %v2625 = vsub.s32 0, %v2624
  %v2626 = vrot.slane %v2622, %v2625
  %v2627 = vmul.f32 %v1937, %v2626
  %v2628 = vmul.f32 %v1941, %v2626
  %v2629 = vadd.f32 %v2620, %v2627
  %v2630 = vadd.f32 %v2621, %v2628
  %v2631 = vld [vmem:[%s3 + $0x104] sm:$0x1]
  %v2632 = vlaneseq
  %v2633 = vshrl.u32 %v2632, 7
  %v2634 = vsub.s32 0, %v2633
  %v2635 = vrot.slane %v2631, %v2634
  %v2636 = vmul.f32 %v1990, %v2635
  %v2637 = vmul.f32 %v1991, %v2635
  %v2638 = vadd.f32 %v2629, %v2636
  %v2639 = vadd.f32 %v2630, %v2637
  %v2641 = vrot.slane %v1634, 1
  %v2644 = vrot.slane %v1634, 7
  %v2645 = vrot.slane %v1635, 7
  %v2646 = vsel %vm53, %v2644, %v2645
  %v2649 = vsel %vm53, %v2641, %v2644
  %v2650 = vrot.slane %v1635, 1
  %v2651 = vsel %vm60, %v2641, %v2650
  %v2655 = vsel %vm60, %v2650, %v2645
  %2657 = vrot.lane.b32.xlu0 %v2649, 1
  %v2658 = vpop.permute.xlu0 %2657
  %2659 = vrot.lane.b32.xlu0 %v2646, 1
  %v2660 = vpop.permute.xlu0 %2659
  %2663 = vrot.lane.b32.xlu0 %v2649, 127
  %v2664 = vpop.permute.xlu0 %2663
  %2665 = vrot.lane.b32.xlu0 %v2646, 127
  %v2666 = vpop.permute.xlu0 %2665
  %v2669 = vsel %vm43, %v2664, %v2658
  %v2670 = vsel %vm43, %v2666, %v2660
  %v2671 = vsel %vm44, %v2658, %v2664
  %v2672 = vsel %vm44, %v2660, %v2666
  %2673 = vrot.lane.b32.xlu0 %v1634, 1
  %v2674 = vpop.permute.xlu0 %2673
  %2675 = vrot.lane.b32.xlu0 %v1635, 1
  %v2676 = vpop.permute.xlu0 %2675
  %2679 = vrot.lane.b32.xlu0 %v1634, 127
  %v2680 = vpop.permute.xlu0 %2679
  %2681 = vrot.lane.b32.xlu0 %v1635, 127
  %v2682 = vpop.permute.xlu0 %2681
  %v2685 = vsel %vm43, %v2680, %v2674
  %v2686 = vsel %vm43, %v2682, %v2676
  %v2687 = vsel %vm44, %v2674, %v2680
  %v2688 = vsel %vm44, %v2676, %v2682
  %2690 = vrot.lane.b32.xlu0 %v2651, 1
  %v2691 = vpop.permute.xlu0 %2690
  %2692 = vrot.lane.b32.xlu0 %v2655, 1
  %v2693 = vpop.permute.xlu0 %2692
  %2696 = vrot.lane.b32.xlu0 %v2651, 127
  %v2697 = vpop.permute.xlu0 %2696
  %2698 = vrot.lane.b32.xlu0 %v2655, 127
  %v2699 = vpop.permute.xlu0 %2698
  %v2702 = vsel %vm43, %v2697, %v2691
  %v2703 = vsel %vm43, %v2699, %v2693
  %v2704 = vsel %vm44, %v2691, %v2697
  %v2705 = vsel %vm44, %v2693, %v2699
  %v2706 = vld [vmem:[%s3 + $0x9] sm:$0x1]
  %v2707 = vlaneseq
  %v2708 = vshrl.u32 %v2707, 7
  %v2709 = vsub.s32 0, %v2708
  %v2710 = vrot.slane %v2706, %v2709
  %v2711 = vmul.f32 %v2669, %v2710
  %v2712 = vmul.f32 %v2670, %v2710
  %v2713 = vadd.f32 %v2071, %v2711
  %v2714 = vadd.f32 %v2072, %v2712
  %v2715 = vld [vmem:[%s3 + $0xa] sm:$0x1]
  %v2716 = vlaneseq
  %v2717 = vshrl.u32 %v2716, 7
  %v2718 = vsub.s32 0, %v2717
  %v2719 = vrot.slane %v2715, %v2718
  %v2720 = vmul.f32 %v2649, %v2719
  %v2721 = vmul.f32 %v2646, %v2719
  %v2722 = vadd.f32 %v2713, %v2720
  %v2723 = vadd.f32 %v2714, %v2721
  %v2724 = vld [vmem:[%s3 + $0xb] sm:$0x1]
  %v2725 = vlaneseq
  %v2726 = vshrl.u32 %v2725, 7
  %v2727 = vsub.s32 0, %v2726
  %v2728 = vrot.slane %v2724, %v2727
  %v2729 = vmul.f32 %v2671, %v2728
  %v2730 = vmul.f32 %v2672, %v2728
  %v2731 = vadd.f32 %v2722, %v2729
  %v2732 = vadd.f32 %v2723, %v2730
  %v2733 = vld [vmem:[%s3 + $0xc] sm:$0x1]
  %v2734 = vlaneseq
  %v2735 = vshrl.u32 %v2734, 7
  %v2736 = vsub.s32 0, %v2735
  %v2737 = vrot.slane %v2733, %v2736
  %v2738 = vmul.f32 %v2685, %v2737
  %v2739 = vmul.f32 %v2686, %v2737
  %v2740 = vadd.f32 %v2731, %v2738
  %v2741 = vadd.f32 %v2732, %v2739
  %v2742 = vld [vmem:[%s3 + $0xd] sm:$0x1]
  %v2743 = vlaneseq
  %v2744 = vshrl.u32 %v2743, 7
  %v2745 = vsub.s32 0, %v2744
  %v2746 = vrot.slane %v2742, %v2745
  %v2747 = vmul.f32 %v1634, %v2746
  %v2748 = vmul.f32 %v1635, %v2746
  %v2749 = vadd.f32 %v2740, %v2747
  %v2750 = vadd.f32 %v2741, %v2748
  %v2751 = vld [vmem:[%s3 + $0xe] sm:$0x1]
  %v2752 = vlaneseq
  %v2753 = vshrl.u32 %v2752, 7
  %v2754 = vsub.s32 0, %v2753
  %v2755 = vrot.slane %v2751, %v2754
  %v2756 = vmul.f32 %v2687, %v2755
  %v2757 = vmul.f32 %v2688, %v2755
  %v2758 = vadd.f32 %v2749, %v2756
  %v2759 = vadd.f32 %v2750, %v2757
  %v2760 = vld [vmem:[%s3 + $0xf] sm:$0x1]
  %v2761 = vlaneseq
  %v2762 = vshrl.u32 %v2761, 7
  %v2763 = vsub.s32 0, %v2762
  %v2764 = vrot.slane %v2760, %v2763
  %v2765 = vmul.f32 %v2702, %v2764
  %v2766 = vmul.f32 %v2703, %v2764
  %v2767 = vadd.f32 %v2758, %v2765
  %v2768 = vadd.f32 %v2759, %v2766
  %v2769 = vld [vmem:[%s3 + $0x10] sm:$0x1]
  %v2770 = vlaneseq
  %v2771 = vshrl.u32 %v2770, 7
  %v2772 = vsub.s32 0, %v2771
  %v2773 = vrot.slane %v2769, %v2772
  %v2774 = vmul.f32 %v2651, %v2773
  %v2775 = vmul.f32 %v2655, %v2773
  %v2776 = vadd.f32 %v2767, %v2774
  %v2777 = vadd.f32 %v2768, %v2775
  %v2778 = vld [vmem:[%s3 + $0x11] sm:$0x1]
  %v2779 = vlaneseq
  %v2780 = vshrl.u32 %v2779, 7
  %v2781 = vsub.s32 0, %v2780
  %v2782 = vrot.slane %v2778, %v2781
  %v2783 = vmul.f32 %v2704, %v2782
  %v2784 = vmul.f32 %v2705, %v2782
  %v2785 = vadd.f32 %v2776, %v2783
  %v2786 = vadd.f32 %v2777, %v2784
  %v2787 = vld [vmem:[%s3 + $0x2d] sm:$0x1]
  %v2788 = vlaneseq
  %v2789 = vshrl.u32 %v2788, 7
  %v2790 = vsub.s32 0, %v2789
  %v2791 = vrot.slane %v2787, %v2790
  %v2792 = vmul.f32 %v2669, %v2791
  %v2793 = vmul.f32 %v2670, %v2791
  %v2794 = vadd.f32 %v2152, %v2792
  %v2795 = vadd.f32 %v2153, %v2793
  %v2796 = vld [vmem:[%s3 + $0x2e] sm:$0x1]
  %v2797 = vlaneseq
  %v2798 = vshrl.u32 %v2797, 7
  %v2799 = vsub.s32 0, %v2798
  %v2800 = vrot.slane %v2796, %v2799
  %v2801 = vmul.f32 %v2649, %v2800
  %v2802 = vmul.f32 %v2646, %v2800
  %v2803 = vadd.f32 %v2794, %v2801
  %v2804 = vadd.f32 %v2795, %v2802
  %v2805 = vld [vmem:[%s3 + $0x2f] sm:$0x1]
  %v2806 = vlaneseq
  %v2807 = vshrl.u32 %v2806, 7
  %v2808 = vsub.s32 0, %v2807
  %v2809 = vrot.slane %v2805, %v2808
  %v2810 = vmul.f32 %v2671, %v2809
  %v2811 = vmul.f32 %v2672, %v2809
  %v2812 = vadd.f32 %v2803, %v2810
  %v2813 = vadd.f32 %v2804, %v2811
  %v2814 = vld [vmem:[%s3 + $0x30] sm:$0x1]
  %v2815 = vlaneseq
  %v2816 = vshrl.u32 %v2815, 7
  %v2817 = vsub.s32 0, %v2816
  %v2818 = vrot.slane %v2814, %v2817
  %v2819 = vmul.f32 %v2685, %v2818
  %v2820 = vmul.f32 %v2686, %v2818
  %v2821 = vadd.f32 %v2812, %v2819
  %v2822 = vadd.f32 %v2813, %v2820
  %v2823 = vld [vmem:[%s3 + $0x31] sm:$0x1]
  %v2824 = vlaneseq
  %v2825 = vshrl.u32 %v2824, 7
  %v2826 = vsub.s32 0, %v2825
  %v2827 = vrot.slane %v2823, %v2826
  %v2828 = vmul.f32 %v1634, %v2827
  %v2829 = vmul.f32 %v1635, %v2827
  %v2830 = vadd.f32 %v2821, %v2828
  %v2831 = vadd.f32 %v2822, %v2829
  %v2832 = vld [vmem:[%s3 + $0x32] sm:$0x1]
  %v2833 = vlaneseq
  %v2834 = vshrl.u32 %v2833, 7
  %v2835 = vsub.s32 0, %v2834
  %v2836 = vrot.slane %v2832, %v2835
  %v2837 = vmul.f32 %v2687, %v2836
  %v2838 = vmul.f32 %v2688, %v2836
  %v2839 = vadd.f32 %v2830, %v2837
  %v2840 = vadd.f32 %v2831, %v2838
  %v2841 = vld [vmem:[%s3 + $0x33] sm:$0x1]
  %v2842 = vlaneseq
  %v2843 = vshrl.u32 %v2842, 7
  %v2844 = vsub.s32 0, %v2843
  %v2845 = vrot.slane %v2841, %v2844
  %v2846 = vmul.f32 %v2702, %v2845
  %v2847 = vmul.f32 %v2703, %v2845
  %v2848 = vadd.f32 %v2839, %v2846
  %v2849 = vadd.f32 %v2840, %v2847
  %v2850 = vld [vmem:[%s3 + $0x34] sm:$0x1]
  %v2851 = vlaneseq
  %v2852 = vshrl.u32 %v2851, 7
  %v2853 = vsub.s32 0, %v2852
  %v2854 = vrot.slane %v2850, %v2853
  %v2855 = vmul.f32 %v2651, %v2854
  %v2856 = vmul.f32 %v2655, %v2854
  %v2857 = vadd.f32 %v2848, %v2855
  %v2858 = vadd.f32 %v2849, %v2856
  %v2859 = vld [vmem:[%s3 + $0x35] sm:$0x1]
  %v2860 = vlaneseq
  %v2861 = vshrl.u32 %v2860, 7
  %v2862 = vsub.s32 0, %v2861
  %v2863 = vrot.slane %v2859, %v2862
  %v2864 = vmul.f32 %v2704, %v2863
  %v2865 = vmul.f32 %v2705, %v2863
  %v2866 = vadd.f32 %v2857, %v2864
  %v2867 = vadd.f32 %v2858, %v2865
  %v2868 = vld [vmem:[%s3 + $0x51] sm:$0x1]
  %v2869 = vlaneseq
  %v2870 = vshrl.u32 %v2869, 7
  %v2871 = vsub.s32 0, %v2870
  %v2872 = vrot.slane %v2868, %v2871
  %v2873 = vmul.f32 %v2669, %v2872
  %v2874 = vmul.f32 %v2670, %v2872
  %v2875 = vadd.f32 %v2233, %v2873
  %v2876 = vadd.f32 %v2234, %v2874
  %v2877 = vld [vmem:[%s3 + $0x52] sm:$0x1]
  %v2878 = vlaneseq
  %v2879 = vshrl.u32 %v2878, 7
  %v2880 = vsub.s32 0, %v2879
  %v2881 = vrot.slane %v2877, %v2880
  %v2882 = vmul.f32 %v2649, %v2881
  %v2883 = vmul.f32 %v2646, %v2881
  %v2884 = vadd.f32 %v2875, %v2882
  %v2885 = vadd.f32 %v2876, %v2883
  %v2886 = vld [vmem:[%s3 + $0x53] sm:$0x1]
  %v2887 = vlaneseq
  %v2888 = vshrl.u32 %v2887, 7
  %v2889 = vsub.s32 0, %v2888
  %v2890 = vrot.slane %v2886, %v2889
  %v2891 = vmul.f32 %v2671, %v2890
  %v2892 = vmul.f32 %v2672, %v2890
  %v2893 = vadd.f32 %v2884, %v2891
  %v2894 = vadd.f32 %v2885, %v2892
  %v2895 = vld [vmem:[%s3 + $0x54] sm:$0x1]
  %v2896 = vlaneseq
  %v2897 = vshrl.u32 %v2896, 7
  %v2898 = vsub.s32 0, %v2897
  %v2899 = vrot.slane %v2895, %v2898
  %v2900 = vmul.f32 %v2685, %v2899
  %v2901 = vmul.f32 %v2686, %v2899
  %v2902 = vadd.f32 %v2893, %v2900
  %v2903 = vadd.f32 %v2894, %v2901
  %v2904 = vld [vmem:[%s3 + $0x55] sm:$0x1]
  %v2905 = vlaneseq
  %v2906 = vshrl.u32 %v2905, 7
  %v2907 = vsub.s32 0, %v2906
  %v2908 = vrot.slane %v2904, %v2907
  %v2909 = vmul.f32 %v1634, %v2908
  %v2910 = vmul.f32 %v1635, %v2908
  %v2911 = vadd.f32 %v2902, %v2909
  %v2912 = vadd.f32 %v2903, %v2910
  %v2913 = vld [vmem:[%s3 + $0x56] sm:$0x1]
  %v2914 = vlaneseq
  %v2915 = vshrl.u32 %v2914, 7
  %v2916 = vsub.s32 0, %v2915
  %v2917 = vrot.slane %v2913, %v2916
  %v2918 = vmul.f32 %v2687, %v2917
  %v2919 = vmul.f32 %v2688, %v2917
  %v2920 = vadd.f32 %v2911, %v2918
  %v2921 = vadd.f32 %v2912, %v2919
  %v2922 = vld [vmem:[%s3 + $0x57] sm:$0x1]
  %v2923 = vlaneseq
  %v2924 = vshrl.u32 %v2923, 7
  %v2925 = vsub.s32 0, %v2924
  %v2926 = vrot.slane %v2922, %v2925
  %v2927 = vmul.f32 %v2702, %v2926
  %v2928 = vmul.f32 %v2703, %v2926
  %v2929 = vadd.f32 %v2920, %v2927
  %v2930 = vadd.f32 %v2921, %v2928
  %v2931 = vld [vmem:[%s3 + $0x58] sm:$0x1]
  %v2932 = vlaneseq
  %v2933 = vshrl.u32 %v2932, 7
  %v2934 = vsub.s32 0, %v2933
  %v2935 = vrot.slane %v2931, %v2934
  %v2936 = vmul.f32 %v2651, %v2935
  %v2937 = vmul.f32 %v2655, %v2935
  %v2938 = vadd.f32 %v2929, %v2936
  %v2939 = vadd.f32 %v2930, %v2937
  %v2940 = vld [vmem:[%s3 + $0x59] sm:$0x1]
  %v2941 = vlaneseq
  %v2942 = vshrl.u32 %v2941, 7
  %v2943 = vsub.s32 0, %v2942
  %v2944 = vrot.slane %v2940, %v2943
  %v2945 = vmul.f32 %v2704, %v2944
  %v2946 = vmul.f32 %v2705, %v2944
  %v2947 = vadd.f32 %v2938, %v2945
  %v2948 = vadd.f32 %v2939, %v2946
  %v2949 = vld [vmem:[%s3 + $0x75] sm:$0x1]
  %v2950 = vlaneseq
  %v2951 = vshrl.u32 %v2950, 7
  %v2952 = vsub.s32 0, %v2951
  %v2953 = vrot.slane %v2949, %v2952
  %v2954 = vmul.f32 %v2669, %v2953
  %v2955 = vmul.f32 %v2670, %v2953
  %v2956 = vadd.f32 %v2314, %v2954
  %v2957 = vadd.f32 %v2315, %v2955
  %v2958 = vld [vmem:[%s3 + $0x76] sm:$0x1]
  %v2959 = vlaneseq
  %v2960 = vshrl.u32 %v2959, 7
  %v2961 = vsub.s32 0, %v2960
  %v2962 = vrot.slane %v2958, %v2961
  %v2963 = vmul.f32 %v2649, %v2962
  %v2964 = vmul.f32 %v2646, %v2962
  %v2965 = vadd.f32 %v2956, %v2963
  %v2966 = vadd.f32 %v2957, %v2964
  %v2967 = vld [vmem:[%s3 + $0x77] sm:$0x1]
  %v2968 = vlaneseq
  %v2969 = vshrl.u32 %v2968, 7
  %v2970 = vsub.s32 0, %v2969
  %v2971 = vrot.slane %v2967, %v2970
  %v2972 = vmul.f32 %v2671, %v2971
  %v2973 = vmul.f32 %v2672, %v2971
  %v2974 = vadd.f32 %v2965, %v2972
  %v2975 = vadd.f32 %v2966, %v2973
  %v2976 = vld [vmem:[%s3 + $0x78] sm:$0x1]
  %v2977 = vlaneseq
  %v2978 = vshrl.u32 %v2977, 7
  %v2979 = vsub.s32 0, %v2978
  %v2980 = vrot.slane %v2976, %v2979
  %v2981 = vmul.f32 %v2685, %v2980
  %v2982 = vmul.f32 %v2686, %v2980
  %v2983 = vadd.f32 %v2974, %v2981
  %v2984 = vadd.f32 %v2975, %v2982
  %v2985 = vld [vmem:[%s3 + $0x79] sm:$0x1]
  %v2986 = vlaneseq
  %v2987 = vshrl.u32 %v2986, 7
  %v2988 = vsub.s32 0, %v2987
  %v2989 = vrot.slane %v2985, %v2988
  %v2990 = vmul.f32 %v1634, %v2989
  %v2991 = vmul.f32 %v1635, %v2989
  %v2992 = vadd.f32 %v2983, %v2990
  %v2993 = vadd.f32 %v2984, %v2991
  %v2994 = vld [vmem:[%s3 + $0x7a] sm:$0x1]
  %v2995 = vlaneseq
  %v2996 = vshrl.u32 %v2995, 7
  %v2997 = vsub.s32 0, %v2996
  %v2998 = vrot.slane %v2994, %v2997
  %v2999 = vmul.f32 %v2687, %v2998
  %v3000 = vmul.f32 %v2688, %v2998
  %v3001 = vadd.f32 %v2992, %v2999
  %v3002 = vadd.f32 %v2993, %v3000
  %v3003 = vld [vmem:[%s3 + $0x7b] sm:$0x1]
  %v3004 = vlaneseq
  %v3005 = vshrl.u32 %v3004, 7
  %v3006 = vsub.s32 0, %v3005
  %v3007 = vrot.slane %v3003, %v3006
  %v3008 = vmul.f32 %v2702, %v3007
  %v3009 = vmul.f32 %v2703, %v3007
  %v3010 = vadd.f32 %v3001, %v3008
  %v3011 = vadd.f32 %v3002, %v3009
  %v3012 = vld [vmem:[%s3 + $0x7c] sm:$0x1]
  %v3013 = vlaneseq
  %v3014 = vshrl.u32 %v3013, 7
  %v3015 = vsub.s32 0, %v3014
  %v3016 = vrot.slane %v3012, %v3015
  %v3017 = vmul.f32 %v2651, %v3016
  %v3018 = vmul.f32 %v2655, %v3016
  %v3019 = vadd.f32 %v3010, %v3017
  %v3020 = vadd.f32 %v3011, %v3018
  %v3021 = vld [vmem:[%s3 + $0x7d] sm:$0x1]
  %v3022 = vlaneseq
  %v3023 = vshrl.u32 %v3022, 7
  %v3024 = vsub.s32 0, %v3023
  %v3025 = vrot.slane %v3021, %v3024
  %v3026 = vmul.f32 %v2704, %v3025
  %v3027 = vmul.f32 %v2705, %v3025
  %v3028 = vadd.f32 %v3019, %v3026
  %v3029 = vadd.f32 %v3020, %v3027
  %v3030 = vld [vmem:[%s3 + $0x99] sm:$0x1]
  %v3031 = vlaneseq
  %v3032 = vshrl.u32 %v3031, 7
  %v3033 = vsub.s32 0, %v3032
  %v3034 = vrot.slane %v3030, %v3033
  %v3035 = vmul.f32 %v2669, %v3034
  %v3036 = vmul.f32 %v2670, %v3034
  %v3037 = vadd.f32 %v2395, %v3035
  %v3038 = vadd.f32 %v2396, %v3036
  %v3039 = vld [vmem:[%s3 + $0x9a] sm:$0x1]
  %v3040 = vlaneseq
  %v3041 = vshrl.u32 %v3040, 7
  %v3042 = vsub.s32 0, %v3041
  %v3043 = vrot.slane %v3039, %v3042
  %v3044 = vmul.f32 %v2649, %v3043
  %v3045 = vmul.f32 %v2646, %v3043
  %v3046 = vadd.f32 %v3037, %v3044
  %v3047 = vadd.f32 %v3038, %v3045
  %v3048 = vld [vmem:[%s3 + $0x9b] sm:$0x1]
  %v3049 = vlaneseq
  %v3050 = vshrl.u32 %v3049, 7
  %v3051 = vsub.s32 0, %v3050
  %v3052 = vrot.slane %v3048, %v3051
  %v3053 = vmul.f32 %v2671, %v3052
  %v3054 = vmul.f32 %v2672, %v3052
  %v3055 = vadd.f32 %v3046, %v3053
  %v3056 = vadd.f32 %v3047, %v3054
  %v3057 = vld [vmem:[%s3 + $0x9c] sm:$0x1]
  %v3058 = vlaneseq
  %v3059 = vshrl.u32 %v3058, 7
  %v3060 = vsub.s32 0, %v3059
  %v3061 = vrot.slane %v3057, %v3060
  %v3062 = vmul.f32 %v2685, %v3061
  %v3063 = vmul.f32 %v2686, %v3061
  %v3064 = vadd.f32 %v3055, %v3062
  %v3065 = vadd.f32 %v3056, %v3063
  %v3066 = vld [vmem:[%s3 + $0x9d] sm:$0x1]
  %v3067 = vlaneseq
  %v3068 = vshrl.u32 %v3067, 7
  %v3069 = vsub.s32 0, %v3068
  %v3070 = vrot.slane %v3066, %v3069
  %v3071 = vmul.f32 %v1634, %v3070
  %v3072 = vmul.f32 %v1635, %v3070
  %v3073 = vadd.f32 %v3064, %v3071
  %v3074 = vadd.f32 %v3065, %v3072
  %v3075 = vld [vmem:[%s3 + $0x9e] sm:$0x1]
  %v3076 = vlaneseq
  %v3077 = vshrl.u32 %v3076, 7
  %v3078 = vsub.s32 0, %v3077
  %v3079 = vrot.slane %v3075, %v3078
  %v3080 = vmul.f32 %v2687, %v3079
  %v3081 = vmul.f32 %v2688, %v3079
  %v3082 = vadd.f32 %v3073, %v3080
  %v3083 = vadd.f32 %v3074, %v3081
  %v3084 = vld [vmem:[%s3 + $0x9f] sm:$0x1]
  %v3085 = vlaneseq
  %v3086 = vshrl.u32 %v3085, 7
  %v3087 = vsub.s32 0, %v3086
  %v3088 = vrot.slane %v3084, %v3087
  %v3089 = vmul.f32 %v2702, %v3088
  %v3090 = vmul.f32 %v2703, %v3088
  %v3091 = vadd.f32 %v3082, %v3089
  %v3092 = vadd.f32 %v3083, %v3090
  %v3093 = vld [vmem:[%s3 + $0xa0] sm:$0x1]
  %v3094 = vlaneseq
  %v3095 = vshrl.u32 %v3094, 7
  %v3096 = vsub.s32 0, %v3095
  %v3097 = vrot.slane %v3093, %v3096
  %v3098 = vmul.f32 %v2651, %v3097
  %v3099 = vmul.f32 %v2655, %v3097
  %v3100 = vadd.f32 %v3091, %v3098
  %v3101 = vadd.f32 %v3092, %v3099
  %v3102 = vld [vmem:[%s3 + $0xa1] sm:$0x1]
  %v3103 = vlaneseq
  %v3104 = vshrl.u32 %v3103, 7
  %v3105 = vsub.s32 0, %v3104
  %v3106 = vrot.slane %v3102, %v3105
  %v3107 = vmul.f32 %v2704, %v3106
  %v3108 = vmul.f32 %v2705, %v3106
  %v3109 = vadd.f32 %v3100, %v3107
  %v3110 = vadd.f32 %v3101, %v3108
  %v3111 = vld [vmem:[%s3 + $0xbd] sm:$0x1]
  %v3112 = vlaneseq
  %v3113 = vshrl.u32 %v3112, 7
  %v3114 = vsub.s32 0, %v3113
  %v3115 = vrot.slane %v3111, %v3114
  %v3116 = vmul.f32 %v2669, %v3115
  %v3117 = vmul.f32 %v2670, %v3115
  %v3118 = vadd.f32 %v2476, %v3116
  %v3119 = vadd.f32 %v2477, %v3117
  %v3120 = vld [vmem:[%s3 + $0xbe] sm:$0x1]
  %v3121 = vlaneseq
  %v3122 = vshrl.u32 %v3121, 7
  %v3123 = vsub.s32 0, %v3122
  %v3124 = vrot.slane %v3120, %v3123
  %v3125 = vmul.f32 %v2649, %v3124
  %v3126 = vmul.f32 %v2646, %v3124
  %v3127 = vadd.f32 %v3118, %v3125
  %v3128 = vadd.f32 %v3119, %v3126
  %v3129 = vld [vmem:[%s3 + $0xbf] sm:$0x1]
  %v3130 = vlaneseq
  %v3131 = vshrl.u32 %v3130, 7
  %v3132 = vsub.s32 0, %v3131
  %v3133 = vrot.slane %v3129, %v3132
  %v3134 = vmul.f32 %v2671, %v3133
  %v3135 = vmul.f32 %v2672, %v3133
  %v3136 = vadd.f32 %v3127, %v3134
  %v3137 = vadd.f32 %v3128, %v3135
  %v3138 = vld [vmem:[%s3 + $0xc0] sm:$0x1]
  %v3139 = vlaneseq
  %v3140 = vshrl.u32 %v3139, 7
  %v3141 = vsub.s32 0, %v3140
  %v3142 = vrot.slane %v3138, %v3141
  %v3143 = vmul.f32 %v2685, %v3142
  %v3144 = vmul.f32 %v2686, %v3142
  %v3145 = vadd.f32 %v3136, %v3143
  %v3146 = vadd.f32 %v3137, %v3144
  %v3147 = vld [vmem:[%s3 + $0xc1] sm:$0x1]
  %v3148 = vlaneseq
  %v3149 = vshrl.u32 %v3148, 7
  %v3150 = vsub.s32 0, %v3149
  %v3151 = vrot.slane %v3147, %v3150
  %v3152 = vmul.f32 %v1634, %v3151
  %v3153 = vmul.f32 %v1635, %v3151
  %v3154 = vadd.f32 %v3145, %v3152
  %v3155 = vadd.f32 %v3146, %v3153
  %v3156 = vld [vmem:[%s3 + $0xc2] sm:$0x1]
  %v3157 = vlaneseq
  %v3158 = vshrl.u32 %v3157, 7
  %v3159 = vsub.s32 0, %v3158
  %v3160 = vrot.slane %v3156, %v3159
  %v3161 = vmul.f32 %v2687, %v3160
  %v3162 = vmul.f32 %v2688, %v3160
  %v3163 = vadd.f32 %v3154, %v3161
  %v3164 = vadd.f32 %v3155, %v3162
  %v3165 = vld [vmem:[%s3 + $0xc3] sm:$0x1]
  %v3166 = vlaneseq
  %v3167 = vshrl.u32 %v3166, 7
  %v3168 = vsub.s32 0, %v3167
  %v3169 = vrot.slane %v3165, %v3168
  %v3170 = vmul.f32 %v2702, %v3169
  %v3171 = vmul.f32 %v2703, %v3169
  %v3172 = vadd.f32 %v3163, %v3170
  %v3173 = vadd.f32 %v3164, %v3171
  %v3174 = vld [vmem:[%s3 + $0xc4] sm:$0x1]
  %v3175 = vlaneseq
  %v3176 = vshrl.u32 %v3175, 7
  %v3177 = vsub.s32 0, %v3176
  %v3178 = vrot.slane %v3174, %v3177
  %v3179 = vmul.f32 %v2651, %v3178
  %v3180 = vmul.f32 %v2655, %v3178
  %v3181 = vadd.f32 %v3172, %v3179
  %v3182 = vadd.f32 %v3173, %v3180
  %v3183 = vld [vmem:[%s3 + $0xc5] sm:$0x1]
  %v3184 = vlaneseq
  %v3185 = vshrl.u32 %v3184, 7
  %v3186 = vsub.s32 0, %v3185
  %v3187 = vrot.slane %v3183, %v3186
  %v3188 = vmul.f32 %v2704, %v3187
  %v3189 = vmul.f32 %v2705, %v3187
  %v3190 = vadd.f32 %v3181, %v3188
  %v3191 = vadd.f32 %v3182, %v3189
  %v3192 = vld [vmem:[%s3 + $0xe1] sm:$0x1]
  %v3193 = vlaneseq
  %v3194 = vshrl.u32 %v3193, 7
  %v3195 = vsub.s32 0, %v3194
  %v3196 = vrot.slane %v3192, %v3195
  %v3197 = vmul.f32 %v2669, %v3196
  %v3198 = vmul.f32 %v2670, %v3196
  %v3199 = vadd.f32 %v2557, %v3197
  %v3200 = vadd.f32 %v2558, %v3198
  %v3201 = vld [vmem:[%s3 + $0xe2] sm:$0x1]
  %v3202 = vlaneseq
  %v3203 = vshrl.u32 %v3202, 7
  %v3204 = vsub.s32 0, %v3203
  %v3205 = vrot.slane %v3201, %v3204
  %v3206 = vmul.f32 %v2649, %v3205
  %v3207 = vmul.f32 %v2646, %v3205
  %v3208 = vadd.f32 %v3199, %v3206
  %v3209 = vadd.f32 %v3200, %v3207
  %v3210 = vld [vmem:[%s3 + $0xe3] sm:$0x1]
  %v3211 = vlaneseq
  %v3212 = vshrl.u32 %v3211, 7
  %v3213 = vsub.s32 0, %v3212
  %v3214 = vrot.slane %v3210, %v3213
  %v3215 = vmul.f32 %v2671, %v3214
  %v3216 = vmul.f32 %v2672, %v3214
  %v3217 = vadd.f32 %v3208, %v3215
  %v3218 = vadd.f32 %v3209, %v3216
  %v3219 = vld [vmem:[%s3 + $0xe4] sm:$0x1]
  %v3220 = vlaneseq
  %v3221 = vshrl.u32 %v3220, 7
  %v3222 = vsub.s32 0, %v3221
  %v3223 = vrot.slane %v3219, %v3222
  %v3224 = vmul.f32 %v2685, %v3223
  %v3225 = vmul.f32 %v2686, %v3223
  %v3226 = vadd.f32 %v3217, %v3224
  %v3227 = vadd.f32 %v3218, %v3225
  %v3228 = vld [vmem:[%s3 + $0xe5] sm:$0x1]
  %v3229 = vlaneseq
  %v3230 = vshrl.u32 %v3229, 7
  %v3231 = vsub.s32 0, %v3230
  %v3232 = vrot.slane %v3228, %v3231
  %v3233 = vmul.f32 %v1634, %v3232
  %v3234 = vmul.f32 %v1635, %v3232
  %v3235 = vadd.f32 %v3226, %v3233
  %v3236 = vadd.f32 %v3227, %v3234
  %v3237 = vld [vmem:[%s3 + $0xe6] sm:$0x1]
  %v3238 = vlaneseq
  %v3239 = vshrl.u32 %v3238, 7
  %v3240 = vsub.s32 0, %v3239
  %v3241 = vrot.slane %v3237, %v3240
  %v3242 = vmul.f32 %v2687, %v3241
  %v3243 = vmul.f32 %v2688, %v3241
  %v3244 = vadd.f32 %v3235, %v3242
  %v3245 = vadd.f32 %v3236, %v3243
  %v3246 = vld [vmem:[%s3 + $0xe7] sm:$0x1]
  %v3247 = vlaneseq
  %v3248 = vshrl.u32 %v3247, 7
  %v3249 = vsub.s32 0, %v3248
  %v3250 = vrot.slane %v3246, %v3249
  %v3251 = vmul.f32 %v2702, %v3250
  %v3252 = vmul.f32 %v2703, %v3250
  %v3253 = vadd.f32 %v3244, %v3251
  %v3254 = vadd.f32 %v3245, %v3252
  %v3255 = vld [vmem:[%s3 + $0xe8] sm:$0x1]
  %v3256 = vlaneseq
  %v3257 = vshrl.u32 %v3256, 7
  %v3258 = vsub.s32 0, %v3257
  %v3259 = vrot.slane %v3255, %v3258
  %v3260 = vmul.f32 %v2651, %v3259
  %v3261 = vmul.f32 %v2655, %v3259
  %v3262 = vadd.f32 %v3253, %v3260
  %v3263 = vadd.f32 %v3254, %v3261
  %v3264 = vld [vmem:[%s3 + $0xe9] sm:$0x1]
  %v3265 = vlaneseq
  %v3266 = vshrl.u32 %v3265, 7
  %v3267 = vsub.s32 0, %v3266
  %v3268 = vrot.slane %v3264, %v3267
  %v3269 = vmul.f32 %v2704, %v3268
  %v3270 = vmul.f32 %v2705, %v3268
  %v3271 = vadd.f32 %v3262, %v3269
  %v3272 = vadd.f32 %v3263, %v3270
  %v3273 = vld [vmem:[%s3 + $0x105] sm:$0x1]
  %v3274 = vlaneseq
  %v3275 = vshrl.u32 %v3274, 7
  %v3276 = vsub.s32 0, %v3275
  %v3277 = vrot.slane %v3273, %v3276
  %v3278 = vmul.f32 %v2669, %v3277
  %v3279 = vmul.f32 %v2670, %v3277
  %v3280 = vadd.f32 %v2638, %v3278
  %v3281 = vadd.f32 %v2639, %v3279
  %v3282 = vld [vmem:[%s3 + $0x106] sm:$0x1]
  %v3283 = vlaneseq
  %v3284 = vshrl.u32 %v3283, 7
  %v3285 = vsub.s32 0, %v3284
  %v3286 = vrot.slane %v3282, %v3285
  %v3287 = vmul.f32 %v2649, %v3286
  %v3288 = vmul.f32 %v2646, %v3286
  %v3289 = vadd.f32 %v3280, %v3287
  %v3290 = vadd.f32 %v3281, %v3288
  %v3291 = vld [vmem:[%s3 + $0x107] sm:$0x1]
  %v3292 = vlaneseq
  %v3293 = vshrl.u32 %v3292, 7
  %v3294 = vsub.s32 0, %v3293
  %v3295 = vrot.slane %v3291, %v3294
  %v3296 = vmul.f32 %v2671, %v3295
  %v3297 = vmul.f32 %v2672, %v3295
  %v3298 = vadd.f32 %v3289, %v3296
  %v3299 = vadd.f32 %v3290, %v3297
  %v3300 = vld [vmem:[%s3 + $0x108] sm:$0x1]
  %v3301 = vlaneseq
  %v3302 = vshrl.u32 %v3301, 7
  %v3303 = vsub.s32 0, %v3302
  %v3304 = vrot.slane %v3300, %v3303
  %v3305 = vmul.f32 %v2685, %v3304
  %v3306 = vmul.f32 %v2686, %v3304
  %v3307 = vadd.f32 %v3298, %v3305
  %v3308 = vadd.f32 %v3299, %v3306
  %v3309 = vld [vmem:[%s3 + $0x109] sm:$0x1]
  %v3310 = vlaneseq
  %v3311 = vshrl.u32 %v3310, 7
  %v3312 = vsub.s32 0, %v3311
  %v3313 = vrot.slane %v3309, %v3312
  %v3314 = vmul.f32 %v1634, %v3313
  %v3315 = vmul.f32 %v1635, %v3313
  %v3316 = vadd.f32 %v3307, %v3314
  %v3317 = vadd.f32 %v3308, %v3315
  %v3318 = vld [vmem:[%s3 + $0x10a] sm:$0x1]
  %v3319 = vlaneseq
  %v3320 = vshrl.u32 %v3319, 7
  %v3321 = vsub.s32 0, %v3320
  %v3322 = vrot.slane %v3318, %v3321
  %v3323 = vmul.f32 %v2687, %v3322
  %v3324 = vmul.f32 %v2688, %v3322
  %v3325 = vadd.f32 %v3316, %v3323
  %v3326 = vadd.f32 %v3317, %v3324
  %v3327 = vld [vmem:[%s3 + $0x10b] sm:$0x1]
  %v3328 = vlaneseq
  %v3329 = vshrl.u32 %v3328, 7
  %v3330 = vsub.s32 0, %v3329
  %v3331 = vrot.slane %v3327, %v3330
  %v3332 = vmul.f32 %v2702, %v3331
  %v3333 = vmul.f32 %v2703, %v3331
  %v3334 = vadd.f32 %v3325, %v3332
  %v3335 = vadd.f32 %v3326, %v3333
  %v3336 = vld [vmem:[%s3 + $0x10c] sm:$0x1]
  %v3337 = vlaneseq
  %v3338 = vshrl.u32 %v3337, 7
  %v3339 = vsub.s32 0, %v3338
  %v3340 = vrot.slane %v3336, %v3339
  %v3341 = vmul.f32 %v2651, %v3340
  %v3342 = vmul.f32 %v2655, %v3340
  %v3343 = vadd.f32 %v3334, %v3341
  %v3344 = vadd.f32 %v3335, %v3342
  %v3345 = vld [vmem:[%s3 + $0x10d] sm:$0x1]
  %v3346 = vlaneseq
  %v3347 = vshrl.u32 %v3346, 7
  %v3348 = vsub.s32 0, %v3347
  %v3349 = vrot.slane %v3345, %v3348
  %v3350 = vmul.f32 %v2704, %v3349
  %v3351 = vmul.f32 %v2705, %v3349
  %v3352 = vadd.f32 %v3343, %v3350
  %v3353 = vadd.f32 %v3344, %v3351
  %v3355 = vrot.slane %v1643, 1
  %v3358 = vrot.slane %v1643, 7
  %v3359 = vrot.slane %v1644, 7
  %v3360 = vsel %vm53, %v3358, %v3359
  %v3363 = vsel %vm53, %v3355, %v3358
  %v3364 = vrot.slane %v1644, 1
  %v3365 = vsel %vm60, %v3355, %v3364
  %v3369 = vsel %vm60, %v3364, %v3359
  %3371 = vrot.lane.b32.xlu0 %v3363, 1
  %v3372 = vpop.permute.xlu0 %3371
  %3373 = vrot.lane.b32.xlu0 %v3360, 1
  %v3374 = vpop.permute.xlu0 %3373
  %3377 = vrot.lane.b32.xlu0 %v3363, 127
  %v3378 = vpop.permute.xlu0 %3377
  %3379 = vrot.lane.b32.xlu0 %v3360, 127
  %v3380 = vpop.permute.xlu0 %3379
  %v3383 = vsel %vm43, %v3378, %v3372
  %v3384 = vsel %vm43, %v3380, %v3374
  %v3385 = vsel %vm44, %v3372, %v3378
  %v3386 = vsel %vm44, %v3374, %v3380
  %3387 = vrot.lane.b32.xlu0 %v1643, 1
  %v3388 = vpop.permute.xlu0 %3387
  %3389 = vrot.lane.b32.xlu0 %v1644, 1
  %v3390 = vpop.permute.xlu0 %3389
  %3393 = vrot.lane.b32.xlu0 %v1643, 127
  %v3394 = vpop.permute.xlu0 %3393
  %3395 = vrot.lane.b32.xlu0 %v1644, 127
  %v3396 = vpop.permute.xlu0 %3395
  %v3399 = vsel %vm43, %v3394, %v3388
  %v3400 = vsel %vm43, %v3396, %v3390
  %v3401 = vsel %vm44, %v3388, %v3394
  %v3402 = vsel %vm44, %v3390, %v3396
  %3404 = vrot.lane.b32.xlu0 %v3365, 1
  %v3405 = vpop.permute.xlu0 %3404
  %3406 = vrot.lane.b32.xlu0 %v3369, 1
  %v3407 = vpop.permute.xlu0 %3406
  %3410 = vrot.lane.b32.xlu0 %v3365, 127
  %v3411 = vpop.permute.xlu0 %3410
  %3412 = vrot.lane.b32.xlu0 %v3369, 127
  %v3413 = vpop.permute.xlu0 %3412
  %v3416 = vsel %vm43, %v3411, %v3405
  %v3417 = vsel %vm43, %v3413, %v3407
  %v3418 = vsel %vm44, %v3405, %v3411
  %v3419 = vsel %vm44, %v3407, %v3413
  %v3420 = vld [vmem:[%s3 + $0x12] sm:$0x1]
  %v3421 = vlaneseq
  %v3422 = vshrl.u32 %v3421, 7
  %v3423 = vsub.s32 0, %v3422
  %v3424 = vrot.slane %v3420, %v3423
  %v3425 = vmul.f32 %v3383, %v3424
  %v3426 = vmul.f32 %v3384, %v3424
  %v3427 = vadd.f32 %v2785, %v3425
  %v3428 = vadd.f32 %v2786, %v3426
  %v3429 = vld [vmem:[%s3 + $0x13] sm:$0x1]
  %v3430 = vlaneseq
  %v3431 = vshrl.u32 %v3430, 7
  %v3432 = vsub.s32 0, %v3431
  %v3433 = vrot.slane %v3429, %v3432
  %v3434 = vmul.f32 %v3363, %v3433
  %v3435 = vmul.f32 %v3360, %v3433
  %v3436 = vadd.f32 %v3427, %v3434
  %v3437 = vadd.f32 %v3428, %v3435
  %v3438 = vld [vmem:[%s3 + $0x14] sm:$0x1]
  %v3439 = vlaneseq
  %v3440 = vshrl.u32 %v3439, 7
  %v3441 = vsub.s32 0, %v3440
  %v3442 = vrot.slane %v3438, %v3441
  %v3443 = vmul.f32 %v3385, %v3442
  %v3444 = vmul.f32 %v3386, %v3442
  %v3445 = vadd.f32 %v3436, %v3443
  %v3446 = vadd.f32 %v3437, %v3444
  %v3447 = vld [vmem:[%s3 + $0x15] sm:$0x1]
  %v3448 = vlaneseq
  %v3449 = vshrl.u32 %v3448, 7
  %v3450 = vsub.s32 0, %v3449
  %v3451 = vrot.slane %v3447, %v3450
  %v3452 = vmul.f32 %v3399, %v3451
  %v3453 = vmul.f32 %v3400, %v3451
  %v3454 = vadd.f32 %v3445, %v3452
  %v3455 = vadd.f32 %v3446, %v3453
  %v3456 = vld [vmem:[%s3 + $0x16] sm:$0x1]
  %v3457 = vlaneseq
  %v3458 = vshrl.u32 %v3457, 7
  %v3459 = vsub.s32 0, %v3458
  %v3460 = vrot.slane %v3456, %v3459
  %v3461 = vmul.f32 %v1643, %v3460
  %v3462 = vmul.f32 %v1644, %v3460
  %v3463 = vadd.f32 %v3454, %v3461
  %v3464 = vadd.f32 %v3455, %v3462
  %v3465 = vld [vmem:[%s3 + $0x17] sm:$0x1]
  %v3466 = vlaneseq
  %v3467 = vshrl.u32 %v3466, 7
  %v3468 = vsub.s32 0, %v3467
  %v3469 = vrot.slane %v3465, %v3468
  %v3470 = vmul.f32 %v3401, %v3469
  %v3471 = vmul.f32 %v3402, %v3469
  %v3472 = vadd.f32 %v3463, %v3470
  %v3473 = vadd.f32 %v3464, %v3471
  %v3474 = vld [vmem:[%s3 + $0x18] sm:$0x1]
  %v3475 = vlaneseq
  %v3476 = vshrl.u32 %v3475, 7
  %v3477 = vsub.s32 0, %v3476
  %v3478 = vrot.slane %v3474, %v3477
  %v3479 = vmul.f32 %v3416, %v3478
  %v3480 = vmul.f32 %v3417, %v3478
  %v3481 = vadd.f32 %v3472, %v3479
  %v3482 = vadd.f32 %v3473, %v3480
  %v3483 = vld [vmem:[%s3 + $0x19] sm:$0x1]
  %v3484 = vlaneseq
  %v3485 = vshrl.u32 %v3484, 7
  %v3486 = vsub.s32 0, %v3485
  %v3487 = vrot.slane %v3483, %v3486
  %v3488 = vmul.f32 %v3365, %v3487
  %v3489 = vmul.f32 %v3369, %v3487
  %v3490 = vadd.f32 %v3481, %v3488
  %v3491 = vadd.f32 %v3482, %v3489
  %v3492 = vld [vmem:[%s3 + $0x1a] sm:$0x1]
  %v3493 = vlaneseq
  %v3494 = vshrl.u32 %v3493, 7
  %v3495 = vsub.s32 0, %v3494
  %v3496 = vrot.slane %v3492, %v3495
  %v3497 = vmul.f32 %v3418, %v3496
  %v3498 = vmul.f32 %v3419, %v3496
  %v3499 = vadd.f32 %v3490, %v3497
  %v3500 = vadd.f32 %v3491, %v3498
  %v3501 = vld [vmem:[%s3 + $0x36] sm:$0x1]
  %v3502 = vlaneseq
  %v3503 = vshrl.u32 %v3502, 7
  %v3504 = vsub.s32 0, %v3503
  %v3505 = vrot.slane %v3501, %v3504
  %v3506 = vmul.f32 %v3383, %v3505
  %v3507 = vmul.f32 %v3384, %v3505
  %v3508 = vadd.f32 %v2866, %v3506
  %v3509 = vadd.f32 %v2867, %v3507
  %v3510 = vld [vmem:[%s3 + $0x37] sm:$0x1]
  %v3511 = vlaneseq
  %v3512 = vshrl.u32 %v3511, 7
  %v3513 = vsub.s32 0, %v3512
  %v3514 = vrot.slane %v3510, %v3513
  %v3515 = vmul.f32 %v3363, %v3514
  %v3516 = vmul.f32 %v3360, %v3514
  %v3517 = vadd.f32 %v3508, %v3515
  %v3518 = vadd.f32 %v3509, %v3516
  %v3519 = vld [vmem:[%s3 + $0x38] sm:$0x1]
  %v3520 = vlaneseq
  %v3521 = vshrl.u32 %v3520, 7
  %v3522 = vsub.s32 0, %v3521
  %v3523 = vrot.slane %v3519, %v3522
  %v3524 = vmul.f32 %v3385, %v3523
  %v3525 = vmul.f32 %v3386, %v3523
  %v3526 = vadd.f32 %v3517, %v3524
  %v3527 = vadd.f32 %v3518, %v3525
  %v3528 = vld [vmem:[%s3 + $0x39] sm:$0x1]
  %v3529 = vlaneseq
  %v3530 = vshrl.u32 %v3529, 7
  %v3531 = vsub.s32 0, %v3530
  %v3532 = vrot.slane %v3528, %v3531
  %v3533 = vmul.f32 %v3399, %v3532
  %v3534 = vmul.f32 %v3400, %v3532
  %v3535 = vadd.f32 %v3526, %v3533
  %v3536 = vadd.f32 %v3527, %v3534
  %v3537 = vld [vmem:[%s3 + $0x3a] sm:$0x1]
  %v3538 = vlaneseq
  %v3539 = vshrl.u32 %v3538, 7
  %v3540 = vsub.s32 0, %v3539
  %v3541 = vrot.slane %v3537, %v3540
  %v3542 = vmul.f32 %v1643, %v3541
  %v3543 = vmul.f32 %v1644, %v3541
  %v3544 = vadd.f32 %v3535, %v3542
  %v3545 = vadd.f32 %v3536, %v3543
  %v3546 = vld [vmem:[%s3 + $0x3b] sm:$0x1]
  %v3547 = vlaneseq
  %v3548 = vshrl.u32 %v3547, 7
  %v3549 = vsub.s32 0, %v3548
  %v3550 = vrot.slane %v3546, %v3549
  %v3551 = vmul.f32 %v3401, %v3550
  %v3552 = vmul.f32 %v3402, %v3550
  %v3553 = vadd.f32 %v3544, %v3551
  %v3554 = vadd.f32 %v3545, %v3552
  %v3555 = vld [vmem:[%s3 + $0x3c] sm:$0x1]
  %v3556 = vlaneseq
  %v3557 = vshrl.u32 %v3556, 7
  %v3558 = vsub.s32 0, %v3557
  %v3559 = vrot.slane %v3555, %v3558
  %v3560 = vmul.f32 %v3416, %v3559
  %v3561 = vmul.f32 %v3417, %v3559
  %v3562 = vadd.f32 %v3553, %v3560
  %v3563 = vadd.f32 %v3554, %v3561
  %v3564 = vld [vmem:[%s3 + $0x3d] sm:$0x1]
  %v3565 = vlaneseq
  %v3566 = vshrl.u32 %v3565, 7
  %v3567 = vsub.s32 0, %v3566
  %v3568 = vrot.slane %v3564, %v3567
  %v3569 = vmul.f32 %v3365, %v3568
  %v3570 = vmul.f32 %v3369, %v3568
  %v3571 = vadd.f32 %v3562, %v3569
  %v3572 = vadd.f32 %v3563, %v3570
  %v3573 = vld [vmem:[%s3 + $0x3e] sm:$0x1]
  %v3574 = vlaneseq
  %v3575 = vshrl.u32 %v3574, 7
  %v3576 = vsub.s32 0, %v3575
  %v3577 = vrot.slane %v3573, %v3576
  %v3578 = vmul.f32 %v3418, %v3577
  %v3579 = vmul.f32 %v3419, %v3577
  %v3580 = vadd.f32 %v3571, %v3578
  %v3581 = vadd.f32 %v3572, %v3579
  %v3582 = vld [vmem:[%s3 + $0x5a] sm:$0x1]
  %v3583 = vlaneseq
  %v3584 = vshrl.u32 %v3583, 7
  %v3585 = vsub.s32 0, %v3584
  %v3586 = vrot.slane %v3582, %v3585
  %v3587 = vmul.f32 %v3383, %v3586
  %v3588 = vmul.f32 %v3384, %v3586
  %v3589 = vadd.f32 %v2947, %v3587
  %v3590 = vadd.f32 %v2948, %v3588
  %v3591 = vld [vmem:[%s3 + $0x5b] sm:$0x1]
  %v3592 = vlaneseq
  %v3593 = vshrl.u32 %v3592, 7
  %v3594 = vsub.s32 0, %v3593
  %v3595 = vrot.slane %v3591, %v3594
  %v3596 = vmul.f32 %v3363, %v3595
  %v3597 = vmul.f32 %v3360, %v3595
  %v3598 = vadd.f32 %v3589, %v3596
  %v3599 = vadd.f32 %v3590, %v3597
  %v3600 = vld [vmem:[%s3 + $0x5c] sm:$0x1]
  %v3601 = vlaneseq
  %v3602 = vshrl.u32 %v3601, 7
  %v3603 = vsub.s32 0, %v3602
  %v3604 = vrot.slane %v3600, %v3603
  %v3605 = vmul.f32 %v3385, %v3604
  %v3606 = vmul.f32 %v3386, %v3604
  %v3607 = vadd.f32 %v3598, %v3605
  %v3608 = vadd.f32 %v3599, %v3606
  %v3609 = vld [vmem:[%s3 + $0x5d] sm:$0x1]
  %v3610 = vlaneseq
  %v3611 = vshrl.u32 %v3610, 7
  %v3612 = vsub.s32 0, %v3611
  %v3613 = vrot.slane %v3609, %v3612
  %v3614 = vmul.f32 %v3399, %v3613
  %v3615 = vmul.f32 %v3400, %v3613
  %v3616 = vadd.f32 %v3607, %v3614
  %v3617 = vadd.f32 %v3608, %v3615
  %v3618 = vld [vmem:[%s3 + $0x5e] sm:$0x1]
  %v3619 = vlaneseq
  %v3620 = vshrl.u32 %v3619, 7
  %v3621 = vsub.s32 0, %v3620
  %v3622 = vrot.slane %v3618, %v3621
  %v3623 = vmul.f32 %v1643, %v3622
  %v3624 = vmul.f32 %v1644, %v3622
  %v3625 = vadd.f32 %v3616, %v3623
  %v3626 = vadd.f32 %v3617, %v3624
  %v3627 = vld [vmem:[%s3 + $0x5f] sm:$0x1]
  %v3628 = vlaneseq
  %v3629 = vshrl.u32 %v3628, 7
  %v3630 = vsub.s32 0, %v3629
  %v3631 = vrot.slane %v3627, %v3630
  %v3632 = vmul.f32 %v3401, %v3631
  %v3633 = vmul.f32 %v3402, %v3631
  %v3634 = vadd.f32 %v3625, %v3632
  %v3635 = vadd.f32 %v3626, %v3633
  %v3636 = vld [vmem:[%s3 + $0x60] sm:$0x1]
  %v3637 = vlaneseq
  %v3638 = vshrl.u32 %v3637, 7
  %v3639 = vsub.s32 0, %v3638
  %v3640 = vrot.slane %v3636, %v3639
  %v3641 = vmul.f32 %v3416, %v3640
  %v3642 = vmul.f32 %v3417, %v3640
  %v3643 = vadd.f32 %v3634, %v3641
  %v3644 = vadd.f32 %v3635, %v3642
  %v3645 = vld [vmem:[%s3 + $0x61] sm:$0x1]
  %v3646 = vlaneseq
  %v3647 = vshrl.u32 %v3646, 7
  %v3648 = vsub.s32 0, %v3647
  %v3649 = vrot.slane %v3645, %v3648
  %v3650 = vmul.f32 %v3365, %v3649
  %v3651 = vmul.f32 %v3369, %v3649
  %v3652 = vadd.f32 %v3643, %v3650
  %v3653 = vadd.f32 %v3644, %v3651
  %v3654 = vld [vmem:[%s3 + $0x62] sm:$0x1]
  %v3655 = vlaneseq
  %v3656 = vshrl.u32 %v3655, 7
  %v3657 = vsub.s32 0, %v3656
  %v3658 = vrot.slane %v3654, %v3657
  %v3659 = vmul.f32 %v3418, %v3658
  %v3660 = vmul.f32 %v3419, %v3658
  %v3661 = vadd.f32 %v3652, %v3659
  %v3662 = vadd.f32 %v3653, %v3660
  %v3663 = vld [vmem:[%s3 + $0x7e] sm:$0x1]
  %v3664 = vlaneseq
  %v3665 = vshrl.u32 %v3664, 7
  %v3666 = vsub.s32 0, %v3665
  %v3667 = vrot.slane %v3663, %v3666
  %v3668 = vmul.f32 %v3383, %v3667
  %v3669 = vmul.f32 %v3384, %v3667
  %v3670 = vadd.f32 %v3028, %v3668
  %v3671 = vadd.f32 %v3029, %v3669
  %v3672 = vld [vmem:[%s3 + $0x7f] sm:$0x1]
  %v3673 = vlaneseq
  %v3674 = vshrl.u32 %v3673, 7
  %v3675 = vsub.s32 0, %v3674
  %v3676 = vrot.slane %v3672, %v3675
  %v3677 = vmul.f32 %v3363, %v3676
  %v3678 = vmul.f32 %v3360, %v3676
  %v3679 = vadd.f32 %v3670, %v3677
  %v3680 = vadd.f32 %v3671, %v3678
  %v3681 = vld [vmem:[%s3 + $0x80] sm:$0x1]
  %v3682 = vlaneseq
  %v3683 = vshrl.u32 %v3682, 7
  %v3684 = vsub.s32 0, %v3683
  %v3685 = vrot.slane %v3681, %v3684
  %v3686 = vmul.f32 %v3385, %v3685
  %v3687 = vmul.f32 %v3386, %v3685
  %v3688 = vadd.f32 %v3679, %v3686
  %v3689 = vadd.f32 %v3680, %v3687
  %v3690 = vld [vmem:[%s3 + $0x81] sm:$0x1]
  %v3691 = vlaneseq
  %v3692 = vshrl.u32 %v3691, 7
  %v3693 = vsub.s32 0, %v3692
  %v3694 = vrot.slane %v3690, %v3693
  %v3695 = vmul.f32 %v3399, %v3694
  %v3696 = vmul.f32 %v3400, %v3694
  %v3697 = vadd.f32 %v3688, %v3695
  %v3698 = vadd.f32 %v3689, %v3696
  %v3699 = vld [vmem:[%s3 + $0x82] sm:$0x1]
  %v3700 = vlaneseq
  %v3701 = vshrl.u32 %v3700, 7
  %v3702 = vsub.s32 0, %v3701
  %v3703 = vrot.slane %v3699, %v3702
  %v3704 = vmul.f32 %v1643, %v3703
  %v3705 = vmul.f32 %v1644, %v3703
  %v3706 = vadd.f32 %v3697, %v3704
  %v3707 = vadd.f32 %v3698, %v3705
  %v3708 = vld [vmem:[%s3 + $0x83] sm:$0x1]
  %v3709 = vlaneseq
  %v3710 = vshrl.u32 %v3709, 7
  %v3711 = vsub.s32 0, %v3710
  %v3712 = vrot.slane %v3708, %v3711
  %v3713 = vmul.f32 %v3401, %v3712
  %v3714 = vmul.f32 %v3402, %v3712
  %v3715 = vadd.f32 %v3706, %v3713
  %v3716 = vadd.f32 %v3707, %v3714
  %v3717 = vld [vmem:[%s3 + $0x84] sm:$0x1]
  %v3718 = vlaneseq
  %v3719 = vshrl.u32 %v3718, 7
  %v3720 = vsub.s32 0, %v3719
  %v3721 = vrot.slane %v3717, %v3720
  %v3722 = vmul.f32 %v3416, %v3721
  %v3723 = vmul.f32 %v3417, %v3721
  %v3724 = vadd.f32 %v3715, %v3722
  %v3725 = vadd.f32 %v3716, %v3723
  %v3726 = vld [vmem:[%s3 + $0x85] sm:$0x1]
  %v3727 = vlaneseq
  %v3728 = vshrl.u32 %v3727, 7
  %v3729 = vsub.s32 0, %v3728
  %v3730 = vrot.slane %v3726, %v3729
  %v3731 = vmul.f32 %v3365, %v3730
  %v3732 = vmul.f32 %v3369, %v3730
  %v3733 = vadd.f32 %v3724, %v3731
  %v3734 = vadd.f32 %v3725, %v3732
  %v3735 = vld [vmem:[%s3 + $0x86] sm:$0x1]
  %v3736 = vlaneseq
  %v3737 = vshrl.u32 %v3736, 7
  %v3738 = vsub.s32 0, %v3737
  %v3739 = vrot.slane %v3735, %v3738
  %v3740 = vmul.f32 %v3418, %v3739
  %v3741 = vmul.f32 %v3419, %v3739
  %v3742 = vadd.f32 %v3733, %v3740
  %v3743 = vadd.f32 %v3734, %v3741
  %v3744 = vld [vmem:[%s3 + $0xa2] sm:$0x1]
  %v3745 = vlaneseq
  %v3746 = vshrl.u32 %v3745, 7
  %v3747 = vsub.s32 0, %v3746
  %v3748 = vrot.slane %v3744, %v3747
  %v3749 = vmul.f32 %v3383, %v3748
  %v3750 = vmul.f32 %v3384, %v3748
  %v3751 = vadd.f32 %v3109, %v3749
  %v3752 = vadd.f32 %v3110, %v3750
  %v3753 = vld [vmem:[%s3 + $0xa3] sm:$0x1]
  %v3754 = vlaneseq
  %v3755 = vshrl.u32 %v3754, 7
  %v3756 = vsub.s32 0, %v3755
  %v3757 = vrot.slane %v3753, %v3756
  %v3758 = vmul.f32 %v3363, %v3757
  %v3759 = vmul.f32 %v3360, %v3757
  %v3760 = vadd.f32 %v3751, %v3758
  %v3761 = vadd.f32 %v3752, %v3759
  %v3762 = vld [vmem:[%s3 + $0xa4] sm:$0x1]
  %v3763 = vlaneseq
  %v3764 = vshrl.u32 %v3763, 7
  %v3765 = vsub.s32 0, %v3764
  %v3766 = vrot.slane %v3762, %v3765
  %v3767 = vmul.f32 %v3385, %v3766
  %v3768 = vmul.f32 %v3386, %v3766
  %v3769 = vadd.f32 %v3760, %v3767
  %v3770 = vadd.f32 %v3761, %v3768
  %v3771 = vld [vmem:[%s3 + $0xa5] sm:$0x1]
  %v3772 = vlaneseq
  %v3773 = vshrl.u32 %v3772, 7
  %v3774 = vsub.s32 0, %v3773
  %v3775 = vrot.slane %v3771, %v3774
  %v3776 = vmul.f32 %v3399, %v3775
  %v3777 = vmul.f32 %v3400, %v3775
  %v3778 = vadd.f32 %v3769, %v3776
  %v3779 = vadd.f32 %v3770, %v3777
  %v3780 = vld [vmem:[%s3 + $0xa6] sm:$0x1]
  %v3781 = vlaneseq
  %v3782 = vshrl.u32 %v3781, 7
  %v3783 = vsub.s32 0, %v3782
  %v3784 = vrot.slane %v3780, %v3783
  %v3785 = vmul.f32 %v1643, %v3784
  %v3786 = vmul.f32 %v1644, %v3784
  %v3787 = vadd.f32 %v3778, %v3785
  %v3788 = vadd.f32 %v3779, %v3786
  %v3789 = vld [vmem:[%s3 + $0xa7] sm:$0x1]
  %v3790 = vlaneseq
  %v3791 = vshrl.u32 %v3790, 7
  %v3792 = vsub.s32 0, %v3791
  %v3793 = vrot.slane %v3789, %v3792
  %v3794 = vmul.f32 %v3401, %v3793
  %v3795 = vmul.f32 %v3402, %v3793
  %v3796 = vadd.f32 %v3787, %v3794
  %v3797 = vadd.f32 %v3788, %v3795
  %v3798 = vld [vmem:[%s3 + $0xa8] sm:$0x1]
  %v3799 = vlaneseq
  %v3800 = vshrl.u32 %v3799, 7
  %v3801 = vsub.s32 0, %v3800
  %v3802 = vrot.slane %v3798, %v3801
  %v3803 = vmul.f32 %v3416, %v3802
  %v3804 = vmul.f32 %v3417, %v3802
  %v3805 = vadd.f32 %v3796, %v3803
  %v3806 = vadd.f32 %v3797, %v3804
  %v3807 = vld [vmem:[%s3 + $0xa9] sm:$0x1]
  %v3808 = vlaneseq
  %v3809 = vshrl.u32 %v3808, 7
  %v3810 = vsub.s32 0, %v3809
  %v3811 = vrot.slane %v3807, %v3810
  %v3812 = vmul.f32 %v3365, %v3811
  %v3813 = vmul.f32 %v3369, %v3811
  %v3814 = vadd.f32 %v3805, %v3812
  %v3815 = vadd.f32 %v3806, %v3813
  %v3816 = vld [vmem:[%s3 + $0xaa] sm:$0x1]
  %v3817 = vlaneseq
  %v3818 = vshrl.u32 %v3817, 7
  %v3819 = vsub.s32 0, %v3818
  %v3820 = vrot.slane %v3816, %v3819
  %v3821 = vmul.f32 %v3418, %v3820
  %v3822 = vmul.f32 %v3419, %v3820
  %v3823 = vadd.f32 %v3814, %v3821
  %v3824 = vadd.f32 %v3815, %v3822
  %v3825 = vld [vmem:[%s3 + $0xc6] sm:$0x1]
  %v3826 = vlaneseq
  %v3827 = vshrl.u32 %v3826, 7
  %v3828 = vsub.s32 0, %v3827
  %v3829 = vrot.slane %v3825, %v3828
  %v3830 = vmul.f32 %v3383, %v3829
  %v3831 = vmul.f32 %v3384, %v3829
  %v3832 = vadd.f32 %v3190, %v3830
  %v3833 = vadd.f32 %v3191, %v3831
  %v3834 = vld [vmem:[%s3 + $0xc7] sm:$0x1]
  %v3835 = vlaneseq
  %v3836 = vshrl.u32 %v3835, 7
  %v3837 = vsub.s32 0, %v3836
  %v3838 = vrot.slane %v3834, %v3837
  %v3839 = vmul.f32 %v3363, %v3838
  %v3840 = vmul.f32 %v3360, %v3838
  %v3841 = vadd.f32 %v3832, %v3839
  %v3842 = vadd.f32 %v3833, %v3840
  %v3843 = vld [vmem:[%s3 + $0xc8] sm:$0x1]
  %v3844 = vlaneseq
  %v3845 = vshrl.u32 %v3844, 7
  %v3846 = vsub.s32 0, %v3845
  %v3847 = vrot.slane %v3843, %v3846
  %v3848 = vmul.f32 %v3385, %v3847
  %v3849 = vmul.f32 %v3386, %v3847
  %v3850 = vadd.f32 %v3841, %v3848
  %v3851 = vadd.f32 %v3842, %v3849
  %v3852 = vld [vmem:[%s3 + $0xc9] sm:$0x1]
  %v3853 = vlaneseq
  %v3854 = vshrl.u32 %v3853, 7
  %v3855 = vsub.s32 0, %v3854
  %v3856 = vrot.slane %v3852, %v3855
  %v3857 = vmul.f32 %v3399, %v3856
  %v3858 = vmul.f32 %v3400, %v3856
  %v3859 = vadd.f32 %v3850, %v3857
  %v3860 = vadd.f32 %v3851, %v3858
  %v3861 = vld [vmem:[%s3 + $0xca] sm:$0x1]
  %v3862 = vlaneseq
  %v3863 = vshrl.u32 %v3862, 7
  %v3864 = vsub.s32 0, %v3863
  %v3865 = vrot.slane %v3861, %v3864
  %v3866 = vmul.f32 %v1643, %v3865
  %v3867 = vmul.f32 %v1644, %v3865
  %v3868 = vadd.f32 %v3859, %v3866
  %v3869 = vadd.f32 %v3860, %v3867
  %v3870 = vld [vmem:[%s3 + $0xcb] sm:$0x1]
  %v3871 = vlaneseq
  %v3872 = vshrl.u32 %v3871, 7
  %v3873 = vsub.s32 0, %v3872
  %v3874 = vrot.slane %v3870, %v3873
  %v3875 = vmul.f32 %v3401, %v3874
  %v3876 = vmul.f32 %v3402, %v3874
  %v3877 = vadd.f32 %v3868, %v3875
  %v3878 = vadd.f32 %v3869, %v3876
  %v3879 = vld [vmem:[%s3 + $0xcc] sm:$0x1]
  %v3880 = vlaneseq
  %v3881 = vshrl.u32 %v3880, 7
  %v3882 = vsub.s32 0, %v3881
  %v3883 = vrot.slane %v3879, %v3882
  %v3884 = vmul.f32 %v3416, %v3883
  %v3885 = vmul.f32 %v3417, %v3883
  %v3886 = vadd.f32 %v3877, %v3884
  %v3887 = vadd.f32 %v3878, %v3885
  %v3888 = vld [vmem:[%s3 + $0xcd] sm:$0x1]
  %v3889 = vlaneseq
  %v3890 = vshrl.u32 %v3889, 7
  %v3891 = vsub.s32 0, %v3890
  %v3892 = vrot.slane %v3888, %v3891
  %v3893 = vmul.f32 %v3365, %v3892
  %v3894 = vmul.f32 %v3369, %v3892
  %v3895 = vadd.f32 %v3886, %v3893
  %v3896 = vadd.f32 %v3887, %v3894
  %v3897 = vld [vmem:[%s3 + $0xce] sm:$0x1]
  %v3898 = vlaneseq
  %v3899 = vshrl.u32 %v3898, 7
  %v3900 = vsub.s32 0, %v3899
  %v3901 = vrot.slane %v3897, %v3900
  %v3902 = vmul.f32 %v3418, %v3901
  %v3903 = vmul.f32 %v3419, %v3901
  %v3904 = vadd.f32 %v3895, %v3902
  %v3905 = vadd.f32 %v3896, %v3903
  %v3906 = vld [vmem:[%s3 + $0xea] sm:$0x1]
  %v3907 = vlaneseq
  %v3908 = vshrl.u32 %v3907, 7
  %v3909 = vsub.s32 0, %v3908
  %v3910 = vrot.slane %v3906, %v3909
  %v3911 = vmul.f32 %v3383, %v3910
  %v3912 = vmul.f32 %v3384, %v3910
  %v3913 = vadd.f32 %v3271, %v3911
  %v3914 = vadd.f32 %v3272, %v3912
  %v3915 = vld [vmem:[%s3 + $0xeb] sm:$0x1]
  %v3916 = vlaneseq
  %v3917 = vshrl.u32 %v3916, 7
  %v3918 = vsub.s32 0, %v3917
  %v3919 = vrot.slane %v3915, %v3918
  %v3920 = vmul.f32 %v3363, %v3919
  %v3921 = vmul.f32 %v3360, %v3919
  %v3922 = vadd.f32 %v3913, %v3920
  %v3923 = vadd.f32 %v3914, %v3921
  %v3924 = vld [vmem:[%s3 + $0xec] sm:$0x1]
  %v3925 = vlaneseq
  %v3926 = vshrl.u32 %v3925, 7
  %v3927 = vsub.s32 0, %v3926
  %v3928 = vrot.slane %v3924, %v3927
  %v3929 = vmul.f32 %v3385, %v3928
  %v3930 = vmul.f32 %v3386, %v3928
  %v3931 = vadd.f32 %v3922, %v3929
  %v3932 = vadd.f32 %v3923, %v3930
  %v3933 = vld [vmem:[%s3 + $0xed] sm:$0x1]
  %v3934 = vlaneseq
  %v3935 = vshrl.u32 %v3934, 7
  %v3936 = vsub.s32 0, %v3935
  %v3937 = vrot.slane %v3933, %v3936
  %v3938 = vmul.f32 %v3399, %v3937
  %v3939 = vmul.f32 %v3400, %v3937
  %v3940 = vadd.f32 %v3931, %v3938
  %v3941 = vadd.f32 %v3932, %v3939
  %v3942 = vld [vmem:[%s3 + $0xee] sm:$0x1]
  %v3943 = vlaneseq
  %v3944 = vshrl.u32 %v3943, 7
  %v3945 = vsub.s32 0, %v3944
  %v3946 = vrot.slane %v3942, %v3945
  %v3947 = vmul.f32 %v1643, %v3946
  %v3948 = vmul.f32 %v1644, %v3946
  %v3949 = vadd.f32 %v3940, %v3947
  %v3950 = vadd.f32 %v3941, %v3948
  %v3951 = vld [vmem:[%s3 + $0xef] sm:$0x1]
  %v3952 = vlaneseq
  %v3953 = vshrl.u32 %v3952, 7
  %v3954 = vsub.s32 0, %v3953
  %v3955 = vrot.slane %v3951, %v3954
  %v3956 = vmul.f32 %v3401, %v3955
  %v3957 = vmul.f32 %v3402, %v3955
  %v3958 = vadd.f32 %v3949, %v3956
  %v3959 = vadd.f32 %v3950, %v3957
  %v3960 = vld [vmem:[%s3 + $0xf0] sm:$0x1]
  %v3961 = vlaneseq
  %v3962 = vshrl.u32 %v3961, 7
  %v3963 = vsub.s32 0, %v3962
  %v3964 = vrot.slane %v3960, %v3963
  %v3965 = vmul.f32 %v3416, %v3964
  %v3966 = vmul.f32 %v3417, %v3964
  %v3967 = vadd.f32 %v3958, %v3965
  %v3968 = vadd.f32 %v3959, %v3966
  %v3969 = vld [vmem:[%s3 + $0xf1] sm:$0x1]
  %v3970 = vlaneseq
  %v3971 = vshrl.u32 %v3970, 7
  %v3972 = vsub.s32 0, %v3971
  %v3973 = vrot.slane %v3969, %v3972
  %v3974 = vmul.f32 %v3365, %v3973
  %v3975 = vmul.f32 %v3369, %v3973
  %v3976 = vadd.f32 %v3967, %v3974
  %v3977 = vadd.f32 %v3968, %v3975
  %v3978 = vld [vmem:[%s3 + $0xf2] sm:$0x1]
  %v3979 = vlaneseq
  %v3980 = vshrl.u32 %v3979, 7
  %v3981 = vsub.s32 0, %v3980
  %v3982 = vrot.slane %v3978, %v3981
  %v3983 = vmul.f32 %v3418, %v3982
  %v3984 = vmul.f32 %v3419, %v3982
  %v3985 = vadd.f32 %v3976, %v3983
  %v3986 = vadd.f32 %v3977, %v3984
  %v3987 = vld [vmem:[%s3 + $0x10e] sm:$0x1]
  %v3988 = vlaneseq
  %v3989 = vshrl.u32 %v3988, 7
  %v3990 = vsub.s32 0, %v3989
  %v3991 = vrot.slane %v3987, %v3990
  %v3992 = vmul.f32 %v3383, %v3991
  %v3993 = vmul.f32 %v3384, %v3991
  %v3994 = vadd.f32 %v3352, %v3992
  %v3995 = vadd.f32 %v3353, %v3993
  %v3996 = vld [vmem:[%s3 + $0x10f] sm:$0x1]
  %v3997 = vlaneseq
  %v3998 = vshrl.u32 %v3997, 7
  %v3999 = vsub.s32 0, %v3998
  %v4000 = vrot.slane %v3996, %v3999
  %v4001 = vmul.f32 %v3363, %v4000
  %v4002 = vmul.f32 %v3360, %v4000
  %v4003 = vadd.f32 %v3994, %v4001
  %v4004 = vadd.f32 %v3995, %v4002
  %v4005 = vld [vmem:[%s3 + $0x110] sm:$0x1]
  %v4006 = vlaneseq
  %v4007 = vshrl.u32 %v4006, 7
  %v4008 = vsub.s32 0, %v4007
  %v4009 = vrot.slane %v4005, %v4008
  %v4010 = vmul.f32 %v3385, %v4009
  %v4011 = vmul.f32 %v3386, %v4009
  %v4012 = vadd.f32 %v4003, %v4010
  %v4013 = vadd.f32 %v4004, %v4011
  %v4014 = vld [vmem:[%s3 + $0x111] sm:$0x1]
  %v4015 = vlaneseq
  %v4016 = vshrl.u32 %v4015, 7
  %v4017 = vsub.s32 0, %v4016
  %v4018 = vrot.slane %v4014, %v4017
  %v4019 = vmul.f32 %v3399, %v4018
  %v4020 = vmul.f32 %v3400, %v4018
  %v4021 = vadd.f32 %v4012, %v4019
  %v4022 = vadd.f32 %v4013, %v4020
  %v4023 = vld [vmem:[%s3 + $0x112] sm:$0x1]
  %v4024 = vlaneseq
  %v4025 = vshrl.u32 %v4024, 7
  %v4026 = vsub.s32 0, %v4025
  %v4027 = vrot.slane %v4023, %v4026
  %v4028 = vmul.f32 %v1643, %v4027
  %v4029 = vmul.f32 %v1644, %v4027
  %v4030 = vadd.f32 %v4021, %v4028
  %v4031 = vadd.f32 %v4022, %v4029
  %v4032 = vld [vmem:[%s3 + $0x113] sm:$0x1]
  %v4033 = vlaneseq
  %v4034 = vshrl.u32 %v4033, 7
  %v4035 = vsub.s32 0, %v4034
  %v4036 = vrot.slane %v4032, %v4035
  %v4037 = vmul.f32 %v3401, %v4036
  %v4038 = vmul.f32 %v3402, %v4036
  %v4039 = vadd.f32 %v4030, %v4037
  %v4040 = vadd.f32 %v4031, %v4038
  %v4041 = vld [vmem:[%s3 + $0x114] sm:$0x1]
  %v4042 = vlaneseq
  %v4043 = vshrl.u32 %v4042, 7
  %v4044 = vsub.s32 0, %v4043
  %v4045 = vrot.slane %v4041, %v4044
  %v4046 = vmul.f32 %v3416, %v4045
  %v4047 = vmul.f32 %v3417, %v4045
  %v4048 = vadd.f32 %v4039, %v4046
  %v4049 = vadd.f32 %v4040, %v4047
  %v4050 = vld [vmem:[%s3 + $0x115] sm:$0x1]
  %v4051 = vlaneseq
  %v4052 = vshrl.u32 %v4051, 7
  %v4053 = vsub.s32 0, %v4052
  %v4054 = vrot.slane %v4050, %v4053
  %v4055 = vmul.f32 %v3365, %v4054
  %v4056 = vmul.f32 %v3369, %v4054
  %v4057 = vadd.f32 %v4048, %v4055
  %v4058 = vadd.f32 %v4049, %v4056
  %v4059 = vld [vmem:[%s3 + $0x116] sm:$0x1]
  %v4060 = vlaneseq
  %v4061 = vshrl.u32 %v4060, 7
  %v4062 = vsub.s32 0, %v4061
  %v4063 = vrot.slane %v4059, %v4062
  %v4064 = vmul.f32 %v3418, %v4063
  %v4065 = vmul.f32 %v3419, %v4063
  %v4066 = vadd.f32 %v4057, %v4064
  %v4067 = vadd.f32 %v4058, %v4065
  %v4069 = vrot.slane %v1652, 1
  %v4072 = vrot.slane %v1652, 7
  %v4073 = vrot.slane %v1653, 7
  %v4074 = vsel %vm53, %v4072, %v4073
  %v4077 = vsel %vm53, %v4069, %v4072
  %v4078 = vrot.slane %v1653, 1
  %v4079 = vsel %vm60, %v4069, %v4078
  %v4083 = vsel %vm60, %v4078, %v4073
  %4085 = vrot.lane.b32.xlu0 %v4077, 1
  %v4086 = vpop.permute.xlu0 %4085
  %4087 = vrot.lane.b32.xlu0 %v4074, 1
  %v4088 = vpop.permute.xlu0 %4087
  %4091 = vrot.lane.b32.xlu0 %v4077, 127
  %v4092 = vpop.permute.xlu0 %4091
  %4093 = vrot.lane.b32.xlu0 %v4074, 127
  %v4094 = vpop.permute.xlu0 %4093
  %v4097 = vsel %vm43, %v4092, %v4086
  %v4098 = vsel %vm43, %v4094, %v4088
  %v4099 = vsel %vm44, %v4086, %v4092
  %v4100 = vsel %vm44, %v4088, %v4094
  %4101 = vrot.lane.b32.xlu0 %v1652, 1
  %v4102 = vpop.permute.xlu0 %4101
  %4103 = vrot.lane.b32.xlu0 %v1653, 1
  %v4104 = vpop.permute.xlu0 %4103
  %4107 = vrot.lane.b32.xlu0 %v1652, 127
  %v4108 = vpop.permute.xlu0 %4107
  %4109 = vrot.lane.b32.xlu0 %v1653, 127
  %v4110 = vpop.permute.xlu0 %4109
  %v4113 = vsel %vm43, %v4108, %v4102
  %v4114 = vsel %vm43, %v4110, %v4104
  %v4115 = vsel %vm44, %v4102, %v4108
  %v4116 = vsel %vm44, %v4104, %v4110
  %4118 = vrot.lane.b32.xlu0 %v4079, 1
  %v4119 = vpop.permute.xlu0 %4118
  %4120 = vrot.lane.b32.xlu0 %v4083, 1
  %v4121 = vpop.permute.xlu0 %4120
  %4124 = vrot.lane.b32.xlu0 %v4079, 127
  %v4125 = vpop.permute.xlu0 %4124
  %4126 = vrot.lane.b32.xlu0 %v4083, 127
  %v4127 = vpop.permute.xlu0 %4126
  %v4130 = vsel %vm43, %v4125, %v4119
  %v4131 = vsel %vm43, %v4127, %v4121
  %v4132 = vsel %vm44, %v4119, %v4125
  %v4133 = vsel %vm44, %v4121, %v4127
  %v4134 = vld [vmem:[%s3 + $0x1b] sm:$0x1]
  %v4135 = vlaneseq
  %v4136 = vshrl.u32 %v4135, 7
  %v4137 = vsub.s32 0, %v4136
  %v4138 = vrot.slane %v4134, %v4137
  %v4139 = vmul.f32 %v4097, %v4138
  %v4140 = vmul.f32 %v4098, %v4138
  %v4141 = vadd.f32 %v3499, %v4139
  %v4142 = vadd.f32 %v3500, %v4140
  %v4143 = vld [vmem:[%s3 + $0x1c] sm:$0x1]
  %v4144 = vlaneseq
  %v4145 = vshrl.u32 %v4144, 7
  %v4146 = vsub.s32 0, %v4145
  %v4147 = vrot.slane %v4143, %v4146
  %v4148 = vmul.f32 %v4077, %v4147
  %v4149 = vmul.f32 %v4074, %v4147
  %v4150 = vadd.f32 %v4141, %v4148
  %v4151 = vadd.f32 %v4142, %v4149
  %v4152 = vld [vmem:[%s3 + $0x1d] sm:$0x1]
  %v4153 = vlaneseq
  %v4154 = vshrl.u32 %v4153, 7
  %v4155 = vsub.s32 0, %v4154
  %v4156 = vrot.slane %v4152, %v4155
  %v4157 = vmul.f32 %v4099, %v4156
  %v4158 = vmul.f32 %v4100, %v4156
  %v4159 = vadd.f32 %v4150, %v4157
  %v4160 = vadd.f32 %v4151, %v4158
  %v4161 = vld [vmem:[%s3 + $0x1e] sm:$0x1]
  %v4162 = vlaneseq
  %v4163 = vshrl.u32 %v4162, 7
  %v4164 = vsub.s32 0, %v4163
  %v4165 = vrot.slane %v4161, %v4164
  %v4166 = vmul.f32 %v4113, %v4165
  %v4167 = vmul.f32 %v4114, %v4165
  %v4168 = vadd.f32 %v4159, %v4166
  %v4169 = vadd.f32 %v4160, %v4167
  %v4170 = vld [vmem:[%s3 + $0x1f] sm:$0x1]
  %v4171 = vlaneseq
  %v4172 = vshrl.u32 %v4171, 7
  %v4173 = vsub.s32 0, %v4172
  %v4174 = vrot.slane %v4170, %v4173
  %v4175 = vmul.f32 %v1652, %v4174
  %v4176 = vmul.f32 %v1653, %v4174
  %v4177 = vadd.f32 %v4168, %v4175
  %v4178 = vadd.f32 %v4169, %v4176
  %v4179 = vld [vmem:[%s3 + $0x20] sm:$0x1]
  %v4180 = vlaneseq
  %v4181 = vshrl.u32 %v4180, 7
  %v4182 = vsub.s32 0, %v4181
  %v4183 = vrot.slane %v4179, %v4182
  %v4184 = vmul.f32 %v4115, %v4183
  %v4185 = vmul.f32 %v4116, %v4183
  %v4186 = vadd.f32 %v4177, %v4184
  %v4187 = vadd.f32 %v4178, %v4185
  %v4188 = vld [vmem:[%s3 + $0x21] sm:$0x1]
  %v4189 = vlaneseq
  %v4190 = vshrl.u32 %v4189, 7
  %v4191 = vsub.s32 0, %v4190
  %v4192 = vrot.slane %v4188, %v4191
  %v4193 = vmul.f32 %v4130, %v4192
  %v4194 = vmul.f32 %v4131, %v4192
  %v4195 = vadd.f32 %v4186, %v4193
  %v4196 = vadd.f32 %v4187, %v4194
  %v4197 = vld [vmem:[%s3 + $0x22] sm:$0x1]
  %v4198 = vlaneseq
  %v4199 = vshrl.u32 %v4198, 7
  %v4200 = vsub.s32 0, %v4199
  %v4201 = vrot.slane %v4197, %v4200
  %v4202 = vmul.f32 %v4079, %v4201
  %v4203 = vmul.f32 %v4083, %v4201
  %v4204 = vadd.f32 %v4195, %v4202
  %v4205 = vadd.f32 %v4196, %v4203
  %v4206 = vld [vmem:[%s3 + $0x23] sm:$0x1]
  %v4207 = vlaneseq
  %v4208 = vshrl.u32 %v4207, 7
  %v4209 = vsub.s32 0, %v4208
  %v4210 = vrot.slane %v4206, %v4209
  %v4211 = vmul.f32 %v4132, %v4210
  %v4212 = vmul.f32 %v4133, %v4210
  %v4213 = vadd.f32 %v4204, %v4211
  %v4214 = vadd.f32 %v4205, %v4212
  %v4215 = vld [vmem:[%s3 + $0x3f] sm:$0x1]
  %v4216 = vlaneseq
  %v4217 = vshrl.u32 %v4216, 7
  %v4218 = vsub.s32 0, %v4217
  %v4219 = vrot.slane %v4215, %v4218
  %v4220 = vmul.f32 %v4097, %v4219
  %v4221 = vmul.f32 %v4098, %v4219
  %v4222 = vadd.f32 %v3580, %v4220
  %v4223 = vadd.f32 %v3581, %v4221
  %v4224 = vld [vmem:[%s3 + $0x40] sm:$0x1]
  %v4225 = vlaneseq
  %v4226 = vshrl.u32 %v4225, 7
  %v4227 = vsub.s32 0, %v4226
  %v4228 = vrot.slane %v4224, %v4227
  %v4229 = vmul.f32 %v4077, %v4228
  %v4230 = vmul.f32 %v4074, %v4228
  %v4231 = vadd.f32 %v4222, %v4229
  %v4232 = vadd.f32 %v4223, %v4230
  %v4233 = vld [vmem:[%s3 + $0x41] sm:$0x1]
  %v4234 = vlaneseq
  %v4235 = vshrl.u32 %v4234, 7
  %v4236 = vsub.s32 0, %v4235
  %v4237 = vrot.slane %v4233, %v4236
  %v4238 = vmul.f32 %v4099, %v4237
  %v4239 = vmul.f32 %v4100, %v4237
  %v4240 = vadd.f32 %v4231, %v4238
  %v4241 = vadd.f32 %v4232, %v4239
  %v4242 = vld [vmem:[%s3 + $0x42] sm:$0x1]
  %v4243 = vlaneseq
  %v4244 = vshrl.u32 %v4243, 7
  %v4245 = vsub.s32 0, %v4244
  %v4246 = vrot.slane %v4242, %v4245
  %v4247 = vmul.f32 %v4113, %v4246
  %v4248 = vmul.f32 %v4114, %v4246
  %v4249 = vadd.f32 %v4240, %v4247
  %v4250 = vadd.f32 %v4241, %v4248
  %v4251 = vld [vmem:[%s3 + $0x43] sm:$0x1]
  %v4252 = vlaneseq
  %v4253 = vshrl.u32 %v4252, 7
  %v4254 = vsub.s32 0, %v4253
  %v4255 = vrot.slane %v4251, %v4254
  %v4256 = vmul.f32 %v1652, %v4255
  %v4257 = vmul.f32 %v1653, %v4255
  %v4258 = vadd.f32 %v4249, %v4256
  %v4259 = vadd.f32 %v4250, %v4257
  %v4260 = vld [vmem:[%s3 + $0x44] sm:$0x1]
  %v4261 = vlaneseq
  %v4262 = vshrl.u32 %v4261, 7
  %v4263 = vsub.s32 0, %v4262
  %v4264 = vrot.slane %v4260, %v4263
  %v4265 = vmul.f32 %v4115, %v4264
  %v4266 = vmul.f32 %v4116, %v4264
  %v4267 = vadd.f32 %v4258, %v4265
  %v4268 = vadd.f32 %v4259, %v4266
  %v4269 = vld [vmem:[%s3 + $0x45] sm:$0x1]
  %v4270 = vlaneseq
  %v4271 = vshrl.u32 %v4270, 7
  %v4272 = vsub.s32 0, %v4271
  %v4273 = vrot.slane %v4269, %v4272
  %v4274 = vmul.f32 %v4130, %v4273
  %v4275 = vmul.f32 %v4131, %v4273
  %v4276 = vadd.f32 %v4267, %v4274
  %v4277 = vadd.f32 %v4268, %v4275
  %v4278 = vld [vmem:[%s3 + $0x46] sm:$0x1]
  %v4279 = vlaneseq
  %v4280 = vshrl.u32 %v4279, 7
  %v4281 = vsub.s32 0, %v4280
  %v4282 = vrot.slane %v4278, %v4281
  %v4283 = vmul.f32 %v4079, %v4282
  %v4284 = vmul.f32 %v4083, %v4282
  %v4285 = vadd.f32 %v4276, %v4283
  %v4286 = vadd.f32 %v4277, %v4284
  %v4287 = vld [vmem:[%s3 + $0x47] sm:$0x1]
  %v4288 = vlaneseq
  %v4289 = vshrl.u32 %v4288, 7
  %v4290 = vsub.s32 0, %v4289
  %v4291 = vrot.slane %v4287, %v4290
  %v4292 = vmul.f32 %v4132, %v4291
  %v4293 = vmul.f32 %v4133, %v4291
  %v4294 = vadd.f32 %v4285, %v4292
  %v4295 = vadd.f32 %v4286, %v4293
  %v4296 = vld [vmem:[%s3 + $0x63] sm:$0x1]
  %v4297 = vlaneseq
  %v4298 = vshrl.u32 %v4297, 7
  %v4299 = vsub.s32 0, %v4298
  %v4300 = vrot.slane %v4296, %v4299
  %v4301 = vmul.f32 %v4097, %v4300
  %v4302 = vmul.f32 %v4098, %v4300
  %v4303 = vadd.f32 %v3661, %v4301
  %v4304 = vadd.f32 %v3662, %v4302
  %v4305 = vld [vmem:[%s3 + $0x64] sm:$0x1]
  %v4306 = vlaneseq
  %v4307 = vshrl.u32 %v4306, 7
  %v4308 = vsub.s32 0, %v4307
  %v4309 = vrot.slane %v4305, %v4308
  %v4310 = vmul.f32 %v4077, %v4309
  %v4311 = vmul.f32 %v4074, %v4309
  %v4312 = vadd.f32 %v4303, %v4310
  %v4313 = vadd.f32 %v4304, %v4311
  %v4314 = vld [vmem:[%s3 + $0x65] sm:$0x1]
  %v4315 = vlaneseq
  %v4316 = vshrl.u32 %v4315, 7
  %v4317 = vsub.s32 0, %v4316
  %v4318 = vrot.slane %v4314, %v4317
  %v4319 = vmul.f32 %v4099, %v4318
  %v4320 = vmul.f32 %v4100, %v4318
  %v4321 = vadd.f32 %v4312, %v4319
  %v4322 = vadd.f32 %v4313, %v4320
  %v4323 = vld [vmem:[%s3 + $0x66] sm:$0x1]
  %v4324 = vlaneseq
  %v4325 = vshrl.u32 %v4324, 7
  %v4326 = vsub.s32 0, %v4325
  %v4327 = vrot.slane %v4323, %v4326
  %v4328 = vmul.f32 %v4113, %v4327
  %v4329 = vmul.f32 %v4114, %v4327
  %v4330 = vadd.f32 %v4321, %v4328
  %v4331 = vadd.f32 %v4322, %v4329
  %v4332 = vld [vmem:[%s3 + $0x67] sm:$0x1]
  %v4333 = vlaneseq
  %v4334 = vshrl.u32 %v4333, 7
  %v4335 = vsub.s32 0, %v4334
  %v4336 = vrot.slane %v4332, %v4335
  %v4337 = vmul.f32 %v1652, %v4336
  %v4338 = vmul.f32 %v1653, %v4336
  %v4339 = vadd.f32 %v4330, %v4337
  %v4340 = vadd.f32 %v4331, %v4338
  %v4341 = vld [vmem:[%s3 + $0x68] sm:$0x1]
  %v4342 = vlaneseq
  %v4343 = vshrl.u32 %v4342, 7
  %v4344 = vsub.s32 0, %v4343
  %v4345 = vrot.slane %v4341, %v4344
  %v4346 = vmul.f32 %v4115, %v4345
  %v4347 = vmul.f32 %v4116, %v4345
  %v4348 = vadd.f32 %v4339, %v4346
  %v4349 = vadd.f32 %v4340, %v4347
  %v4350 = vld [vmem:[%s3 + $0x69] sm:$0x1]
  %v4351 = vlaneseq
  %v4352 = vshrl.u32 %v4351, 7
  %v4353 = vsub.s32 0, %v4352
  %v4354 = vrot.slane %v4350, %v4353
  %v4355 = vmul.f32 %v4130, %v4354
  %v4356 = vmul.f32 %v4131, %v4354
  %v4357 = vadd.f32 %v4348, %v4355
  %v4358 = vadd.f32 %v4349, %v4356
  %v4359 = vld [vmem:[%s3 + $0x6a] sm:$0x1]
  %v4360 = vlaneseq
  %v4361 = vshrl.u32 %v4360, 7
  %v4362 = vsub.s32 0, %v4361
  %v4363 = vrot.slane %v4359, %v4362
  %v4364 = vmul.f32 %v4079, %v4363
  %v4365 = vmul.f32 %v4083, %v4363
  %v4366 = vadd.f32 %v4357, %v4364
  %v4367 = vadd.f32 %v4358, %v4365
  %v4368 = vld [vmem:[%s3 + $0x6b] sm:$0x1]
  %v4369 = vlaneseq
  %v4370 = vshrl.u32 %v4369, 7
  %v4371 = vsub.s32 0, %v4370
  %v4372 = vrot.slane %v4368, %v4371
  %v4373 = vmul.f32 %v4132, %v4372
  %v4374 = vmul.f32 %v4133, %v4372
  %v4375 = vadd.f32 %v4366, %v4373
  %v4376 = vadd.f32 %v4367, %v4374
  %v4377 = vld [vmem:[%s3 + $0x87] sm:$0x1]
  %v4378 = vlaneseq
  %v4379 = vshrl.u32 %v4378, 7
  %v4380 = vsub.s32 0, %v4379
  %v4381 = vrot.slane %v4377, %v4380
  %v4382 = vmul.f32 %v4097, %v4381
  %v4383 = vmul.f32 %v4098, %v4381
  %v4384 = vadd.f32 %v3742, %v4382
  %v4385 = vadd.f32 %v3743, %v4383
  %v4386 = vld [vmem:[%s3 + $0x88] sm:$0x1]
  %v4387 = vlaneseq
  %v4388 = vshrl.u32 %v4387, 7
  %v4389 = vsub.s32 0, %v4388
  %v4390 = vrot.slane %v4386, %v4389
  %v4391 = vmul.f32 %v4077, %v4390
  %v4392 = vmul.f32 %v4074, %v4390
  %v4393 = vadd.f32 %v4384, %v4391
  %v4394 = vadd.f32 %v4385, %v4392
  %v4395 = vld [vmem:[%s3 + $0x89] sm:$0x1]
  %v4396 = vlaneseq
  %v4397 = vshrl.u32 %v4396, 7
  %v4398 = vsub.s32 0, %v4397
  %v4399 = vrot.slane %v4395, %v4398
  %v4400 = vmul.f32 %v4099, %v4399
  %v4401 = vmul.f32 %v4100, %v4399
  %v4402 = vadd.f32 %v4393, %v4400
  %v4403 = vadd.f32 %v4394, %v4401
  %v4404 = vld [vmem:[%s3 + $0x8a] sm:$0x1]
  %v4405 = vlaneseq
  %v4406 = vshrl.u32 %v4405, 7
  %v4407 = vsub.s32 0, %v4406
  %v4408 = vrot.slane %v4404, %v4407
  %v4409 = vmul.f32 %v4113, %v4408
  %v4410 = vmul.f32 %v4114, %v4408
  %v4411 = vadd.f32 %v4402, %v4409
  %v4412 = vadd.f32 %v4403, %v4410
  %v4413 = vld [vmem:[%s3 + $0x8b] sm:$0x1]
  %v4414 = vlaneseq
  %v4415 = vshrl.u32 %v4414, 7
  %v4416 = vsub.s32 0, %v4415
  %v4417 = vrot.slane %v4413, %v4416
  %v4418 = vmul.f32 %v1652, %v4417
  %v4419 = vmul.f32 %v1653, %v4417
  %v4420 = vadd.f32 %v4411, %v4418
  %v4421 = vadd.f32 %v4412, %v4419
  %v4422 = vld [vmem:[%s3 + $0x8c] sm:$0x1]
  %v4423 = vlaneseq
  %v4424 = vshrl.u32 %v4423, 7
  %v4425 = vsub.s32 0, %v4424
  %v4426 = vrot.slane %v4422, %v4425
  %v4427 = vmul.f32 %v4115, %v4426
  %v4428 = vmul.f32 %v4116, %v4426
  %v4429 = vadd.f32 %v4420, %v4427
  %v4430 = vadd.f32 %v4421, %v4428
  %v4431 = vld [vmem:[%s3 + $0x8d] sm:$0x1]
  %v4432 = vlaneseq
  %v4433 = vshrl.u32 %v4432, 7
  %v4434 = vsub.s32 0, %v4433
  %v4435 = vrot.slane %v4431, %v4434
  %v4436 = vmul.f32 %v4130, %v4435
  %v4437 = vmul.f32 %v4131, %v4435
  %v4438 = vadd.f32 %v4429, %v4436
  %v4439 = vadd.f32 %v4430, %v4437
  %v4440 = vld [vmem:[%s3 + $0x8e] sm:$0x1]
  %v4441 = vlaneseq
  %v4442 = vshrl.u32 %v4441, 7
  %v4443 = vsub.s32 0, %v4442
  %v4444 = vrot.slane %v4440, %v4443
  %v4445 = vmul.f32 %v4079, %v4444
  %v4446 = vmul.f32 %v4083, %v4444
  %v4447 = vadd.f32 %v4438, %v4445
  %v4448 = vadd.f32 %v4439, %v4446
  %v4449 = vld [vmem:[%s3 + $0x8f] sm:$0x1]
  %v4450 = vlaneseq
  %v4451 = vshrl.u32 %v4450, 7
  %v4452 = vsub.s32 0, %v4451
  %v4453 = vrot.slane %v4449, %v4452
  %v4454 = vmul.f32 %v4132, %v4453
  %v4455 = vmul.f32 %v4133, %v4453
  %v4456 = vadd.f32 %v4447, %v4454
  %v4457 = vadd.f32 %v4448, %v4455
  %v4458 = vld [vmem:[%s3 + $0xab] sm:$0x1]
  %v4459 = vlaneseq
  %v4460 = vshrl.u32 %v4459, 7
  %v4461 = vsub.s32 0, %v4460
  %v4462 = vrot.slane %v4458, %v4461
  %v4463 = vmul.f32 %v4097, %v4462
  %v4464 = vmul.f32 %v4098, %v4462
  %v4465 = vadd.f32 %v3823, %v4463
  %v4466 = vadd.f32 %v3824, %v4464
  %v4467 = vld [vmem:[%s3 + $0xac] sm:$0x1]
  %v4468 = vlaneseq
  %v4469 = vshrl.u32 %v4468, 7
  %v4470 = vsub.s32 0, %v4469
  %v4471 = vrot.slane %v4467, %v4470
  %v4472 = vmul.f32 %v4077, %v4471
  %v4473 = vmul.f32 %v4074, %v4471
  %v4474 = vadd.f32 %v4465, %v4472
  %v4475 = vadd.f32 %v4466, %v4473
  %v4476 = vld [vmem:[%s3 + $0xad] sm:$0x1]
  %v4477 = vlaneseq
  %v4478 = vshrl.u32 %v4477, 7
  %v4479 = vsub.s32 0, %v4478
  %v4480 = vrot.slane %v4476, %v4479
  %v4481 = vmul.f32 %v4099, %v4480
  %v4482 = vmul.f32 %v4100, %v4480
  %v4483 = vadd.f32 %v4474, %v4481
  %v4484 = vadd.f32 %v4475, %v4482
  %v4485 = vld [vmem:[%s3 + $0xae] sm:$0x1]
  %v4486 = vlaneseq
  %v4487 = vshrl.u32 %v4486, 7
  %v4488 = vsub.s32 0, %v4487
  %v4489 = vrot.slane %v4485, %v4488
  %v4490 = vmul.f32 %v4113, %v4489
  %v4491 = vmul.f32 %v4114, %v4489
  %v4492 = vadd.f32 %v4483, %v4490
  %v4493 = vadd.f32 %v4484, %v4491
  %v4494 = vld [vmem:[%s3 + $0xaf] sm:$0x1]
  %v4495 = vlaneseq
  %v4496 = vshrl.u32 %v4495, 7
  %v4497 = vsub.s32 0, %v4496
  %v4498 = vrot.slane %v4494, %v4497
  %v4499 = vmul.f32 %v1652, %v4498
  %v4500 = vmul.f32 %v1653, %v4498
  %v4501 = vadd.f32 %v4492, %v4499
  %v4502 = vadd.f32 %v4493, %v4500
  %v4503 = vld [vmem:[%s3 + $0xb0] sm:$0x1]
  %v4504 = vlaneseq
  %v4505 = vshrl.u32 %v4504, 7
  %v4506 = vsub.s32 0, %v4505
  %v4507 = vrot.slane %v4503, %v4506
  %v4508 = vmul.f32 %v4115, %v4507
  %v4509 = vmul.f32 %v4116, %v4507
  %v4510 = vadd.f32 %v4501, %v4508
  %v4511 = vadd.f32 %v4502, %v4509
  %v4512 = vld [vmem:[%s3 + $0xb1] sm:$0x1]
  %v4513 = vlaneseq
  %v4514 = vshrl.u32 %v4513, 7
  %v4515 = vsub.s32 0, %v4514
  %v4516 = vrot.slane %v4512, %v4515
  %v4517 = vmul.f32 %v4130, %v4516
  %v4518 = vmul.f32 %v4131, %v4516
  %v4519 = vadd.f32 %v4510, %v4517
  %v4520 = vadd.f32 %v4511, %v4518
  %v4521 = vld [vmem:[%s3 + $0xb2] sm:$0x1]
  %v4522 = vlaneseq
  %v4523 = vshrl.u32 %v4522, 7
  %v4524 = vsub.s32 0, %v4523
  %v4525 = vrot.slane %v4521, %v4524
  %v4526 = vmul.f32 %v4079, %v4525
  %v4527 = vmul.f32 %v4083, %v4525
  %v4528 = vadd.f32 %v4519, %v4526
  %v4529 = vadd.f32 %v4520, %v4527
  %v4530 = vld [vmem:[%s3 + $0xb3] sm:$0x1]
  %v4531 = vlaneseq
  %v4532 = vshrl.u32 %v4531, 7
  %v4533 = vsub.s32 0, %v4532
  %v4534 = vrot.slane %v4530, %v4533
  %v4535 = vmul.f32 %v4132, %v4534
  %v4536 = vmul.f32 %v4133, %v4534
  %v4537 = vadd.f32 %v4528, %v4535
  %v4538 = vadd.f32 %v4529, %v4536
  %v4539 = vld [vmem:[%s3 + $0xcf] sm:$0x1]
  %v4540 = vlaneseq
  %v4541 = vshrl.u32 %v4540, 7
  %v4542 = vsub.s32 0, %v4541
  %v4543 = vrot.slane %v4539, %v4542
  %v4544 = vmul.f32 %v4097, %v4543
  %v4545 = vmul.f32 %v4098, %v4543
  %v4546 = vadd.f32 %v3904, %v4544
  %v4547 = vadd.f32 %v3905, %v4545
  %v4548 = vld [vmem:[%s3 + $0xd0] sm:$0x1]
  %v4549 = vlaneseq
  %v4550 = vshrl.u32 %v4549, 7
  %v4551 = vsub.s32 0, %v4550
  %v4552 = vrot.slane %v4548, %v4551
  %v4553 = vmul.f32 %v4077, %v4552
  %v4554 = vmul.f32 %v4074, %v4552
  %v4555 = vadd.f32 %v4546, %v4553
  %v4556 = vadd.f32 %v4547, %v4554
  %v4557 = vld [vmem:[%s3 + $0xd1] sm:$0x1]
  %v4558 = vlaneseq
  %v4559 = vshrl.u32 %v4558, 7
  %v4560 = vsub.s32 0, %v4559
  %v4561 = vrot.slane %v4557, %v4560
  %v4562 = vmul.f32 %v4099, %v4561
  %v4563 = vmul.f32 %v4100, %v4561
  %v4564 = vadd.f32 %v4555, %v4562
  %v4565 = vadd.f32 %v4556, %v4563
  %v4566 = vld [vmem:[%s3 + $0xd2] sm:$0x1]
  %v4567 = vlaneseq
  %v4568 = vshrl.u32 %v4567, 7
  %v4569 = vsub.s32 0, %v4568
  %v4570 = vrot.slane %v4566, %v4569
  %v4571 = vmul.f32 %v4113, %v4570
  %v4572 = vmul.f32 %v4114, %v4570
  %v4573 = vadd.f32 %v4564, %v4571
  %v4574 = vadd.f32 %v4565, %v4572
  %v4575 = vld [vmem:[%s3 + $0xd3] sm:$0x1]
  %v4576 = vlaneseq
  %v4577 = vshrl.u32 %v4576, 7
  %v4578 = vsub.s32 0, %v4577
  %v4579 = vrot.slane %v4575, %v4578
  %v4580 = vmul.f32 %v1652, %v4579
  %v4581 = vmul.f32 %v1653, %v4579
  %v4582 = vadd.f32 %v4573, %v4580
  %v4583 = vadd.f32 %v4574, %v4581
  %v4584 = vld [vmem:[%s3 + $0xd4] sm:$0x1]
  %v4585 = vlaneseq
  %v4586 = vshrl.u32 %v4585, 7
  %v4587 = vsub.s32 0, %v4586
  %v4588 = vrot.slane %v4584, %v4587
  %v4589 = vmul.f32 %v4115, %v4588
  %v4590 = vmul.f32 %v4116, %v4588
  %v4591 = vadd.f32 %v4582, %v4589
  %v4592 = vadd.f32 %v4583, %v4590
  %v4593 = vld [vmem:[%s3 + $0xd5] sm:$0x1]
  %v4594 = vlaneseq
  %v4595 = vshrl.u32 %v4594, 7
  %v4596 = vsub.s32 0, %v4595
  %v4597 = vrot.slane %v4593, %v4596
  %v4598 = vmul.f32 %v4130, %v4597
  %v4599 = vmul.f32 %v4131, %v4597
  %v4600 = vadd.f32 %v4591, %v4598
  %v4601 = vadd.f32 %v4592, %v4599
  %v4602 = vld [vmem:[%s3 + $0xd6] sm:$0x1]
  %v4603 = vlaneseq
  %v4604 = vshrl.u32 %v4603, 7
  %v4605 = vsub.s32 0, %v4604
  %v4606 = vrot.slane %v4602, %v4605
  %v4607 = vmul.f32 %v4079, %v4606
  %v4608 = vmul.f32 %v4083, %v4606
  %v4609 = vadd.f32 %v4600, %v4607
  %v4610 = vadd.f32 %v4601, %v4608
  %v4611 = vld [vmem:[%s3 + $0xd7] sm:$0x1]
  %v4612 = vlaneseq
  %v4613 = vshrl.u32 %v4612, 7
  %v4614 = vsub.s32 0, %v4613
  %v4615 = vrot.slane %v4611, %v4614
  %v4616 = vmul.f32 %v4132, %v4615
  %v4617 = vmul.f32 %v4133, %v4615
  %v4618 = vadd.f32 %v4609, %v4616
  %v4619 = vadd.f32 %v4610, %v4617
  %v4620 = vld [vmem:[%s3 + $0xf3] sm:$0x1]
  %v4621 = vlaneseq
  %v4622 = vshrl.u32 %v4621, 7
  %v4623 = vsub.s32 0, %v4622
  %v4624 = vrot.slane %v4620, %v4623
  %v4625 = vmul.f32 %v4097, %v4624
  %v4626 = vmul.f32 %v4098, %v4624
  %v4627 = vadd.f32 %v3985, %v4625
  %v4628 = vadd.f32 %v3986, %v4626
  %v4629 = vld [vmem:[%s3 + $0xf4] sm:$0x1]
  %v4630 = vlaneseq
  %v4631 = vshrl.u32 %v4630, 7
  %v4632 = vsub.s32 0, %v4631
  %v4633 = vrot.slane %v4629, %v4632
  %v4634 = vmul.f32 %v4077, %v4633
  %v4635 = vmul.f32 %v4074, %v4633
  %v4636 = vadd.f32 %v4627, %v4634
  %v4637 = vadd.f32 %v4628, %v4635
  %v4638 = vld [vmem:[%s3 + $0xf5] sm:$0x1]
  %v4639 = vlaneseq
  %v4640 = vshrl.u32 %v4639, 7
  %v4641 = vsub.s32 0, %v4640
  %v4642 = vrot.slane %v4638, %v4641
  %v4643 = vmul.f32 %v4099, %v4642
  %v4644 = vmul.f32 %v4100, %v4642
  %v4645 = vadd.f32 %v4636, %v4643
  %v4646 = vadd.f32 %v4637, %v4644
  %v4647 = vld [vmem:[%s3 + $0xf6] sm:$0x1]
  %v4648 = vlaneseq
  %v4649 = vshrl.u32 %v4648, 7
  %v4650 = vsub.s32 0, %v4649
  %v4651 = vrot.slane %v4647, %v4650
  %v4652 = vmul.f32 %v4113, %v4651
  %v4653 = vmul.f32 %v4114, %v4651
  %v4654 = vadd.f32 %v4645, %v4652
  %v4655 = vadd.f32 %v4646, %v4653
  %v4656 = vld [vmem:[%s3 + $0xf7] sm:$0x1]
  %v4657 = vlaneseq
  %v4658 = vshrl.u32 %v4657, 7
  %v4659 = vsub.s32 0, %v4658
  %v4660 = vrot.slane %v4656, %v4659
  %v4661 = vmul.f32 %v1652, %v4660
  %v4662 = vmul.f32 %v1653, %v4660
  %v4663 = vadd.f32 %v4654, %v4661
  %v4664 = vadd.f32 %v4655, %v4662
  %v4665 = vld [vmem:[%s3 + $0xf8] sm:$0x1]
  %v4666 = vlaneseq
  %v4667 = vshrl.u32 %v4666, 7
  %v4668 = vsub.s32 0, %v4667
  %v4669 = vrot.slane %v4665, %v4668
  %v4670 = vmul.f32 %v4115, %v4669
  %v4671 = vmul.f32 %v4116, %v4669
  %v4672 = vadd.f32 %v4663, %v4670
  %v4673 = vadd.f32 %v4664, %v4671
  %v4674 = vld [vmem:[%s3 + $0xf9] sm:$0x1]
  %v4675 = vlaneseq
  %v4676 = vshrl.u32 %v4675, 7
  %v4677 = vsub.s32 0, %v4676
  %v4678 = vrot.slane %v4674, %v4677
  %v4679 = vmul.f32 %v4130, %v4678
  %v4680 = vmul.f32 %v4131, %v4678
  %v4681 = vadd.f32 %v4672, %v4679
  %v4682 = vadd.f32 %v4673, %v4680
  %v4683 = vld [vmem:[%s3 + $0xfa] sm:$0x1]
  %v4684 = vlaneseq
  %v4685 = vshrl.u32 %v4684, 7
  %v4686 = vsub.s32 0, %v4685
  %v4687 = vrot.slane %v4683, %v4686
  %v4688 = vmul.f32 %v4079, %v4687
  %v4689 = vmul.f32 %v4083, %v4687
  %v4690 = vadd.f32 %v4681, %v4688
  %v4691 = vadd.f32 %v4682, %v4689
  %v4692 = vld [vmem:[%s3 + $0xfb] sm:$0x1]
  %v4693 = vlaneseq
  %v4694 = vshrl.u32 %v4693, 7
  %v4695 = vsub.s32 0, %v4694
  %v4696 = vrot.slane %v4692, %v4695
  %v4697 = vmul.f32 %v4132, %v4696
  %v4698 = vmul.f32 %v4133, %v4696
  %v4699 = vadd.f32 %v4690, %v4697
  %v4700 = vadd.f32 %v4691, %v4698
  %v4701 = vld [vmem:[%s3 + $0x117] sm:$0x1]
  %v4702 = vlaneseq
  %v4703 = vshrl.u32 %v4702, 7
  %v4704 = vsub.s32 0, %v4703
  %v4705 = vrot.slane %v4701, %v4704
  %v4706 = vmul.f32 %v4097, %v4705
  %v4707 = vmul.f32 %v4098, %v4705
  %v4708 = vadd.f32 %v4066, %v4706
  %v4709 = vadd.f32 %v4067, %v4707
  %v4710 = vld [vmem:[%s3 + $0x118] sm:$0x1]
  %v4711 = vlaneseq
  %v4712 = vshrl.u32 %v4711, 7
  %v4713 = vsub.s32 0, %v4712
  %v4714 = vrot.slane %v4710, %v4713
  %v4715 = vmul.f32 %v4077, %v4714
  %v4716 = vmul.f32 %v4074, %v4714
  %v4717 = vadd.f32 %v4708, %v4715
  %v4718 = vadd.f32 %v4709, %v4716
  %v4719 = vld [vmem:[%s3 + $0x119] sm:$0x1]
  %v4720 = vlaneseq
  %v4721 = vshrl.u32 %v4720, 7
  %v4722 = vsub.s32 0, %v4721
  %v4723 = vrot.slane %v4719, %v4722
  %v4724 = vmul.f32 %v4099, %v4723
  %v4725 = vmul.f32 %v4100, %v4723
  %v4726 = vadd.f32 %v4717, %v4724
  %v4727 = vadd.f32 %v4718, %v4725
  %v4728 = vld [vmem:[%s3 + $0x11a] sm:$0x1]
  %v4729 = vlaneseq
  %v4730 = vshrl.u32 %v4729, 7
  %v4731 = vsub.s32 0, %v4730
  %v4732 = vrot.slane %v4728, %v4731
  %v4733 = vmul.f32 %v4113, %v4732
  %v4734 = vmul.f32 %v4114, %v4732
  %v4735 = vadd.f32 %v4726, %v4733
  %v4736 = vadd.f32 %v4727, %v4734
  %v4737 = vld [vmem:[%s3 + $0x11b] sm:$0x1]
  %v4738 = vlaneseq
  %v4739 = vshrl.u32 %v4738, 7
  %v4740 = vsub.s32 0, %v4739
  %v4741 = vrot.slane %v4737, %v4740
  %v4742 = vmul.f32 %v1652, %v4741
  %v4743 = vmul.f32 %v1653, %v4741
  %v4744 = vadd.f32 %v4735, %v4742
  %v4745 = vadd.f32 %v4736, %v4743
  %v4746 = vld [vmem:[%s3 + $0x11c] sm:$0x1]
  %v4747 = vlaneseq
  %v4748 = vshrl.u32 %v4747, 7
  %v4749 = vsub.s32 0, %v4748
  %v4750 = vrot.slane %v4746, %v4749
  %v4751 = vmul.f32 %v4115, %v4750
  %v4752 = vmul.f32 %v4116, %v4750
  %v4753 = vadd.f32 %v4744, %v4751
  %v4754 = vadd.f32 %v4745, %v4752
  %v4755 = vld [vmem:[%s3 + $0x11d] sm:$0x1]
  %v4756 = vlaneseq
  %v4757 = vshrl.u32 %v4756, 7
  %v4758 = vsub.s32 0, %v4757
  %v4759 = vrot.slane %v4755, %v4758
  %v4760 = vmul.f32 %v4130, %v4759
  %v4761 = vmul.f32 %v4131, %v4759
  %v4762 = vadd.f32 %v4753, %v4760
  %v4763 = vadd.f32 %v4754, %v4761
  %v4764 = vld [vmem:[%s3 + $0x11e] sm:$0x1]
  %v4765 = vlaneseq
  %v4766 = vshrl.u32 %v4765, 7
  %v4767 = vsub.s32 0, %v4766
  %v4768 = vrot.slane %v4764, %v4767
  %v4769 = vmul.f32 %v4079, %v4768
  %v4770 = vmul.f32 %v4083, %v4768
  %v4771 = vadd.f32 %v4762, %v4769
  %v4772 = vadd.f32 %v4763, %v4770
  %v4773 = vld [vmem:[%s3 + $0x11f] sm:$0x1]
  %v4774 = vlaneseq
  %v4775 = vshrl.u32 %v4774, 7
  %v4776 = vsub.s32 0, %v4775
  %v4777 = vrot.slane %v4773, %v4776
  %v4778 = vmul.f32 %v4132, %v4777
  %v4779 = vmul.f32 %v4133, %v4777
  %v4780 = vadd.f32 %v4771, %v4778
  %v4781 = vadd.f32 %v4772, %v4779
  %v4782 = vld [vmem:[%s5] sm:$0xff]
  %v4783 = vld [vmem:[%s5 + $0x8] sm:$0xff]
  %v4784 = vld [vmem:[%s5 + $0x10] sm:$0xff]
  %v4785 = vld [vmem:[%s5 + $0x18] sm:$0xff]
  %v4786 = vld [vmem:[%s5 + $0x20] sm:$0xff]
  %v4787 = vld [vmem:[%s5 + $0x28] sm:$0xff]
  %v4788 = vld [vmem:[%s5 + $0x30] sm:$0xff]
  %v4789 = vld [vmem:[%s5 + $0x38] sm:$0xff]
  %4790 = vmatprep.subr.mxu0 0.0
  %4791 = vmatpush1.msra.mxu0 %v4213
  %4792 = vmatprep.subr.mxu0 0.0
  %4793 = vmatpush1.msra.mxu0 %v4214
  %4794 = vmatprep.subr.mxu0 0.0
  %4795 = vmatpush1.msra.mxu0 %v4294
  %4796 = vmatprep.subr.mxu0 0.0
  %4797 = vmatpush1.msra.mxu0 %v4295
  %4798 = vmatprep.subr.mxu0 0.0
  %4799 = vmatpush1.msra.mxu0 %v4375
  %4800 = vmatprep.subr.mxu0 0.0
  %4801 = vmatpush1.msra.mxu0 %v4376
  %4802 = vmatprep.subr.mxu0 0.0
  %4803 = vmatpush1.msra.mxu0 %v4456
  %4804 = vmatprep.subr.mxu0 0.0
  %4805 = vmatpush1.msra.mxu0 %v4457
  %4806 = vmatprep.subr.mxu0 0.0
  %4807 = vmatpush1.msra.mxu0 %v4537
  %4808 = vmatprep.subr.mxu0 0.0
  %4809 = vmatpush1.msra.mxu0 %v4538
  %4810 = vmatprep.subr.mxu0 0.0
  %4811 = vmatpush1.msra.mxu0 %v4618
  %4812 = vmatprep.subr.mxu0 0.0
  %4813 = vmatpush1.msra.mxu0 %v4619
  %4814 = vmatprep.subr.mxu0 0.0
  %4815 = vmatpush1.msra.mxu0 %v4699
  %4816 = vmatprep.subr.mxu0 0.0
  %4817 = vmatpush1.msra.mxu0 %v4700
  %4818 = vmatprep.subr.mxu0 0.0
  %4819 = vmatpush1.msra.mxu0 %v4780
  %4820 = vmatprep.subr.mxu0 0.0
  %4821 = vmatpush1.msra.mxu0 %v4781
  %4822 = vmatprep.subr.mxu0 0.0
  %4823 = vmatpush1.msra.mxu0 0.0
  %4824 = vmatprep.subr.mxu0 0.0
  %4825 = vmatpush1.msra.mxu0 0.0
  %4826 = vmatprep.subr.mxu0 0.0
  %4827 = vmatpush1.msra.mxu0 0.0
  %4828 = vmatprep.subr.mxu0 0.0
  %4829 = vmatpush1.msra.mxu0 0.0
  %4830 = vmatprep.subr.mxu0 0.0
  %4831 = vmatpush1.msra.mxu0 0.0
  %4832 = vmatprep.subr.mxu0 0.0
  %4833 = vmatpush1.msra.mxu0 0.0
  %4834 = vmatprep.subr.mxu0 0.0
  %4835 = vmatpush1.msra.mxu0 0.0
  %4836 = vmatprep.subr.mxu0 0.0
  %4837 = vmatpush1.msra.mxu0 0.0
  %4838 = vmatprep.subr.mxu0 0.0
  %4839 = vmatpush1.msra.mxu0 0.0
  %4840 = vmatprep.subr.mxu0 0.0
  %4841 = vmatpush1.msra.mxu0 0.0
  %4842 = vmatprep.subr.mxu0 0.0
  %4843 = vmatpush1.msra.mxu0 0.0
  %4844 = vmatprep.subr.mxu0 0.0
  %4845 = vmatpush1.msra.mxu0 0.0
  %4846 = vmatprep.subr.mxu0 0.0
  %4847 = vmatpush1.msra.mxu0 0.0
  %4848 = vmatprep.subr.mxu0 0.0
  %4849 = vmatpush1.msra.mxu0 0.0
  %4850 = vmatprep.subr.mxu0 0.0
  %4851 = vmatpush1.msra.mxu0 0.0
  %4852 = vmatprep.subr.mxu0 0.0
  %4853 = vmatpush1.msra.mxu0 0.0
  %4854 = vmatprep.mubr.f32.mxu0 0.0
  %4855 = vmatmul.mubr.f32.gmra.mrb[0].mxu0 %v4782
  %v4856 = vpop.f32.mrb[0].mxu0
  %v4857 = vadd.f32 0.0, %v4856
  %v4858 = vpop.f32.mrb[0].mxu0
  %4859 = vmatprep.mubr.f32.mxu0 0.0
  %4860 = vmatmul.mubr.f32.gmra.mrb[0].mxu0 %v4783
  %v4861 = vpop.f32.mrb[0].mxu0
  %v4862 = vadd.f32 0.0, %v4861
  %v4863 = vpop.f32.mrb[0].mxu0
  %4864 = vmatprep.mubr.f32.mxu0 0.0
  %4865 = vmatmul.mubr.f32.gmra.mrb[0].mxu0 %v4784
  %v4866 = vpop.f32.mrb[0].mxu0
  %v4867 = vadd.f32 0.0, %v4866
  %v4868 = vpop.f32.mrb[0].mxu0
  %4869 = vmatprep.mubr.f32.mxu0 0.0
  %4870 = vmatmul.mubr.f32.gmra.mrb[0].mxu0 %v4785
  %v4871 = vpop.f32.mrb[0].mxu0
  %v4872 = vadd.f32 0.0, %v4871
  %v4873 = vpop.f32.mrb[0].mxu0
  %4874 = vmatprep.mubr.f32.mxu0 0.0
  %4875 = vmatmul.mubr.f32.gmra.mrb[0].mxu0 %v4786
  %v4876 = vpop.f32.mrb[0].mxu0
  %v4877 = vadd.f32 0.0, %v4876
  %v4878 = vpop.f32.mrb[0].mxu0
  %4879 = vmatprep.mubr.f32.mxu0 0.0
  %4880 = vmatmul.mubr.f32.gmra.mrb[0].mxu0 %v4787
  %v4881 = vpop.f32.mrb[0].mxu0
  %v4882 = vadd.f32 0.0, %v4881
  %v4883 = vpop.f32.mrb[0].mxu0
  %4884 = vmatprep.mubr.f32.mxu0 0.0
  %4885 = vmatmul.mubr.f32.gmra.mrb[0].mxu0 %v4788
  %v4886 = vpop.f32.mrb[0].mxu0
  %v4887 = vadd.f32 0.0, %v4886
  %v4888 = vpop.f32.mrb[0].mxu0
  %4889 = vmatprep.mubr.f32.mxu0 0.0
  %4890 = vmatmul.mubr.f32.gmra.mrb[0].mxu0 %v4789
  %v4891 = vpop.f32.mrb[0].mxu0
  %v4892 = vadd.f32 0.0, %v4891
  %v4893 = vpop.f32.mrb[0].mxu0
  %4894 = vdwg.mxu0
  %v4895 = vld [vmem:[%s6] sm:$0xff]
  %v4896 = vld [vmem:[%s6 + $0x8] sm:$0xff]
  %v4897 = vld [vmem:[%s6 + $0x10] sm:$0xff]
  %v4898 = vld [vmem:[%s6 + $0x18] sm:$0xff]
  %v4899 = vld [vmem:[%s6 + $0x20] sm:$0xff]
  %v4900 = vld [vmem:[%s6 + $0x28] sm:$0xff]
  %v4901 = vld [vmem:[%s6 + $0x30] sm:$0xff]
  %v4902 = vld [vmem:[%s6 + $0x38] sm:$0xff]
  %v4903 = vld [vmem:[%s6 + $0x40] sm:$0xff]
  %v4904 = vld [vmem:[%s6 + $0x48] sm:$0xff]
  %v4905 = vld [vmem:[%s6 + $0x50] sm:$0xff]
  %v4906 = vld [vmem:[%s6 + $0x58] sm:$0xff]
  %v4907 = vld [vmem:[%s6 + $0x60] sm:$0xff]
  %v4908 = vld [vmem:[%s6 + $0x68] sm:$0xff]
  %v4909 = vld [vmem:[%s6 + $0x70] sm:$0xff]
  %v4910 = vld [vmem:[%s6 + $0x78] sm:$0xff]
  %v4911 = vld [vmem:[%s7] sm:$0xff]
  %v4912 = vld [vmem:[%s7 + $0x8] sm:$0xff]
  %v4913 = vld [vmem:[%s7 + $0x10] sm:$0xff]
  %v4914 = vld [vmem:[%s7 + $0x18] sm:$0xff]
  %v4915 = vld [vmem:[%s7 + $0x20] sm:$0xff]
  %v4916 = vld [vmem:[%s7 + $0x28] sm:$0xff]
  %v4917 = vld [vmem:[%s7 + $0x30] sm:$0xff]
  %v4918 = vld [vmem:[%s7 + $0x38] sm:$0xff]
  %4919 = vmatprep.subr.mxu0 0.0
  %4920 = vmatpush1.msra.mxu0 %v4895
  %4921 = vmatprep.subr.mxu0 0.0
  %4922 = vmatpush1.msra.mxu0 %v4896
  %4923 = vmatprep.subr.mxu0 0.0
  %4924 = vmatpush1.msra.mxu0 %v4897
  %4925 = vmatprep.subr.mxu0 0.0
  %4926 = vmatpush1.msra.mxu0 %v4898
  %4927 = vmatprep.subr.mxu0 0.0
  %4928 = vmatpush1.msra.mxu0 %v4899
  %4929 = vmatprep.subr.mxu0 0.0
  %4930 = vmatpush1.msra.mxu0 %v4900
  %4931 = vmatprep.subr.mxu0 0.0
  %4932 = vmatpush1.msra.mxu0 %v4901
  %4933 = vmatprep.subr.mxu0 0.0
  %4934 = vmatpush1.msra.mxu0 %v4902
  %4935 = vmatprep.subr.mxu0 0.0
  %4936 = vmatpush1.msra.mxu0 %v4903
  %4937 = vmatprep.subr.mxu0 0.0
  %4938 = vmatpush1.msra.mxu0 %v4904
  %4939 = vmatprep.subr.mxu0 0.0
  %4940 = vmatpush1.msra.mxu0 %v4905
  %4941 = vmatprep.subr.mxu0 0.0
  %4942 = vmatpush1.msra.mxu0 %v4906
  %4943 = vmatprep.subr.mxu0 0.0
  %4944 = vmatpush1.msra.mxu0 %v4907
  %4945 = vmatprep.subr.mxu0 0.0
  %4946 = vmatpush1.msra.mxu0 %v4908
  %4947 = vmatprep.subr.mxu0 0.0
  %4948 = vmatpush1.msra.mxu0 %v4909
  %4949 = vmatprep.subr.mxu0 0.0
  %4950 = vmatpush1.msra.mxu0 %v4910
  %4951 = vmatprep.subr.mxu0 0.0
  %4952 = vmatpush1.msra.mxu0 0.0
  %4953 = vmatprep.subr.mxu0 0.0
  %4954 = vmatpush1.msra.mxu0 0.0
  %4955 = vmatprep.subr.mxu0 0.0
  %4956 = vmatpush1.msra.mxu0 0.0
  %4957 = vmatprep.subr.mxu0 0.0
  %4958 = vmatpush1.msra.mxu0 0.0
  %4959 = vmatprep.subr.mxu0 0.0
  %4960 = vmatpush1.msra.mxu0 0.0
  %4961 = vmatprep.subr.mxu0 0.0
  %4962 = vmatpush1.msra.mxu0 0.0
  %4963 = vmatprep.subr.mxu0 0.0
  %4964 = vmatpush1.msra.mxu0 0.0
  %4965 = vmatprep.subr.mxu0 0.0
  %4966 = vmatpush1.msra.mxu0 0.0
  %4967 = vmatprep.subr.mxu0 0.0
  %4968 = vmatpush1.msra.mxu0 0.0
  %4969 = vmatprep.subr.mxu0 0.0
  %4970 = vmatpush1.msra.mxu0 0.0
  %4971 = vmatprep.subr.mxu0 0.0
  %4972 = vmatpush1.msra.mxu0 0.0
  %4973 = vmatprep.subr.mxu0 0.0
  %4974 = vmatpush1.msra.mxu0 0.0
  %4975 = vmatprep.subr.mxu0 0.0
  %4976 = vmatpush1.msra.mxu0 0.0
  %4977 = vmatprep.subr.mxu0 0.0
  %4978 = vmatpush1.msra.mxu0 0.0
  %4979 = vmatprep.subr.mxu0 0.0
  %4980 = vmatpush1.msra.mxu0 0.0
  %4981 = vmatprep.subr.mxu0 0.0
  %4982 = vmatpush1.msra.mxu0 0.0
  %4983 = vmatprep.mubr.f32.mxu0 0.0
  %4984 = vmatmul.mubr.f32.gmra.mrb[0].mxu0 %v4857
  %v4985 = vpop.f32.mrb[0].mxu0
  %v4986 = vadd.f32 %v4911, %v4985
  %v4987 = vpop.f32.mrb[0].mxu0
  %4988 = vmatprep.mubr.f32.mxu0 0.0
  %4989 = vmatmul.mubr.f32.gmra.mrb[0].mxu0 %v4862
  %v4990 = vpop.f32.mrb[0].mxu0
  %v4991 = vadd.f32 %v4912, %v4990
  %v4992 = vpop.f32.mrb[0].mxu0
  %4993 = vmatprep.mubr.f32.mxu0 0.0
  %4994 = vmatmul.mubr.f32.gmra.mrb[0].mxu0 %v4867
  %v4995 = vpop.f32.mrb[0].mxu0
  %v4996 = vadd.f32 %v4913, %v4995
  %v4997 = vpop.f32.mrb[0].mxu0
  %4998 = vmatprep.mubr.f32.mxu0 0.0
  %4999 = vmatmul.mubr.f32.gmra.mrb[0].mxu0 %v4872
  %v5000 = vpop.f32.mrb[0].mxu0
  %v5001 = vadd.f32 %v4914, %v5000
  %v5002 = vpop.f32.mrb[0].mxu0
  %5003 = vmatprep.mubr.f32.mxu0 0.0
  %5004 = vmatmul.mubr.f32.gmra.mrb[0].mxu0 %v4877
  %v5005 = vpop.f32.mrb[0].mxu0
  %v5006 = vadd.f32 %v4915, %v5005
  %v5007 = vpop.f32.mrb[0].mxu0
  %5008 = vmatprep.mubr.f32.mxu0 0.0
  %5009 = vmatmul.mubr.f32.gmra.mrb[0].mxu0 %v4882
  %v5010 = vpop.f32.mrb[0].mxu0
  %v5011 = vadd.f32 %v4916, %v5010
  %v5012 = vpop.f32.mrb[0].mxu0
  %5013 = vmatprep.mubr.f32.mxu0 0.0
  %5014 = vmatmul.mubr.f32.gmra.mrb[0].mxu0 %v4887
  %v5015 = vpop.f32.mrb[0].mxu0
  %v5016 = vadd.f32 %v4917, %v5015
  %v5017 = vpop.f32.mrb[0].mxu0
  %5018 = vmatprep.mubr.f32.mxu0 0.0
  %5019 = vmatmul.mubr.f32.gmra.mrb[0].mxu0 %v4892
  %v5020 = vpop.f32.mrb[0].mxu0
  %v5021 = vadd.f32 %v4918, %v5020
  %v5022 = vpop.f32.mrb[0].mxu0
  %5023 = vdwg.mxu0
  %5028 = vrot.lane.b32.xlu0 %v5006, 64
  %v5029 = vpop.permute.xlu0 %5028
  %5030 = vrot.lane.b32.xlu0 %v5011, 64
  %v5031 = vpop.permute.xlu0 %5030
  %5032 = vrot.lane.b32.xlu0 %v5016, 64
  %v5033 = vpop.permute.xlu0 %5032
  %5034 = vrot.lane.b32.xlu0 %v5021, 64
  %v5035 = vpop.permute.xlu0 %5034
  %vm5040 = vcmask 523264
  %v5041 = vsel %vm5040, %v4986, %v5029
  %v5042 = vsel %vm5040, %v4991, %v5031
  %v5043 = vsel %vm5040, %v4996, %v5033
  %v5044 = vsel %vm5040, %v5001, %v5035
  %5045 = vst [vmem:[%s8] sm:$0xff] %v5041
  %5046 = vst [vmem:[%s8 + $0x8] sm:$0xff] %v5042
  %5047 = vst [vmem:[%s8 + $0x10] sm:$0xff] %v5043
  %5048 = vst [vmem:[%s8 + $0x18] sm:$0xff] %v5044
  // Predicated region
  $region34: #{basic_block_forward.1} parent=0 // pred_check
    _
  $region35: #{basic_block_forward.1} parent=0 // pred_check_branch
    %5050 = sbr.rel (0) target = $region37
  $region36: #{basic_block_forward.1} parent=0 // pred_region
    _
  $region37: #{basic_block_forward.1} parent=0 // pred_fallthru
    _
  // Predicated region
  $region38: #{basic_block_forward.1} parent=0 // pred_check
    _
  $region39: #{basic_block_forward.1} parent=0 // pred_check_branch
    %5052 = sbr.rel (0) target = $region41
  $region40: #{basic_block_forward.1} parent=0 // pred_region
    _
  $region41: #{basic_block_forward.1} parent=0 // pred_fallthru
    _

</llo_original>
